<compile_context>
chip_gen: v5e
topology: v5e:2x2
jax: 0.10.0
libtpu: 0.0.40
codegen_flags: <defaults>
</compile_context>

<pallas_src>
import functools

import numpy as np
import jax
import jax.numpy as jnp
from jax.experimental import pallas as pl
from jax.experimental.pallas import tpu as pltpu

NUM_JOINTS = 16     # MPII
STEM_OUT = 576      # deephar feature width after the stem
MAX_TM = 256        # max row tile for matmul-style kernels


def _round_up(x, m):
    return ((x + m - 1) // m) * m


def _row_tile(m):
    # multiple of 8 (sublane), capped at 256 (v6e/v7x MXU row width)
    return min(MAX_TM, _round_up(m, 8))


# --------------------------------------------------------------------------
# Pallas kernels
# --------------------------------------------------------------------------
def _mm_bias_kernel(a_ref, w_ref, b_ref, o_ref, *, relu):
    """out = relu?( A @ W + bias ).  BN scale is pre-folded into W (bf16)."""
    acc = jnp.dot(a_ref[...].astype(jnp.bfloat16), w_ref[...],
                  preferred_element_type=jnp.float32)
    acc = acc + b_ref[...]
    if relu:
        acc = jnp.maximum(acc, 0.0)
    o_ref[...] = acc


def matmul_bias(a, w, bias, relu):
    """a: (M, K) f32, w: (K, N) bf16 (scale folded), bias: (N,) f32 -> (M, N) f32."""
    M, K = a.shape
    Kw, N = w.shape
    assert K == Kw
    tm = _row_tile(M)
    Mp = _round_up(M, tm)
    a_p = jnp.pad(a, ((0, Mp - M), (0, 0))) if Mp != M else a
    out = pl.pallas_call(
        functools.partial(_mm_bias_kernel, relu=relu),
        out_shape=jax.ShapeDtypeStruct((Mp, N), jnp.float32),
        grid=(Mp // tm,),
        in_specs=[
            pl.BlockSpec((tm, K), lambda i: (i, 0)),
            pl.BlockSpec((K, N), lambda i: (0, 0)),
            pl.BlockSpec((1, N), lambda i: (0, 0)),
        ],
        out_specs=pl.BlockSpec((tm, N), lambda i: (i, 0)),
        compiler_params=pltpu.CompilerParams(dimension_semantics=("parallel",)),
    )(a_p, w, bias.reshape(1, N))
    return out[:M] if Mp != M else out


def _sepconv_kernel(p_ref, dww_ref, pww_ref, b_ref, o_ref, *, relu):
    """Fused separable conv: depthwise 3x3 tap-sum (VPU, f32) feeding the
    pointwise 1x1 matmul (MXU, bf16) + bias (+ReLU) epilogue, all in VMEM.

    p_ref: (9, TM, C) taps-major patches -> each tap is a lane/sublane-dense
    (TM, C) tile; 9 unrolled multiply-adds, no (TM, 9, C) sublane padding."""
    w = dww_ref[...]                              # (9, C) f32
    acc = p_ref[0] * w[0:1, :]
    for k in range(1, 9):
        acc = acc + p_ref[k] * w[k:k + 1, :]      # (TM, C) f32
    out = jnp.dot(acc.astype(jnp.bfloat16), pww_ref[...],
                  preferred_element_type=jnp.float32)
    out = out + b_ref[...]
    if relu:
        out = jnp.maximum(out, 0.0)
    o_ref[...] = out


def _heat_pose_kernel(h_ref, w_ref, b_ref, xg_ref, yg_ref, heat_ref, pose_ref):
    """Fused heatmap 1x1 conv + spatial soft-argmax for one batch element.
    Heatmap tile (HW, J) never leaves VMEM before the softmax/expectation."""
    h = h_ref[0].astype(jnp.bfloat16)                               # (HW, C)
    heat = jnp.dot(h, w_ref[...], preferred_element_type=jnp.float32)
    heat = heat + b_ref[...]                                        # (HW, J)
    heat_ref[0] = heat

    m = jnp.max(heat, axis=0, keepdims=True)                        # (1, J)
    e = jnp.exp(heat - m)                                           # (HW, J)
    inv = pl.reciprocal(jnp.sum(e, axis=0, keepdims=True), approx=True)
    px = jnp.sum(e * xg_ref[...], axis=0, keepdims=True) * inv      # (1, J)
    py = jnp.sum(e * yg_ref[...], axis=0, keepdims=True) * inv      # (1, J)
    pose_ref[0] = jnp.concatenate([px, py], axis=0)                 # (2, J)


# --------------------------------------------------------------------------
# Wrappers
# --------------------------------------------------------------------------
def _im2col(x, kh, kw, stride, pad, taps_first=False):
    B, H, W, C = x.shape
    sh, sw = stride
    ph, pw = pad
    xp = jnp.pad(x, ((0, 0), (ph, ph), (pw, pw), (0, 0)))
    Ho = (H + 2 * ph - kh) // sh + 1
    Wo = (W + 2 * pw - kw) // sw + 1
    cols = []
    for i in range(kh):
        for j in range(kw):
            cols.append(xp[:, i:i + (Ho - 1) * sh + 1:sh,
                           j:j + (Wo - 1) * sw + 1:sw, :])
    if taps_first:
        patches = jnp.stack(cols, axis=0)      # (kh*kw, B, Ho, Wo, C)
    else:
        patches = jnp.stack(cols, axis=3)      # (B, Ho, Wo, kh*kw, C)
    return patches, Ho, Wo


def conv_bn_act(x, p, stride=(1, 1), pad=(0, 0), relu=True):
    """Conv2d + folded BatchNorm (+ ReLU) via the Pallas matmul kernel."""
    kh, kw, cin, cout = p["w"].shape
    B = x.shape[0]
    patches, Ho, Wo = _im2col(x, kh, kw, stride, pad)
    a = patches.reshape(B * Ho * Wo, kh * kw * cin)
    w2 = p["w"].reshape(kh * kw * cin, cout)
    out = matmul_bias(a, w2, p["bias"], relu)
    return out.reshape(B, Ho, Wo, cout)


def sepconv_bn_act(x, p, relu=True):
    """Fused depthwise-3x3 + pointwise-1x1 + BN/ReLU in a single Pallas call."""
    B, H, W, C = x.shape
    cout = p["pw_w"].shape[1]
    patches, Ho, Wo = _im2col(x, 3, 3, (1, 1), (1, 1), taps_first=True)
    M = B * Ho * Wo
    pf = patches.reshape(9, M, C)
    tm = _row_tile(M)
    Mp = _round_up(M, tm)
    if Mp != M:
        pf = jnp.pad(pf, ((0, 0), (0, Mp - M), (0, 0)))
    out = pl.pallas_call(
        functools.partial(_sepconv_kernel, relu=relu),
        out_shape=jax.ShapeDtypeStruct((Mp, cout), jnp.float32),
        grid=(Mp // tm,),
        in_specs=[
            pl.BlockSpec((9, tm, C), lambda i: (0, i, 0)),
            pl.BlockSpec((9, C), lambda i: (0, 0)),
            pl.BlockSpec((C, cout), lambda i: (0, 0)),
            pl.BlockSpec((1, cout), lambda i: (0, 0)),
        ],
        out_specs=pl.BlockSpec((tm, cout), lambda i: (i, 0)),
        compiler_params=pltpu.CompilerParams(dimension_semantics=("parallel",)),
    )(pf, p["dw_w"], p["pw_w"], p["bias"].reshape(1, cout))
    out = out[:M] if Mp != M else out
    return out.reshape(B, Ho, Wo, cout)


def heatmap_softargmax(h, p):
    """Fused 1x1 heatmap conv + spatial softmax + coordinate expectation.
    h: (B, Hh, Wh, C) -> heatmaps (B, J, Hh, Wh), pose (B, J, 2) in [0, 1]."""
    B, Hh, Wh, C = h.shape
    J = p["w"].shape[-1]
    HW = Hh * Wh
    h2 = h.reshape(B, HW, C)
    w2 = p["w"].reshape(C, J)
    xg = jnp.tile(jnp.linspace(0.0, 1.0, Wh, dtype=jnp.float32), Hh).reshape(HW, 1)
    yg = jnp.repeat(jnp.linspace(0.0, 1.0, Hh, dtype=jnp.float32), Wh).reshape(HW, 1)
    heat, pose = pl.pallas_call(
        _heat_pose_kernel,
        out_shape=(jax.ShapeDtypeStruct((B, HW, J), jnp.float32),
                   jax.ShapeDtypeStruct((B, 2, J), jnp.float32)),
        grid=(B,),
        in_specs=[
            pl.BlockSpec((1, HW, C), lambda b: (b, 0, 0)),
            pl.BlockSpec((C, J), lambda b: (0, 0)),
            pl.BlockSpec((1, J), lambda b: (0, 0)),
            pl.BlockSpec((HW, 1), lambda b: (0, 0)),
            pl.BlockSpec((HW, 1), lambda b: (0, 0)),
        ],
        out_specs=(pl.BlockSpec((1, HW, J), lambda b: (b, 0, 0)),
                   pl.BlockSpec((1, 2, J), lambda b: (b, 0, 0))),
        compiler_params=pltpu.CompilerParams(dimension_semantics=("parallel",)),
    )(h2, w2, p["bias"].reshape(1, J), xg, yg)
    heatmaps = jnp.transpose(heat.reshape(B, Hh, Wh, J), (0, 3, 1, 2))  # NCHW
    pose_out = jnp.transpose(pose, (0, 2, 1))                            # (B, J, 2)
    return heatmaps, pose_out


def maxpool(x, k, s, pad):
    return jax.lax.reduce_window(
        x, -jnp.inf, jax.lax.max,
        (1, k, k, 1), (1, s, s, 1),
        ((0, 0), (pad, pad), (pad, pad), (0, 0)))


def upsample2x(x):
    return jnp.repeat(jnp.repeat(x, 2, axis=1), 2, axis=2)


# --------------------------------------------------------------------------
# Parameters (deterministic synthetic weights; BN scale folded, weights bf16)
# --------------------------------------------------------------------------
def _conv_params(key, kh, kw, cin, cout):
    k1, k2, k3 = jax.random.split(key, 3)
    fan_in = kh * kw * cin
    w = jax.random.normal(k1, (kh, kw, cin, cout), jnp.float32) / np.sqrt(fan_in)
    scale = 1.0 + 0.1 * jax.random.normal(k2, (cout,), jnp.float32)
    bias = 0.1 * jax.random.normal(k3, (cout,), jnp.float32)
    # Fold BN scale into the weight (A @ (W*diag(s)) + b); bf16 MXU operands.
    return dict(w=(w * scale[None, None, None, :]).astype(jnp.bfloat16),
                bias=bias)


def _sepconv_params(key, cin, cout):
    k1, k2, k3, k4 = jax.random.split(key, 4)
    dw_w = jax.random.normal(k1, (9, cin), jnp.float32) / 3.0
    pw_w = jax.random.normal(k2, (cin, cout), jnp.float32) / np.sqrt(cin)
    scale = 1.0 + 0.1 * jax.random.normal(k3, (cout,), jnp.float32)
    bias = 0.1 * jax.random.normal(k4, (cout,), jnp.float32)
    return dict(dw_w=dw_w,                                   # f32 for the VPU tap-sum
                pw_w=(pw_w * scale[None, :]).astype(jnp.bfloat16),
                bias=bias)


def init_params(key):
    keys = jax.random.split(key, 14)
    p = {}
    # ---- Stem (Inception-v4 style entry flow, 1/8 resolution, 576 ch) ----
    p["s_c1"] = _conv_params(keys[0], 3, 3, 3, 32)
    p["s_c2"] = _conv_params(keys[1], 3, 3, 32, 32)
    p["s_c3"] = _conv_params(keys[2], 3, 3, 32, 64)
    p["s_c4"] = _conv_params(keys[3], 3, 3, 64, 96)
    # s_a1 (64) and s_b1 (64) share the same 160-ch input -> fused into one
    # lane-dense 128-wide 1x1 conv, split after the kernel.
    p["s_ab1"] = _conv_params(keys[4], 1, 1, 160, 128)
    p["s_a2"] = _conv_params(keys[5], 3, 3, 64, 96)
    p["s_b2"] = _conv_params(keys[6], 5, 1, 64, 64)
    p["s_b3"] = _conv_params(keys[7], 1, 5, 64, 64)
    p["s_b4"] = _conv_params(keys[8], 3, 3, 64, 96)
    p["s_c6"] = _conv_params(keys[9], 3, 3, 192, 192)
    p["s_c7"] = _conv_params(keys[10], 1, 1, 384, STEM_OUT)
    # ---- ReceptionBlock (num_context=0) ----
    p["r_low"] = _sepconv_params(keys[11], STEM_OUT, STEM_OUT)
    p["r_out"] = _sepconv_params(keys[12], STEM_OUT, STEM_OUT)
    p["r_hm"] = _conv_params(keys[13], 1, 1, STEM_OUT, NUM_JOINTS)
    return p


# --------------------------------------------------------------------------
# Mpii_1 forward
# --------------------------------------------------------------------------
def mpii_1_forward(params, x_nchw):
    # NCHW (PyTorch) -> NHWC (TPU)
    x = jnp.transpose(x_nchw, (0, 2, 3, 1)).astype(jnp.float32)

    # ---------------- Stem ----------------
    x = conv_bn_act(x, params["s_c1"], (2, 2), (1, 1), True)       # /2, 32
    x = conv_bn_act(x, params["s_c2"], (1, 1), (1, 1), True)       # 32
    x = conv_bn_act(x, params["s_c3"], (1, 1), (1, 1), True)       # 64
    a = conv_bn_act(x, params["s_c4"], (2, 2), (1, 1), True)       # /4, 96
    b = maxpool(x, 3, 2, 1)                                        # /4, 64
    x = jnp.concatenate([a, b], axis=-1)                           # 160
    ab = conv_bn_act(x, params["s_ab1"], (1, 1), (0, 0), True)     # 128 (fused a1|b1)
    a, b = ab[..., :64], ab[..., 64:]
    a = conv_bn_act(a, params["s_a2"], (1, 1), (1, 1), False)      # 96
    b = conv_bn_act(b, params["s_b2"], (1, 1), (2, 0), True)       # 5x1, 64
    b = conv_bn_act(b, params["s_b3"], (1, 1), (0, 2), True)       # 1x5, 64
    b = conv_bn_act(b, params["s_b4"], (1, 1), (1, 1), False)      # 96
    x = jax.nn.relu(jnp.concatenate([a, b], axis=-1))              # 192
    a = conv_bn_act(x, params["s_c6"], (2, 2), (1, 1), True)       # /8, 192
    b = maxpool(x, 3, 2, 1)                                        # /8, 192
    x = jnp.concatenate([a, b], axis=-1)                           # 384
    x = conv_bn_act(x, params["s_c7"], (1, 1), (0, 0), True)       # 576

    # ----------- ReceptionBlock (num_context=0) -----------
    low = maxpool(x, 2, 2, 0)
    low = sepconv_bn_act(low, params["r_low"], relu=True)
    up = upsample2x(low)
    h = jax.nn.relu(x + up)                                        # skip connection
    h = sepconv_bn_act(h, params["r_out"], relu=True)
    heatmaps, pose = heatmap_softargmax(h, params["r_hm"])
    # (the PyTorch ReceptionBlock's 3rd output is discarded by Mpii_1)
    return heatmaps, pose


# --------------------------------------------------------------------------
if __name__ == "__main__":
    key = jax.random.PRNGKey(0)
    pkey, xkey = jax.random.split(key)
    params = init_params(pkey)

    # Small MPII-style input: batch=2, RGB, 32x32 crop (NCHW).
    x = jax.random.normal(xkey, (2, 3, 32, 32), jnp.float32)

    fwd = jax.jit(mpii_1_forward)
    heatmaps, pose = fwd(params, x)
    jax.block_until_ready((heatmaps, pose))

    assert heatmaps.shape == (2, NUM_JOINTS, 4, 4), heatmaps.shape
    assert pose.shape == (2, NUM_JOINTS, 2), pose.shape
    assert bool(jnp.all(jnp.isfinite(heatmaps))) and bool(jnp.all(jnp.isfinite(pose)))
    print("KERNEL_OK")
</pallas_src>

<mosaic_0001>
module attributes {stable_mosaic.version = 11 : i64} {
  func.func @_mm_bias_kernel(%arg0: i32, %arg1: memref<256x27xf32, #tpu.memory_space<vmem>>, %arg2: memref<27x32xbf16, #tpu.memory_space<vmem>>, %arg3: memref<1x32xf32, #tpu.memory_space<vmem>>, %arg4: memref<256x32xf32, #tpu.memory_space<vmem>>) attributes {dimension_semantics = [#tpu.dimension_semantics<parallel>], iteration_bounds = array<i64: 2>, scalar_prefetch = 0 : i64, scratch_operands = 0 : i64, tpu.core_type = #tpu.core_type<tc>, window_params = [{transform_indices = @transform_0, window_bounds = array<i64: 256, 27>}, {pipeline_mode = #tpu.pipeline_mode<synchronous>, transform_indices = @transform_1, window_bounds = array<i64: 27, 32>}, {pipeline_mode = #tpu.pipeline_mode<synchronous>, transform_indices = @transform_2, window_bounds = array<i64: 1, 32>}, {transform_indices = @transform_3, window_bounds = array<i64: 256, 32>}]} {
    %c0 = arith.constant 0 : index
    %c0_0 = arith.constant 0 : index
    %0 = vector.load %arg1[%c0, %c0_0] : memref<256x27xf32, #tpu.memory_space<vmem>>, vector<256x27xf32>
    %1 = arith.truncf %0 : vector<256x27xf32> to vector<256x27xbf16>
    %c0_1 = arith.constant 0 : index
    %c0_2 = arith.constant 0 : index
    %2 = vector.load %arg2[%c0_1, %c0_2] : memref<27x32xbf16, #tpu.memory_space<vmem>>, vector<27x32xbf16>
    %cst = arith.constant dense<0.000000e+00> : vector<256x32xf32>
    %3 = tpu.matmul %1, %2, %cst {dimension_numbers = #tpu.dot_dimension_numbers<[1], [0], [0], [1], [0, 0, 1, 1], [], []>} : vector<256x27xbf16>, vector<27x32xbf16>, vector<256x32xf32> -> vector<256x32xf32>
    %c0_3 = arith.constant 0 : index
    %c0_4 = arith.constant 0 : index
    %4 = vector.load %arg3[%c0_3, %c0_4] : memref<1x32xf32, #tpu.memory_space<vmem>>, vector<1x32xf32>
    %5 = vector.broadcast %4 : vector<1x32xf32> to vector<256x32xf32>
    %6 = arith.addf %3, %5 : vector<256x32xf32>
    %cst_5 = arith.constant 0.000000e+00 : f32
    %7 = vector.broadcast %cst_5 : f32 to vector<256x32xf32>
    %8 = arith.maximumf %6, %7 : vector<256x32xf32>
    %c0_6 = arith.constant 0 : index
    %c0_7 = arith.constant 0 : index
    %9 = vector.load %arg4[%c0_6, %c0_7] : memref<256x32xf32, #tpu.memory_space<vmem>>, vector<256x32xf32>
    tpu.vector_store %arg4[%c0_6, %c0_7], %8 {strides = array<i32>} : memref<256x32xf32, #tpu.memory_space<vmem>>, vector<256x32xf32>,
    return
  }
  func.func @transform_0(%arg0: i32) -> (i32, i32) {
    %c0_i32 = arith.constant 0 : i32
    %c0_i32_0 = arith.constant 0 : i32
    return %arg0, %c0_i32 : i32, i32
  }
  func.func @transform_1(%arg0: i32) -> (i32, i32) {
    %c0_i32 = arith.constant 0 : i32
    %c0_i32_0 = arith.constant 0 : i32
    %c0_i32_1 = arith.constant 0 : i32
    return %c0_i32, %c0_i32_0 : i32, i32
  }
  func.func @transform_2(%arg0: i32) -> (i32, i32) {
    %c0_i32 = arith.constant 0 : i32
    %c0_i32_0 = arith.constant 0 : i32
    %c0_i32_1 = arith.constant 0 : i32
    return %c0_i32, %c0_i32_0 : i32, i32
  }
  func.func @transform_3(%arg0: i32) -> (i32, i32) {
    %c0_i32 = arith.constant 0 : i32
    %c0_i32_0 = arith.constant 0 : i32
    return %arg0, %c0_i32 : i32, i32
  }
}

module attributes {stable_mosaic.version = 11 : i64} {
  func.func @_mm_bias_kernel(%arg0: i32, %arg1: memref<256x288xf32, #tpu.memory_space<vmem>>, %arg2: memref<288x32xbf16, #tpu.memory_space<vmem>>, %arg3: memref<1x32xf32, #tpu.memory_space<vmem>>, %arg4: memref<256x32xf32, #tpu.memory_space<vmem>>) attributes {dimension_semantics = [#tpu.dimension_semantics<parallel>], iteration_bounds = array<i64: 2>, scalar_prefetch = 0 : i64, scratch_operands = 0 : i64, tpu.core_type = #tpu.core_type<tc>, window_params = [{transform_indices = @transform_0, window_bounds = array<i64: 256, 288>}, {pipeline_mode = #tpu.pipeline_mode<synchronous>, transform_indices = @transform_1, window_bounds = array<i64: 288, 32>}, {pipeline_mode = #tpu.pipeline_mode<synchronous>, transform_indices = @transform_2, window_bounds = array<i64: 1, 32>}, {transform_indices = @transform_3, window_bounds = array<i64: 256, 32>}]} {
    %c0 = arith.constant 0 : index
    %c0_0 = arith.constant 0 : index
    %0 = vector.load %arg1[%c0, %c0_0] : memref<256x288xf32, #tpu.memory_space<vmem>>, vector<256x288xf32>
    %1 = arith.truncf %0 : vector<256x288xf32> to vector<256x288xbf16>
    %c0_1 = arith.constant 0 : index
    %c0_2 = arith.constant 0 : index
    %2 = vector.load %arg2[%c0_1, %c0_2] : memref<288x32xbf16, #tpu.memory_space<vmem>>, vector<288x32xbf16>
    %cst = arith.constant dense<0.000000e+00> : vector<256x32xf32>
    %3 = tpu.matmul %1, %2, %cst {dimension_numbers = #tpu.dot_dimension_numbers<[1], [0], [0], [1], [0, 0, 1, 1], [], []>} : vector<256x288xbf16>, vector<288x32xbf16>, vector<256x32xf32> -> vector<256x32xf32>
    %c0_3 = arith.constant 0 : index
    %c0_4 = arith.constant 0 : index
    %4 = vector.load %arg3[%c0_3, %c0_4] : memref<1x32xf32, #tpu.memory_space<vmem>>, vector<1x32xf32>
    %5 = vector.broadcast %4 : vector<1x32xf32> to vector<256x32xf32>
    %6 = arith.addf %3, %5 : vector<256x32xf32>
    %cst_5 = arith.constant 0.000000e+00 : f32
    %7 = vector.broadcast %cst_5 : f32 to vector<256x32xf32>
    %8 = arith.maximumf %6, %7 : vector<256x32xf32>
    %c0_6 = arith.constant 0 : index
    %c0_7 = arith.constant 0 : index
    %9 = vector.load %arg4[%c0_6, %c0_7] : memref<256x32xf32, #tpu.memory_space<vmem>>, vector<256x32xf32>
    tpu.vector_store %arg4[%c0_6, %c0_7], %8 {strides = array<i32>} : memref<256x32xf32, #tpu.memory_space<vmem>>, vector<256x32xf32>,
    return
  }
  func.func @transform_0(%arg0: i32) -> (i32, i32) {
    %c0_i32 = arith.constant 0 : i32
    %c0_i32_0 = arith.constant 0 : i32
    return %arg0, %c0_i32 : i32, i32
  }
  func.func @transform_1(%arg0: i32) -> (i32, i32) {
    %c0_i32 = arith.constant 0 : i32
    %c0_i32_0 = arith.constant 0 : i32
    %c0_i32_1 = arith.constant 0 : i32
    return %c0_i32, %c0_i32_0 : i32, i32
  }
  func.func @transform_2(%arg0: i32) -> (i32, i32) {
    %c0_i32 = arith.constant 0 : i32
    %c0_i32_0 = arith.constant 0 : i32
    %c0_i32_1 = arith.constant 0 : i32
    return %c0_i32, %c0_i32_0 : i32, i32
  }
  func.func @transform_3(%arg0: i32) -> (i32, i32) {
    %c0_i32 = arith.constant 0 : i32
    %c0_i32_0 = arith.constant 0 : i32
    return %arg0, %c0_i32 : i32, i32
  }
}

module attributes {stable_mosaic.version = 11 : i64} {
  func.func @_mm_bias_kernel(%arg0: i32, %arg1: memref<256x288xf32, #tpu.memory_space<vmem>>, %arg2: memref<288x64xbf16, #tpu.memory_space<vmem>>, %arg3: memref<1x64xf32, #tpu.memory_space<vmem>>, %arg4: memref<256x64xf32, #tpu.memory_space<vmem>>) attributes {dimension_semantics = [#tpu.dimension_semantics<parallel>], iteration_bounds = array<i64: 2>, scalar_prefetch = 0 : i64, scratch_operands = 0 : i64, tpu.core_type = #tpu.core_type<tc>, window_params = [{transform_indices = @transform_0, window_bounds = array<i64: 256, 288>}, {pipeline_mode = #tpu.pipeline_mode<synchronous>, transform_indices = @transform_1, window_bounds = array<i64: 288, 64>}, {pipeline_mode = #tpu.pipeline_mode<synchronous>, transform_indices = @transform_2, window_bounds = array<i64: 1, 64>}, {transform_indices = @transform_3, window_bounds = array<i64: 256, 64>}]} {
    %c0 = arith.constant 0 : index
    %c0_0 = arith.constant 0 : index
    %0 = vector.load %arg1[%c0, %c0_0] : memref<256x288xf32, #tpu.memory_space<vmem>>, vector<256x288xf32>
    %1 = arith.truncf %0 : vector<256x288xf32> to vector<256x288xbf16>
    %c0_1 = arith.constant 0 : index
    %c0_2 = arith.constant 0 : index
    %2 = vector.load %arg2[%c0_1, %c0_2] : memref<288x64xbf16, #tpu.memory_space<vmem>>, vector<288x64xbf16>
    %cst = arith.constant dense<0.000000e+00> : vector<256x64xf32>
    %3 = tpu.matmul %1, %2, %cst {dimension_numbers = #tpu.dot_dimension_numbers<[1], [0], [0], [1], [0, 0, 1, 1], [], []>} : vector<256x288xbf16>, vector<288x64xbf16>, vector<256x64xf32> -> vector<256x64xf32>
    %c0_3 = arith.constant 0 : index
    %c0_4 = arith.constant 0 : index
    %4 = vector.load %arg3[%c0_3, %c0_4] : memref<1x64xf32, #tpu.memory_space<vmem>>, vector<1x64xf32>
    %5 = vector.broadcast %4 : vector<1x64xf32> to vector<256x64xf32>
    %6 = arith.addf %3, %5 : vector<256x64xf32>
    %cst_5 = arith.constant 0.000000e+00 : f32
    %7 = vector.broadcast %cst_5 : f32 to vector<256x64xf32>
    %8 = arith.maximumf %6, %7 : vector<256x64xf32>
    %c0_6 = arith.constant 0 : index
    %c0_7 = arith.constant 0 : index
    %9 = vector.load %arg4[%c0_6, %c0_7] : memref<256x64xf32, #tpu.memory_space<vmem>>, vector<256x64xf32>
    tpu.vector_store %arg4[%c0_6, %c0_7], %8 {strides = array<i32>} : memref<256x64xf32, #tpu.memory_space<vmem>>, vector<256x64xf32>,
    return
  }
  func.func @transform_0(%arg0: i32) -> (i32, i32) {
    %c0_i32 = arith.constant 0 : i32
    %c0_i32_0 = arith.constant 0 : i32
    return %arg0, %c0_i32 : i32, i32
  }
  func.func @transform_1(%arg0: i32) -> (i32, i32) {
    %c0_i32 = arith.constant 0 : i32
    %c0_i32_0 = arith.constant 0 : i32
    %c0_i32_1 = arith.constant 0 : i32
    return %c0_i32, %c0_i32_0 : i32, i32
  }
  func.func @transform_2(%arg0: i32) -> (i32, i32) {
    %c0_i32 = arith.constant 0 : i32
    %c0_i32_0 = arith.constant 0 : i32
    %c0_i32_1 = arith.constant 0 : i32
    return %c0_i32, %c0_i32_0 : i32, i32
  }
  func.func @transform_3(%arg0: i32) -> (i32, i32) {
    %c0_i32 = arith.constant 0 : i32
    %c0_i32_0 = arith.constant 0 : i32
    return %arg0, %c0_i32 : i32, i32
  }
}

module attributes {stable_mosaic.version = 11 : i64} {
  func.func @_mm_bias_kernel(%arg0: i32, %arg1: memref<128x576xf32, #tpu.memory_space<vmem>>, %arg2: memref<576x96xbf16, #tpu.memory_space<vmem>>, %arg3: memref<1x96xf32, #tpu.memory_space<vmem>>, %arg4: memref<128x96xf32, #tpu.memory_space<vmem>>) attributes {dimension_semantics = [#tpu.dimension_semantics<parallel>], iteration_bounds = array<i64: 1>, scalar_prefetch = 0 : i64, scratch_operands = 0 : i64, tpu.core_type = #tpu.core_type<tc>, window_params = [{transform_indices = @transform_0, window_bounds = array<i64: 128, 576>}, {pipeline_mode = #tpu.pipeline_mode<synchronous>, transform_indices = @transform_1, window_bounds = array<i64: 576, 96>}, {pipeline_mode = #tpu.pipeline_mode<synchronous>, transform_indices = @transform_2, window_bounds = array<i64: 1, 96>}, {transform_indices = @transform_3, window_bounds = array<i64: 128, 96>}]} {
    %c0 = arith.constant 0 : index
    %c0_0 = arith.constant 0 : index
    %0 = vector.load %arg1[%c0, %c0_0] : memref<128x576xf32, #tpu.memory_space<vmem>>, vector<128x576xf32>
    %1 = arith.truncf %0 : vector<128x576xf32> to vector<128x576xbf16>
    %c0_1 = arith.constant 0 : index
    %c0_2 = arith.constant 0 : index
    %2 = vector.load %arg2[%c0_1, %c0_2] : memref<576x96xbf16, #tpu.memory_space<vmem>>, vector<576x96xbf16>
    %cst = arith.constant dense<0.000000e+00> : vector<128x96xf32>
    %3 = tpu.matmul %1, %2, %cst {dimension_numbers = #tpu.dot_dimension_numbers<[1], [0], [0], [1], [0, 0, 1, 1], [], []>} : vector<128x576xbf16>, vector<576x96xbf16>, vector<128x96xf32> -> vector<128x96xf32>
    %c0_3 = arith.constant 0 : index
    %c0_4 = arith.constant 0 : index
    %4 = vector.load %arg3[%c0_3, %c0_4] : memref<1x96xf32, #tpu.memory_space<vmem>>, vector<1x96xf32>
    %5 = vector.broadcast %4 : vector<1x96xf32> to vector<128x96xf32>
    %6 = arith.addf %3, %5 : vector<128x96xf32>
    %cst_5 = arith.constant 0.000000e+00 : f32
    %7 = vector.broadcast %cst_5 : f32 to vector<128x96xf32>
    %8 = arith.maximumf %6, %7 : vector<128x96xf32>
    %c0_6 = arith.constant 0 : index
    %c0_7 = arith.constant 0 : index
    %9 = vector.load %arg4[%c0_6, %c0_7] : memref<128x96xf32, #tpu.memory_space<vmem>>, vector<128x96xf32>
    tpu.vector_store %arg4[%c0_6, %c0_7], %8 {strides = array<i32>} : memref<128x96xf32, #tpu.memory_space<vmem>>, vector<128x96xf32>,
    return
  }
  func.func @transform_0(%arg0: i32) -> (i32, i32) {
    %c0_i32 = arith.constant 0 : i32
    %c0_i32_0 = arith.constant 0 : i32
    return %arg0, %c0_i32 : i32, i32
  }
  func.func @transform_1(%arg0: i32) -> (i32, i32) {
    %c0_i32 = arith.constant 0 : i32
    %c0_i32_0 = arith.constant 0 : i32
    %c0_i32_1 = arith.constant 0 : i32
    return %c0_i32, %c0_i32_0 : i32, i32
  }
  func.func @transform_2(%arg0: i32) -> (i32, i32) {
    %c0_i32 = arith.constant 0 : i32
    %c0_i32_0 = arith.constant 0 : i32
    %c0_i32_1 = arith.constant 0 : i32
    return %c0_i32, %c0_i32_0 : i32, i32
  }
  func.func @transform_3(%arg0: i32) -> (i32, i32) {
    %c0_i32 = arith.constant 0 : i32
    %c0_i32_0 = arith.constant 0 : i32
    return %arg0, %c0_i32 : i32, i32
  }
}

module attributes {stable_mosaic.version = 11 : i64} {
  func.func @_mm_bias_kernel(%arg0: i32, %arg1: memref<128x160xf32, #tpu.memory_space<vmem>>, %arg2: memref<160x128xbf16, #tpu.memory_space<vmem>>, %arg3: memref<1x128xf32, #tpu.memory_space<vmem>>, %arg4: memref<128x128xf32, #tpu.memory_space<vmem>>) attributes {dimension_semantics = [#tpu.dimension_semantics<parallel>], iteration_bounds = array<i64: 1>, scalar_prefetch = 0 : i64, scratch_operands = 0 : i64, tpu.core_type = #tpu.core_type<tc>, window_params = [{transform_indices = @transform_0, window_bounds = array<i64: 128, 160>}, {pipeline_mode = #tpu.pipeline_mode<synchronous>, transform_indices = @transform_1, window_bounds = array<i64: 160, 128>}, {pipeline_mode = #tpu.pipeline_mode<synchronous>, transform_indices = @transform_2, window_bounds = array<i64: 1, 128>}, {transform_indices = @transform_3, window_bounds = array<i64: 128, 128>}]} {
    %c0 = arith.constant 0 : index
    %c0_0 = arith.constant 0 : index
    %0 = vector.load %arg1[%c0, %c0_0] : memref<128x160xf32, #tpu.memory_space<vmem>>, vector<128x160xf32>
    %1 = arith.truncf %0 : vector<128x160xf32> to vector<128x160xbf16>
    %c0_1 = arith.constant 0 : index
    %c0_2 = arith.constant 0 : index
    %2 = vector.load %arg2[%c0_1, %c0_2] : memref<160x128xbf16, #tpu.memory_space<vmem>>, vector<160x128xbf16>
    %cst = arith.constant dense<0.000000e+00> : vector<128x128xf32>
    %3 = tpu.matmul %1, %2, %cst {dimension_numbers = #tpu.dot_dimension_numbers<[1], [0], [0], [1], [0, 0, 1, 1], [], []>} : vector<128x160xbf16>, vector<160x128xbf16>, vector<128x128xf32> -> vector<128x128xf32>
    %c0_3 = arith.constant 0 : index
    %c0_4 = arith.constant 0 : index
    %4 = vector.load %arg3[%c0_3, %c0_4] : memref<1x128xf32, #tpu.memory_space<vmem>>, vector<1x128xf32>
    %5 = vector.broadcast %4 : vector<1x128xf32> to vector<128x128xf32>
    %6 = arith.addf %3, %5 : vector<128x128xf32>
    %cst_5 = arith.constant 0.000000e+00 : f32
    %7 = vector.broadcast %cst_5 : f32 to vector<128x128xf32>
    %8 = arith.maximumf %6, %7 : vector<128x128xf32>
    %c0_6 = arith.constant 0 : index
    %c0_7 = arith.constant 0 : index
    %9 = vector.load %arg4[%c0_6, %c0_7] : memref<128x128xf32, #tpu.memory_space<vmem>>, vector<128x128xf32>
    tpu.vector_store %arg4[%c0_6, %c0_7], %8 {strides = array<i32>} : memref<128x128xf32, #tpu.memory_space<vmem>>, vector<128x128xf32>,
    return
  }
  func.func @transform_0(%arg0: i32) -> (i32, i32) {
    %c0_i32 = arith.constant 0 : i32
    %c0_i32_0 = arith.constant 0 : i32
    return %arg0, %c0_i32 : i32, i32
  }
  func.func @transform_1(%arg0: i32) -> (i32, i32) {
    %c0_i32 = arith.constant 0 : i32
    %c0_i32_0 = arith.constant 0 : i32
    %c0_i32_1 = arith.constant 0 : i32
    return %c0_i32, %c0_i32_0 : i32, i32
  }
  func.func @transform_2(%arg0: i32) -> (i32, i32) {
    %c0_i32 = arith.constant 0 : i32
    %c0_i32_0 = arith.constant 0 : i32
    %c0_i32_1 = arith.constant 0 : i32
    return %c0_i32, %c0_i32_0 : i32, i32
  }
  func.func @transform_3(%arg0: i32) -> (i32, i32) {
    %c0_i32 = arith.constant 0 : i32
    %c0_i32_0 = arith.constant 0 : i32
    return %arg0, %c0_i32 : i32, i32
  }
}

module attributes {stable_mosaic.version = 11 : i64} {
  func.func @_mm_bias_kernel(%arg0: i32, %arg1: memref<128x576xf32, #tpu.memory_space<vmem>>, %arg2: memref<576x96xbf16, #tpu.memory_space<vmem>>, %arg3: memref<1x96xf32, #tpu.memory_space<vmem>>, %arg4: memref<128x96xf32, #tpu.memory_space<vmem>>) attributes {dimension_semantics = [#tpu.dimension_semantics<parallel>], iteration_bounds = array<i64: 1>, scalar_prefetch = 0 : i64, scratch_operands = 0 : i64, tpu.core_type = #tpu.core_type<tc>, window_params = [{transform_indices = @transform_0, window_bounds = array<i64: 128, 576>}, {pipeline_mode = #tpu.pipeline_mode<synchronous>, transform_indices = @transform_1, window_bounds = array<i64: 576, 96>}, {pipeline_mode = #tpu.pipeline_mode<synchronous>, transform_indices = @transform_2, window_bounds = array<i64: 1, 96>}, {transform_indices = @transform_3, window_bounds = array<i64: 128, 96>}]} {
    %c0 = arith.constant 0 : index
    %c0_0 = arith.constant 0 : index
    %0 = vector.load %arg1[%c0, %c0_0] : memref<128x576xf32, #tpu.memory_space<vmem>>, vector<128x576xf32>
    %1 = arith.truncf %0 : vector<128x576xf32> to vector<128x576xbf16>
    %c0_1 = arith.constant 0 : index
    %c0_2 = arith.constant 0 : index
    %2 = vector.load %arg2[%c0_1, %c0_2] : memref<576x96xbf16, #tpu.memory_space<vmem>>, vector<576x96xbf16>
    %cst = arith.constant dense<0.000000e+00> : vector<128x96xf32>
    %3 = tpu.matmul %1, %2, %cst {dimension_numbers = #tpu.dot_dimension_numbers<[1], [0], [0], [1], [0, 0, 1, 1], [], []>} : vector<128x576xbf16>, vector<576x96xbf16>, vector<128x96xf32> -> vector<128x96xf32>
    %c0_3 = arith.constant 0 : index
    %c0_4 = arith.constant 0 : index
    %4 = vector.load %arg3[%c0_3, %c0_4] : memref<1x96xf32, #tpu.memory_space<vmem>>, vector<1x96xf32>
    %5 = vector.broadcast %4 : vector<1x96xf32> to vector<128x96xf32>
    %6 = arith.addf %3, %5 : vector<128x96xf32>
    %c0_5 = arith.constant 0 : index
    %c0_6 = arith.constant 0 : index
    %7 = vector.load %arg4[%c0_5, %c0_6] : memref<128x96xf32, #tpu.memory_space<vmem>>, vector<128x96xf32>
    tpu.vector_store %arg4[%c0_5, %c0_6], %6 {strides = array<i32>} : memref<128x96xf32, #tpu.memory_space<vmem>>, vector<128x96xf32>,
    return
  }
  func.func @transform_0(%arg0: i32) -> (i32, i32) {
    %c0_i32 = arith.constant 0 : i32
    %c0_i32_0 = arith.constant 0 : i32
    return %arg0, %c0_i32 : i32, i32
  }
  func.func @transform_1(%arg0: i32) -> (i32, i32) {
    %c0_i32 = arith.constant 0 : i32
    %c0_i32_0 = arith.constant 0 : i32
    %c0_i32_1 = arith.constant 0 : i32
    return %c0_i32, %c0_i32_0 : i32, i32
  }
  func.func @transform_2(%arg0: i32) -> (i32, i32) {
    %c0_i32 = arith.constant 0 : i32
    %c0_i32_0 = arith.constant 0 : i32
    %c0_i32_1 = arith.constant 0 : i32
    return %c0_i32, %c0_i32_0 : i32, i32
  }
  func.func @transform_3(%arg0: i32) -> (i32, i32) {
    %c0_i32 = arith.constant 0 : i32
    %c0_i32_0 = arith.constant 0 : i32
    return %arg0, %c0_i32 : i32, i32
  }
}

module attributes {stable_mosaic.version = 11 : i64} {
  func.func @_mm_bias_kernel(%arg0: i32, %arg1: memref<128x320xf32, #tpu.memory_space<vmem>>, %arg2: memref<320x64xbf16, #tpu.memory_space<vmem>>, %arg3: memref<1x64xf32, #tpu.memory_space<vmem>>, %arg4: memref<128x64xf32, #tpu.memory_space<vmem>>) attributes {dimension_semantics = [#tpu.dimension_semantics<parallel>], iteration_bounds = array<i64: 1>, scalar_prefetch = 0 : i64, scratch_operands = 0 : i64, tpu.core_type = #tpu.core_type<tc>, window_params = [{transform_indices = @transform_0, window_bounds = array<i64: 128, 320>}, {pipeline_mode = #tpu.pipeline_mode<synchronous>, transform_indices = @transform_1, window_bounds = array<i64: 320, 64>}, {pipeline_mode = #tpu.pipeline_mode<synchronous>, transform_indices = @transform_2, window_bounds = array<i64: 1, 64>}, {transform_indices = @transform_3, window_bounds = array<i64: 128, 64>}]} {
    %c0 = arith.constant 0 : index
    %c0_0 = arith.constant 0 : index
    %0 = vector.load %arg1[%c0, %c0_0] : memref<128x320xf32, #tpu.memory_space<vmem>>, vector<128x320xf32>
    %1 = arith.truncf %0 : vector<128x320xf32> to vector<128x320xbf16>
    %c0_1 = arith.constant 0 : index
    %c0_2 = arith.constant 0 : index
    %2 = vector.load %arg2[%c0_1, %c0_2] : memref<320x64xbf16, #tpu.memory_space<vmem>>, vector<320x64xbf16>
    %cst = arith.constant dense<0.000000e+00> : vector<128x64xf32>
    %3 = tpu.matmul %1, %2, %cst {dimension_numbers = #tpu.dot_dimension_numbers<[1], [0], [0], [1], [0, 0, 1, 1], [], []>} : vector<128x320xbf16>, vector<320x64xbf16>, vector<128x64xf32> -> vector<128x64xf32>
    %c0_3 = arith.constant 0 : index
    %c0_4 = arith.constant 0 : index
    %4 = vector.load %arg3[%c0_3, %c0_4] : memref<1x64xf32, #tpu.memory_space<vmem>>, vector<1x64xf32>
    %5 = vector.broadcast %4 : vector<1x64xf32> to vector<128x64xf32>
    %6 = arith.addf %3, %5 : vector<128x64xf32>
    %cst_5 = arith.constant 0.000000e+00 : f32
    %7 = vector.broadcast %cst_5 : f32 to vector<128x64xf32>
    %8 = arith.maximumf %6, %7 : vector<128x64xf32>
    %c0_6 = arith.constant 0 : index
    %c0_7 = arith.constant 0 : index
    %9 = vector.load %arg4[%c0_6, %c0_7] : memref<128x64xf32, #tpu.memory_space<vmem>>, vector<128x64xf32>
    tpu.vector_store %arg4[%c0_6, %c0_7], %8 {strides = array<i32>} : memref<128x64xf32, #tpu.memory_space<vmem>>, vector<128x64xf32>,
    return
  }
  func.func @transform_0(%arg0: i32) -> (i32, i32) {
    %c0_i32 = arith.constant 0 : i32
    %c0_i32_0 = arith.constant 0 : i32
    return %arg0, %c0_i32 : i32, i32
  }
  func.func @transform_1(%arg0: i32) -> (i32, i32) {
    %c0_i32 = arith.constant 0 : i32
    %c0_i32_0 = arith.constant 0 : i32
    %c0_i32_1 = arith.constant 0 : i32
    return %c0_i32, %c0_i32_0 : i32, i32
  }
  func.func @transform_2(%arg0: i32) -> (i32, i32) {
    %c0_i32 = arith.constant 0 : i32
    %c0_i32_0 = arith.constant 0 : i32
    %c0_i32_1 = arith.constant 0 : i32
    return %c0_i32, %c0_i32_0 : i32, i32
  }
  func.func @transform_3(%arg0: i32) -> (i32, i32) {
    %c0_i32 = arith.constant 0 : i32
    %c0_i32_0 = arith.constant 0 : i32
    return %arg0, %c0_i32 : i32, i32
  }
}

module attributes {stable_mosaic.version = 11 : i64} {
  func.func @_mm_bias_kernel(%arg0: i32, %arg1: memref<32x1728xf32, #tpu.memory_space<vmem>>, %arg2: memref<1728x192xbf16, #tpu.memory_space<vmem>>, %arg3: memref<1x192xf32, #tpu.memory_space<vmem>>, %arg4: memref<32x192xf32, #tpu.memory_space<vmem>>) attributes {dimension_semantics = [#tpu.dimension_semantics<parallel>], iteration_bounds = array<i64: 1>, scalar_prefetch = 0 : i64, scratch_operands = 0 : i64, tpu.core_type = #tpu.core_type<tc>, window_params = [{transform_indices = @transform_0, window_bounds = array<i64: 32, 1728>}, {pipeline_mode = #tpu.pipeline_mode<synchronous>, transform_indices = @transform_1, window_bounds = array<i64: 1728, 192>}, {pipeline_mode = #tpu.pipeline_mode<synchronous>, transform_indices = @transform_2, window_bounds = array<i64: 1, 192>}, {transform_indices = @transform_3, window_bounds = array<i64: 32, 192>}]} {
    %c0 = arith.constant 0 : index
    %c0_0 = arith.constant 0 : index
    %0 = vector.load %arg1[%c0, %c0_0] : memref<32x1728xf32, #tpu.memory_space<vmem>>, vector<32x1728xf32>
    %1 = arith.truncf %0 : vector<32x1728xf32> to vector<32x1728xbf16>
    %c0_1 = arith.constant 0 : index
    %c0_2 = arith.constant 0 : index
    %2 = vector.load %arg2[%c0_1, %c0_2] : memref<1728x192xbf16, #tpu.memory_space<vmem>>, vector<1728x192xbf16>
    %cst = arith.constant dense<0.000000e+00> : vector<32x192xf32>
    %3 = tpu.matmul %1, %2, %cst {dimension_numbers = #tpu.dot_dimension_numbers<[1], [0], [0], [1], [0, 0, 1, 1], [], []>} : vector<32x1728xbf16>, vector<1728x192xbf16>, vector<32x192xf32> -> vector<32x192xf32>
    %c0_3 = arith.constant 0 : index
    %c0_4 = arith.constant 0 : index
    %4 = vector.load %arg3[%c0_3, %c0_4] : memref<1x192xf32, #tpu.memory_space<vmem>>, vector<1x192xf32>
    %5 = vector.broadcast %4 : vector<1x192xf32> to vector<32x192xf32>
    %6 = arith.addf %3, %5 : vector<32x192xf32>
    %cst_5 = arith.constant 0.000000e+00 : f32
    %7 = vector.broadcast %cst_5 : f32 to vector<32x192xf32>
    %8 = arith.maximumf %6, %7 : vector<32x192xf32>
    %c0_6 = arith.constant 0 : index
    %c0_7 = arith.constant 0 : index
    %9 = vector.load %arg4[%c0_6, %c0_7] : memref<32x192xf32, #tpu.memory_space<vmem>>, vector<32x192xf32>
    tpu.vector_store %arg4[%c0_6, %c0_7], %8 {strides = array<i32>} : memref<32x192xf32, #tpu.memory_space<vmem>>, vector<32x192xf32>,
    return
  }
  func.func @transform_0(%arg0: i32) -> (i32, i32) {
    %c0_i32 = arith.constant 0 : i32
    %c0_i32_0 = arith.constant 0 : i32
    return %arg0, %c0_i32 : i32, i32
  }
  func.func @transform_1(%arg0: i32) -> (i32, i32) {
    %c0_i32 = arith.constant 0 : i32
    %c0_i32_0 = arith.constant 0 : i32
    %c0_i32_1 = arith.constant 0 : i32
    return %c0_i32, %c0_i32_0 : i32, i32
  }
  func.func @transform_2(%arg0: i32) -> (i32, i32) {
    %c0_i32 = arith.constant 0 : i32
    %c0_i32_0 = arith.constant 0 : i32
    %c0_i32_1 = arith.constant 0 : i32
    return %c0_i32, %c0_i32_0 : i32, i32
  }
  func.func @transform_3(%arg0: i32) -> (i32, i32) {
    %c0_i32 = arith.constant 0 : i32
    %c0_i32_0 = arith.constant 0 : i32
    return %arg0, %c0_i32 : i32, i32
  }
}

module attributes {stable_mosaic.version = 11 : i64} {
  func.func @_mm_bias_kernel(%arg0: i32, %arg1: memref<32x384xf32, #tpu.memory_space<vmem>>, %arg2: memref<384x576xbf16, #tpu.memory_space<vmem>>, %arg3: memref<1x576xf32, #tpu.memory_space<vmem>>, %arg4: memref<32x576xf32, #tpu.memory_space<vmem>>) attributes {dimension_semantics = [#tpu.dimension_semantics<parallel>], iteration_bounds = array<i64: 1>, scalar_prefetch = 0 : i64, scratch_operands = 0 : i64, tpu.core_type = #tpu.core_type<tc>, window_params = [{transform_indices = @transform_0, window_bounds = array<i64: 32, 384>}, {pipeline_mode = #tpu.pipeline_mode<synchronous>, transform_indices = @transform_1, window_bounds = array<i64: 384, 576>}, {pipeline_mode = #tpu.pipeline_mode<synchronous>, transform_indices = @transform_2, window_bounds = array<i64: 1, 576>}, {transform_indices = @transform_3, window_bounds = array<i64: 32, 576>}]} {
    %c0 = arith.constant 0 : index
    %c0_0 = arith.constant 0 : index
    %0 = vector.load %arg1[%c0, %c0_0] : memref<32x384xf32, #tpu.memory_space<vmem>>, vector<32x384xf32>
    %1 = arith.truncf %0 : vector<32x384xf32> to vector<32x384xbf16>
    %c0_1 = arith.constant 0 : index
    %c0_2 = arith.constant 0 : index
    %2 = vector.load %arg2[%c0_1, %c0_2] : memref<384x576xbf16, #tpu.memory_space<vmem>>, vector<384x576xbf16>
    %cst = arith.constant dense<0.000000e+00> : vector<32x576xf32>
    %3 = tpu.matmul %1, %2, %cst {dimension_numbers = #tpu.dot_dimension_numbers<[1], [0], [0], [1], [0, 0, 1, 1], [], []>} : vector<32x384xbf16>, vector<384x576xbf16>, vector<32x576xf32> -> vector<32x576xf32>
    %c0_3 = arith.constant 0 : index
    %c0_4 = arith.constant 0 : index
    %4 = vector.load %arg3[%c0_3, %c0_4] : memref<1x576xf32, #tpu.memory_space<vmem>>, vector<1x576xf32>
    %5 = vector.broadcast %4 : vector<1x576xf32> to vector<32x576xf32>
    %6 = arith.addf %3, %5 : vector<32x576xf32>
    %cst_5 = arith.constant 0.000000e+00 : f32
    %7 = vector.broadcast %cst_5 : f32 to vector<32x576xf32>
    %8 = arith.maximumf %6, %7 : vector<32x576xf32>
    %c0_6 = arith.constant 0 : index
    %c0_7 = arith.constant 0 : index
    %9 = vector.load %arg4[%c0_6, %c0_7] : memref<32x576xf32, #tpu.memory_space<vmem>>, vector<32x576xf32>
    tpu.vector_store %arg4[%c0_6, %c0_7], %8 {strides = array<i32>} : memref<32x576xf32, #tpu.memory_space<vmem>>, vector<32x576xf32>,
    return
  }
  func.func @transform_0(%arg0: i32) -> (i32, i32) {
    %c0_i32 = arith.constant 0 : i32
    %c0_i32_0 = arith.constant 0 : i32
    return %arg0, %c0_i32 : i32, i32
  }
  func.func @transform_1(%arg0: i32) -> (i32, i32) {
    %c0_i32 = arith.constant 0 : i32
    %c0_i32_0 = arith.constant 0 : i32
    %c0_i32_1 = arith.constant 0 : i32
    return %c0_i32, %c0_i32_0 : i32, i32
  }
  func.func @transform_2(%arg0: i32) -> (i32, i32) {
    %c0_i32 = arith.constant 0 : i32
    %c0_i32_0 = arith.constant 0 : i32
    %c0_i32_1 = arith.constant 0 : i32
    return %c0_i32, %c0_i32_0 : i32, i32
  }
  func.func @transform_3(%arg0: i32) -> (i32, i32) {
    %c0_i32 = arith.constant 0 : i32
    %c0_i32_0 = arith.constant 0 : i32
    return %arg0, %c0_i32 : i32, i32
  }
}

module attributes {stable_mosaic.version = 11 : i64} {
  func.func @_sepconv_kernel(%arg0: i32, %arg1: memref<9x8x576xf32, #tpu.memory_space<vmem>>, %arg2: memref<9x576xf32, #tpu.memory_space<vmem>>, %arg3: memref<576x576xbf16, #tpu.memory_space<vmem>>, %arg4: memref<1x576xf32, #tpu.memory_space<vmem>>, %arg5: memref<8x576xf32, #tpu.memory_space<vmem>>) attributes {dimension_semantics = [#tpu.dimension_semantics<parallel>], iteration_bounds = array<i64: 1>, scalar_prefetch = 0 : i64, scratch_operands = 0 : i64, tpu.core_type = #tpu.core_type<tc>, window_params = [{transform_indices = @transform_0, window_bounds = array<i64: 9, 8, 576>}, {pipeline_mode = #tpu.pipeline_mode<synchronous>, transform_indices = @transform_1, window_bounds = array<i64: 9, 576>}, {pipeline_mode = #tpu.pipeline_mode<synchronous>, transform_indices = @transform_2, window_bounds = array<i64: 576, 576>}, {pipeline_mode = #tpu.pipeline_mode<synchronous>, transform_indices = @transform_3, window_bounds = array<i64: 1, 576>}, {transform_indices = @transform_4, window_bounds = array<i64: 8, 576>}]} {
    %c0 = arith.constant 0 : index
    %c0_0 = arith.constant 0 : index
    %0 = vector.load %arg2[%c0, %c0_0] : memref<9x576xf32, #tpu.memory_space<vmem>>, vector<9x576xf32>
    %c0_1 = arith.constant 0 : index
    %c0_2 = arith.constant 0 : index
    %c0_3 = arith.constant 0 : index
    %1 = vector.load %arg1[%c0_1, %c0_2, %c0_3] : memref<9x8x576xf32, #tpu.memory_space<vmem>>, vector<1x8x576xf32>
    %2 = vector.shape_cast %1 : vector<1x8x576xf32> to vector<8x576xf32>
    %3 = vector.extract_strided_slice %0 {offsets = [0, 0], sizes = [1, 576], strides = [1, 1]} : vector<9x576xf32> to vector<1x576xf32>
    %4 = vector.broadcast %3 : vector<1x576xf32> to vector<8x576xf32>
    %5 = arith.mulf %2, %4 : vector<8x576xf32>
    %c1 = arith.constant 1 : index
    %c0_4 = arith.constant 0 : index
    %c0_5 = arith.constant 0 : index
    %6 = vector.load %arg1[%c1, %c0_4, %c0_5] : memref<9x8x576xf32, #tpu.memory_space<vmem>>, vector<1x8x576xf32>
    %7 = vector.shape_cast %6 : vector<1x8x576xf32> to vector<8x576xf32>
    %8 = vector.extract_strided_slice %0 {offsets = [1, 0], sizes = [1, 576], strides = [1, 1]} : vector<9x576xf32> to vector<1x576xf32>
    %9 = vector.broadcast %8 : vector<1x576xf32> to vector<8x576xf32>
    %10 = arith.mulf %7, %9 : vector<8x576xf32>
    %11 = arith.addf %5, %10 : vector<8x576xf32>
    %c2 = arith.constant 2 : index
    %c0_6 = arith.constant 0 : index
    %c0_7 = arith.constant 0 : index
    %12 = vector.load %arg1[%c2, %c0_6, %c0_7] : memref<9x8x576xf32, #tpu.memory_space<vmem>>, vector<1x8x576xf32>
    %13 = vector.shape_cast %12 : vector<1x8x576xf32> to vector<8x576xf32>
    %14 = vector.extract_strided_slice %0 {offsets = [2, 0], sizes = [1, 576], strides = [1, 1]} : vector<9x576xf32> to vector<1x576xf32>
    %15 = vector.broadcast %14 : vector<1x576xf32> to vector<8x576xf32>
    %16 = arith.mulf %13, %15 : vector<8x576xf32>
    %17 = arith.addf %11, %16 : vector<8x576xf32>
    %c3 = arith.constant 3 : index
    %c0_8 = arith.constant 0 : index
    %c0_9 = arith.constant 0 : index
    %18 = vector.load %arg1[%c3, %c0_8, %c0_9] : memref<9x8x576xf32, #tpu.memory_space<vmem>>, vector<1x8x576xf32>
    %19 = vector.shape_cast %18 : vector<1x8x576xf32> to vector<8x576xf32>
    %20 = vector.extract_strided_slice %0 {offsets = [3, 0], sizes = [1, 576], strides = [1, 1]} : vector<9x576xf32> to vector<1x576xf32>
    %21 = vector.broadcast %20 : vector<1x576xf32> to vector<8x576xf32>
    %22 = arith.mulf %19, %21 : vector<8x576xf32>
    %23 = arith.addf %17, %22 : vector<8x576xf32>
    %c4 = arith.constant 4 : index
    %c0_10 = arith.constant 0 : index
    %c0_11 = arith.constant 0 : index
    %24 = vector.load %arg1[%c4, %c0_10, %c0_11] : memref<9x8x576xf32, #tpu.memory_space<vmem>>, vector<1x8x576xf32>
    %25 = vector.shape_cast %24 : vector<1x8x576xf32> to vector<8x576xf32>
    %26 = vector.extract_strided_slice %0 {offsets = [4, 0], sizes = [1, 576], strides = [1, 1]} : vector<9x576xf32> to vector<1x576xf32>
    %27 = vector.broadcast %26 : vector<1x576xf32> to vector<8x576xf32>
    %28 = arith.mulf %25, %27 : vector<8x576xf32>
    %29 = arith.addf %23, %28 : vector<8x576xf32>
    %c5 = arith.constant 5 : index
    %c0_12 = arith.constant 0 : index
    %c0_13 = arith.constant 0 : index
    %30 = vector.load %arg1[%c5, %c0_12, %c0_13] : memref<9x8x576xf32, #tpu.memory_space<vmem>>, vector<1x8x576xf32>
    %31 = vector.shape_cast %30 : vector<1x8x576xf32> to vector<8x576xf32>
    %32 = vector.extract_strided_slice %0 {offsets = [5, 0], sizes = [1, 576], strides = [1, 1]} : vector<9x576xf32> to vector<1x576xf32>
    %33 = vector.broadcast %32 : vector<1x576xf32> to vector<8x576xf32>
    %34 = arith.mulf %31, %33 : vector<8x576xf32>
    %35 = arith.addf %29, %34 : vector<8x576xf32>
    %c6 = arith.constant 6 : index
    %c0_14 = arith.constant 0 : index
    %c0_15 = arith.constant 0 : index
    %36 = vector.load %arg1[%c6, %c0_14, %c0_15] : memref<9x8x576xf32, #tpu.memory_space<vmem>>, vector<1x8x576xf32>
    %37 = vector.shape_cast %36 : vector<1x8x576xf32> to vector<8x576xf32>
    %38 = vector.extract_strided_slice %0 {offsets = [6, 0], sizes = [1, 576], strides = [1, 1]} : vector<9x576xf32> to vector<1x576xf32>
    %39 = vector.broadcast %38 : vector<1x576xf32> to vector<8x576xf32>
    %40 = arith.mulf %37, %39 : vector<8x576xf32>
    %41 = arith.addf %35, %40 : vector<8x576xf32>
    %c7 = arith.constant 7 : index
    %c0_16 = arith.constant 0 : index
    %c0_17 = arith.constant 0 : index
    %42 = vector.load %arg1[%c7, %c0_16, %c0_17] : memref<9x8x576xf32, #tpu.memory_space<vmem>>, vector<1x8x576xf32>
    %43 = vector.shape_cast %42 : vector<1x8x576xf32> to vector<8x576xf32>
    %44 = vector.extract_strided_slice %0 {offsets = [7, 0], sizes = [1, 576], strides = [1, 1]} : vector<9x576xf32> to vector<1x576xf32>
    %45 = vector.broadcast %44 : vector<1x576xf32> to vector<8x576xf32>
    %46 = arith.mulf %43, %45 : vector<8x576xf32>
    %47 = arith.addf %41, %46 : vector<8x576xf32>
    %c8 = arith.constant 8 : index
    %c0_18 = arith.constant 0 : index
    %c0_19 = arith.constant 0 : index
    %48 = vector.load %arg1[%c8, %c0_18, %c0_19] : memref<9x8x576xf32, #tpu.memory_space<vmem>>, vector<1x8x576xf32>
    %49 = vector.shape_cast %48 : vector<1x8x576xf32> to vector<8x576xf32>
    %50 = vector.extract_strided_slice %0 {offsets = [8, 0], sizes = [1, 576], strides = [1, 1]} : vector<9x576xf32> to vector<1x576xf32>
    %51 = vector.broadcast %50 : vector<1x576xf32> to vector<8x576xf32>
    %52 = arith.mulf %49, %51 : vector<8x576xf32>
    %53 = arith.addf %47, %52 : vector<8x576xf32>
    %54 = arith.truncf %53 : vector<8x576xf32> to vector<8x576xbf16>
    %c0_20 = arith.constant 0 : index
    %c0_21 = arith.constant 0 : index
    %55 = vector.load %arg3[%c0_20, %c0_21] : memref<576x576xbf16, #tpu.memory_space<vmem>>, vector<576x576xbf16>
    %cst = arith.constant dense<0.000000e+00> : vector<8x576xf32>
    %56 = tpu.matmul %54, %55, %cst {dimension_numbers = #tpu.dot_dimension_numbers<[1], [0], [0], [1], [0, 0, 1, 1], [], []>} : vector<8x576xbf16>, vector<576x576xbf16>, vector<8x576xf32> -> vector<8x576xf32>
    %c0_22 = arith.constant 0 : index
    %c0_23 = arith.constant 0 : index
    %57 = vector.load %arg4[%c0_22, %c0_23] : memref<1x576xf32, #tpu.memory_space<vmem>>, vector<1x576xf32>
    %58 = vector.broadcast %57 : vector<1x576xf32> to vector<8x576xf32>
    %59 = arith.addf %56, %58 : vector<8x576xf32>
    %cst_24 = arith.constant 0.000000e+00 : f32
    %60 = vector.broadcast %cst_24 : f32 to vector<8x576xf32>
    %61 = arith.maximumf %59, %60 : vector<8x576xf32>
    %c0_25 = arith.constant 0 : index
    %c0_26 = arith.constant 0 : index
    %62 = vector.load %arg5[%c0_25, %c0_26] : memref<8x576xf32, #tpu.memory_space<vmem>>, vector<8x576xf32>
    tpu.vector_store %arg5[%c0_25, %c0_26], %61 {strides = array<i32>} : memref<8x576xf32, #tpu.memory_space<vmem>>, vector<8x576xf32>,
    return
  }
  func.func @transform_0(%arg0: i32) -> (i32, i32, i32) {
    %c0_i32 = arith.constant 0 : i32
    %c0_i32_0 = arith.constant 0 : i32
    %c0_i32_1 = arith.constant 0 : i32
    return %c0_i32, %arg0, %c0_i32_0 : i32, i32, i32
  }
  func.func @transform_1(%arg0: i32) -> (i32, i32) {
    %c0_i32 = arith.constant 0 : i32
    %c0_i32_0 = arith.constant 0 : i32
    %c0_i32_1 = arith.constant 0 : i32
    return %c0_i32, %c0_i32_0 : i32, i32
  }
  func.func @transform_2(%arg0: i32) -> (i32, i32) {
    %c0_i32 = arith.constant 0 : i32
    %c0_i32_0 = arith.constant 0 : i32
    %c0_i32_1 = arith.constant 0 : i32
    return %c0_i32, %c0_i32_0 : i32, i32
  }
  func.func @transform_3(%arg0: i32) -> (i32, i32) {
    %c0_i32 = arith.constant 0 : i32
    %c0_i32_0 = arith.constant 0 : i32
    %c0_i32_1 = arith.constant 0 : i32
    return %c0_i32, %c0_i32_0 : i32, i32
  }
  func.func @transform_4(%arg0: i32) -> (i32, i32) {
    %c0_i32 = arith.constant 0 : i32
    %c0_i32_0 = arith.constant 0 : i32
    return %arg0, %c0_i32 : i32, i32
  }
}

module attributes {stable_mosaic.version = 11 : i64} {
  func.func @_sepconv_kernel(%arg0: i32, %arg1: memref<9x32x576xf32, #tpu.memory_space<vmem>>, %arg2: memref<9x576xf32, #tpu.memory_space<vmem>>, %arg3: memref<576x576xbf16, #tpu.memory_space<vmem>>, %arg4: memref<1x576xf32, #tpu.memory_space<vmem>>, %arg5: memref<32x576xf32, #tpu.memory_space<vmem>>) attributes {dimension_semantics = [#tpu.dimension_semantics<parallel>], iteration_bounds = array<i64: 1>, scalar_prefetch = 0 : i64, scratch_operands = 0 : i64, tpu.core_type = #tpu.core_type<tc>, window_params = [{transform_indices = @transform_0, window_bounds = array<i64: 9, 32, 576>}, {pipeline_mode = #tpu.pipeline_mode<synchronous>, transform_indices = @transform_1, window_bounds = array<i64: 9, 576>}, {pipeline_mode = #tpu.pipeline_mode<synchronous>, transform_indices = @transform_2, window_bounds = array<i64: 576, 576>}, {pipeline_mode = #tpu.pipeline_mode<synchronous>, transform_indices = @transform_3, window_bounds = array<i64: 1, 576>}, {transform_indices = @transform_4, window_bounds = array<i64: 32, 576>}]} {
    %c0 = arith.constant 0 : index
    %c0_0 = arith.constant 0 : index
    %0 = vector.load %arg2[%c0, %c0_0] : memref<9x576xf32, #tpu.memory_space<vmem>>, vector<9x576xf32>
    %c0_1 = arith.constant 0 : index
    %c0_2 = arith.constant 0 : index
    %c0_3 = arith.constant 0 : index
    %1 = vector.load %arg1[%c0_1, %c0_2, %c0_3] : memref<9x32x576xf32, #tpu.memory_space<vmem>>, vector<1x32x576xf32>
    %2 = vector.shape_cast %1 : vector<1x32x576xf32> to vector<32x576xf32>
    %3 = vector.extract_strided_slice %0 {offsets = [0, 0], sizes = [1, 576], strides = [1, 1]} : vector<9x576xf32> to vector<1x576xf32>
    %4 = vector.broadcast %3 : vector<1x576xf32> to vector<32x576xf32>
    %5 = arith.mulf %2, %4 : vector<32x576xf32>
    %c1 = arith.constant 1 : index
    %c0_4 = arith.constant 0 : index
    %c0_5 = arith.constant 0 : index
    %6 = vector.load %arg1[%c1, %c0_4, %c0_5] : memref<9x32x576xf32, #tpu.memory_space<vmem>>, vector<1x32x576xf32>
    %7 = vector.shape_cast %6 : vector<1x32x576xf32> to vector<32x576xf32>
    %8 = vector.extract_strided_slice %0 {offsets = [1, 0], sizes = [1, 576], strides = [1, 1]} : vector<9x576xf32> to vector<1x576xf32>
    %9 = vector.broadcast %8 : vector<1x576xf32> to vector<32x576xf32>
    %10 = arith.mulf %7, %9 : vector<32x576xf32>
    %11 = arith.addf %5, %10 : vector<32x576xf32>
    %c2 = arith.constant 2 : index
    %c0_6 = arith.constant 0 : index
    %c0_7 = arith.constant 0 : index
    %12 = vector.load %arg1[%c2, %c0_6, %c0_7] : memref<9x32x576xf32, #tpu.memory_space<vmem>>, vector<1x32x576xf32>
    %13 = vector.shape_cast %12 : vector<1x32x576xf32> to vector<32x576xf32>
    %14 = vector.extract_strided_slice %0 {offsets = [2, 0], sizes = [1, 576], strides = [1, 1]} : vector<9x576xf32> to vector<1x576xf32>
    %15 = vector.broadcast %14 : vector<1x576xf32> to vector<32x576xf32>
    %16 = arith.mulf %13, %15 : vector<32x576xf32>
    %17 = arith.addf %11, %16 : vector<32x576xf32>
    %c3 = arith.constant 3 : index
    %c0_8 = arith.constant 0 : index
    %c0_9 = arith.constant 0 : index
    %18 = vector.load %arg1[%c3, %c0_8, %c0_9] : memref<9x32x576xf32, #tpu.memory_space<vmem>>, vector<1x32x576xf32>
    %19 = vector.shape_cast %18 : vector<1x32x576xf32> to vector<32x576xf32>
    %20 = vector.extract_strided_slice %0 {offsets = [3, 0], sizes = [1, 576], strides = [1, 1]} : vector<9x576xf32> to vector<1x576xf32>
    %21 = vector.broadcast %20 : vector<1x576xf32> to vector<32x576xf32>
    %22 = arith.mulf %19, %21 : vector<32x576xf32>
    %23 = arith.addf %17, %22 : vector<32x576xf32>
    %c4 = arith.constant 4 : index
    %c0_10 = arith.constant 0 : index
    %c0_11 = arith.constant 0 : index
    %24 = vector.load %arg1[%c4, %c0_10, %c0_11] : memref<9x32x576xf32, #tpu.memory_space<vmem>>, vector<1x32x576xf32>
    %25 = vector.shape_cast %24 : vector<1x32x576xf32> to vector<32x576xf32>
    %26 = vector.extract_strided_slice %0 {offsets = [4, 0], sizes = [1, 576], strides = [1, 1]} : vector<9x576xf32> to vector<1x576xf32>
    %27 = vector.broadcast %26 : vector<1x576xf32> to vector<32x576xf32>
    %28 = arith.mulf %25, %27 : vector<32x576xf32>
    %29 = arith.addf %23, %28 : vector<32x576xf32>
    %c5 = arith.constant 5 : index
    %c0_12 = arith.constant 0 : index
    %c0_13 = arith.constant 0 : index
    %30 = vector.load %arg1[%c5, %c0_12, %c0_13] : memref<9x32x576xf32, #tpu.memory_space<vmem>>, vector<1x32x576xf32>
    %31 = vector.shape_cast %30 : vector<1x32x576xf32> to vector<32x576xf32>
    %32 = vector.extract_strided_slice %0 {offsets = [5, 0], sizes = [1, 576], strides = [1, 1]} : vector<9x576xf32> to vector<1x576xf32>
    %33 = vector.broadcast %32 : vector<1x576xf32> to vector<32x576xf32>
    %34 = arith.mulf %31, %33 : vector<32x576xf32>
    %35 = arith.addf %29, %34 : vector<32x576xf32>
    %c6 = arith.constant 6 : index
    %c0_14 = arith.constant 0 : index
    %c0_15 = arith.constant 0 : index
    %36 = vector.load %arg1[%c6, %c0_14, %c0_15] : memref<9x32x576xf32, #tpu.memory_space<vmem>>, vector<1x32x576xf32>
    %37 = vector.shape_cast %36 : vector<1x32x576xf32> to vector<32x576xf32>
    %38 = vector.extract_strided_slice %0 {offsets = [6, 0], sizes = [1, 576], strides = [1, 1]} : vector<9x576xf32> to vector<1x576xf32>
    %39 = vector.broadcast %38 : vector<1x576xf32> to vector<32x576xf32>
    %40 = arith.mulf %37, %39 : vector<32x576xf32>
    %41 = arith.addf %35, %40 : vector<32x576xf32>
    %c7 = arith.constant 7 : index
    %c0_16 = arith.constant 0 : index
    %c0_17 = arith.constant 0 : index
    %42 = vector.load %arg1[%c7, %c0_16, %c0_17] : memref<9x32x576xf32, #tpu.memory_space<vmem>>, vector<1x32x576xf32>
    %43 = vector.shape_cast %42 : vector<1x32x576xf32> to vector<32x576xf32>
    %44 = vector.extract_strided_slice %0 {offsets = [7, 0], sizes = [1, 576], strides = [1, 1]} : vector<9x576xf32> to vector<1x576xf32>
    %45 = vector.broadcast %44 : vector<1x576xf32> to vector<32x576xf32>
    %46 = arith.mulf %43, %45 : vector<32x576xf32>
    %47 = arith.addf %41, %46 : vector<32x576xf32>
    %c8 = arith.constant 8 : index
    %c0_18 = arith.constant 0 : index
    %c0_19 = arith.constant 0 : index
    %48 = vector.load %arg1[%c8, %c0_18, %c0_19] : memref<9x32x576xf32, #tpu.memory_space<vmem>>, vector<1x32x576xf32>
    %49 = vector.shape_cast %48 : vector<1x32x576xf32> to vector<32x576xf32>
    %50 = vector.extract_strided_slice %0 {offsets = [8, 0], sizes = [1, 576], strides = [1, 1]} : vector<9x576xf32> to vector<1x576xf32>
    %51 = vector.broadcast %50 : vector<1x576xf32> to vector<32x576xf32>
    %52 = arith.mulf %49, %51 : vector<32x576xf32>
    %53 = arith.addf %47, %52 : vector<32x576xf32>
    %54 = arith.truncf %53 : vector<32x576xf32> to vector<32x576xbf16>
    %c0_20 = arith.constant 0 : index
    %c0_21 = arith.constant 0 : index
    %55 = vector.load %arg3[%c0_20, %c0_21] : memref<576x576xbf16, #tpu.memory_space<vmem>>, vector<576x576xbf16>
    %cst = arith.constant dense<0.000000e+00> : vector<32x576xf32>
    %56 = tpu.matmul %54, %55, %cst {dimension_numbers = #tpu.dot_dimension_numbers<[1], [0], [0], [1], [0, 0, 1, 1], [], []>} : vector<32x576xbf16>, vector<576x576xbf16>, vector<32x576xf32> -> vector<32x576xf32>
    %c0_22 = arith.constant 0 : index
    %c0_23 = arith.constant 0 : index
    %57 = vector.load %arg4[%c0_22, %c0_23] : memref<1x576xf32, #tpu.memory_space<vmem>>, vector<1x576xf32>
    %58 = vector.broadcast %57 : vector<1x576xf32> to vector<32x576xf32>
    %59 = arith.addf %56, %58 : vector<32x576xf32>
    %cst_24 = arith.constant 0.000000e+00 : f32
    %60 = vector.broadcast %cst_24 : f32 to vector<32x576xf32>
    %61 = arith.maximumf %59, %60 : vector<32x576xf32>
    %c0_25 = arith.constant 0 : index
    %c0_26 = arith.constant 0 : index
    %62 = vector.load %arg5[%c0_25, %c0_26] : memref<32x576xf32, #tpu.memory_space<vmem>>, vector<32x576xf32>
    tpu.vector_store %arg5[%c0_25, %c0_26], %61 {strides = array<i32>} : memref<32x576xf32, #tpu.memory_space<vmem>>, vector<32x576xf32>,
    return
  }
  func.func @transform_0(%arg0: i32) -> (i32, i32, i32) {
    %c0_i32 = arith.constant 0 : i32
    %c0_i32_0 = arith.constant 0 : i32
    %c0_i32_1 = arith.constant 0 : i32
    return %c0_i32, %arg0, %c0_i32_0 : i32, i32, i32
  }
  func.func @transform_1(%arg0: i32) -> (i32, i32) {
    %c0_i32 = arith.constant 0 : i32
    %c0_i32_0 = arith.constant 0 : i32
    %c0_i32_1 = arith.constant 0 : i32
    return %c0_i32, %c0_i32_0 : i32, i32
  }
  func.func @transform_2(%arg0: i32) -> (i32, i32) {
    %c0_i32 = arith.constant 0 : i32
    %c0_i32_0 = arith.constant 0 : i32
    %c0_i32_1 = arith.constant 0 : i32
    return %c0_i32, %c0_i32_0 : i32, i32
  }
  func.func @transform_3(%arg0: i32) -> (i32, i32) {
    %c0_i32 = arith.constant 0 : i32
    %c0_i32_0 = arith.constant 0 : i32
    %c0_i32_1 = arith.constant 0 : i32
    return %c0_i32, %c0_i32_0 : i32, i32
  }
  func.func @transform_4(%arg0: i32) -> (i32, i32) {
    %c0_i32 = arith.constant 0 : i32
    %c0_i32_0 = arith.constant 0 : i32
    return %arg0, %c0_i32 : i32, i32
  }
}

module attributes {stable_mosaic.version = 11 : i64} {
  func.func @_heat_pose_kernel(%arg0: i32, %arg1: memref<1x16x576xf32, #tpu.memory_space<vmem>>, %arg2: memref<576x16xbf16, #tpu.memory_space<vmem>>, %arg3: memref<1x16xf32, #tpu.memory_space<vmem>>, %arg4: memref<16x1xf32, #tpu.memory_space<vmem>>, %arg5: memref<16x1xf32, #tpu.memory_space<vmem>>, %arg6: memref<1x16x16xf32, #tpu.memory_space<vmem>>, %arg7: memref<1x2x16xf32, #tpu.memory_space<vmem>>) attributes {dimension_semantics = [#tpu.dimension_semantics<parallel>], iteration_bounds = array<i64: 2>, scalar_prefetch = 0 : i64, scratch_operands = 0 : i64, tpu.core_type = #tpu.core_type<tc>, window_params = [{transform_indices = @transform_0, window_bounds = array<i64: 1, 16, 576>}, {pipeline_mode = #tpu.pipeline_mode<synchronous>, transform_indices = @transform_1, window_bounds = array<i64: 576, 16>}, {pipeline_mode = #tpu.pipeline_mode<synchronous>, transform_indices = @transform_2, window_bounds = array<i64: 1, 16>}, {pipeline_mode = #tpu.pipeline_mode<synchronous>, transform_indices = @transform_3, window_bounds = array<i64: 16, 1>}, {pipeline_mode = #tpu.pipeline_mode<synchronous>, transform_indices = @transform_4, window_bounds = array<i64: 16, 1>}, {transform_indices = @transform_5, window_bounds = array<i64: 1, 16, 16>}, {transform_indices = @transform_6, window_bounds = array<i64: 1, 2, 16>}]} {
    %c0 = arith.constant 0 : index
    %c0_0 = arith.constant 0 : index
    %c0_1 = arith.constant 0 : index
    %0 = vector.load %arg1[%c0, %c0_0, %c0_1] : memref<1x16x576xf32, #tpu.memory_space<vmem>>, vector<1x16x576xf32>
    %1 = vector.shape_cast %0 : vector<1x16x576xf32> to vector<16x576xf32>
    %2 = arith.truncf %1 : vector<16x576xf32> to vector<16x576xbf16>
    %c0_2 = arith.constant 0 : index
    %c0_3 = arith.constant 0 : index
    %3 = vector.load %arg2[%c0_2, %c0_3] : memref<576x16xbf16, #tpu.memory_space<vmem>>, vector<576x16xbf16>
    %cst = arith.constant dense<0.000000e+00> : vector<16x16xf32>
    %4 = tpu.matmul %2, %3, %cst {dimension_numbers = #tpu.dot_dimension_numbers<[1], [0], [0], [1], [0, 0, 1, 1], [], []>} : vector<16x576xbf16>, vector<576x16xbf16>, vector<16x16xf32> -> vector<16x16xf32>
    %c0_4 = arith.constant 0 : index
    %c0_5 = arith.constant 0 : index
    %5 = vector.load %arg3[%c0_4, %c0_5] : memref<1x16xf32, #tpu.memory_space<vmem>>, vector<1x16xf32>
    %6 = vector.broadcast %5 : vector<1x16xf32> to vector<16x16xf32>
    %7 = arith.addf %4, %6 : vector<16x16xf32>
    %c0_6 = arith.constant 0 : index
    %c0_7 = arith.constant 0 : index
    %c0_8 = arith.constant 0 : index
    %8 = vector.load %arg6[%c0_6, %c0_7, %c0_8] : memref<1x16x16xf32, #tpu.memory_space<vmem>>, vector<1x16x16xf32>
    %9 = vector.shape_cast %8 : vector<1x16x16xf32> to vector<16x16xf32>
    %10 = vector.shape_cast %7 : vector<16x16xf32> to vector<1x16x16xf32>
    tpu.vector_store %arg6[%c0_6, %c0_7, %c0_8], %10 {strides = array<i32>} : memref<1x16x16xf32, #tpu.memory_space<vmem>>, vector<1x16x16xf32>,
    %cst_9 = arith.constant dense<0xFF800000> : vector<16xf32>
    %11 = vector.multi_reduction <maximumf>, %7, %cst_9 [0] : vector<16x16xf32> to vector<16xf32>
    %12 = vector.shape_cast %11 : vector<16xf32> to vector<1x16xf32>
    %13 = vector.broadcast %12 : vector<1x16xf32> to vector<16x16xf32>
    %14 = arith.subf %7, %13 : vector<16x16xf32>
    %15 = math.exp %14 : vector<16x16xf32>
    %cst_10 = arith.constant dense<0.000000e+00> : vector<16xf32>
    %16 = vector.multi_reduction <add>, %15, %cst_10 [0] : vector<16x16xf32> to vector<16xf32>
    %17 = vector.shape_cast %16 : vector<16xf32> to vector<1x16xf32>
    %18 = tpu.reciprocal %17 {approx = true} : vector<1x16xf32> -> vector<1x16xf32>
    %c0_11 = arith.constant 0 : index
    %c0_12 = arith.constant 0 : index
    %19 = vector.load %arg4[%c0_11, %c0_12] : memref<16x1xf32, #tpu.memory_space<vmem>>, vector<16x1xf32>
    %20 = vector.broadcast %19 : vector<16x1xf32> to vector<16x16xf32>
    %21 = arith.mulf %15, %20 : vector<16x16xf32>
    %cst_13 = arith.constant dense<0.000000e+00> : vector<16xf32>
    %22 = vector.multi_reduction <add>, %21, %cst_13 [0] : vector<16x16xf32> to vector<16xf32>
    %23 = vector.shape_cast %22 : vector<16xf32> to vector<1x16xf32>
    %24 = arith.mulf %23, %18 : vector<1x16xf32>
    %c0_14 = arith.constant 0 : index
    %c0_15 = arith.constant 0 : index
    %25 = vector.load %arg5[%c0_14, %c0_15] : memref<16x1xf32, #tpu.memory_space<vmem>>, vector<16x1xf32>
    %26 = vector.broadcast %25 : vector<16x1xf32> to vector<16x16xf32>
    %27 = arith.mulf %15, %26 : vector<16x16xf32>
    %cst_16 = arith.constant dense<0.000000e+00> : vector<16xf32>
    %28 = vector.multi_reduction <add>, %27, %cst_16 [0] : vector<16x16xf32> to vector<16xf32>
    %29 = vector.shape_cast %28 : vector<16xf32> to vector<1x16xf32>
    %30 = arith.mulf %29, %18 : vector<1x16xf32>
    %31 = tpu.concatenate %24, %30 in 0 : vector<1x16xf32>, vector<1x16xf32> -> vector<2x16xf32>
    %c0_17 = arith.constant 0 : index
    %c0_18 = arith.constant 0 : index
    %c0_19 = arith.constant 0 : index
    %32 = vector.load %arg7[%c0_17, %c0_18, %c0_19] : memref<1x2x16xf32, #tpu.memory_space<vmem>>, vector<1x2x16xf32>
    %33 = vector.shape_cast %32 : vector<1x2x16xf32> to vector<2x16xf32>
    %34 = vector.shape_cast %31 : vector<2x16xf32> to vector<1x2x16xf32>
    tpu.vector_store %arg7[%c0_17, %c0_18, %c0_19], %34 {strides = array<i32>} : memref<1x2x16xf32, #tpu.memory_space<vmem>>, vector<1x2x16xf32>,
    return
  }
  func.func @transform_0(%arg0: i32) -> (i32, i32, i32) {
    %c0_i32 = arith.constant 0 : i32
    %c0_i32_0 = arith.constant 0 : i32
    %c0_i32_1 = arith.constant 0 : i32
    return %arg0, %c0_i32, %c0_i32_0 : i32, i32, i32
  }
  func.func @transform_1(%arg0: i32) -> (i32, i32) {
    %c0_i32 = arith.constant 0 : i32
    %c0_i32_0 = arith.constant 0 : i32
    %c0_i32_1 = arith.constant 0 : i32
    return %c0_i32, %c0_i32_0 : i32, i32
  }
  func.func @transform_2(%arg0: i32) -> (i32, i32) {
    %c0_i32 = arith.constant 0 : i32
    %c0_i32_0 = arith.constant 0 : i32
    %c0_i32_1 = arith.constant 0 : i32
    return %c0_i32, %c0_i32_0 : i32, i32
  }
  func.func @transform_3(%arg0: i32) -> (i32, i32) {
    %c0_i32 = arith.constant 0 : i32
    %c0_i32_0 = arith.constant 0 : i32
    %c0_i32_1 = arith.constant 0 : i32
    return %c0_i32, %c0_i32_0 : i32, i32
  }
  func.func @transform_4(%arg0: i32) -> (i32, i32) {
    %c0_i32 = arith.constant 0 : i32
    %c0_i32_0 = arith.constant 0 : i32
    %c0_i32_1 = arith.constant 0 : i32
    return %c0_i32, %c0_i32_0 : i32, i32
  }
  func.func @transform_5(%arg0: i32) -> (i32, i32, i32) {
    %c0_i32 = arith.constant 0 : i32
    %c0_i32_0 = arith.constant 0 : i32
    %c0_i32_1 = arith.constant 0 : i32
    return %arg0, %c0_i32, %c0_i32_0 : i32, i32, i32
  }
  func.func @transform_6(%arg0: i32) -> (i32, i32, i32) {
    %c0_i32 = arith.constant 0 : i32
    %c0_i32_0 = arith.constant 0 : i32
    %c0_i32_1 = arith.constant 0 : i32
    return %arg0, %c0_i32, %c0_i32_0 : i32, i32, i32
  }
}

</mosaic_0001>

<llo_original>
// kernel: mpii_1_forward.14
$region0: #{mpii_1_forward.14}
  #allocation0 [shape = 'u32[]', space=smem, size = 0x4, offset = 0x4, fixed_abs, tag = 'smem constant byte address 0x4 - core index']
  #allocation1 [shape = 'u32[72,128]{1,0:T(1,128)}', space=vmem, size = 0x9000, scoped, tag = 'internal scratch']
  %s0 = inlined_call_operand.vmem [shape: f32[512,27], index: 0, kind: input, shape index: {}]
  %s1 = inlined_call_operand.vmem [shape: bf16[27,32], index: 1, kind: input, shape index: {}]
  %s2 = inlined_call_operand.hbm [shape: f32[1,32], index: 2, kind: input, shape index: {}]
  %s3 = inlined_call_operand.vmem [shape: f32[512,32], index: 3, kind: output, shape index: {}]
  %s4 = sld [smem:[#allocation0]]
  $region49: #{mpii_1_forward.14} parent=0
    _
  %s6 = ssub.s32 1, %s4
  %s7 = scalar_select 0, %s6, %s4
  $region1: #{mpii_1_forward.14} parent=0
    #allocation2 [shape = 'u8[512]{0}', space=vmem, size = 0x400, scoped, tag = 'input window, operand 2, single buffered']
    #allocation3 [shape = 's32[2]{0}', space=sflag, size = 0x8, scoped, tag = 'scoped memory for mpii_1_forward.14']
    %8 = vsyncpa [#allocation3], 0
    loop: start=0, step=1, limit=4
    $region2: #{mpii_1_forward.14} parent=1 // loop_pre_header
      _
    $region3: #{mpii_1_forward.14} parent=1 // loop_header
      %s10 = sphi 0, %s14
      %p11 = scmp.ge.s32.totalorder %s10, 4
      %s20 = sphi 0, %s22
      %s23 = sphi 0, %s20
      %s24 = sphi 0, %s23
      %s40 = sphi 0, %s24
      %s44 = sphi 0, %s44
      %s46 = sphi 0, %s44
      %s47 = sphi 0, %s46
      %s61 = sphi 0, %s47
      %s65 = sphi 0, %s65
      %s67 = sphi 0, %s65
      %s68 = sphi 0, %s67
      %s82 = sphi 0, %s68
      %s88 = sphi 0, %s90
      %s91 = sphi 0, %s88
      %s92 = sphi 0, %s91
      %s108 = sphi 0, %s92
    $region4: #{mpii_1_forward.14} parent=1 // loop_header_branch
      %13 = sbr.rel (%p11) target = $region8
    $region5: #{mpii_1_forward.14} parent=1 // loop_body
      %s15 = ssub.s32 %s10, 1
      %s16 = ssub.s32 %s10, 2
      %s17 = sadd.s32 %s10, 1
      %s18 = ssub.s32 %s10, %s17
      %p19 = scmp.eq.s32.totalorder %s18, 0
      %s21 = sadd.s32 %s20, 1
      %s22 = scalar_select %p19, %s20, %s21
      %p25 = pneg %p19
      %p26 = scmp.eq.s32.totalorder %s10, 1
      %p27 = por %p25, %p26
      %p28 = scmp.ne.s32.totalorder %s20, %s23
      %p29 = scmp.eq.s32.totalorder %s10, 0
      %p30 = por %p28, %p29
      %p31 = scmp.ne.s32.totalorder %s20, %s23
      %p32 = scmp.eq.s32.totalorder %s15, 1
      %p33 = por %p31, %p32
      %p34 = scmp.ne.s32.totalorder %s23, %s24
      %p35 = scmp.eq.s32.totalorder %s15, 0
      %p36 = por %p34, %p35
      %p37 = scmp.ne.s32.totalorder %s23, %s24
      %p38 = scmp.eq.s32.totalorder %s16, 1
      %p39 = por %p37, %p38
      %p41 = scmp.ne.s32.totalorder %s24, %s40
      %p42 = scmp.eq.s32.totalorder %s16, 0
      %p43 = por %p41, %p42
      %s45 = sadd.s32 %s44, 1
      %p48 = scmp.eq.s32.totalorder %s10, 1
      %p49 = scmp.ne.s32.totalorder %s44, %s46
      %p50 = scmp.eq.s32.totalorder %s10, 0
      %p51 = por %p49, %p50
      %p52 = scmp.ne.s32.totalorder %s44, %s46
      %p53 = scmp.eq.s32.totalorder %s15, 1
      %p54 = por %p52, %p53
      %p55 = scmp.ne.s32.totalorder %s46, %s47
      %p56 = scmp.eq.s32.totalorder %s15, 0
      %p57 = por %p55, %p56
      %p58 = scmp.ne.s32.totalorder %s46, %s47
      %p59 = scmp.eq.s32.totalorder %s16, 1
      %p60 = por %p58, %p59
      %p62 = scmp.ne.s32.totalorder %s47, %s61
      %p63 = scmp.eq.s32.totalorder %s16, 0
      %p64 = por %p62, %p63
      %s66 = sadd.s32 %s65, 1
      %p69 = scmp.eq.s32.totalorder %s10, 1
      %p70 = scmp.ne.s32.totalorder %s65, %s67
      %p71 = scmp.eq.s32.totalorder %s10, 0
      %p72 = por %p70, %p71
      %p73 = scmp.ne.s32.totalorder %s65, %s67
      %p74 = scmp.eq.s32.totalorder %s15, 1
      %p75 = por %p73, %p74
      %p76 = scmp.ne.s32.totalorder %s67, %s68
      %p77 = scmp.eq.s32.totalorder %s15, 0
      %p78 = por %p76, %p77
      %p79 = scmp.ne.s32.totalorder %s67, %s68
      %p80 = scmp.eq.s32.totalorder %s16, 1
      %p81 = por %p79, %p80
      %p83 = scmp.ne.s32.totalorder %s68, %s82
      %p84 = scmp.eq.s32.totalorder %s16, 0
      %p85 = por %p83, %p84
      %s86 = ssub.s32 %s10, %s17
      %p87 = scmp.eq.s32.totalorder %s86, 0
      %s89 = sadd.s32 %s88, 1
      %s90 = scalar_select %p87, %s88, %s89
      %p93 = pneg %p87
      %p94 = scmp.eq.s32.totalorder %s10, 1
      %p95 = por %p93, %p94
      %p96 = scmp.ne.s32.totalorder %s88, %s91
      %p97 = scmp.eq.s32.totalorder %s10, 0
      %p98 = por %p96, %p97
      %p99 = scmp.ne.s32.totalorder %s88, %s91
      %p100 = scmp.eq.s32.totalorder %s15, 1
      %p101 = por %p99, %p100
      %p102 = scmp.ne.s32.totalorder %s91, %s92
      %p103 = scmp.eq.s32.totalorder %s15, 0
      %p104 = por %p102, %p103
      %p105 = scmp.ne.s32.totalorder %s91, %s92
      %p106 = scmp.eq.s32.totalorder %s16, 1
      %p107 = por %p105, %p106
      %p109 = scmp.ne.s32.totalorder %s92, %s108
      %p110 = scmp.eq.s32.totalorder %s16, 0
      %p111 = por %p109, %p110
      %p112 = scmp.le.s32.totalorder 1, %s10
      %p113 = scmp.lt.s32.totalorder %s10, 3
      %p114 = pnand %p112, %p113
      %p115 = pneg %p114
      // Predicated region
      $region9: #{mpii_1_forward.14} parent=5 // pred_check
        _
      $region10: #{mpii_1_forward.14} parent=5 // pred_check_branch
        %117 = sbr.rel (%p114) target = $region12
      $region11: #{mpii_1_forward.14} parent=5 // pred_region
        %s118 = ssub.s32 %s10, 1
        // Predicated region
        $region13: #{mpii_1_forward.14} parent=11 // pred_check
          %p119 = pneg %p57
        $region14: #{mpii_1_forward.14} parent=11 // pred_check_branch
          %121 = sbr.rel (%p119) target = $region16
        $region15: #{mpii_1_forward.14} parent=11 // pred_region
          _
        $region16: #{mpii_1_forward.14} parent=11 // pred_fallthru
          _
        // Predicated region
        $region17: #{mpii_1_forward.14} parent=11 // pred_check
          %p122 = pneg %p78
        $region18: #{mpii_1_forward.14} parent=11 // pred_check_branch
          %124 = sbr.rel (%p122) target = $region20
        $region19: #{mpii_1_forward.14} parent=11 // pred_region
          %126 = vsyncadd [#allocation3], 0
          %s128 = sshll.u32 %s2, 4
          %s129 = int_to_ptr.hbm [resolvable:$true] %s128
          %s130 = sshll.u32 [#allocation2], 4
          %s131 = int_to_ptr.vmem [resolvable:$true] %s130
          %133 = dma.hbm_to_vmem [thread:$0]  %s129, 16, %s131, [#allocation3]
        $region20: #{mpii_1_forward.14} parent=11 // pred_fallthru
          _
      $region12: #{mpii_1_forward.14} parent=5 // pred_fallthru
        _
      %p134 = scmp.lt.s32.totalorder %s10, 2
      // Predicated region
      $region21: #{mpii_1_forward.14} parent=5 // pred_check
        %p135 = pneg %p134
      $region22: #{mpii_1_forward.14} parent=5 // pred_check_branch
        %137 = sbr.rel (%p135) target = $region24
      $region23: #{mpii_1_forward.14} parent=5 // pred_region
        // Predicated region
        $region25: #{mpii_1_forward.14} parent=23 // pred_check
          %p138 = pneg %p30
        $region26: #{mpii_1_forward.14} parent=23 // pred_check_branch
          %140 = sbr.rel (%p138) target = $region28
        $region27: #{mpii_1_forward.14} parent=23 // pred_region
          %s141 = smul.u32 32, %s10
          %p142 = scmp.lt.s32.totalorder %s141, 63
          %s143 = scalar_select %p142, %s141, 63
          %s144 = smul.addr %s143, 8
          %s145 = scalar_lea.vmem %s0, %s144
          %s146 = smul.u32 32, %s10
        $region28: #{mpii_1_forward.14} parent=23 // pred_fallthru
          _
      $region24: #{mpii_1_forward.14} parent=5 // pred_fallthru
        _
      %p147 = scmp.le.s32.totalorder 1, %s10
      %p148 = scmp.lt.s32.totalorder %s10, 3
      %p149 = pnand %p147, %p148
      %p150 = pneg %p149
      // Predicated region
      $region29: #{mpii_1_forward.14} parent=5 // pred_check
        _
      $region30: #{mpii_1_forward.14} parent=5 // pred_check_branch
        %152 = sbr.rel (%p149) target = $region32
      $region31: #{mpii_1_forward.14} parent=5 // pred_region
        %s153 = ssub.s32 %s10, 1
        // Predicated region
        $region33: #{mpii_1_forward.14} parent=31 // pred_check
          %p154 = pneg %p78
        $region34: #{mpii_1_forward.14} parent=31 // pred_check_branch
          %156 = sbr.rel (%p154) target = $region36
        $region35: #{mpii_1_forward.14} parent=31 // pred_region
          %158 = dma.done [#allocation3], 16
        $region36: #{mpii_1_forward.14} parent=31 // pred_fallthru
          _
        %s159 = smul.u32 32, %s15
        %p160 = scmp.lt.s32.totalorder %s159, 63
        %s161 = scalar_select %p160, %s159, 63
        %s162 = smul.addr %s161, 8
        %s163 = scalar_lea.vmem %s0, %s162
        %p164 = pneg %p36
        %p165 = pneg %p33
        %p166 = pneg %p57
        %p167 = pneg %p54
        %p168 = pneg %p78
        %p169 = pneg %p75
        %p170 = pneg %p104
        %p171 = pneg %p101
        %s172 = smul.u32 32, %s15
        %p173 = scmp.lt.s32.totalorder %s172, 63
        %s174 = scalar_select %p173, %s172, 63
        %s175 = smul.addr %s174, 8
        %s176 = scalar_lea.vmem %s3, %s175
        %s177 = smul.u32 32, %s15
        %p178 = scmp.lt.s32.totalorder %s177, 63
        %s179 = scalar_select %p178, %s177, 63
        %s180 = smul.addr %s179, 8
        %s181 = scalar_lea.vmem %s0, %s180
        %s182 = smul.u32 32, %s15
        %s183 = smul.u32 32, %s15
        %p184 = scmp.lt.s32.totalorder %s183, 63
        %s185 = scalar_select %p184, %s183, 63
        %s186 = smul.addr %s185, 8
        %s187 = scalar_lea.vmem %s3, %s186
        %s188 = smul.u32 32, %s15
        %v190 = vld [vmem:[%s181] sm:$0xff]
        %v191 = vld [vmem:[%s181 + $0x8] sm:$0xff]
        %v192 = vld [vmem:[%s181 + $0x10] sm:$0xff]
        %v193 = vld [vmem:[%s181 + $0x18] sm:$0xff]
        %v194 = vld [vmem:[%s181 + $0x20] sm:$0xff]
        %v195 = vld [vmem:[%s181 + $0x28] sm:$0xff]
        %v196 = vld [vmem:[%s181 + $0x30] sm:$0xff]
        %v197 = vld [vmem:[%s181 + $0x38] sm:$0xff]
        %v198 = vld [vmem:[%s181 + $0x40] sm:$0xff]
        %v199 = vld [vmem:[%s181 + $0x48] sm:$0xff]
        %v200 = vld [vmem:[%s181 + $0x50] sm:$0xff]
        %v201 = vld [vmem:[%s181 + $0x58] sm:$0xff]
        %v202 = vld [vmem:[%s181 + $0x60] sm:$0xff]
        %v203 = vld [vmem:[%s181 + $0x68] sm:$0xff]
        %v204 = vld [vmem:[%s181 + $0x70] sm:$0xff]
        %v205 = vld [vmem:[%s181 + $0x78] sm:$0xff]
        %v206 = vld [vmem:[%s181 + $0x80] sm:$0xff]
        %v207 = vld [vmem:[%s181 + $0x88] sm:$0xff]
        %v208 = vld [vmem:[%s181 + $0x90] sm:$0xff]
        %v209 = vld [vmem:[%s181 + $0x98] sm:$0xff]
        %v210 = vld [vmem:[%s181 + $0xa0] sm:$0xff]
        %v211 = vld [vmem:[%s181 + $0xa8] sm:$0xff]
        %v212 = vld [vmem:[%s181 + $0xb0] sm:$0xff]
        %v213 = vld [vmem:[%s181 + $0xb8] sm:$0xff]
        %v214 = vld [vmem:[%s181 + $0xc0] sm:$0xff]
        %v215 = vld [vmem:[%s181 + $0xc8] sm:$0xff]
        %v216 = vld [vmem:[%s181 + $0xd0] sm:$0xff]
        %v217 = vld [vmem:[%s181 + $0xd8] sm:$0xff]
        %v218 = vld [vmem:[%s181 + $0xe0] sm:$0xff]
        %v219 = vld [vmem:[%s181 + $0xe8] sm:$0xff]
        %v220 = vld [vmem:[%s181 + $0xf0] sm:$0xff]
        %v221 = vld [vmem:[%s181 + $0xf8] sm:$0xff]
        %v222 = vpack.c.bf16 %v191, %v190
        %v223 = vpack.c.bf16 %v193, %v192
        %v224 = vpack.c.bf16 %v195, %v194
        %v225 = vpack.c.bf16 %v197, %v196
        %v226 = vpack.c.bf16 %v199, %v198
        %v227 = vpack.c.bf16 %v201, %v200
        %v228 = vpack.c.bf16 %v203, %v202
        %v229 = vpack.c.bf16 %v205, %v204
        %v230 = vpack.c.bf16 %v207, %v206
        %v231 = vpack.c.bf16 %v209, %v208
        %v232 = vpack.c.bf16 %v211, %v210
        %v233 = vpack.c.bf16 %v213, %v212
        %v234 = vpack.c.bf16 %v215, %v214
        %v235 = vpack.c.bf16 %v217, %v216
        %v236 = vpack.c.bf16 %v219, %v218
        %v237 = vpack.c.bf16 %v221, %v220
        %v238 = vld [vmem:[%s1] sm:$0xf]
        %v239 = vld [vmem:[%s1 + $0x4] sm:$0xf]
        %v240 = vld [vmem:[%s1 + $0x8] sm:$0xf]
        %v241 = vld [vmem:[%s1 + $0xc] sm:$0x3]
        %v242 = vld [vmem:[#allocation2] sm:$0x1]
        %v244 = vperm.slane %v242, 0
        %v250 = vunpack.c.l.b16 %v238
        %v251 = vunpack.c.l.b16 %v239
        %v252 = vunpack.c.l.b16 %v240
        %v253 = vunpack.c.l.b16 %v241
        %v254 = vpack.c.b16 %v251, %v250
        %v255 = vpack.c.b16 %v253, %v252
        %vm257 = vcmask 220160
        %v259 = vsel %vm257, %v222, 0
        %v262 = vsel %vm257, %v223, 0
        %v265 = vsel %vm257, %v224, 0
        %v268 = vsel %vm257, %v225, 0
        %v271 = vsel %vm257, %v226, 0
        %v274 = vsel %vm257, %v227, 0
        %v277 = vsel %vm257, %v228, 0
        %v280 = vsel %vm257, %v229, 0
        %v283 = vsel %vm257, %v230, 0
        %v286 = vsel %vm257, %v231, 0
        %v289 = vsel %vm257, %v232, 0
        %v292 = vsel %vm257, %v233, 0
        %v295 = vsel %vm257, %v234, 0
        %v298 = vsel %vm257, %v235, 0
        %v301 = vsel %vm257, %v236, 0
        %v304 = vsel %vm257, %v237, 0
        %vm306 = vcmask 1044480
        %vm307 = vcmask 1045504
        %v308 = vsel %vm306, 4294967295, 65535
        %v309 = vsel %vm307, %v308, 0
        %v311 = vand.u32 %v255, %v309
        %313 = vmatpush.bf16.msra.mxu0 0
        %314 = vmatpush.bf16.msra.mxu0 0
        %315 = vmatpush.bf16.msra.mxu0 0
        %316 = vmatpush.bf16.msra.mxu0 0
        %317 = vmatpush.bf16.msra.mxu0 0
        %318 = vmatpush.bf16.msra.mxu0 0
        %319 = vmatpush.bf16.msra.mxu0 %v311
        %320 = vmatpush.bf16.msra.mxu0 %v254
        %321 = vmatmul.bf16.gmra.mxu0 %v259
        %v322 = vpop.f32.mrf.mxu0
        %v323 = vadd.f32 %v244, %v322
        %v324 = vpop.f32.mrf.mxu0
        %v325 = vadd.f32 %v244, %v324
        %326 = vmatmul.bf16.gmra.mxu0 %v262
        %v327 = vpop.f32.mrf.mxu0
        %v328 = vadd.f32 %v244, %v327
        %v329 = vpop.f32.mrf.mxu0
        %v330 = vadd.f32 %v244, %v329
        %331 = vmatmul.bf16.gmra.mxu0 %v265
        %v332 = vpop.f32.mrf.mxu0
        %v333 = vadd.f32 %v244, %v332
        %v334 = vpop.f32.mrf.mxu0
        %v335 = vadd.f32 %v244, %v334
        %336 = vmatmul.bf16.gmra.mxu0 %v268
        %v337 = vpop.f32.mrf.mxu0
        %v338 = vadd.f32 %v244, %v337
        %v339 = vpop.f32.mrf.mxu0
        %v340 = vadd.f32 %v244, %v339
        %341 = vmatmul.bf16.gmra.mxu0 %v271
        %v342 = vpop.f32.mrf.mxu0
        %v343 = vadd.f32 %v244, %v342
        %v344 = vpop.f32.mrf.mxu0
        %v345 = vadd.f32 %v244, %v344
        %346 = vmatmul.bf16.gmra.mxu0 %v274
        %v347 = vpop.f32.mrf.mxu0
        %v348 = vadd.f32 %v244, %v347
        %v349 = vpop.f32.mrf.mxu0
        %v350 = vadd.f32 %v244, %v349
        %351 = vmatmul.bf16.gmra.mxu0 %v277
        %v352 = vpop.f32.mrf.mxu0
        %v353 = vadd.f32 %v244, %v352
        %v354 = vpop.f32.mrf.mxu0
        %v355 = vadd.f32 %v244, %v354
        %356 = vmatmul.bf16.gmra.mxu0 %v280
        %v357 = vpop.f32.mrf.mxu0
        %v358 = vadd.f32 %v244, %v357
        %v359 = vpop.f32.mrf.mxu0
        %v360 = vadd.f32 %v244, %v359
        %361 = vmatmul.bf16.gmra.mxu0 %v283
        %v362 = vpop.f32.mrf.mxu0
        %v363 = vadd.f32 %v244, %v362
        %v364 = vpop.f32.mrf.mxu0
        %v365 = vadd.f32 %v244, %v364
        %366 = vmatmul.bf16.gmra.mxu0 %v286
        %v367 = vpop.f32.mrf.mxu0
        %v368 = vadd.f32 %v244, %v367
        %v369 = vpop.f32.mrf.mxu0
        %v370 = vadd.f32 %v244, %v369
        %371 = vmatmul.bf16.gmra.mxu0 %v289
        %v372 = vpop.f32.mrf.mxu0
        %v373 = vadd.f32 %v244, %v372
        %v374 = vpop.f32.mrf.mxu0
        %v375 = vadd.f32 %v244, %v374
        %376 = vmatmul.bf16.gmra.mxu0 %v292
        %v377 = vpop.f32.mrf.mxu0
        %v378 = vadd.f32 %v244, %v377
        %v379 = vpop.f32.mrf.mxu0
        %v380 = vadd.f32 %v244, %v379
        %381 = vmatmul.bf16.gmra.mxu0 %v295
        %v382 = vpop.f32.mrf.mxu0
        %v383 = vadd.f32 %v244, %v382
        %v384 = vpop.f32.mrf.mxu0
        %v385 = vadd.f32 %v244, %v384
        %386 = vmatmul.bf16.gmra.mxu0 %v298
        %v387 = vpop.f32.mrf.mxu0
        %v388 = vadd.f32 %v244, %v387
        %v389 = vpop.f32.mrf.mxu0
        %v390 = vadd.f32 %v244, %v389
        %391 = vmatmul.bf16.gmra.mxu0 %v301
        %v392 = vpop.f32.mrf.mxu0
        %v393 = vadd.f32 %v244, %v392
        %v394 = vpop.f32.mrf.mxu0
        %v395 = vadd.f32 %v244, %v394
        %396 = vmatmul.bf16.gmra.mxu0 %v304
        %v397 = vpop.f32.mrf.mxu0
        %v398 = vadd.f32 %v244, %v397
        %v399 = vpop.f32.mrf.mxu0
        %v400 = vadd.f32 %v244, %v399
        %401 = vdwg.mxu0
        %v402 = vmax.f32 %v323, 0.0
        %v403 = vmax.f32 %v325, 0.0
        %v404 = vmax.f32 %v328, 0.0
        %v405 = vmax.f32 %v330, 0.0
        %v406 = vmax.f32 %v333, 0.0
        %v407 = vmax.f32 %v335, 0.0
        %v408 = vmax.f32 %v338, 0.0
        %v409 = vmax.f32 %v340, 0.0
        %v410 = vmax.f32 %v343, 0.0
        %v411 = vmax.f32 %v345, 0.0
        %v412 = vmax.f32 %v348, 0.0
        %v413 = vmax.f32 %v350, 0.0
        %v414 = vmax.f32 %v353, 0.0
        %v415 = vmax.f32 %v355, 0.0
        %v416 = vmax.f32 %v358, 0.0
        %v417 = vmax.f32 %v360, 0.0
        %v418 = vmax.f32 %v363, 0.0
        %v419 = vmax.f32 %v365, 0.0
        %v420 = vmax.f32 %v368, 0.0
        %v421 = vmax.f32 %v370, 0.0
        %v422 = vmax.f32 %v373, 0.0
        %v423 = vmax.f32 %v375, 0.0
        %v424 = vmax.f32 %v378, 0.0
        %v425 = vmax.f32 %v380, 0.0
        %v426 = vmax.f32 %v383, 0.0
        %v427 = vmax.f32 %v385, 0.0
        %v428 = vmax.f32 %v388, 0.0
        %v429 = vmax.f32 %v390, 0.0
        %v430 = vmax.f32 %v393, 0.0
        %v431 = vmax.f32 %v395, 0.0
        %v432 = vmax.f32 %v398, 0.0
        %v433 = vmax.f32 %v400, 0.0
        %vm434 = vcmask 261120
        %435 = vst.msk [vmem:[%s187] sm:$0xff] %vm434, %v402
        %436 = vst.msk [vmem:[%s187 + $0x8] sm:$0xff] %vm434, %v403
        %437 = vst.msk [vmem:[%s187 + $0x10] sm:$0xff] %vm434, %v404
        %438 = vst.msk [vmem:[%s187 + $0x18] sm:$0xff] %vm434, %v405
        %439 = vst.msk [vmem:[%s187 + $0x20] sm:$0xff] %vm434, %v406
        %440 = vst.msk [vmem:[%s187 + $0x28] sm:$0xff] %vm434, %v407
        %441 = vst.msk [vmem:[%s187 + $0x30] sm:$0xff] %vm434, %v408
        %442 = vst.msk [vmem:[%s187 + $0x38] sm:$0xff] %vm434, %v409
        %443 = vst.msk [vmem:[%s187 + $0x40] sm:$0xff] %vm434, %v410
        %444 = vst.msk [vmem:[%s187 + $0x48] sm:$0xff] %vm434, %v411
        %445 = vst.msk [vmem:[%s187 + $0x50] sm:$0xff] %vm434, %v412
        %446 = vst.msk [vmem:[%s187 + $0x58] sm:$0xff] %vm434, %v413
        %447 = vst.msk [vmem:[%s187 + $0x60] sm:$0xff] %vm434, %v414
        %448 = vst.msk [vmem:[%s187 + $0x68] sm:$0xff] %vm434, %v415
        %449 = vst.msk [vmem:[%s187 + $0x70] sm:$0xff] %vm434, %v416
        %450 = vst.msk [vmem:[%s187 + $0x78] sm:$0xff] %vm434, %v417
        %451 = vst.msk [vmem:[%s187 + $0x80] sm:$0xff] %vm434, %v418
        %452 = vst.msk [vmem:[%s187 + $0x88] sm:$0xff] %vm434, %v419
        %453 = vst.msk [vmem:[%s187 + $0x90] sm:$0xff] %vm434, %v420
        %454 = vst.msk [vmem:[%s187 + $0x98] sm:$0xff] %vm434, %v421
        %455 = vst.msk [vmem:[%s187 + $0xa0] sm:$0xff] %vm434, %v422
        %456 = vst.msk [vmem:[%s187 + $0xa8] sm:$0xff] %vm434, %v423
        %457 = vst.msk [vmem:[%s187 + $0xb0] sm:$0xff] %vm434, %v424
        %458 = vst.msk [vmem:[%s187 + $0xb8] sm:$0xff] %vm434, %v425
        %459 = vst.msk [vmem:[%s187 + $0xc0] sm:$0xff] %vm434, %v426
        %460 = vst.msk [vmem:[%s187 + $0xc8] sm:$0xff] %vm434, %v427
        %461 = vst.msk [vmem:[%s187 + $0xd0] sm:$0xff] %vm434, %v428
        %462 = vst.msk [vmem:[%s187 + $0xd8] sm:$0xff] %vm434, %v429
        %463 = vst.msk [vmem:[%s187 + $0xe0] sm:$0xff] %vm434, %v430
        %464 = vst.msk [vmem:[%s187 + $0xe8] sm:$0xff] %vm434, %v431
        %465 = vst.msk [vmem:[%s187 + $0xf0] sm:$0xff] %vm434, %v432
        %466 = vst.msk [vmem:[%s187 + $0xf8] sm:$0xff] %vm434, %v433
        %s467 = smul.u32 32, %s15
        %p468 = scmp.lt.s32.totalorder %s467, 63
        %s469 = scalar_select %p468, %s467, 63
        %s470 = smul.addr %s469, 8
        %s471 = scalar_lea.vmem %s3, %s470
        // Predicated region
        $region37: #{mpii_1_forward.14} parent=31 // pred_check
          %p472 = pneg %p101
        $region38: #{mpii_1_forward.14} parent=31 // pred_check_branch
          %474 = sbr.rel (%p472) target = $region40
        $region39: #{mpii_1_forward.14} parent=31 // pred_region
          %s475 = smul.u32 32, %s15
        $region40: #{mpii_1_forward.14} parent=31 // pred_fallthru
          _
      $region32: #{mpii_1_forward.14} parent=5 // pred_fallthru
        _
      %p476 = scmp.le.s32.totalorder 2, %s10
      // Predicated region
      $region41: #{mpii_1_forward.14} parent=5 // pred_check
        %p477 = pneg %p476
      $region42: #{mpii_1_forward.14} parent=5 // pred_check_branch
        %479 = sbr.rel (%p477) target = $region44
      $region43: #{mpii_1_forward.14} parent=5 // pred_region
        %s480 = ssub.s32 %s10, 2
        // Predicated region
        $region45: #{mpii_1_forward.14} parent=43 // pred_check
          %p481 = pneg %p107
        $region46: #{mpii_1_forward.14} parent=43 // pred_check_branch
          %483 = sbr.rel (%p481) target = $region48
        $region47: #{mpii_1_forward.14} parent=43 // pred_region
          %s484 = smul.u32 32, %s16
          %p485 = scmp.lt.s32.totalorder %s484, 63
          %s486 = scalar_select %p485, %s484, 63
          %s487 = smul.addr %s486, 8
          %s488 = scalar_lea.vmem %s3, %s487
        $region48: #{mpii_1_forward.14} parent=43 // pred_fallthru
          _
      $region44: #{mpii_1_forward.14} parent=5 // pred_fallthru
        _
    $region6: #{mpii_1_forward.14} parent=1 // loop_footer
      %s14 = sadd.s32 1, %s10
    $region7: #{mpii_1_forward.14} parent=1 // loop_footer_branch
      %9 = sbr.rel target = $region3
    $region8: #{mpii_1_forward.14} parent=1 // loop_exit
      _
    %489 = vsyncpa [#allocation3], 1
    %s490 = scalar_lea.sflag [#allocation3], 1
    %491 = vsyncpa %s490, 1

// kernel: mpii_1_forward.15
$region0: #{mpii_1_forward.15}
  #allocation0 [shape = 'u32[]', space=smem, size = 0x4, offset = 0x4, fixed_abs, tag = 'smem constant byte address 0x4 - core index']
  #allocation1 [shape = 'u32[72,128]{1,0:T(1,128)}', space=vmem, size = 0x9000, scoped, tag = 'internal scratch']
  %s0 = inlined_call_operand.vmem [shape: f32[512,288], index: 0, kind: input, shape index: {}]
  %s1 = inlined_call_operand.vmem [shape: bf16[288,32], index: 1, kind: input, shape index: {}]
  %s2 = inlined_call_operand.vmem [shape: f32[1,32], index: 2, kind: input, shape index: {}]
  %s3 = inlined_call_operand.vmem [shape: f32[512,32], index: 3, kind: output, shape index: {}]
  %s4 = sld [smem:[#allocation0]]
  $region45: #{mpii_1_forward.15} parent=0
    _
  %s6 = ssub.s32 1, %s4
  %s7 = scalar_select 0, %s6, %s4
  loop: start=0, step=1, limit=4
  $region2: #{mpii_1_forward.15} parent=0 // loop_pre_header
    _
  $region3: #{mpii_1_forward.15} parent=0 // loop_header
    %s9 = sphi 0, %s13
    %p10 = scmp.ge.s32.totalorder %s9, 4
    %s19 = sphi 0, %s21
    %s22 = sphi 0, %s19
    %s23 = sphi 0, %s22
    %s39 = sphi 0, %s23
    %s43 = sphi 0, %s43
    %s45 = sphi 0, %s43
    %s46 = sphi 0, %s45
    %s60 = sphi 0, %s46
    %s64 = sphi 0, %s64
    %s66 = sphi 0, %s64
    %s67 = sphi 0, %s66
    %s81 = sphi 0, %s67
    %s87 = sphi 0, %s89
    %s90 = sphi 0, %s87
    %s91 = sphi 0, %s90
    %s107 = sphi 0, %s91
  $region4: #{mpii_1_forward.15} parent=0 // loop_header_branch
    %12 = sbr.rel (%p10) target = $region8
  $region5: #{mpii_1_forward.15} parent=0 // loop_body
    %s14 = ssub.s32 %s9, 1
    %s15 = ssub.s32 %s9, 2
    %s16 = sadd.s32 %s9, 1
    %s17 = ssub.s32 %s9, %s16
    %p18 = scmp.eq.s32.totalorder %s17, 0
    %s20 = sadd.s32 %s19, 1
    %s21 = scalar_select %p18, %s19, %s20
    %p24 = pneg %p18
    %p25 = scmp.eq.s32.totalorder %s9, 1
    %p26 = por %p24, %p25
    %p27 = scmp.ne.s32.totalorder %s19, %s22
    %p28 = scmp.eq.s32.totalorder %s9, 0
    %p29 = por %p27, %p28
    %p30 = scmp.ne.s32.totalorder %s19, %s22
    %p31 = scmp.eq.s32.totalorder %s14, 1
    %p32 = por %p30, %p31
    %p33 = scmp.ne.s32.totalorder %s22, %s23
    %p34 = scmp.eq.s32.totalorder %s14, 0
    %p35 = por %p33, %p34
    %p36 = scmp.ne.s32.totalorder %s22, %s23
    %p37 = scmp.eq.s32.totalorder %s15, 1
    %p38 = por %p36, %p37
    %p40 = scmp.ne.s32.totalorder %s23, %s39
    %p41 = scmp.eq.s32.totalorder %s15, 0
    %p42 = por %p40, %p41
    %s44 = sadd.s32 %s43, 1
    %p47 = scmp.eq.s32.totalorder %s9, 1
    %p48 = scmp.ne.s32.totalorder %s43, %s45
    %p49 = scmp.eq.s32.totalorder %s9, 0
    %p50 = por %p48, %p49
    %p51 = scmp.ne.s32.totalorder %s43, %s45
    %p52 = scmp.eq.s32.totalorder %s14, 1
    %p53 = por %p51, %p52
    %p54 = scmp.ne.s32.totalorder %s45, %s46
    %p55 = scmp.eq.s32.totalorder %s14, 0
    %p56 = por %p54, %p55
    %p57 = scmp.ne.s32.totalorder %s45, %s46
    %p58 = scmp.eq.s32.totalorder %s15, 1
    %p59 = por %p57, %p58
    %p61 = scmp.ne.s32.totalorder %s46, %s60
    %p62 = scmp.eq.s32.totalorder %s15, 0
    %p63 = por %p61, %p62
    %s65 = sadd.s32 %s64, 1
    %p68 = scmp.eq.s32.totalorder %s9, 1
    %p69 = scmp.ne.s32.totalorder %s64, %s66
    %p70 = scmp.eq.s32.totalorder %s9, 0
    %p71 = por %p69, %p70
    %p72 = scmp.ne.s32.totalorder %s64, %s66
    %p73 = scmp.eq.s32.totalorder %s14, 1
    %p74 = por %p72, %p73
    %p75 = scmp.ne.s32.totalorder %s66, %s67
    %p76 = scmp.eq.s32.totalorder %s14, 0
    %p77 = por %p75, %p76
    %p78 = scmp.ne.s32.totalorder %s66, %s67
    %p79 = scmp.eq.s32.totalorder %s15, 1
    %p80 = por %p78, %p79
    %p82 = scmp.ne.s32.totalorder %s67, %s81
    %p83 = scmp.eq.s32.totalorder %s15, 0
    %p84 = por %p82, %p83
    %s85 = ssub.s32 %s9, %s16
    %p86 = scmp.eq.s32.totalorder %s85, 0
    %s88 = sadd.s32 %s87, 1
    %s89 = scalar_select %p86, %s87, %s88
    %p92 = pneg %p86
    %p93 = scmp.eq.s32.totalorder %s9, 1
    %p94 = por %p92, %p93
    %p95 = scmp.ne.s32.totalorder %s87, %s90
    %p96 = scmp.eq.s32.totalorder %s9, 0
    %p97 = por %p95, %p96
    %p98 = scmp.ne.s32.totalorder %s87, %s90
    %p99 = scmp.eq.s32.totalorder %s14, 1
    %p100 = por %p98, %p99
    %p101 = scmp.ne.s32.totalorder %s90, %s91
    %p102 = scmp.eq.s32.totalorder %s14, 0
    %p103 = por %p101, %p102
    %p104 = scmp.ne.s32.totalorder %s90, %s91
    %p105 = scmp.eq.s32.totalorder %s15, 1
    %p106 = por %p104, %p105
    %p108 = scmp.ne.s32.totalorder %s91, %s107
    %p109 = scmp.eq.s32.totalorder %s15, 0
    %p110 = por %p108, %p109
    %p111 = scmp.le.s32.totalorder 1, %s9
    %p112 = scmp.lt.s32.totalorder %s9, 3
    %p113 = pnand %p111, %p112
    %p114 = pneg %p113
    // Predicated region
    $region9: #{mpii_1_forward.15} parent=5 // pred_check
      _
    $region10: #{mpii_1_forward.15} parent=5 // pred_check_branch
      %116 = sbr.rel (%p113) target = $region12
    $region11: #{mpii_1_forward.15} parent=5 // pred_region
      %s117 = ssub.s32 %s9, 1
      // Predicated region
      $region13: #{mpii_1_forward.15} parent=11 // pred_check
        %p118 = pneg %p56
      $region14: #{mpii_1_forward.15} parent=11 // pred_check_branch
        %120 = sbr.rel (%p118) target = $region16
      $region15: #{mpii_1_forward.15} parent=11 // pred_region
        _
      $region16: #{mpii_1_forward.15} parent=11 // pred_fallthru
        _
      // Predicated region
      $region17: #{mpii_1_forward.15} parent=11 // pred_check
        %p121 = pneg %p77
      $region18: #{mpii_1_forward.15} parent=11 // pred_check_branch
        %123 = sbr.rel (%p121) target = $region20
      $region19: #{mpii_1_forward.15} parent=11 // pred_region
        _
      $region20: #{mpii_1_forward.15} parent=11 // pred_fallthru
        _
    $region12: #{mpii_1_forward.15} parent=5 // pred_fallthru
      _
    %p124 = scmp.lt.s32.totalorder %s9, 2
    // Predicated region
    $region21: #{mpii_1_forward.15} parent=5 // pred_check
      %p125 = pneg %p124
    $region22: #{mpii_1_forward.15} parent=5 // pred_check_branch
      %127 = sbr.rel (%p125) target = $region24
    $region23: #{mpii_1_forward.15} parent=5 // pred_region
      // Predicated region
      $region25: #{mpii_1_forward.15} parent=23 // pred_check
        %p128 = pneg %p29
      $region26: #{mpii_1_forward.15} parent=23 // pred_check_branch
        %130 = sbr.rel (%p128) target = $region28
      $region27: #{mpii_1_forward.15} parent=23 // pred_region
        %s131 = smul.u32 32, %s9
        %p132 = scmp.lt.s32.totalorder %s131, 63
        %s133 = scalar_select %p132, %s131, 63
        %s134 = smul.addr %s133, 3
        %s135 = smul.addr %s134, 8
        %s136 = scalar_lea.vmem %s0, %s135
        %s137 = smul.u32 32, %s9
      $region28: #{mpii_1_forward.15} parent=23 // pred_fallthru
        _
    $region24: #{mpii_1_forward.15} parent=5 // pred_fallthru
      _
    %p138 = scmp.le.s32.totalorder 1, %s9
    %p139 = scmp.lt.s32.totalorder %s9, 3
    %p140 = pnand %p138, %p139
    %p141 = pneg %p140
    // Predicated region
    $region29: #{mpii_1_forward.15} parent=5 // pred_check
      _
    $region30: #{mpii_1_forward.15} parent=5 // pred_check_branch
      %143 = sbr.rel (%p140) target = $region32
    $region31: #{mpii_1_forward.15} parent=5 // pred_region
      %s144 = ssub.s32 %s9, 1
      %s145 = smul.u32 32, %s14
      %p146 = scmp.lt.s32.totalorder %s145, 63
      %s147 = scalar_select %p146, %s145, 63
      %s148 = smul.addr %s147, 3
      %s149 = smul.addr %s148, 8
      %s150 = scalar_lea.vmem %s0, %s149
      %p151 = pneg %p35
      %p152 = pneg %p32
      %p153 = pneg %p56
      %p154 = pneg %p53
      %p155 = pneg %p77
      %p156 = pneg %p74
      %p157 = pneg %p103
      %p158 = pneg %p100
      %s159 = smul.u32 32, %s14
      %p160 = scmp.lt.s32.totalorder %s159, 63
      %s161 = scalar_select %p160, %s159, 63
      %s162 = smul.addr %s161, 8
      %s163 = scalar_lea.vmem %s3, %s162
      %s164 = smul.u32 32, %s14
      %p165 = scmp.lt.s32.totalorder %s164, 63
      %s166 = scalar_select %p165, %s164, 63
      %s167 = smul.addr %s166, 3
      %s168 = smul.addr %s167, 8
      %s169 = scalar_lea.vmem %s0, %s168
      %s170 = smul.u32 32, %s14
      %s171 = smul.u32 32, %s14
      %p172 = scmp.lt.s32.totalorder %s171, 63
      %s173 = scalar_select %p172, %s171, 63
      %s174 = smul.addr %s173, 8
      %s175 = scalar_lea.vmem %s3, %s174
      %s176 = smul.u32 32, %s14
      %v178 = vld [vmem:[%s169] sm:$0xff]
      %v179 = vld [vmem:[%s169 + $0x8] sm:$0xff]
      %v180 = vld [vmem:[%s169 + $0x10] sm:$0xff]
      %v181 = vld [vmem:[%s169 + $0x18] sm:$0xff]
      %v182 = vld [vmem:[%s169 + $0x20] sm:$0xff]
      %v183 = vld [vmem:[%s169 + $0x28] sm:$0xff]
      %v184 = vld [vmem:[%s169 + $0x30] sm:$0xff]
      %v185 = vld [vmem:[%s169 + $0x38] sm:$0xff]
      %v186 = vld [vmem:[%s169 + $0x40] sm:$0xff]
      %v187 = vld [vmem:[%s169 + $0x48] sm:$0xff]
      %v188 = vld [vmem:[%s169 + $0x50] sm:$0xff]
      %v189 = vld [vmem:[%s169 + $0x58] sm:$0xff]
      %v190 = vld [vmem:[%s169 + $0x60] sm:$0xff]
      %v191 = vld [vmem:[%s169 + $0x68] sm:$0xff]
      %v192 = vld [vmem:[%s169 + $0x70] sm:$0xff]
      %v193 = vld [vmem:[%s169 + $0x78] sm:$0xff]
      %v194 = vld [vmem:[%s169 + $0x80] sm:$0xff]
      %v195 = vld [vmem:[%s169 + $0x88] sm:$0xff]
      %v196 = vld [vmem:[%s169 + $0x90] sm:$0xff]
      %v197 = vld [vmem:[%s169 + $0x98] sm:$0xff]
      %v198 = vld [vmem:[%s169 + $0xa0] sm:$0xff]
      %v199 = vld [vmem:[%s169 + $0xa8] sm:$0xff]
      %v200 = vld [vmem:[%s169 + $0xb0] sm:$0xff]
      %v201 = vld [vmem:[%s169 + $0xb8] sm:$0xff]
      %v202 = vld [vmem:[%s169 + $0xc0] sm:$0xff]
      %v203 = vld [vmem:[%s169 + $0xc8] sm:$0xff]
      %v204 = vld [vmem:[%s169 + $0xd0] sm:$0xff]
      %v205 = vld [vmem:[%s169 + $0xd8] sm:$0xff]
      %v206 = vld [vmem:[%s169 + $0xe0] sm:$0xff]
      %v207 = vld [vmem:[%s169 + $0xe8] sm:$0xff]
      %v208 = vld [vmem:[%s169 + $0xf0] sm:$0xff]
      %v209 = vld [vmem:[%s169 + $0xf8] sm:$0xff]
      %v210 = vld [vmem:[%s169 + $0x100] sm:$0xff]
      %v211 = vld [vmem:[%s169 + $0x108] sm:$0xff]
      %v212 = vld [vmem:[%s169 + $0x110] sm:$0xff]
      %v213 = vld [vmem:[%s169 + $0x118] sm:$0xff]
      %v214 = vld [vmem:[%s169 + $0x120] sm:$0xff]
      %v215 = vld [vmem:[%s169 + $0x128] sm:$0xff]
      %v216 = vld [vmem:[%s169 + $0x130] sm:$0xff]
      %v217 = vld [vmem:[%s169 + $0x138] sm:$0xff]
      %v218 = vld [vmem:[%s169 + $0x140] sm:$0xff]
      %v219 = vld [vmem:[%s169 + $0x148] sm:$0xff]
      %v220 = vld [vmem:[%s169 + $0x150] sm:$0xff]
      %v221 = vld [vmem:[%s169 + $0x158] sm:$0xff]
      %v222 = vld [vmem:[%s169 + $0x160] sm:$0xff]
      %v223 = vld [vmem:[%s169 + $0x168] sm:$0xff]
      %v224 = vld [vmem:[%s169 + $0x170] sm:$0xff]
      %v225 = vld [vmem:[%s169 + $0x178] sm:$0xff]
      %v226 = vld [vmem:[%s169 + $0x180] sm:$0xff]
      %v227 = vld [vmem:[%s169 + $0x188] sm:$0xff]
      %v228 = vld [vmem:[%s169 + $0x190] sm:$0xff]
      %v229 = vld [vmem:[%s169 + $0x198] sm:$0xff]
      %v230 = vld [vmem:[%s169 + $0x1a0] sm:$0xff]
      %v231 = vld [vmem:[%s169 + $0x1a8] sm:$0xff]
      %v232 = vld [vmem:[%s169 + $0x1b0] sm:$0xff]
      %v233 = vld [vmem:[%s169 + $0x1b8] sm:$0xff]
      %v234 = vld [vmem:[%s169 + $0x1c0] sm:$0xff]
      %v235 = vld [vmem:[%s169 + $0x1c8] sm:$0xff]
      %v236 = vld [vmem:[%s169 + $0x1d0] sm:$0xff]
      %v237 = vld [vmem:[%s169 + $0x1d8] sm:$0xff]
      %v238 = vld [vmem:[%s169 + $0x1e0] sm:$0xff]
      %v239 = vld [vmem:[%s169 + $0x1e8] sm:$0xff]
      %v240 = vld [vmem:[%s169 + $0x1f0] sm:$0xff]
      %v241 = vld [vmem:[%s169 + $0x1f8] sm:$0xff]
      %v242 = vld [vmem:[%s169 + $0x200] sm:$0xff]
      %v243 = vld [vmem:[%s169 + $0x208] sm:$0xff]
      %v244 = vld [vmem:[%s169 + $0x210] sm:$0xff]
      %v245 = vld [vmem:[%s169 + $0x218] sm:$0xff]
      %v246 = vld [vmem:[%s169 + $0x220] sm:$0xff]
      %v247 = vld [vmem:[%s169 + $0x228] sm:$0xff]
      %v248 = vld [vmem:[%s169 + $0x230] sm:$0xff]
      %v249 = vld [vmem:[%s169 + $0x238] sm:$0xff]
      %v250 = vld [vmem:[%s169 + $0x240] sm:$0xff]
      %v251 = vld [vmem:[%s169 + $0x248] sm:$0xff]
      %v252 = vld [vmem:[%s169 + $0x250] sm:$0xff]
      %v253 = vld [vmem:[%s169 + $0x258] sm:$0xff]
      %v254 = vld [vmem:[%s169 + $0x260] sm:$0xff]
      %v255 = vld [vmem:[%s169 + $0x268] sm:$0xff]
      %v256 = vld [vmem:[%s169 + $0x270] sm:$0xff]
      %v257 = vld [vmem:[%s169 + $0x278] sm:$0xff]
      %v258 = vld [vmem:[%s169 + $0x280] sm:$0xff]
      %v259 = vld [vmem:[%s169 + $0x288] sm:$0xff]
      %v260 = vld [vmem:[%s169 + $0x290] sm:$0xff]
      %v261 = vld [vmem:[%s169 + $0x298] sm:$0xff]
      %v262 = vld [vmem:[%s169 + $0x2a0] sm:$0xff]
      %v263 = vld [vmem:[%s169 + $0x2a8] sm:$0xff]
      %v264 = vld [vmem:[%s169 + $0x2b0] sm:$0xff]
      %v265 = vld [vmem:[%s169 + $0x2b8] sm:$0xff]
      %v266 = vld [vmem:[%s169 + $0x2c0] sm:$0xff]
      %v267 = vld [vmem:[%s169 + $0x2c8] sm:$0xff]
      %v268 = vld [vmem:[%s169 + $0x2d0] sm:$0xff]
      %v269 = vld [vmem:[%s169 + $0x2d8] sm:$0xff]
      %v270 = vld [vmem:[%s169 + $0x2e0] sm:$0xff]
      %v271 = vld [vmem:[%s169 + $0x2e8] sm:$0xff]
      %v272 = vld [vmem:[%s169 + $0x2f0] sm:$0xff]
      %v273 = vld [vmem:[%s169 + $0x2f8] sm:$0xff]
      %v274 = vpack.c.bf16 %v181, %v178
      %v275 = vpack.c.bf16 %v182, %v179
      %v276 = vpack.c.bf16 %v183, %v180
      %v277 = vpack.c.bf16 %v187, %v184
      %v278 = vpack.c.bf16 %v188, %v185
      %v279 = vpack.c.bf16 %v189, %v186
      %v280 = vpack.c.bf16 %v193, %v190
      %v281 = vpack.c.bf16 %v194, %v191
      %v282 = vpack.c.bf16 %v195, %v192
      %v283 = vpack.c.bf16 %v199, %v196
      %v284 = vpack.c.bf16 %v200, %v197
      %v285 = vpack.c.bf16 %v201, %v198
      %v286 = vpack.c.bf16 %v205, %v202
      %v287 = vpack.c.bf16 %v206, %v203
      %v288 = vpack.c.bf16 %v207, %v204
      %v289 = vpack.c.bf16 %v211, %v208
      %v290 = vpack.c.bf16 %v212, %v209
      %v291 = vpack.c.bf16 %v213, %v210
      %v292 = vpack.c.bf16 %v217, %v214
      %v293 = vpack.c.bf16 %v218, %v215
      %v294 = vpack.c.bf16 %v219, %v216
      %v295 = vpack.c.bf16 %v223, %v220
      %v296 = vpack.c.bf16 %v224, %v221
      %v297 = vpack.c.bf16 %v225, %v222
      %v298 = vpack.c.bf16 %v229, %v226
      %v299 = vpack.c.bf16 %v230, %v227
      %v300 = vpack.c.bf16 %v231, %v228
      %v301 = vpack.c.bf16 %v235, %v232
      %v302 = vpack.c.bf16 %v236, %v233
      %v303 = vpack.c.bf16 %v237, %v234
      %v304 = vpack.c.bf16 %v241, %v238
      %v305 = vpack.c.bf16 %v242, %v239
      %v306 = vpack.c.bf16 %v243, %v240
      %v307 = vpack.c.bf16 %v247, %v244
      %v308 = vpack.c.bf16 %v248, %v245
      %v309 = vpack.c.bf16 %v249, %v246
      %v310 = vpack.c.bf16 %v253, %v250
      %v311 = vpack.c.bf16 %v254, %v251
      %v312 = vpack.c.bf16 %v255, %v252
      %v313 = vpack.c.bf16 %v259, %v256
      %v314 = vpack.c.bf16 %v260, %v257
      %v315 = vpack.c.bf16 %v261, %v258
      %v316 = vpack.c.bf16 %v265, %v262
      %v317 = vpack.c.bf16 %v266, %v263
      %v318 = vpack.c.bf16 %v267, %v264
      %v319 = vpack.c.bf16 %v271, %v268
      %v320 = vpack.c.bf16 %v272, %v269
      %v321 = vpack.c.bf16 %v273, %v270
      %v322 = vld [vmem:[%s1] sm:$0xf]
      %v323 = vld [vmem:[%s1 + $0x4] sm:$0xf]
      %v324 = vld [vmem:[%s1 + $0x8] sm:$0xf]
      %v325 = vld [vmem:[%s1 + $0xc] sm:$0xf]
      %v326 = vld [vmem:[%s1 + $0x10] sm:$0xf]
      %v327 = vld [vmem:[%s1 + $0x14] sm:$0xf]
      %v328 = vld [vmem:[%s1 + $0x18] sm:$0xf]
      %v329 = vld [vmem:[%s1 + $0x1c] sm:$0xf]
      %v330 = vld [vmem:[%s1 + $0x20] sm:$0xf]
      %v331 = vld [vmem:[%s1 + $0x24] sm:$0xf]
      %v332 = vld [vmem:[%s1 + $0x28] sm:$0xf]
      %v333 = vld [vmem:[%s1 + $0x2c] sm:$0xf]
      %v334 = vld [vmem:[%s1 + $0x30] sm:$0xf]
      %v335 = vld [vmem:[%s1 + $0x34] sm:$0xf]
      %v336 = vld [vmem:[%s1 + $0x38] sm:$0xf]
      %v337 = vld [vmem:[%s1 + $0x3c] sm:$0xf]
      %v338 = vld [vmem:[%s1 + $0x40] sm:$0xf]
      %v339 = vld [vmem:[%s1 + $0x44] sm:$0xf]
      %v340 = vld [vmem:[%s1 + $0x48] sm:$0xf]
      %v341 = vld [vmem:[%s1 + $0x4c] sm:$0xf]
      %v342 = vld [vmem:[%s1 + $0x50] sm:$0xf]
      %v343 = vld [vmem:[%s1 + $0x54] sm:$0xf]
      %v344 = vld [vmem:[%s1 + $0x58] sm:$0xf]
      %v345 = vld [vmem:[%s1 + $0x5c] sm:$0xf]
      %v346 = vld [vmem:[%s1 + $0x60] sm:$0xf]
      %v347 = vld [vmem:[%s1 + $0x64] sm:$0xf]
      %v348 = vld [vmem:[%s1 + $0x68] sm:$0xf]
      %v349 = vld [vmem:[%s1 + $0x6c] sm:$0xf]
      %v350 = vld [vmem:[%s1 + $0x70] sm:$0xf]
      %v351 = vld [vmem:[%s1 + $0x74] sm:$0xf]
      %v352 = vld [vmem:[%s1 + $0x78] sm:$0xf]
      %v353 = vld [vmem:[%s1 + $0x7c] sm:$0xf]
      %v354 = vld [vmem:[%s1 + $0x80] sm:$0xf]
      %v355 = vld [vmem:[%s1 + $0x84] sm:$0xf]
      %v356 = vld [vmem:[%s1 + $0x88] sm:$0xf]
      %v357 = vld [vmem:[%s1 + $0x8c] sm:$0xf]
      %v358 = vld [vmem:[%s2] sm:$0x1]
      %v360 = vperm.slane %v358, 0
      %v398 = vunpack.c.l.b16 %v322
      %v399 = vunpack.c.l.b16 %v323
      %v400 = vunpack.c.l.b16 %v324
      %v401 = vunpack.c.l.b16 %v325
      %v402 = vunpack.c.l.b16 %v326
      %v403 = vunpack.c.l.b16 %v327
      %v404 = vunpack.c.l.b16 %v328
      %v405 = vunpack.c.l.b16 %v329
      %v406 = vunpack.c.l.b16 %v330
      %v407 = vunpack.c.l.b16 %v331
      %v408 = vunpack.c.l.b16 %v332
      %v409 = vunpack.c.l.b16 %v333
      %v410 = vunpack.c.l.b16 %v334
      %v411 = vunpack.c.l.b16 %v335
      %v412 = vunpack.c.l.b16 %v336
      %v413 = vunpack.c.l.b16 %v337
      %v414 = vunpack.c.l.b16 %v338
      %v415 = vunpack.c.l.b16 %v339
      %v416 = vunpack.c.l.b16 %v340
      %v417 = vunpack.c.l.b16 %v341
      %v418 = vunpack.c.l.b16 %v342
      %v419 = vunpack.c.l.b16 %v343
      %v420 = vunpack.c.l.b16 %v344
      %v421 = vunpack.c.l.b16 %v345
      %v422 = vunpack.c.l.b16 %v346
      %v423 = vunpack.c.l.b16 %v347
      %v424 = vunpack.c.l.b16 %v348
      %v425 = vunpack.c.l.b16 %v349
      %v426 = vunpack.c.l.b16 %v350
      %v427 = vunpack.c.l.b16 %v351
      %v428 = vunpack.c.l.b16 %v352
      %v429 = vunpack.c.l.b16 %v353
      %v430 = vunpack.c.l.b16 %v354
      %v431 = vunpack.c.l.b16 %v355
      %v432 = vunpack.c.l.b16 %v356
      %v433 = vunpack.c.l.b16 %v357
      %v434 = vpack.c.b16 %v399, %v398
      %v435 = vpack.c.b16 %v401, %v400
      %v436 = vpack.c.b16 %v403, %v402
      %v437 = vpack.c.b16 %v405, %v404
      %v438 = vpack.c.b16 %v407, %v406
      %v439 = vpack.c.b16 %v409, %v408
      %v440 = vpack.c.b16 %v411, %v410
      %v441 = vpack.c.b16 %v413, %v412
      %v442 = vpack.c.b16 %v415, %v414
      %v443 = vpack.c.b16 %v417, %v416
      %v444 = vpack.c.b16 %v419, %v418
      %v445 = vpack.c.b16 %v421, %v420
      %v446 = vpack.c.b16 %v423, %v422
      %v447 = vpack.c.b16 %v425, %v424
      %v448 = vpack.c.b16 %v427, %v426
      %v449 = vpack.c.b16 %v429, %v428
      %v450 = vpack.c.b16 %v431, %v430
      %v451 = vpack.c.b16 %v433, %v432
      %vm470 = vcmask 261120
      %v472 = vsel %vm470, %v276, 0
      %v475 = vsel %vm470, %v279, 0
      %v478 = vsel %vm470, %v282, 0
      %v481 = vsel %vm470, %v285, 0
      %v484 = vsel %vm470, %v288, 0
      %v487 = vsel %vm470, %v291, 0
      %v490 = vsel %vm470, %v294, 0
      %v493 = vsel %vm470, %v297, 0
      %v496 = vsel %vm470, %v300, 0
      %v499 = vsel %vm470, %v303, 0
      %v502 = vsel %vm470, %v306, 0
      %v505 = vsel %vm470, %v309, 0
      %v508 = vsel %vm470, %v312, 0
      %v511 = vsel %vm470, %v315, 0
      %v514 = vsel %vm470, %v318, 0
      %v517 = vsel %vm470, %v321, 0
      %519 = vmatpush.bf16.msra.mxu0 %v441
      %520 = vmatpush.bf16.msra.mxu0 %v440
      %521 = vmatpush.bf16.msra.mxu0 %v439
      %522 = vmatpush.bf16.msra.mxu0 %v438
      %523 = vmatpush.bf16.msra.mxu0 %v437
      %524 = vmatpush.bf16.msra.mxu0 %v436
      %525 = vmatpush.bf16.msra.mxu0 %v435
      %526 = vmatpush.bf16.msra.mxu0 %v434
      %527 = vmatmul.bf16.gmra.mxu0 %v274
      %v528 = vpop.f32.mrf.mxu0
      %v529 = vadd.f32 %v360, %v528
      %v530 = vpop.f32.mrf.mxu0
      %v531 = vadd.f32 %v360, %v530
      %532 = vmatmul.bf16.gmra.mxu0 %v277
      %v533 = vpop.f32.mrf.mxu0
      %v534 = vadd.f32 %v360, %v533
      %v535 = vpop.f32.mrf.mxu0
      %v536 = vadd.f32 %v360, %v535
      %537 = vmatmul.bf16.gmra.mxu0 %v280
      %v538 = vpop.f32.mrf.mxu0
      %v539 = vadd.f32 %v360, %v538
      %v540 = vpop.f32.mrf.mxu0
      %v541 = vadd.f32 %v360, %v540
      %542 = vmatmul.bf16.gmra.mxu0 %v283
      %v543 = vpop.f32.mrf.mxu0
      %v544 = vadd.f32 %v360, %v543
      %v545 = vpop.f32.mrf.mxu0
      %v546 = vadd.f32 %v360, %v545
      %547 = vmatmul.bf16.gmra.mxu0 %v286
      %v548 = vpop.f32.mrf.mxu0
      %v549 = vadd.f32 %v360, %v548
      %v550 = vpop.f32.mrf.mxu0
      %v551 = vadd.f32 %v360, %v550
      %552 = vmatmul.bf16.gmra.mxu0 %v289
      %v553 = vpop.f32.mrf.mxu0
      %v554 = vadd.f32 %v360, %v553
      %v555 = vpop.f32.mrf.mxu0
      %v556 = vadd.f32 %v360, %v555
      %557 = vmatmul.bf16.gmra.mxu0 %v292
      %v558 = vpop.f32.mrf.mxu0
      %v559 = vadd.f32 %v360, %v558
      %v560 = vpop.f32.mrf.mxu0
      %v561 = vadd.f32 %v360, %v560
      %562 = vmatmul.bf16.gmra.mxu0 %v295
      %v563 = vpop.f32.mrf.mxu0
      %v564 = vadd.f32 %v360, %v563
      %v565 = vpop.f32.mrf.mxu0
      %v566 = vadd.f32 %v360, %v565
      %567 = vmatmul.bf16.gmra.mxu0 %v298
      %v568 = vpop.f32.mrf.mxu0
      %v569 = vadd.f32 %v360, %v568
      %v570 = vpop.f32.mrf.mxu0
      %v571 = vadd.f32 %v360, %v570
      %572 = vmatmul.bf16.gmra.mxu0 %v301
      %v573 = vpop.f32.mrf.mxu0
      %v574 = vadd.f32 %v360, %v573
      %v575 = vpop.f32.mrf.mxu0
      %v576 = vadd.f32 %v360, %v575
      %577 = vmatmul.bf16.gmra.mxu0 %v304
      %v578 = vpop.f32.mrf.mxu0
      %v579 = vadd.f32 %v360, %v578
      %v580 = vpop.f32.mrf.mxu0
      %v581 = vadd.f32 %v360, %v580
      %582 = vmatmul.bf16.gmra.mxu0 %v307
      %v583 = vpop.f32.mrf.mxu0
      %v584 = vadd.f32 %v360, %v583
      %v585 = vpop.f32.mrf.mxu0
      %v586 = vadd.f32 %v360, %v585
      %587 = vmatmul.bf16.gmra.mxu0 %v310
      %v588 = vpop.f32.mrf.mxu0
      %v589 = vadd.f32 %v360, %v588
      %v590 = vpop.f32.mrf.mxu0
      %v591 = vadd.f32 %v360, %v590
      %592 = vmatmul.bf16.gmra.mxu0 %v313
      %v593 = vpop.f32.mrf.mxu0
      %v594 = vadd.f32 %v360, %v593
      %v595 = vpop.f32.mrf.mxu0
      %v596 = vadd.f32 %v360, %v595
      %597 = vmatmul.bf16.gmra.mxu0 %v316
      %v598 = vpop.f32.mrf.mxu0
      %v599 = vadd.f32 %v360, %v598
      %v600 = vpop.f32.mrf.mxu0
      %v601 = vadd.f32 %v360, %v600
      %602 = vmatmul.bf16.gmra.mxu0 %v319
      %v603 = vpop.f32.mrf.mxu0
      %v604 = vadd.f32 %v360, %v603
      %v605 = vpop.f32.mrf.mxu0
      %v606 = vadd.f32 %v360, %v605
      %607 = vdwg.mxu0
      %608 = vmatpush.bf16.msra.mxu0 %v449
      %609 = vmatpush.bf16.msra.mxu0 %v448
      %610 = vmatpush.bf16.msra.mxu0 %v447
      %611 = vmatpush.bf16.msra.mxu0 %v446
      %612 = vmatpush.bf16.msra.mxu0 %v445
      %613 = vmatpush.bf16.msra.mxu0 %v444
      %614 = vmatpush.bf16.msra.mxu0 %v443
      %615 = vmatpush.bf16.msra.mxu0 %v442
      %616 = vmatmul.bf16.gmra.mxu0 %v275
      %v617 = vpop.f32.mrf.mxu0
      %v618 = vadd.f32 %v529, %v617
      %v619 = vpop.f32.mrf.mxu0
      %v620 = vadd.f32 %v531, %v619
      %621 = vmatmul.bf16.gmra.mxu0 %v278
      %v622 = vpop.f32.mrf.mxu0
      %v623 = vadd.f32 %v534, %v622
      %v624 = vpop.f32.mrf.mxu0
      %v625 = vadd.f32 %v536, %v624
      %626 = vmatmul.bf16.gmra.mxu0 %v281
      %v627 = vpop.f32.mrf.mxu0
      %v628 = vadd.f32 %v539, %v627
      %v629 = vpop.f32.mrf.mxu0
      %v630 = vadd.f32 %v541, %v629
      %631 = vmatmul.bf16.gmra.mxu0 %v284
      %v632 = vpop.f32.mrf.mxu0
      %v633 = vadd.f32 %v544, %v632
      %v634 = vpop.f32.mrf.mxu0
      %v635 = vadd.f32 %v546, %v634
      %636 = vmatmul.bf16.gmra.mxu0 %v287
      %v637 = vpop.f32.mrf.mxu0
      %v638 = vadd.f32 %v549, %v637
      %v639 = vpop.f32.mrf.mxu0
      %v640 = vadd.f32 %v551, %v639
      %641 = vmatmul.bf16.gmra.mxu0 %v290
      %v642 = vpop.f32.mrf.mxu0
      %v643 = vadd.f32 %v554, %v642
      %v644 = vpop.f32.mrf.mxu0
      %v645 = vadd.f32 %v556, %v644
      %646 = vmatmul.bf16.gmra.mxu0 %v293
      %v647 = vpop.f32.mrf.mxu0
      %v648 = vadd.f32 %v559, %v647
      %v649 = vpop.f32.mrf.mxu0
      %v650 = vadd.f32 %v561, %v649
      %651 = vmatmul.bf16.gmra.mxu0 %v296
      %v652 = vpop.f32.mrf.mxu0
      %v653 = vadd.f32 %v564, %v652
      %v654 = vpop.f32.mrf.mxu0
      %v655 = vadd.f32 %v566, %v654
      %656 = vmatmul.bf16.gmra.mxu0 %v299
      %v657 = vpop.f32.mrf.mxu0
      %v658 = vadd.f32 %v569, %v657
      %v659 = vpop.f32.mrf.mxu0
      %v660 = vadd.f32 %v571, %v659
      %661 = vmatmul.bf16.gmra.mxu0 %v302
      %v662 = vpop.f32.mrf.mxu0
      %v663 = vadd.f32 %v574, %v662
      %v664 = vpop.f32.mrf.mxu0
      %v665 = vadd.f32 %v576, %v664
      %666 = vmatmul.bf16.gmra.mxu0 %v305
      %v667 = vpop.f32.mrf.mxu0
      %v668 = vadd.f32 %v579, %v667
      %v669 = vpop.f32.mrf.mxu0
      %v670 = vadd.f32 %v581, %v669
      %671 = vmatmul.bf16.gmra.mxu0 %v308
      %v672 = vpop.f32.mrf.mxu0
      %v673 = vadd.f32 %v584, %v672
      %v674 = vpop.f32.mrf.mxu0
      %v675 = vadd.f32 %v586, %v674
      %676 = vmatmul.bf16.gmra.mxu0 %v311
      %v677 = vpop.f32.mrf.mxu0
      %v678 = vadd.f32 %v589, %v677
      %v679 = vpop.f32.mrf.mxu0
      %v680 = vadd.f32 %v591, %v679
      %681 = vmatmul.bf16.gmra.mxu0 %v314
      %v682 = vpop.f32.mrf.mxu0
      %v683 = vadd.f32 %v594, %v682
      %v684 = vpop.f32.mrf.mxu0
      %v685 = vadd.f32 %v596, %v684
      %686 = vmatmul.bf16.gmra.mxu0 %v317
      %v687 = vpop.f32.mrf.mxu0
      %v688 = vadd.f32 %v599, %v687
      %v689 = vpop.f32.mrf.mxu0
      %v690 = vadd.f32 %v601, %v689
      %691 = vmatmul.bf16.gmra.mxu0 %v320
      %v692 = vpop.f32.mrf.mxu0
      %v693 = vadd.f32 %v604, %v692
      %v694 = vpop.f32.mrf.mxu0
      %v695 = vadd.f32 %v606, %v694
      %696 = vdwg.mxu0
      %697 = vmatpush.bf16.msra.mxu0 0
      %698 = vmatpush.bf16.msra.mxu0 0
      %699 = vmatpush.bf16.msra.mxu0 0
      %700 = vmatpush.bf16.msra.mxu0 0
      %701 = vmatpush.bf16.msra.mxu0 0
      %702 = vmatpush.bf16.msra.mxu0 0
      %703 = vmatpush.bf16.msra.mxu0 %v451
      %704 = vmatpush.bf16.msra.mxu0 %v450
      %705 = vmatmul.bf16.gmra.mxu0 %v472
      %v706 = vpop.f32.mrf.mxu0
      %v707 = vadd.f32 %v618, %v706
      %v708 = vpop.f32.mrf.mxu0
      %v709 = vadd.f32 %v620, %v708
      %710 = vmatmul.bf16.gmra.mxu0 %v475
      %v711 = vpop.f32.mrf.mxu0
      %v712 = vadd.f32 %v623, %v711
      %v713 = vpop.f32.mrf.mxu0
      %v714 = vadd.f32 %v625, %v713
      %715 = vmatmul.bf16.gmra.mxu0 %v478
      %v716 = vpop.f32.mrf.mxu0
      %v717 = vadd.f32 %v628, %v716
      %v718 = vpop.f32.mrf.mxu0
      %v719 = vadd.f32 %v630, %v718
      %720 = vmatmul.bf16.gmra.mxu0 %v481
      %v721 = vpop.f32.mrf.mxu0
      %v722 = vadd.f32 %v633, %v721
      %v723 = vpop.f32.mrf.mxu0
      %v724 = vadd.f32 %v635, %v723
      %725 = vmatmul.bf16.gmra.mxu0 %v484
      %v726 = vpop.f32.mrf.mxu0
      %v727 = vadd.f32 %v638, %v726
      %v728 = vpop.f32.mrf.mxu0
      %v729 = vadd.f32 %v640, %v728
      %730 = vmatmul.bf16.gmra.mxu0 %v487
      %v731 = vpop.f32.mrf.mxu0
      %v732 = vadd.f32 %v643, %v731
      %v733 = vpop.f32.mrf.mxu0
      %v734 = vadd.f32 %v645, %v733
      %735 = vmatmul.bf16.gmra.mxu0 %v490
      %v736 = vpop.f32.mrf.mxu0
      %v737 = vadd.f32 %v648, %v736
      %v738 = vpop.f32.mrf.mxu0
      %v739 = vadd.f32 %v650, %v738
      %740 = vmatmul.bf16.gmra.mxu0 %v493
      %v741 = vpop.f32.mrf.mxu0
      %v742 = vadd.f32 %v653, %v741
      %v743 = vpop.f32.mrf.mxu0
      %v744 = vadd.f32 %v655, %v743
      %745 = vmatmul.bf16.gmra.mxu0 %v496
      %v746 = vpop.f32.mrf.mxu0
      %v747 = vadd.f32 %v658, %v746
      %v748 = vpop.f32.mrf.mxu0
      %v749 = vadd.f32 %v660, %v748
      %750 = vmatmul.bf16.gmra.mxu0 %v499
      %v751 = vpop.f32.mrf.mxu0
      %v752 = vadd.f32 %v663, %v751
      %v753 = vpop.f32.mrf.mxu0
      %v754 = vadd.f32 %v665, %v753
      %755 = vmatmul.bf16.gmra.mxu0 %v502
      %v756 = vpop.f32.mrf.mxu0
      %v757 = vadd.f32 %v668, %v756
      %v758 = vpop.f32.mrf.mxu0
      %v759 = vadd.f32 %v670, %v758
      %760 = vmatmul.bf16.gmra.mxu0 %v505
      %v761 = vpop.f32.mrf.mxu0
      %v762 = vadd.f32 %v673, %v761
      %v763 = vpop.f32.mrf.mxu0
      %v764 = vadd.f32 %v675, %v763
      %765 = vmatmul.bf16.gmra.mxu0 %v508
      %v766 = vpop.f32.mrf.mxu0
      %v767 = vadd.f32 %v678, %v766
      %v768 = vpop.f32.mrf.mxu0
      %v769 = vadd.f32 %v680, %v768
      %770 = vmatmul.bf16.gmra.mxu0 %v511
      %v771 = vpop.f32.mrf.mxu0
      %v772 = vadd.f32 %v683, %v771
      %v773 = vpop.f32.mrf.mxu0
      %v774 = vadd.f32 %v685, %v773
      %775 = vmatmul.bf16.gmra.mxu0 %v514
      %v776 = vpop.f32.mrf.mxu0
      %v777 = vadd.f32 %v688, %v776
      %v778 = vpop.f32.mrf.mxu0
      %v779 = vadd.f32 %v690, %v778
      %780 = vmatmul.bf16.gmra.mxu0 %v517
      %v781 = vpop.f32.mrf.mxu0
      %v782 = vadd.f32 %v693, %v781
      %v783 = vpop.f32.mrf.mxu0
      %v784 = vadd.f32 %v695, %v783
      %785 = vdwg.mxu0
      %v786 = vmax.f32 %v707, 0.0
      %v787 = vmax.f32 %v709, 0.0
      %v788 = vmax.f32 %v712, 0.0
      %v789 = vmax.f32 %v714, 0.0
      %v790 = vmax.f32 %v717, 0.0
      %v791 = vmax.f32 %v719, 0.0
      %v792 = vmax.f32 %v722, 0.0
      %v793 = vmax.f32 %v724, 0.0
      %v794 = vmax.f32 %v727, 0.0
      %v795 = vmax.f32 %v729, 0.0
      %v796 = vmax.f32 %v732, 0.0
      %v797 = vmax.f32 %v734, 0.0
      %v798 = vmax.f32 %v737, 0.0
      %v799 = vmax.f32 %v739, 0.0
      %v800 = vmax.f32 %v742, 0.0
      %v801 = vmax.f32 %v744, 0.0
      %v802 = vmax.f32 %v747, 0.0
      %v803 = vmax.f32 %v749, 0.0
      %v804 = vmax.f32 %v752, 0.0
      %v805 = vmax.f32 %v754, 0.0
      %v806 = vmax.f32 %v757, 0.0
      %v807 = vmax.f32 %v759, 0.0
      %v808 = vmax.f32 %v762, 0.0
      %v809 = vmax.f32 %v764, 0.0
      %v810 = vmax.f32 %v767, 0.0
      %v811 = vmax.f32 %v769, 0.0
      %v812 = vmax.f32 %v772, 0.0
      %v813 = vmax.f32 %v774, 0.0
      %v814 = vmax.f32 %v777, 0.0
      %v815 = vmax.f32 %v779, 0.0
      %v816 = vmax.f32 %v782, 0.0
      %v817 = vmax.f32 %v784, 0.0
      %818 = vst.msk [vmem:[%s175] sm:$0xff] %vm470, %v786
      %819 = vst.msk [vmem:[%s175 + $0x8] sm:$0xff] %vm470, %v787
      %820 = vst.msk [vmem:[%s175 + $0x10] sm:$0xff] %vm470, %v788
      %821 = vst.msk [vmem:[%s175 + $0x18] sm:$0xff] %vm470, %v789
      %822 = vst.msk [vmem:[%s175 + $0x20] sm:$0xff] %vm470, %v790
      %823 = vst.msk [vmem:[%s175 + $0x28] sm:$0xff] %vm470, %v791
      %824 = vst.msk [vmem:[%s175 + $0x30] sm:$0xff] %vm470, %v792
      %825 = vst.msk [vmem:[%s175 + $0x38] sm:$0xff] %vm470, %v793
      %826 = vst.msk [vmem:[%s175 + $0x40] sm:$0xff] %vm470, %v794
      %827 = vst.msk [vmem:[%s175 + $0x48] sm:$0xff] %vm470, %v795
      %828 = vst.msk [vmem:[%s175 + $0x50] sm:$0xff] %vm470, %v796
      %829 = vst.msk [vmem:[%s175 + $0x58] sm:$0xff] %vm470, %v797
      %830 = vst.msk [vmem:[%s175 + $0x60] sm:$0xff] %vm470, %v798
      %831 = vst.msk [vmem:[%s175 + $0x68] sm:$0xff] %vm470, %v799
      %832 = vst.msk [vmem:[%s175 + $0x70] sm:$0xff] %vm470, %v800
      %833 = vst.msk [vmem:[%s175 + $0x78] sm:$0xff] %vm470, %v801
      %834 = vst.msk [vmem:[%s175 + $0x80] sm:$0xff] %vm470, %v802
      %835 = vst.msk [vmem:[%s175 + $0x88] sm:$0xff] %vm470, %v803
      %836 = vst.msk [vmem:[%s175 + $0x90] sm:$0xff] %vm470, %v804
      %837 = vst.msk [vmem:[%s175 + $0x98] sm:$0xff] %vm470, %v805
      %838 = vst.msk [vmem:[%s175 + $0xa0] sm:$0xff] %vm470, %v806
      %839 = vst.msk [vmem:[%s175 + $0xa8] sm:$0xff] %vm470, %v807
      %840 = vst.msk [vmem:[%s175 + $0xb0] sm:$0xff] %vm470, %v808
      %841 = vst.msk [vmem:[%s175 + $0xb8] sm:$0xff] %vm470, %v809
      %842 = vst.msk [vmem:[%s175 + $0xc0] sm:$0xff] %vm470, %v810
      %843 = vst.msk [vmem:[%s175 + $0xc8] sm:$0xff] %vm470, %v811
      %844 = vst.msk [vmem:[%s175 + $0xd0] sm:$0xff] %vm470, %v812
      %845 = vst.msk [vmem:[%s175 + $0xd8] sm:$0xff] %vm470, %v813
      %846 = vst.msk [vmem:[%s175 + $0xe0] sm:$0xff] %vm470, %v814
      %847 = vst.msk [vmem:[%s175 + $0xe8] sm:$0xff] %vm470, %v815
      %848 = vst.msk [vmem:[%s175 + $0xf0] sm:$0xff] %vm470, %v816
      %849 = vst.msk [vmem:[%s175 + $0xf8] sm:$0xff] %vm470, %v817
      %s850 = smul.u32 32, %s14
      %p851 = scmp.lt.s32.totalorder %s850, 63
      %s852 = scalar_select %p851, %s850, 63
      %s853 = smul.addr %s852, 8
      %s854 = scalar_lea.vmem %s3, %s853
      // Predicated region
      $region33: #{mpii_1_forward.15} parent=31 // pred_check
        %p855 = pneg %p100
      $region34: #{mpii_1_forward.15} parent=31 // pred_check_branch
        %857 = sbr.rel (%p855) target = $region36
      $region35: #{mpii_1_forward.15} parent=31 // pred_region
        %s858 = smul.u32 32, %s14
      $region36: #{mpii_1_forward.15} parent=31 // pred_fallthru
        _
    $region32: #{mpii_1_forward.15} parent=5 // pred_fallthru
      _
    %p859 = scmp.le.s32.totalorder 2, %s9
    // Predicated region
    $region37: #{mpii_1_forward.15} parent=5 // pred_check
      %p860 = pneg %p859
    $region38: #{mpii_1_forward.15} parent=5 // pred_check_branch
      %862 = sbr.rel (%p860) target = $region40
    $region39: #{mpii_1_forward.15} parent=5 // pred_region
      %s863 = ssub.s32 %s9, 2
      // Predicated region
      $region41: #{mpii_1_forward.15} parent=39 // pred_check
        %p864 = pneg %p106
      $region42: #{mpii_1_forward.15} parent=39 // pred_check_branch
        %866 = sbr.rel (%p864) target = $region44
      $region43: #{mpii_1_forward.15} parent=39 // pred_region
        %s867 = smul.u32 32, %s15
        %p868 = scmp.lt.s32.totalorder %s867, 63
        %s869 = scalar_select %p868, %s867, 63
        %s870 = smul.addr %s869, 8
        %s871 = scalar_lea.vmem %s3, %s870
      $region44: #{mpii_1_forward.15} parent=39 // pred_fallthru
        _
    $region40: #{mpii_1_forward.15} parent=5 // pred_fallthru
      _
  $region6: #{mpii_1_forward.15} parent=0 // loop_footer
    %s13 = sadd.s32 1, %s9
  $region7: #{mpii_1_forward.15} parent=0 // loop_footer_branch
    %8 = sbr.rel target = $region3
  $region8: #{mpii_1_forward.15} parent=0 // loop_exit
    _

// kernel: mpii_1_forward.16
$region0: #{mpii_1_forward.16}
  #allocation0 [shape = 'u32[]', space=smem, size = 0x4, offset = 0x4, fixed_abs, tag = 'smem constant byte address 0x4 - core index']
  #allocation1 [shape = 'u32[72,128]{1,0:T(1,128)}', space=vmem, size = 0x9000, scoped, tag = 'internal scratch']
  %s0 = inlined_call_operand.vmem [shape: f32[512,288], index: 0, kind: input, shape index: {}]
  %s1 = inlined_call_operand.vmem [shape: bf16[288,64], index: 1, kind: input, shape index: {}]
  %s2 = inlined_call_operand.vmem [shape: f32[1,64], index: 2, kind: input, shape index: {}]
  %s3 = inlined_call_operand.vmem [shape: f32[512,64], index: 3, kind: output, shape index: {}]
  %s4 = sld [smem:[#allocation0]]
  $region45: #{mpii_1_forward.16} parent=0
    _
  %s6 = ssub.s32 1, %s4
  %s7 = scalar_select 0, %s6, %s4
  loop: start=0, step=1, limit=4
  $region2: #{mpii_1_forward.16} parent=0 // loop_pre_header
    _
  $region3: #{mpii_1_forward.16} parent=0 // loop_header
    %s9 = sphi 0, %s13
    %p10 = scmp.ge.s32.totalorder %s9, 4
    %s19 = sphi 0, %s21
    %s22 = sphi 0, %s19
    %s23 = sphi 0, %s22
    %s39 = sphi 0, %s23
    %s43 = sphi 0, %s43
    %s45 = sphi 0, %s43
    %s46 = sphi 0, %s45
    %s60 = sphi 0, %s46
    %s64 = sphi 0, %s64
    %s66 = sphi 0, %s64
    %s67 = sphi 0, %s66
    %s81 = sphi 0, %s67
    %s87 = sphi 0, %s89
    %s90 = sphi 0, %s87
    %s91 = sphi 0, %s90
    %s107 = sphi 0, %s91
  $region4: #{mpii_1_forward.16} parent=0 // loop_header_branch
    %12 = sbr.rel (%p10) target = $region8
  $region5: #{mpii_1_forward.16} parent=0 // loop_body
    %s14 = ssub.s32 %s9, 1
    %s15 = ssub.s32 %s9, 2
    %s16 = sadd.s32 %s9, 1
    %s17 = ssub.s32 %s9, %s16
    %p18 = scmp.eq.s32.totalorder %s17, 0
    %s20 = sadd.s32 %s19, 1
    %s21 = scalar_select %p18, %s19, %s20
    %p24 = pneg %p18
    %p25 = scmp.eq.s32.totalorder %s9, 1
    %p26 = por %p24, %p25
    %p27 = scmp.ne.s32.totalorder %s19, %s22
    %p28 = scmp.eq.s32.totalorder %s9, 0
    %p29 = por %p27, %p28
    %p30 = scmp.ne.s32.totalorder %s19, %s22
    %p31 = scmp.eq.s32.totalorder %s14, 1
    %p32 = por %p30, %p31
    %p33 = scmp.ne.s32.totalorder %s22, %s23
    %p34 = scmp.eq.s32.totalorder %s14, 0
    %p35 = por %p33, %p34
    %p36 = scmp.ne.s32.totalorder %s22, %s23
    %p37 = scmp.eq.s32.totalorder %s15, 1
    %p38 = por %p36, %p37
    %p40 = scmp.ne.s32.totalorder %s23, %s39
    %p41 = scmp.eq.s32.totalorder %s15, 0
    %p42 = por %p40, %p41
    %s44 = sadd.s32 %s43, 1
    %p47 = scmp.eq.s32.totalorder %s9, 1
    %p48 = scmp.ne.s32.totalorder %s43, %s45
    %p49 = scmp.eq.s32.totalorder %s9, 0
    %p50 = por %p48, %p49
    %p51 = scmp.ne.s32.totalorder %s43, %s45
    %p52 = scmp.eq.s32.totalorder %s14, 1
    %p53 = por %p51, %p52
    %p54 = scmp.ne.s32.totalorder %s45, %s46
    %p55 = scmp.eq.s32.totalorder %s14, 0
    %p56 = por %p54, %p55
    %p57 = scmp.ne.s32.totalorder %s45, %s46
    %p58 = scmp.eq.s32.totalorder %s15, 1
    %p59 = por %p57, %p58
    %p61 = scmp.ne.s32.totalorder %s46, %s60
    %p62 = scmp.eq.s32.totalorder %s15, 0
    %p63 = por %p61, %p62
    %s65 = sadd.s32 %s64, 1
    %p68 = scmp.eq.s32.totalorder %s9, 1
    %p69 = scmp.ne.s32.totalorder %s64, %s66
    %p70 = scmp.eq.s32.totalorder %s9, 0
    %p71 = por %p69, %p70
    %p72 = scmp.ne.s32.totalorder %s64, %s66
    %p73 = scmp.eq.s32.totalorder %s14, 1
    %p74 = por %p72, %p73
    %p75 = scmp.ne.s32.totalorder %s66, %s67
    %p76 = scmp.eq.s32.totalorder %s14, 0
    %p77 = por %p75, %p76
    %p78 = scmp.ne.s32.totalorder %s66, %s67
    %p79 = scmp.eq.s32.totalorder %s15, 1
    %p80 = por %p78, %p79
    %p82 = scmp.ne.s32.totalorder %s67, %s81
    %p83 = scmp.eq.s32.totalorder %s15, 0
    %p84 = por %p82, %p83
    %s85 = ssub.s32 %s9, %s16
    %p86 = scmp.eq.s32.totalorder %s85, 0
    %s88 = sadd.s32 %s87, 1
    %s89 = scalar_select %p86, %s87, %s88
    %p92 = pneg %p86
    %p93 = scmp.eq.s32.totalorder %s9, 1
    %p94 = por %p92, %p93
    %p95 = scmp.ne.s32.totalorder %s87, %s90
    %p96 = scmp.eq.s32.totalorder %s9, 0
    %p97 = por %p95, %p96
    %p98 = scmp.ne.s32.totalorder %s87, %s90
    %p99 = scmp.eq.s32.totalorder %s14, 1
    %p100 = por %p98, %p99
    %p101 = scmp.ne.s32.totalorder %s90, %s91
    %p102 = scmp.eq.s32.totalorder %s14, 0
    %p103 = por %p101, %p102
    %p104 = scmp.ne.s32.totalorder %s90, %s91
    %p105 = scmp.eq.s32.totalorder %s15, 1
    %p106 = por %p104, %p105
    %p108 = scmp.ne.s32.totalorder %s91, %s107
    %p109 = scmp.eq.s32.totalorder %s15, 0
    %p110 = por %p108, %p109
    %p111 = scmp.le.s32.totalorder 1, %s9
    %p112 = scmp.lt.s32.totalorder %s9, 3
    %p113 = pnand %p111, %p112
    %p114 = pneg %p113
    // Predicated region
    $region9: #{mpii_1_forward.16} parent=5 // pred_check
      _
    $region10: #{mpii_1_forward.16} parent=5 // pred_check_branch
      %116 = sbr.rel (%p113) target = $region12
    $region11: #{mpii_1_forward.16} parent=5 // pred_region
      %s117 = ssub.s32 %s9, 1
      // Predicated region
      $region13: #{mpii_1_forward.16} parent=11 // pred_check
        %p118 = pneg %p56
      $region14: #{mpii_1_forward.16} parent=11 // pred_check_branch
        %120 = sbr.rel (%p118) target = $region16
      $region15: #{mpii_1_forward.16} parent=11 // pred_region
        _
      $region16: #{mpii_1_forward.16} parent=11 // pred_fallthru
        _
      // Predicated region
      $region17: #{mpii_1_forward.16} parent=11 // pred_check
        %p121 = pneg %p77
      $region18: #{mpii_1_forward.16} parent=11 // pred_check_branch
        %123 = sbr.rel (%p121) target = $region20
      $region19: #{mpii_1_forward.16} parent=11 // pred_region
        _
      $region20: #{mpii_1_forward.16} parent=11 // pred_fallthru
        _
    $region12: #{mpii_1_forward.16} parent=5 // pred_fallthru
      _
    %p124 = scmp.lt.s32.totalorder %s9, 2
    // Predicated region
    $region21: #{mpii_1_forward.16} parent=5 // pred_check
      %p125 = pneg %p124
    $region22: #{mpii_1_forward.16} parent=5 // pred_check_branch
      %127 = sbr.rel (%p125) target = $region24
    $region23: #{mpii_1_forward.16} parent=5 // pred_region
      // Predicated region
      $region25: #{mpii_1_forward.16} parent=23 // pred_check
        %p128 = pneg %p29
      $region26: #{mpii_1_forward.16} parent=23 // pred_check_branch
        %130 = sbr.rel (%p128) target = $region28
      $region27: #{mpii_1_forward.16} parent=23 // pred_region
        %s131 = smul.u32 32, %s9
        %p132 = scmp.lt.s32.totalorder %s131, 63
        %s133 = scalar_select %p132, %s131, 63
        %s134 = smul.addr %s133, 3
        %s135 = smul.addr %s134, 8
        %s136 = scalar_lea.vmem %s0, %s135
        %s137 = smul.u32 32, %s9
      $region28: #{mpii_1_forward.16} parent=23 // pred_fallthru
        _
    $region24: #{mpii_1_forward.16} parent=5 // pred_fallthru
      _
    %p138 = scmp.le.s32.totalorder 1, %s9
    %p139 = scmp.lt.s32.totalorder %s9, 3
    %p140 = pnand %p138, %p139
    %p141 = pneg %p140
    // Predicated region
    $region29: #{mpii_1_forward.16} parent=5 // pred_check
      _
    $region30: #{mpii_1_forward.16} parent=5 // pred_check_branch
      %143 = sbr.rel (%p140) target = $region32
    $region31: #{mpii_1_forward.16} parent=5 // pred_region
      %s144 = ssub.s32 %s9, 1
      %s145 = smul.u32 32, %s14
      %p146 = scmp.lt.s32.totalorder %s145, 63
      %s147 = scalar_select %p146, %s145, 63
      %s148 = smul.addr %s147, 3
      %s149 = smul.addr %s148, 8
      %s150 = scalar_lea.vmem %s0, %s149
      %p151 = pneg %p35
      %p152 = pneg %p32
      %p153 = pneg %p56
      %p154 = pneg %p53
      %p155 = pneg %p77
      %p156 = pneg %p74
      %p157 = pneg %p103
      %p158 = pneg %p100
      %s159 = smul.u32 32, %s14
      %p160 = scmp.lt.s32.totalorder %s159, 63
      %s161 = scalar_select %p160, %s159, 63
      %s162 = smul.addr %s161, 8
      %s163 = scalar_lea.vmem %s3, %s162
      %s164 = smul.u32 32, %s14
      %p165 = scmp.lt.s32.totalorder %s164, 63
      %s166 = scalar_select %p165, %s164, 63
      %s167 = smul.addr %s166, 3
      %s168 = smul.addr %s167, 8
      %s169 = scalar_lea.vmem %s0, %s168
      %s170 = smul.u32 32, %s14
      %s171 = smul.u32 32, %s14
      %p172 = scmp.lt.s32.totalorder %s171, 63
      %s173 = scalar_select %p172, %s171, 63
      %s174 = smul.addr %s173, 8
      %s175 = scalar_lea.vmem %s3, %s174
      %s176 = smul.u32 32, %s14
      %v178 = vld [vmem:[%s169] sm:$0xff]
      %v179 = vld [vmem:[%s169 + $0x8] sm:$0xff]
      %v180 = vld [vmem:[%s169 + $0x10] sm:$0xff]
      %v181 = vld [vmem:[%s169 + $0x18] sm:$0xff]
      %v182 = vld [vmem:[%s169 + $0x20] sm:$0xff]
      %v183 = vld [vmem:[%s169 + $0x28] sm:$0xff]
      %v184 = vld [vmem:[%s169 + $0x30] sm:$0xff]
      %v185 = vld [vmem:[%s169 + $0x38] sm:$0xff]
      %v186 = vld [vmem:[%s169 + $0x40] sm:$0xff]
      %v187 = vld [vmem:[%s169 + $0x48] sm:$0xff]
      %v188 = vld [vmem:[%s169 + $0x50] sm:$0xff]
      %v189 = vld [vmem:[%s169 + $0x58] sm:$0xff]
      %v190 = vld [vmem:[%s169 + $0x60] sm:$0xff]
      %v191 = vld [vmem:[%s169 + $0x68] sm:$0xff]
      %v192 = vld [vmem:[%s169 + $0x70] sm:$0xff]
      %v193 = vld [vmem:[%s169 + $0x78] sm:$0xff]
      %v194 = vld [vmem:[%s169 + $0x80] sm:$0xff]
      %v195 = vld [vmem:[%s169 + $0x88] sm:$0xff]
      %v196 = vld [vmem:[%s169 + $0x90] sm:$0xff]
      %v197 = vld [vmem:[%s169 + $0x98] sm:$0xff]
      %v198 = vld [vmem:[%s169 + $0xa0] sm:$0xff]
      %v199 = vld [vmem:[%s169 + $0xa8] sm:$0xff]
      %v200 = vld [vmem:[%s169 + $0xb0] sm:$0xff]
      %v201 = vld [vmem:[%s169 + $0xb8] sm:$0xff]
      %v202 = vld [vmem:[%s169 + $0xc0] sm:$0xff]
      %v203 = vld [vmem:[%s169 + $0xc8] sm:$0xff]
      %v204 = vld [vmem:[%s169 + $0xd0] sm:$0xff]
      %v205 = vld [vmem:[%s169 + $0xd8] sm:$0xff]
      %v206 = vld [vmem:[%s169 + $0xe0] sm:$0xff]
      %v207 = vld [vmem:[%s169 + $0xe8] sm:$0xff]
      %v208 = vld [vmem:[%s169 + $0xf0] sm:$0xff]
      %v209 = vld [vmem:[%s169 + $0xf8] sm:$0xff]
      %v210 = vld [vmem:[%s169 + $0x100] sm:$0xff]
      %v211 = vld [vmem:[%s169 + $0x108] sm:$0xff]
      %v212 = vld [vmem:[%s169 + $0x110] sm:$0xff]
      %v213 = vld [vmem:[%s169 + $0x118] sm:$0xff]
      %v214 = vld [vmem:[%s169 + $0x120] sm:$0xff]
      %v215 = vld [vmem:[%s169 + $0x128] sm:$0xff]
      %v216 = vld [vmem:[%s169 + $0x130] sm:$0xff]
      %v217 = vld [vmem:[%s169 + $0x138] sm:$0xff]
      %v218 = vld [vmem:[%s169 + $0x140] sm:$0xff]
      %v219 = vld [vmem:[%s169 + $0x148] sm:$0xff]
      %v220 = vld [vmem:[%s169 + $0x150] sm:$0xff]
      %v221 = vld [vmem:[%s169 + $0x158] sm:$0xff]
      %v222 = vld [vmem:[%s169 + $0x160] sm:$0xff]
      %v223 = vld [vmem:[%s169 + $0x168] sm:$0xff]
      %v224 = vld [vmem:[%s169 + $0x170] sm:$0xff]
      %v225 = vld [vmem:[%s169 + $0x178] sm:$0xff]
      %v226 = vld [vmem:[%s169 + $0x180] sm:$0xff]
      %v227 = vld [vmem:[%s169 + $0x188] sm:$0xff]
      %v228 = vld [vmem:[%s169 + $0x190] sm:$0xff]
      %v229 = vld [vmem:[%s169 + $0x198] sm:$0xff]
      %v230 = vld [vmem:[%s169 + $0x1a0] sm:$0xff]
      %v231 = vld [vmem:[%s169 + $0x1a8] sm:$0xff]
      %v232 = vld [vmem:[%s169 + $0x1b0] sm:$0xff]
      %v233 = vld [vmem:[%s169 + $0x1b8] sm:$0xff]
      %v234 = vld [vmem:[%s169 + $0x1c0] sm:$0xff]
      %v235 = vld [vmem:[%s169 + $0x1c8] sm:$0xff]
      %v236 = vld [vmem:[%s169 + $0x1d0] sm:$0xff]
      %v237 = vld [vmem:[%s169 + $0x1d8] sm:$0xff]
      %v238 = vld [vmem:[%s169 + $0x1e0] sm:$0xff]
      %v239 = vld [vmem:[%s169 + $0x1e8] sm:$0xff]
      %v240 = vld [vmem:[%s169 + $0x1f0] sm:$0xff]
      %v241 = vld [vmem:[%s169 + $0x1f8] sm:$0xff]
      %v242 = vld [vmem:[%s169 + $0x200] sm:$0xff]
      %v243 = vld [vmem:[%s169 + $0x208] sm:$0xff]
      %v244 = vld [vmem:[%s169 + $0x210] sm:$0xff]
      %v245 = vld [vmem:[%s169 + $0x218] sm:$0xff]
      %v246 = vld [vmem:[%s169 + $0x220] sm:$0xff]
      %v247 = vld [vmem:[%s169 + $0x228] sm:$0xff]
      %v248 = vld [vmem:[%s169 + $0x230] sm:$0xff]
      %v249 = vld [vmem:[%s169 + $0x238] sm:$0xff]
      %v250 = vld [vmem:[%s169 + $0x240] sm:$0xff]
      %v251 = vld [vmem:[%s169 + $0x248] sm:$0xff]
      %v252 = vld [vmem:[%s169 + $0x250] sm:$0xff]
      %v253 = vld [vmem:[%s169 + $0x258] sm:$0xff]
      %v254 = vld [vmem:[%s169 + $0x260] sm:$0xff]
      %v255 = vld [vmem:[%s169 + $0x268] sm:$0xff]
      %v256 = vld [vmem:[%s169 + $0x270] sm:$0xff]
      %v257 = vld [vmem:[%s169 + $0x278] sm:$0xff]
      %v258 = vld [vmem:[%s169 + $0x280] sm:$0xff]
      %v259 = vld [vmem:[%s169 + $0x288] sm:$0xff]
      %v260 = vld [vmem:[%s169 + $0x290] sm:$0xff]
      %v261 = vld [vmem:[%s169 + $0x298] sm:$0xff]
      %v262 = vld [vmem:[%s169 + $0x2a0] sm:$0xff]
      %v263 = vld [vmem:[%s169 + $0x2a8] sm:$0xff]
      %v264 = vld [vmem:[%s169 + $0x2b0] sm:$0xff]
      %v265 = vld [vmem:[%s169 + $0x2b8] sm:$0xff]
      %v266 = vld [vmem:[%s169 + $0x2c0] sm:$0xff]
      %v267 = vld [vmem:[%s169 + $0x2c8] sm:$0xff]
      %v268 = vld [vmem:[%s169 + $0x2d0] sm:$0xff]
      %v269 = vld [vmem:[%s169 + $0x2d8] sm:$0xff]
      %v270 = vld [vmem:[%s169 + $0x2e0] sm:$0xff]
      %v271 = vld [vmem:[%s169 + $0x2e8] sm:$0xff]
      %v272 = vld [vmem:[%s169 + $0x2f0] sm:$0xff]
      %v273 = vld [vmem:[%s169 + $0x2f8] sm:$0xff]
      %v274 = vpack.c.bf16 %v181, %v178
      %v275 = vpack.c.bf16 %v182, %v179
      %v276 = vpack.c.bf16 %v183, %v180
      %v277 = vpack.c.bf16 %v187, %v184
      %v278 = vpack.c.bf16 %v188, %v185
      %v279 = vpack.c.bf16 %v189, %v186
      %v280 = vpack.c.bf16 %v193, %v190
      %v281 = vpack.c.bf16 %v194, %v191
      %v282 = vpack.c.bf16 %v195, %v192
      %v283 = vpack.c.bf16 %v199, %v196
      %v284 = vpack.c.bf16 %v200, %v197
      %v285 = vpack.c.bf16 %v201, %v198
      %v286 = vpack.c.bf16 %v205, %v202
      %v287 = vpack.c.bf16 %v206, %v203
      %v288 = vpack.c.bf16 %v207, %v204
      %v289 = vpack.c.bf16 %v211, %v208
      %v290 = vpack.c.bf16 %v212, %v209
      %v291 = vpack.c.bf16 %v213, %v210
      %v292 = vpack.c.bf16 %v217, %v214
      %v293 = vpack.c.bf16 %v218, %v215
      %v294 = vpack.c.bf16 %v219, %v216
      %v295 = vpack.c.bf16 %v223, %v220
      %v296 = vpack.c.bf16 %v224, %v221
      %v297 = vpack.c.bf16 %v225, %v222
      %v298 = vpack.c.bf16 %v229, %v226
      %v299 = vpack.c.bf16 %v230, %v227
      %v300 = vpack.c.bf16 %v231, %v228
      %v301 = vpack.c.bf16 %v235, %v232
      %v302 = vpack.c.bf16 %v236, %v233
      %v303 = vpack.c.bf16 %v237, %v234
      %v304 = vpack.c.bf16 %v241, %v238
      %v305 = vpack.c.bf16 %v242, %v239
      %v306 = vpack.c.bf16 %v243, %v240
      %v307 = vpack.c.bf16 %v247, %v244
      %v308 = vpack.c.bf16 %v248, %v245
      %v309 = vpack.c.bf16 %v249, %v246
      %v310 = vpack.c.bf16 %v253, %v250
      %v311 = vpack.c.bf16 %v254, %v251
      %v312 = vpack.c.bf16 %v255, %v252
      %v313 = vpack.c.bf16 %v259, %v256
      %v314 = vpack.c.bf16 %v260, %v257
      %v315 = vpack.c.bf16 %v261, %v258
      %v316 = vpack.c.bf16 %v265, %v262
      %v317 = vpack.c.bf16 %v266, %v263
      %v318 = vpack.c.bf16 %v267, %v264
      %v319 = vpack.c.bf16 %v271, %v268
      %v320 = vpack.c.bf16 %v272, %v269
      %v321 = vpack.c.bf16 %v273, %v270
      %v322 = vld [vmem:[%s1] sm:$0xf]
      %v323 = vld [vmem:[%s1 + $0x4] sm:$0xf]
      %v324 = vld [vmem:[%s1 + $0x8] sm:$0xf]
      %v325 = vld [vmem:[%s1 + $0xc] sm:$0xf]
      %v326 = vld [vmem:[%s1 + $0x10] sm:$0xf]
      %v327 = vld [vmem:[%s1 + $0x14] sm:$0xf]
      %v328 = vld [vmem:[%s1 + $0x18] sm:$0xf]
      %v329 = vld [vmem:[%s1 + $0x1c] sm:$0xf]
      %v330 = vld [vmem:[%s1 + $0x20] sm:$0xf]
      %v331 = vld [vmem:[%s1 + $0x24] sm:$0xf]
      %v332 = vld [vmem:[%s1 + $0x28] sm:$0xf]
      %v333 = vld [vmem:[%s1 + $0x2c] sm:$0xf]
      %v334 = vld [vmem:[%s1 + $0x30] sm:$0xf]
      %v335 = vld [vmem:[%s1 + $0x34] sm:$0xf]
      %v336 = vld [vmem:[%s1 + $0x38] sm:$0xf]
      %v337 = vld [vmem:[%s1 + $0x3c] sm:$0xf]
      %v338 = vld [vmem:[%s1 + $0x40] sm:$0xf]
      %v339 = vld [vmem:[%s1 + $0x44] sm:$0xf]
      %v340 = vld [vmem:[%s1 + $0x48] sm:$0xf]
      %v341 = vld [vmem:[%s1 + $0x4c] sm:$0xf]
      %v342 = vld [vmem:[%s1 + $0x50] sm:$0xf]
      %v343 = vld [vmem:[%s1 + $0x54] sm:$0xf]
      %v344 = vld [vmem:[%s1 + $0x58] sm:$0xf]
      %v345 = vld [vmem:[%s1 + $0x5c] sm:$0xf]
      %v346 = vld [vmem:[%s1 + $0x60] sm:$0xf]
      %v347 = vld [vmem:[%s1 + $0x64] sm:$0xf]
      %v348 = vld [vmem:[%s1 + $0x68] sm:$0xf]
      %v349 = vld [vmem:[%s1 + $0x6c] sm:$0xf]
      %v350 = vld [vmem:[%s1 + $0x70] sm:$0xf]
      %v351 = vld [vmem:[%s1 + $0x74] sm:$0xf]
      %v352 = vld [vmem:[%s1 + $0x78] sm:$0xf]
      %v353 = vld [vmem:[%s1 + $0x7c] sm:$0xf]
      %v354 = vld [vmem:[%s1 + $0x80] sm:$0xf]
      %v355 = vld [vmem:[%s1 + $0x84] sm:$0xf]
      %v356 = vld [vmem:[%s1 + $0x88] sm:$0xf]
      %v357 = vld [vmem:[%s1 + $0x8c] sm:$0xf]
      %v358 = vld [vmem:[%s2] sm:$0x1]
      %v360 = vperm.slane %v358, 0
      %v398 = vunpack.c.l.b16 %v322
      %v399 = vunpack.c.l.b16 %v323
      %v400 = vunpack.c.l.b16 %v324
      %v401 = vunpack.c.l.b16 %v325
      %v402 = vunpack.c.l.b16 %v326
      %v403 = vunpack.c.l.b16 %v327
      %v404 = vunpack.c.l.b16 %v328
      %v405 = vunpack.c.l.b16 %v329
      %v406 = vunpack.c.l.b16 %v330
      %v407 = vunpack.c.l.b16 %v331
      %v408 = vunpack.c.l.b16 %v332
      %v409 = vunpack.c.l.b16 %v333
      %v410 = vunpack.c.l.b16 %v334
      %v411 = vunpack.c.l.b16 %v335
      %v412 = vunpack.c.l.b16 %v336
      %v413 = vunpack.c.l.b16 %v337
      %v414 = vunpack.c.l.b16 %v338
      %v415 = vunpack.c.l.b16 %v339
      %v416 = vunpack.c.l.b16 %v340
      %v417 = vunpack.c.l.b16 %v341
      %v418 = vunpack.c.l.b16 %v342
      %v419 = vunpack.c.l.b16 %v343
      %v420 = vunpack.c.l.b16 %v344
      %v421 = vunpack.c.l.b16 %v345
      %v422 = vunpack.c.l.b16 %v346
      %v423 = vunpack.c.l.b16 %v347
      %v424 = vunpack.c.l.b16 %v348
      %v425 = vunpack.c.l.b16 %v349
      %v426 = vunpack.c.l.b16 %v350
      %v427 = vunpack.c.l.b16 %v351
      %v428 = vunpack.c.l.b16 %v352
      %v429 = vunpack.c.l.b16 %v353
      %v430 = vunpack.c.l.b16 %v354
      %v431 = vunpack.c.l.b16 %v355
      %v432 = vunpack.c.l.b16 %v356
      %v433 = vunpack.c.l.b16 %v357
      %v434 = vpack.c.b16 %v399, %v398
      %v435 = vpack.c.b16 %v401, %v400
      %v436 = vpack.c.b16 %v403, %v402
      %v437 = vpack.c.b16 %v405, %v404
      %v438 = vpack.c.b16 %v407, %v406
      %v439 = vpack.c.b16 %v409, %v408
      %v440 = vpack.c.b16 %v411, %v410
      %v441 = vpack.c.b16 %v413, %v412
      %v442 = vpack.c.b16 %v415, %v414
      %v443 = vpack.c.b16 %v417, %v416
      %v444 = vpack.c.b16 %v419, %v418
      %v445 = vpack.c.b16 %v421, %v420
      %v446 = vpack.c.b16 %v423, %v422
      %v447 = vpack.c.b16 %v425, %v424
      %v448 = vpack.c.b16 %v427, %v426
      %v449 = vpack.c.b16 %v429, %v428
      %v450 = vpack.c.b16 %v431, %v430
      %v451 = vpack.c.b16 %v433, %v432
      %vm470 = vcmask 261120
      %v472 = vsel %vm470, %v276, 0
      %v475 = vsel %vm470, %v279, 0
      %v478 = vsel %vm470, %v282, 0
      %v481 = vsel %vm470, %v285, 0
      %v484 = vsel %vm470, %v288, 0
      %v487 = vsel %vm470, %v291, 0
      %v490 = vsel %vm470, %v294, 0
      %v493 = vsel %vm470, %v297, 0
      %v496 = vsel %vm470, %v300, 0
      %v499 = vsel %vm470, %v303, 0
      %v502 = vsel %vm470, %v306, 0
      %v505 = vsel %vm470, %v309, 0
      %v508 = vsel %vm470, %v312, 0
      %v511 = vsel %vm470, %v315, 0
      %v514 = vsel %vm470, %v318, 0
      %v517 = vsel %vm470, %v321, 0
      %519 = vmatpush.bf16.msra.mxu0 %v441
      %520 = vmatpush.bf16.msra.mxu0 %v440
      %521 = vmatpush.bf16.msra.mxu0 %v439
      %522 = vmatpush.bf16.msra.mxu0 %v438
      %523 = vmatpush.bf16.msra.mxu0 %v437
      %524 = vmatpush.bf16.msra.mxu0 %v436
      %525 = vmatpush.bf16.msra.mxu0 %v435
      %526 = vmatpush.bf16.msra.mxu0 %v434
      %527 = vmatmul.bf16.gmra.mxu0 %v274
      %v528 = vpop.f32.mrf.mxu0
      %v529 = vadd.f32 %v360, %v528
      %v530 = vpop.f32.mrf.mxu0
      %v531 = vadd.f32 %v360, %v530
      %532 = vmatmul.bf16.gmra.mxu0 %v277
      %v533 = vpop.f32.mrf.mxu0
      %v534 = vadd.f32 %v360, %v533
      %v535 = vpop.f32.mrf.mxu0
      %v536 = vadd.f32 %v360, %v535
      %537 = vmatmul.bf16.gmra.mxu0 %v280
      %v538 = vpop.f32.mrf.mxu0
      %v539 = vadd.f32 %v360, %v538
      %v540 = vpop.f32.mrf.mxu0
      %v541 = vadd.f32 %v360, %v540
      %542 = vmatmul.bf16.gmra.mxu0 %v283
      %v543 = vpop.f32.mrf.mxu0
      %v544 = vadd.f32 %v360, %v543
      %v545 = vpop.f32.mrf.mxu0
      %v546 = vadd.f32 %v360, %v545
      %547 = vmatmul.bf16.gmra.mxu0 %v286
      %v548 = vpop.f32.mrf.mxu0
      %v549 = vadd.f32 %v360, %v548
      %v550 = vpop.f32.mrf.mxu0
      %v551 = vadd.f32 %v360, %v550
      %552 = vmatmul.bf16.gmra.mxu0 %v289
      %v553 = vpop.f32.mrf.mxu0
      %v554 = vadd.f32 %v360, %v553
      %v555 = vpop.f32.mrf.mxu0
      %v556 = vadd.f32 %v360, %v555
      %557 = vmatmul.bf16.gmra.mxu0 %v292
      %v558 = vpop.f32.mrf.mxu0
      %v559 = vadd.f32 %v360, %v558
      %v560 = vpop.f32.mrf.mxu0
      %v561 = vadd.f32 %v360, %v560
      %562 = vmatmul.bf16.gmra.mxu0 %v295
      %v563 = vpop.f32.mrf.mxu0
      %v564 = vadd.f32 %v360, %v563
      %v565 = vpop.f32.mrf.mxu0
      %v566 = vadd.f32 %v360, %v565
      %567 = vmatmul.bf16.gmra.mxu0 %v298
      %v568 = vpop.f32.mrf.mxu0
      %v569 = vadd.f32 %v360, %v568
      %v570 = vpop.f32.mrf.mxu0
      %v571 = vadd.f32 %v360, %v570
      %572 = vmatmul.bf16.gmra.mxu0 %v301
      %v573 = vpop.f32.mrf.mxu0
      %v574 = vadd.f32 %v360, %v573
      %v575 = vpop.f32.mrf.mxu0
      %v576 = vadd.f32 %v360, %v575
      %577 = vmatmul.bf16.gmra.mxu0 %v304
      %v578 = vpop.f32.mrf.mxu0
      %v579 = vadd.f32 %v360, %v578
      %v580 = vpop.f32.mrf.mxu0
      %v581 = vadd.f32 %v360, %v580
      %582 = vmatmul.bf16.gmra.mxu0 %v307
      %v583 = vpop.f32.mrf.mxu0
      %v584 = vadd.f32 %v360, %v583
      %v585 = vpop.f32.mrf.mxu0
      %v586 = vadd.f32 %v360, %v585
      %587 = vmatmul.bf16.gmra.mxu0 %v310
      %v588 = vpop.f32.mrf.mxu0
      %v589 = vadd.f32 %v360, %v588
      %v590 = vpop.f32.mrf.mxu0
      %v591 = vadd.f32 %v360, %v590
      %592 = vmatmul.bf16.gmra.mxu0 %v313
      %v593 = vpop.f32.mrf.mxu0
      %v594 = vadd.f32 %v360, %v593
      %v595 = vpop.f32.mrf.mxu0
      %v596 = vadd.f32 %v360, %v595
      %597 = vmatmul.bf16.gmra.mxu0 %v316
      %v598 = vpop.f32.mrf.mxu0
      %v599 = vadd.f32 %v360, %v598
      %v600 = vpop.f32.mrf.mxu0
      %v601 = vadd.f32 %v360, %v600
      %602 = vmatmul.bf16.gmra.mxu0 %v319
      %v603 = vpop.f32.mrf.mxu0
      %v604 = vadd.f32 %v360, %v603
      %v605 = vpop.f32.mrf.mxu0
      %v606 = vadd.f32 %v360, %v605
      %607 = vdwg.mxu0
      %608 = vmatpush.bf16.msra.mxu0 %v449
      %609 = vmatpush.bf16.msra.mxu0 %v448
      %610 = vmatpush.bf16.msra.mxu0 %v447
      %611 = vmatpush.bf16.msra.mxu0 %v446
      %612 = vmatpush.bf16.msra.mxu0 %v445
      %613 = vmatpush.bf16.msra.mxu0 %v444
      %614 = vmatpush.bf16.msra.mxu0 %v443
      %615 = vmatpush.bf16.msra.mxu0 %v442
      %616 = vmatmul.bf16.gmra.mxu0 %v275
      %v617 = vpop.f32.mrf.mxu0
      %v618 = vadd.f32 %v529, %v617
      %v619 = vpop.f32.mrf.mxu0
      %v620 = vadd.f32 %v531, %v619
      %621 = vmatmul.bf16.gmra.mxu0 %v278
      %v622 = vpop.f32.mrf.mxu0
      %v623 = vadd.f32 %v534, %v622
      %v624 = vpop.f32.mrf.mxu0
      %v625 = vadd.f32 %v536, %v624
      %626 = vmatmul.bf16.gmra.mxu0 %v281
      %v627 = vpop.f32.mrf.mxu0
      %v628 = vadd.f32 %v539, %v627
      %v629 = vpop.f32.mrf.mxu0
      %v630 = vadd.f32 %v541, %v629
      %631 = vmatmul.bf16.gmra.mxu0 %v284
      %v632 = vpop.f32.mrf.mxu0
      %v633 = vadd.f32 %v544, %v632
      %v634 = vpop.f32.mrf.mxu0
      %v635 = vadd.f32 %v546, %v634
      %636 = vmatmul.bf16.gmra.mxu0 %v287
      %v637 = vpop.f32.mrf.mxu0
      %v638 = vadd.f32 %v549, %v637
      %v639 = vpop.f32.mrf.mxu0
      %v640 = vadd.f32 %v551, %v639
      %641 = vmatmul.bf16.gmra.mxu0 %v290
      %v642 = vpop.f32.mrf.mxu0
      %v643 = vadd.f32 %v554, %v642
      %v644 = vpop.f32.mrf.mxu0
      %v645 = vadd.f32 %v556, %v644
      %646 = vmatmul.bf16.gmra.mxu0 %v293
      %v647 = vpop.f32.mrf.mxu0
      %v648 = vadd.f32 %v559, %v647
      %v649 = vpop.f32.mrf.mxu0
      %v650 = vadd.f32 %v561, %v649
      %651 = vmatmul.bf16.gmra.mxu0 %v296
      %v652 = vpop.f32.mrf.mxu0
      %v653 = vadd.f32 %v564, %v652
      %v654 = vpop.f32.mrf.mxu0
      %v655 = vadd.f32 %v566, %v654
      %656 = vmatmul.bf16.gmra.mxu0 %v299
      %v657 = vpop.f32.mrf.mxu0
      %v658 = vadd.f32 %v569, %v657
      %v659 = vpop.f32.mrf.mxu0
      %v660 = vadd.f32 %v571, %v659
      %661 = vmatmul.bf16.gmra.mxu0 %v302
      %v662 = vpop.f32.mrf.mxu0
      %v663 = vadd.f32 %v574, %v662
      %v664 = vpop.f32.mrf.mxu0
      %v665 = vadd.f32 %v576, %v664
      %666 = vmatmul.bf16.gmra.mxu0 %v305
      %v667 = vpop.f32.mrf.mxu0
      %v668 = vadd.f32 %v579, %v667
      %v669 = vpop.f32.mrf.mxu0
      %v670 = vadd.f32 %v581, %v669
      %671 = vmatmul.bf16.gmra.mxu0 %v308
      %v672 = vpop.f32.mrf.mxu0
      %v673 = vadd.f32 %v584, %v672
      %v674 = vpop.f32.mrf.mxu0
      %v675 = vadd.f32 %v586, %v674
      %676 = vmatmul.bf16.gmra.mxu0 %v311
      %v677 = vpop.f32.mrf.mxu0
      %v678 = vadd.f32 %v589, %v677
      %v679 = vpop.f32.mrf.mxu0
      %v680 = vadd.f32 %v591, %v679
      %681 = vmatmul.bf16.gmra.mxu0 %v314
      %v682 = vpop.f32.mrf.mxu0
      %v683 = vadd.f32 %v594, %v682
      %v684 = vpop.f32.mrf.mxu0
      %v685 = vadd.f32 %v596, %v684
      %686 = vmatmul.bf16.gmra.mxu0 %v317
      %v687 = vpop.f32.mrf.mxu0
      %v688 = vadd.f32 %v599, %v687
      %v689 = vpop.f32.mrf.mxu0
      %v690 = vadd.f32 %v601, %v689
      %691 = vmatmul.bf16.gmra.mxu0 %v320
      %v692 = vpop.f32.mrf.mxu0
      %v693 = vadd.f32 %v604, %v692
      %v694 = vpop.f32.mrf.mxu0
      %v695 = vadd.f32 %v606, %v694
      %696 = vdwg.mxu0
      %697 = vmatpush.bf16.msra.mxu0 0
      %698 = vmatpush.bf16.msra.mxu0 0
      %699 = vmatpush.bf16.msra.mxu0 0
      %700 = vmatpush.bf16.msra.mxu0 0
      %701 = vmatpush.bf16.msra.mxu0 0
      %702 = vmatpush.bf16.msra.mxu0 0
      %703 = vmatpush.bf16.msra.mxu0 %v451
      %704 = vmatpush.bf16.msra.mxu0 %v450
      %705 = vmatmul.bf16.gmra.mxu0 %v472
      %v706 = vpop.f32.mrf.mxu0
      %v707 = vadd.f32 %v618, %v706
      %v708 = vpop.f32.mrf.mxu0
      %v709 = vadd.f32 %v620, %v708
      %710 = vmatmul.bf16.gmra.mxu0 %v475
      %v711 = vpop.f32.mrf.mxu0
      %v712 = vadd.f32 %v623, %v711
      %v713 = vpop.f32.mrf.mxu0
      %v714 = vadd.f32 %v625, %v713
      %715 = vmatmul.bf16.gmra.mxu0 %v478
      %v716 = vpop.f32.mrf.mxu0
      %v717 = vadd.f32 %v628, %v716
      %v718 = vpop.f32.mrf.mxu0
      %v719 = vadd.f32 %v630, %v718
      %720 = vmatmul.bf16.gmra.mxu0 %v481
      %v721 = vpop.f32.mrf.mxu0
      %v722 = vadd.f32 %v633, %v721
      %v723 = vpop.f32.mrf.mxu0
      %v724 = vadd.f32 %v635, %v723
      %725 = vmatmul.bf16.gmra.mxu0 %v484
      %v726 = vpop.f32.mrf.mxu0
      %v727 = vadd.f32 %v638, %v726
      %v728 = vpop.f32.mrf.mxu0
      %v729 = vadd.f32 %v640, %v728
      %730 = vmatmul.bf16.gmra.mxu0 %v487
      %v731 = vpop.f32.mrf.mxu0
      %v732 = vadd.f32 %v643, %v731
      %v733 = vpop.f32.mrf.mxu0
      %v734 = vadd.f32 %v645, %v733
      %735 = vmatmul.bf16.gmra.mxu0 %v490
      %v736 = vpop.f32.mrf.mxu0
      %v737 = vadd.f32 %v648, %v736
      %v738 = vpop.f32.mrf.mxu0
      %v739 = vadd.f32 %v650, %v738
      %740 = vmatmul.bf16.gmra.mxu0 %v493
      %v741 = vpop.f32.mrf.mxu0
      %v742 = vadd.f32 %v653, %v741
      %v743 = vpop.f32.mrf.mxu0
      %v744 = vadd.f32 %v655, %v743
      %745 = vmatmul.bf16.gmra.mxu0 %v496
      %v746 = vpop.f32.mrf.mxu0
      %v747 = vadd.f32 %v658, %v746
      %v748 = vpop.f32.mrf.mxu0
      %v749 = vadd.f32 %v660, %v748
      %750 = vmatmul.bf16.gmra.mxu0 %v499
      %v751 = vpop.f32.mrf.mxu0
      %v752 = vadd.f32 %v663, %v751
      %v753 = vpop.f32.mrf.mxu0
      %v754 = vadd.f32 %v665, %v753
      %755 = vmatmul.bf16.gmra.mxu0 %v502
      %v756 = vpop.f32.mrf.mxu0
      %v757 = vadd.f32 %v668, %v756
      %v758 = vpop.f32.mrf.mxu0
      %v759 = vadd.f32 %v670, %v758
      %760 = vmatmul.bf16.gmra.mxu0 %v505
      %v761 = vpop.f32.mrf.mxu0
      %v762 = vadd.f32 %v673, %v761
      %v763 = vpop.f32.mrf.mxu0
      %v764 = vadd.f32 %v675, %v763
      %765 = vmatmul.bf16.gmra.mxu0 %v508
      %v766 = vpop.f32.mrf.mxu0
      %v767 = vadd.f32 %v678, %v766
      %v768 = vpop.f32.mrf.mxu0
      %v769 = vadd.f32 %v680, %v768
      %770 = vmatmul.bf16.gmra.mxu0 %v511
      %v771 = vpop.f32.mrf.mxu0
      %v772 = vadd.f32 %v683, %v771
      %v773 = vpop.f32.mrf.mxu0
      %v774 = vadd.f32 %v685, %v773
      %775 = vmatmul.bf16.gmra.mxu0 %v514
      %v776 = vpop.f32.mrf.mxu0
      %v777 = vadd.f32 %v688, %v776
      %v778 = vpop.f32.mrf.mxu0
      %v779 = vadd.f32 %v690, %v778
      %780 = vmatmul.bf16.gmra.mxu0 %v517
      %v781 = vpop.f32.mrf.mxu0
      %v782 = vadd.f32 %v693, %v781
      %v783 = vpop.f32.mrf.mxu0
      %v784 = vadd.f32 %v695, %v783
      %785 = vdwg.mxu0
      %v786 = vmax.f32 %v707, 0.0
      %v787 = vmax.f32 %v709, 0.0
      %v788 = vmax.f32 %v712, 0.0
      %v789 = vmax.f32 %v714, 0.0
      %v790 = vmax.f32 %v717, 0.0
      %v791 = vmax.f32 %v719, 0.0
      %v792 = vmax.f32 %v722, 0.0
      %v793 = vmax.f32 %v724, 0.0
      %v794 = vmax.f32 %v727, 0.0
      %v795 = vmax.f32 %v729, 0.0
      %v796 = vmax.f32 %v732, 0.0
      %v797 = vmax.f32 %v734, 0.0
      %v798 = vmax.f32 %v737, 0.0
      %v799 = vmax.f32 %v739, 0.0
      %v800 = vmax.f32 %v742, 0.0
      %v801 = vmax.f32 %v744, 0.0
      %v802 = vmax.f32 %v747, 0.0
      %v803 = vmax.f32 %v749, 0.0
      %v804 = vmax.f32 %v752, 0.0
      %v805 = vmax.f32 %v754, 0.0
      %v806 = vmax.f32 %v757, 0.0
      %v807 = vmax.f32 %v759, 0.0
      %v808 = vmax.f32 %v762, 0.0
      %v809 = vmax.f32 %v764, 0.0
      %v810 = vmax.f32 %v767, 0.0
      %v811 = vmax.f32 %v769, 0.0
      %v812 = vmax.f32 %v772, 0.0
      %v813 = vmax.f32 %v774, 0.0
      %v814 = vmax.f32 %v777, 0.0
      %v815 = vmax.f32 %v779, 0.0
      %v816 = vmax.f32 %v782, 0.0
      %v817 = vmax.f32 %v784, 0.0
      %vm818 = vcmask 523264
      %819 = vst.msk [vmem:[%s175] sm:$0xff] %vm818, %v786
      %820 = vst.msk [vmem:[%s175 + $0x8] sm:$0xff] %vm818, %v787
      %821 = vst.msk [vmem:[%s175 + $0x10] sm:$0xff] %vm818, %v788
      %822 = vst.msk [vmem:[%s175 + $0x18] sm:$0xff] %vm818, %v789
      %823 = vst.msk [vmem:[%s175 + $0x20] sm:$0xff] %vm818, %v790
      %824 = vst.msk [vmem:[%s175 + $0x28] sm:$0xff] %vm818, %v791
      %825 = vst.msk [vmem:[%s175 + $0x30] sm:$0xff] %vm818, %v792
      %826 = vst.msk [vmem:[%s175 + $0x38] sm:$0xff] %vm818, %v793
      %827 = vst.msk [vmem:[%s175 + $0x40] sm:$0xff] %vm818, %v794
      %828 = vst.msk [vmem:[%s175 + $0x48] sm:$0xff] %vm818, %v795
      %829 = vst.msk [vmem:[%s175 + $0x50] sm:$0xff] %vm818, %v796
      %830 = vst.msk [vmem:[%s175 + $0x58] sm:$0xff] %vm818, %v797
      %831 = vst.msk [vmem:[%s175 + $0x60] sm:$0xff] %vm818, %v798
      %832 = vst.msk [vmem:[%s175 + $0x68] sm:$0xff] %vm818, %v799
      %833 = vst.msk [vmem:[%s175 + $0x70] sm:$0xff] %vm818, %v800
      %834 = vst.msk [vmem:[%s175 + $0x78] sm:$0xff] %vm818, %v801
      %835 = vst.msk [vmem:[%s175 + $0x80] sm:$0xff] %vm818, %v802
      %836 = vst.msk [vmem:[%s175 + $0x88] sm:$0xff] %vm818, %v803
      %837 = vst.msk [vmem:[%s175 + $0x90] sm:$0xff] %vm818, %v804
      %838 = vst.msk [vmem:[%s175 + $0x98] sm:$0xff] %vm818, %v805
      %839 = vst.msk [vmem:[%s175 + $0xa0] sm:$0xff] %vm818, %v806
      %840 = vst.msk [vmem:[%s175 + $0xa8] sm:$0xff] %vm818, %v807
      %841 = vst.msk [vmem:[%s175 + $0xb0] sm:$0xff] %vm818, %v808
      %842 = vst.msk [vmem:[%s175 + $0xb8] sm:$0xff] %vm818, %v809
      %843 = vst.msk [vmem:[%s175 + $0xc0] sm:$0xff] %vm818, %v810
      %844 = vst.msk [vmem:[%s175 + $0xc8] sm:$0xff] %vm818, %v811
      %845 = vst.msk [vmem:[%s175 + $0xd0] sm:$0xff] %vm818, %v812
      %846 = vst.msk [vmem:[%s175 + $0xd8] sm:$0xff] %vm818, %v813
      %847 = vst.msk [vmem:[%s175 + $0xe0] sm:$0xff] %vm818, %v814
      %848 = vst.msk [vmem:[%s175 + $0xe8] sm:$0xff] %vm818, %v815
      %849 = vst.msk [vmem:[%s175 + $0xf0] sm:$0xff] %vm818, %v816
      %850 = vst.msk [vmem:[%s175 + $0xf8] sm:$0xff] %vm818, %v817
      %s851 = smul.u32 32, %s14
      %p852 = scmp.lt.s32.totalorder %s851, 63
      %s853 = scalar_select %p852, %s851, 63
      %s854 = smul.addr %s853, 8
      %s855 = scalar_lea.vmem %s3, %s854
      // Predicated region
      $region33: #{mpii_1_forward.16} parent=31 // pred_check
        %p856 = pneg %p100
      $region34: #{mpii_1_forward.16} parent=31 // pred_check_branch
        %858 = sbr.rel (%p856) target = $region36
      $region35: #{mpii_1_forward.16} parent=31 // pred_region
        %s859 = smul.u32 32, %s14
      $region36: #{mpii_1_forward.16} parent=31 // pred_fallthru
        _
    $region32: #{mpii_1_forward.16} parent=5 // pred_fallthru
      _
    %p860 = scmp.le.s32.totalorder 2, %s9
    // Predicated region
    $region37: #{mpii_1_forward.16} parent=5 // pred_check
      %p861 = pneg %p860
    $region38: #{mpii_1_forward.16} parent=5 // pred_check_branch
      %863 = sbr.rel (%p861) target = $region40
    $region39: #{mpii_1_forward.16} parent=5 // pred_region
      %s864 = ssub.s32 %s9, 2
      // Predicated region
      $region41: #{mpii_1_forward.16} parent=39 // pred_check
        %p865 = pneg %p106
      $region42: #{mpii_1_forward.16} parent=39 // pred_check_branch
        %867 = sbr.rel (%p865) target = $region44
      $region43: #{mpii_1_forward.16} parent=39 // pred_region
        %s868 = smul.u32 32, %s15
        %p869 = scmp.lt.s32.totalorder %s868, 63
        %s870 = scalar_select %p869, %s868, 63
        %s871 = smul.addr %s870, 8
        %s872 = scalar_lea.vmem %s3, %s871
      $region44: #{mpii_1_forward.16} parent=39 // pred_fallthru
        _
    $region40: #{mpii_1_forward.16} parent=5 // pred_fallthru
      _
  $region6: #{mpii_1_forward.16} parent=0 // loop_footer
    %s13 = sadd.s32 1, %s9
  $region7: #{mpii_1_forward.16} parent=0 // loop_footer_branch
    %8 = sbr.rel target = $region3
  $region8: #{mpii_1_forward.16} parent=0 // loop_exit
    _

// kernel: mpii_1_forward.17
$region0: #{mpii_1_forward.17}
  #allocation0 [shape = 'u32[]', space=smem, size = 0x4, offset = 0x4, fixed_abs, tag = 'smem constant byte address 0x4 - core index']
  #allocation1 [shape = 'u32[72,128]{1,0:T(1,128)}', space=vmem, size = 0x9000, scoped, tag = 'internal scratch']
  %s0 = inlined_call_operand.vmem [shape: f32[128,576], index: 0, kind: input, shape index: {}]
  %s1 = inlined_call_operand.vmem [shape: bf16[576,96], index: 1, kind: input, shape index: {}]
  %s2 = inlined_call_operand.vmem [shape: f32[1,96], index: 2, kind: input, shape index: {}]
  %s3 = inlined_call_operand.vmem [shape: f32[128,96], index: 3, kind: output, shape index: {}]
  %s4 = sld [smem:[#allocation0]]
  $region22: #{mpii_1_forward.17} parent=0
    _
  %s6 = ssub.s32 1, %s4
  %s7 = scalar_select 0, %s6, %s4
  // Predicated region
  $region2: #{mpii_1_forward.17} parent=0 // pred_check
    _
  $region3: #{mpii_1_forward.17} parent=0 // pred_check_branch
    %9 = sbr.rel (0) target = $region5
  $region4: #{mpii_1_forward.17} parent=0 // pred_region
    _
  $region5: #{mpii_1_forward.17} parent=0 // pred_fallthru
    _
  // Predicated region
  $region6: #{mpii_1_forward.17} parent=0 // pred_check
    _
  $region7: #{mpii_1_forward.17} parent=0 // pred_check_branch
    %11 = sbr.rel (0) target = $region9
  $region8: #{mpii_1_forward.17} parent=0 // pred_region
    _
  $region9: #{mpii_1_forward.17} parent=0 // pred_fallthru
    _
  // Predicated region
  $region10: #{mpii_1_forward.17} parent=0 // pred_check
    _
  $region11: #{mpii_1_forward.17} parent=0 // pred_check_branch
    %13 = sbr.rel (0) target = $region13
  $region12: #{mpii_1_forward.17} parent=0 // pred_region
    _
  $region13: #{mpii_1_forward.17} parent=0 // pred_fallthru
    _
  %v15 = vld [vmem:[%s0] sm:$0xff]
  %v16 = vld [vmem:[%s0 + $0x8] sm:$0xff]
  %v17 = vld [vmem:[%s0 + $0x10] sm:$0xff]
  %v18 = vld [vmem:[%s0 + $0x18] sm:$0xff]
  %v19 = vld [vmem:[%s0 + $0x20] sm:$0xff]
  %v20 = vld [vmem:[%s0 + $0x28] sm:$0xff]
  %v21 = vld [vmem:[%s0 + $0x30] sm:$0xff]
  %v22 = vld [vmem:[%s0 + $0x38] sm:$0xff]
  %v23 = vld [vmem:[%s0 + $0x40] sm:$0xff]
  %v24 = vld [vmem:[%s0 + $0x48] sm:$0xff]
  %v25 = vld [vmem:[%s0 + $0x50] sm:$0xff]
  %v26 = vld [vmem:[%s0 + $0x58] sm:$0xff]
  %v27 = vld [vmem:[%s0 + $0x60] sm:$0xff]
  %v28 = vld [vmem:[%s0 + $0x68] sm:$0xff]
  %v29 = vld [vmem:[%s0 + $0x70] sm:$0xff]
  %v30 = vld [vmem:[%s0 + $0x78] sm:$0xff]
  %v31 = vld [vmem:[%s0 + $0x80] sm:$0xff]
  %v32 = vld [vmem:[%s0 + $0x88] sm:$0xff]
  %v33 = vld [vmem:[%s0 + $0x90] sm:$0xff]
  %v34 = vld [vmem:[%s0 + $0x98] sm:$0xff]
  %v35 = vld [vmem:[%s0 + $0xa0] sm:$0xff]
  %v36 = vld [vmem:[%s0 + $0xa8] sm:$0xff]
  %v37 = vld [vmem:[%s0 + $0xb0] sm:$0xff]
  %v38 = vld [vmem:[%s0 + $0xb8] sm:$0xff]
  %v39 = vld [vmem:[%s0 + $0xc0] sm:$0xff]
  %v40 = vld [vmem:[%s0 + $0xc8] sm:$0xff]
  %v41 = vld [vmem:[%s0 + $0xd0] sm:$0xff]
  %v42 = vld [vmem:[%s0 + $0xd8] sm:$0xff]
  %v43 = vld [vmem:[%s0 + $0xe0] sm:$0xff]
  %v44 = vld [vmem:[%s0 + $0xe8] sm:$0xff]
  %v45 = vld [vmem:[%s0 + $0xf0] sm:$0xff]
  %v46 = vld [vmem:[%s0 + $0xf8] sm:$0xff]
  %v47 = vld [vmem:[%s0 + $0x100] sm:$0xff]
  %v48 = vld [vmem:[%s0 + $0x108] sm:$0xff]
  %v49 = vld [vmem:[%s0 + $0x110] sm:$0xff]
  %v50 = vld [vmem:[%s0 + $0x118] sm:$0xff]
  %v51 = vld [vmem:[%s0 + $0x120] sm:$0xff]
  %v52 = vld [vmem:[%s0 + $0x128] sm:$0xff]
  %v53 = vld [vmem:[%s0 + $0x130] sm:$0xff]
  %v54 = vld [vmem:[%s0 + $0x138] sm:$0xff]
  %v55 = vld [vmem:[%s0 + $0x140] sm:$0xff]
  %v56 = vld [vmem:[%s0 + $0x148] sm:$0xff]
  %v57 = vld [vmem:[%s0 + $0x150] sm:$0xff]
  %v58 = vld [vmem:[%s0 + $0x158] sm:$0xff]
  %v59 = vld [vmem:[%s0 + $0x160] sm:$0xff]
  %v60 = vld [vmem:[%s0 + $0x168] sm:$0xff]
  %v61 = vld [vmem:[%s0 + $0x170] sm:$0xff]
  %v62 = vld [vmem:[%s0 + $0x178] sm:$0xff]
  %v63 = vld [vmem:[%s0 + $0x180] sm:$0xff]
  %v64 = vld [vmem:[%s0 + $0x188] sm:$0xff]
  %v65 = vld [vmem:[%s0 + $0x190] sm:$0xff]
  %v66 = vld [vmem:[%s0 + $0x198] sm:$0xff]
  %v67 = vld [vmem:[%s0 + $0x1a0] sm:$0xff]
  %v68 = vld [vmem:[%s0 + $0x1a8] sm:$0xff]
  %v69 = vld [vmem:[%s0 + $0x1b0] sm:$0xff]
  %v70 = vld [vmem:[%s0 + $0x1b8] sm:$0xff]
  %v71 = vld [vmem:[%s0 + $0x1c0] sm:$0xff]
  %v72 = vld [vmem:[%s0 + $0x1c8] sm:$0xff]
  %v73 = vld [vmem:[%s0 + $0x1d0] sm:$0xff]
  %v74 = vld [vmem:[%s0 + $0x1d8] sm:$0xff]
  %v75 = vld [vmem:[%s0 + $0x1e0] sm:$0xff]
  %v76 = vld [vmem:[%s0 + $0x1e8] sm:$0xff]
  %v77 = vld [vmem:[%s0 + $0x1f0] sm:$0xff]
  %v78 = vld [vmem:[%s0 + $0x1f8] sm:$0xff]
  %v79 = vld [vmem:[%s0 + $0x200] sm:$0xff]
  %v80 = vld [vmem:[%s0 + $0x208] sm:$0xff]
  %v81 = vld [vmem:[%s0 + $0x210] sm:$0xff]
  %v82 = vld [vmem:[%s0 + $0x218] sm:$0xff]
  %v83 = vld [vmem:[%s0 + $0x220] sm:$0xff]
  %v84 = vld [vmem:[%s0 + $0x228] sm:$0xff]
  %v85 = vld [vmem:[%s0 + $0x230] sm:$0xff]
  %v86 = vld [vmem:[%s0 + $0x238] sm:$0xff]
  %v87 = vld [vmem:[%s0 + $0x240] sm:$0xff]
  %v88 = vld [vmem:[%s0 + $0x248] sm:$0xff]
  %v89 = vld [vmem:[%s0 + $0x250] sm:$0xff]
  %v90 = vld [vmem:[%s0 + $0x258] sm:$0xff]
  %v91 = vld [vmem:[%s0 + $0x260] sm:$0xff]
  %v92 = vld [vmem:[%s0 + $0x268] sm:$0xff]
  %v93 = vld [vmem:[%s0 + $0x270] sm:$0xff]
  %v94 = vld [vmem:[%s0 + $0x278] sm:$0xff]
  %v95 = vpack.c.bf16 %v20, %v15
  %v96 = vpack.c.bf16 %v21, %v16
  %v97 = vpack.c.bf16 %v22, %v17
  %v98 = vpack.c.bf16 %v23, %v18
  %v99 = vpack.c.bf16 %v24, %v19
  %v100 = vpack.c.bf16 %v30, %v25
  %v101 = vpack.c.bf16 %v31, %v26
  %v102 = vpack.c.bf16 %v32, %v27
  %v103 = vpack.c.bf16 %v33, %v28
  %v104 = vpack.c.bf16 %v34, %v29
  %v105 = vpack.c.bf16 %v40, %v35
  %v106 = vpack.c.bf16 %v41, %v36
  %v107 = vpack.c.bf16 %v42, %v37
  %v108 = vpack.c.bf16 %v43, %v38
  %v109 = vpack.c.bf16 %v44, %v39
  %v110 = vpack.c.bf16 %v50, %v45
  %v111 = vpack.c.bf16 %v51, %v46
  %v112 = vpack.c.bf16 %v52, %v47
  %v113 = vpack.c.bf16 %v53, %v48
  %v114 = vpack.c.bf16 %v54, %v49
  %v115 = vpack.c.bf16 %v60, %v55
  %v116 = vpack.c.bf16 %v61, %v56
  %v117 = vpack.c.bf16 %v62, %v57
  %v118 = vpack.c.bf16 %v63, %v58
  %v119 = vpack.c.bf16 %v64, %v59
  %v120 = vpack.c.bf16 %v70, %v65
  %v121 = vpack.c.bf16 %v71, %v66
  %v122 = vpack.c.bf16 %v72, %v67
  %v123 = vpack.c.bf16 %v73, %v68
  %v124 = vpack.c.bf16 %v74, %v69
  %v125 = vpack.c.bf16 %v80, %v75
  %v126 = vpack.c.bf16 %v81, %v76
  %v127 = vpack.c.bf16 %v82, %v77
  %v128 = vpack.c.bf16 %v83, %v78
  %v129 = vpack.c.bf16 %v84, %v79
  %v130 = vpack.c.bf16 %v90, %v85
  %v131 = vpack.c.bf16 %v91, %v86
  %v132 = vpack.c.bf16 %v92, %v87
  %v133 = vpack.c.bf16 %v93, %v88
  %v134 = vpack.c.bf16 %v94, %v89
  %v135 = vld [vmem:[%s1] sm:$0xf]
  %v136 = vld [vmem:[%s1 + $0x4] sm:$0xf]
  %v137 = vld [vmem:[%s1 + $0x8] sm:$0xf]
  %v138 = vld [vmem:[%s1 + $0xc] sm:$0xf]
  %v139 = vld [vmem:[%s1 + $0x10] sm:$0xf]
  %v140 = vld [vmem:[%s1 + $0x14] sm:$0xf]
  %v141 = vld [vmem:[%s1 + $0x18] sm:$0xf]
  %v142 = vld [vmem:[%s1 + $0x1c] sm:$0xf]
  %v143 = vld [vmem:[%s1 + $0x20] sm:$0xf]
  %v144 = vld [vmem:[%s1 + $0x24] sm:$0xf]
  %v145 = vld [vmem:[%s1 + $0x28] sm:$0xf]
  %v146 = vld [vmem:[%s1 + $0x2c] sm:$0xf]
  %v147 = vld [vmem:[%s1 + $0x30] sm:$0xf]
  %v148 = vld [vmem:[%s1 + $0x34] sm:$0xf]
  %v149 = vld [vmem:[%s1 + $0x38] sm:$0xf]
  %v150 = vld [vmem:[%s1 + $0x3c] sm:$0xf]
  %v151 = vld [vmem:[%s1 + $0x40] sm:$0xf]
  %v152 = vld [vmem:[%s1 + $0x44] sm:$0xf]
  %v153 = vld [vmem:[%s1 + $0x48] sm:$0xf]
  %v154 = vld [vmem:[%s1 + $0x4c] sm:$0xf]
  %v155 = vld [vmem:[%s1 + $0x50] sm:$0xf]
  %v156 = vld [vmem:[%s1 + $0x54] sm:$0xf]
  %v157 = vld [vmem:[%s1 + $0x58] sm:$0xf]
  %v158 = vld [vmem:[%s1 + $0x5c] sm:$0xf]
  %v159 = vld [vmem:[%s1 + $0x60] sm:$0xf]
  %v160 = vld [vmem:[%s1 + $0x64] sm:$0xf]
  %v161 = vld [vmem:[%s1 + $0x68] sm:$0xf]
  %v162 = vld [vmem:[%s1 + $0x6c] sm:$0xf]
  %v163 = vld [vmem:[%s1 + $0x70] sm:$0xf]
  %v164 = vld [vmem:[%s1 + $0x74] sm:$0xf]
  %v165 = vld [vmem:[%s1 + $0x78] sm:$0xf]
  %v166 = vld [vmem:[%s1 + $0x7c] sm:$0xf]
  %v167 = vld [vmem:[%s1 + $0x80] sm:$0xf]
  %v168 = vld [vmem:[%s1 + $0x84] sm:$0xf]
  %v169 = vld [vmem:[%s1 + $0x88] sm:$0xf]
  %v170 = vld [vmem:[%s1 + $0x8c] sm:$0xf]
  %v171 = vld [vmem:[%s1 + $0x90] sm:$0xf]
  %v172 = vld [vmem:[%s1 + $0x94] sm:$0xf]
  %v173 = vld [vmem:[%s1 + $0x98] sm:$0xf]
  %v174 = vld [vmem:[%s1 + $0x9c] sm:$0xf]
  %v175 = vld [vmem:[%s1 + $0xa0] sm:$0xf]
  %v176 = vld [vmem:[%s1 + $0xa4] sm:$0xf]
  %v177 = vld [vmem:[%s1 + $0xa8] sm:$0xf]
  %v178 = vld [vmem:[%s1 + $0xac] sm:$0xf]
  %v179 = vld [vmem:[%s1 + $0xb0] sm:$0xf]
  %v180 = vld [vmem:[%s1 + $0xb4] sm:$0xf]
  %v181 = vld [vmem:[%s1 + $0xb8] sm:$0xf]
  %v182 = vld [vmem:[%s1 + $0xbc] sm:$0xf]
  %v183 = vld [vmem:[%s1 + $0xc0] sm:$0xf]
  %v184 = vld [vmem:[%s1 + $0xc4] sm:$0xf]
  %v185 = vld [vmem:[%s1 + $0xc8] sm:$0xf]
  %v186 = vld [vmem:[%s1 + $0xcc] sm:$0xf]
  %v187 = vld [vmem:[%s1 + $0xd0] sm:$0xf]
  %v188 = vld [vmem:[%s1 + $0xd4] sm:$0xf]
  %v189 = vld [vmem:[%s1 + $0xd8] sm:$0xf]
  %v190 = vld [vmem:[%s1 + $0xdc] sm:$0xf]
  %v191 = vld [vmem:[%s1 + $0xe0] sm:$0xf]
  %v192 = vld [vmem:[%s1 + $0xe4] sm:$0xf]
  %v193 = vld [vmem:[%s1 + $0xe8] sm:$0xf]
  %v194 = vld [vmem:[%s1 + $0xec] sm:$0xf]
  %v195 = vld [vmem:[%s1 + $0xf0] sm:$0xf]
  %v196 = vld [vmem:[%s1 + $0xf4] sm:$0xf]
  %v197 = vld [vmem:[%s1 + $0xf8] sm:$0xf]
  %v198 = vld [vmem:[%s1 + $0xfc] sm:$0xf]
  %v199 = vld [vmem:[%s1 + $0x100] sm:$0xf]
  %v200 = vld [vmem:[%s1 + $0x104] sm:$0xf]
  %v201 = vld [vmem:[%s1 + $0x108] sm:$0xf]
  %v202 = vld [vmem:[%s1 + $0x10c] sm:$0xf]
  %v203 = vld [vmem:[%s1 + $0x110] sm:$0xf]
  %v204 = vld [vmem:[%s1 + $0x114] sm:$0xf]
  %v205 = vld [vmem:[%s1 + $0x118] sm:$0xf]
  %v206 = vld [vmem:[%s1 + $0x11c] sm:$0xf]
  %v207 = vld [vmem:[%s2] sm:$0x1]
  %v209 = vperm.slane %v207, 0
  %v283 = vunpack.c.l.b16 %v135
  %v284 = vunpack.c.l.b16 %v136
  %v285 = vunpack.c.l.b16 %v137
  %v286 = vunpack.c.l.b16 %v138
  %v287 = vunpack.c.l.b16 %v139
  %v288 = vunpack.c.l.b16 %v140
  %v289 = vunpack.c.l.b16 %v141
  %v290 = vunpack.c.l.b16 %v142
  %v291 = vunpack.c.l.b16 %v143
  %v292 = vunpack.c.l.b16 %v144
  %v293 = vunpack.c.l.b16 %v145
  %v294 = vunpack.c.l.b16 %v146
  %v295 = vunpack.c.l.b16 %v147
  %v296 = vunpack.c.l.b16 %v148
  %v297 = vunpack.c.l.b16 %v149
  %v298 = vunpack.c.l.b16 %v150
  %v299 = vunpack.c.l.b16 %v151
  %v300 = vunpack.c.l.b16 %v152
  %v301 = vunpack.c.l.b16 %v153
  %v302 = vunpack.c.l.b16 %v154
  %v303 = vunpack.c.l.b16 %v155
  %v304 = vunpack.c.l.b16 %v156
  %v305 = vunpack.c.l.b16 %v157
  %v306 = vunpack.c.l.b16 %v158
  %v307 = vunpack.c.l.b16 %v159
  %v308 = vunpack.c.l.b16 %v160
  %v309 = vunpack.c.l.b16 %v161
  %v310 = vunpack.c.l.b16 %v162
  %v311 = vunpack.c.l.b16 %v163
  %v312 = vunpack.c.l.b16 %v164
  %v313 = vunpack.c.l.b16 %v165
  %v314 = vunpack.c.l.b16 %v166
  %v315 = vunpack.c.l.b16 %v167
  %v316 = vunpack.c.l.b16 %v168
  %v317 = vunpack.c.l.b16 %v169
  %v318 = vunpack.c.l.b16 %v170
  %v319 = vunpack.c.l.b16 %v171
  %v320 = vunpack.c.l.b16 %v172
  %v321 = vunpack.c.l.b16 %v173
  %v322 = vunpack.c.l.b16 %v174
  %v323 = vunpack.c.l.b16 %v175
  %v324 = vunpack.c.l.b16 %v176
  %v325 = vunpack.c.l.b16 %v177
  %v326 = vunpack.c.l.b16 %v178
  %v327 = vunpack.c.l.b16 %v179
  %v328 = vunpack.c.l.b16 %v180
  %v329 = vunpack.c.l.b16 %v181
  %v330 = vunpack.c.l.b16 %v182
  %v331 = vunpack.c.l.b16 %v183
  %v332 = vunpack.c.l.b16 %v184
  %v333 = vunpack.c.l.b16 %v185
  %v334 = vunpack.c.l.b16 %v186
  %v335 = vunpack.c.l.b16 %v187
  %v336 = vunpack.c.l.b16 %v188
  %v337 = vunpack.c.l.b16 %v189
  %v338 = vunpack.c.l.b16 %v190
  %v339 = vunpack.c.l.b16 %v191
  %v340 = vunpack.c.l.b16 %v192
  %v341 = vunpack.c.l.b16 %v193
  %v342 = vunpack.c.l.b16 %v194
  %v343 = vunpack.c.l.b16 %v195
  %v344 = vunpack.c.l.b16 %v196
  %v345 = vunpack.c.l.b16 %v197
  %v346 = vunpack.c.l.b16 %v198
  %v347 = vunpack.c.l.b16 %v199
  %v348 = vunpack.c.l.b16 %v200
  %v349 = vunpack.c.l.b16 %v201
  %v350 = vunpack.c.l.b16 %v202
  %v351 = vunpack.c.l.b16 %v203
  %v352 = vunpack.c.l.b16 %v204
  %v353 = vunpack.c.l.b16 %v205
  %v354 = vunpack.c.l.b16 %v206
  %v355 = vpack.c.b16 %v284, %v283
  %v356 = vpack.c.b16 %v286, %v285
  %v357 = vpack.c.b16 %v288, %v287
  %v358 = vpack.c.b16 %v290, %v289
  %v359 = vpack.c.b16 %v292, %v291
  %v360 = vpack.c.b16 %v294, %v293
  %v361 = vpack.c.b16 %v296, %v295
  %v362 = vpack.c.b16 %v298, %v297
  %v363 = vpack.c.b16 %v300, %v299
  %v364 = vpack.c.b16 %v302, %v301
  %v365 = vpack.c.b16 %v304, %v303
  %v366 = vpack.c.b16 %v306, %v305
  %v367 = vpack.c.b16 %v308, %v307
  %v368 = vpack.c.b16 %v310, %v309
  %v369 = vpack.c.b16 %v312, %v311
  %v370 = vpack.c.b16 %v314, %v313
  %v371 = vpack.c.b16 %v316, %v315
  %v372 = vpack.c.b16 %v318, %v317
  %v373 = vpack.c.b16 %v320, %v319
  %v374 = vpack.c.b16 %v322, %v321
  %v375 = vpack.c.b16 %v324, %v323
  %v376 = vpack.c.b16 %v326, %v325
  %v377 = vpack.c.b16 %v328, %v327
  %v378 = vpack.c.b16 %v330, %v329
  %v379 = vpack.c.b16 %v332, %v331
  %v380 = vpack.c.b16 %v334, %v333
  %v381 = vpack.c.b16 %v336, %v335
  %v382 = vpack.c.b16 %v338, %v337
  %v383 = vpack.c.b16 %v340, %v339
  %v384 = vpack.c.b16 %v342, %v341
  %v385 = vpack.c.b16 %v344, %v343
  %v386 = vpack.c.b16 %v346, %v345
  %v387 = vpack.c.b16 %v348, %v347
  %v388 = vpack.c.b16 %v350, %v349
  %v389 = vpack.c.b16 %v352, %v351
  %v390 = vpack.c.b16 %v354, %v353
  %vm427 = vcmask 523264
  %v429 = vsel %vm427, %v99, 0
  %v432 = vsel %vm427, %v104, 0
  %v435 = vsel %vm427, %v109, 0
  %v438 = vsel %vm427, %v114, 0
  %v441 = vsel %vm427, %v119, 0
  %v444 = vsel %vm427, %v124, 0
  %v447 = vsel %vm427, %v129, 0
  %v450 = vsel %vm427, %v134, 0
  %452 = vmatpush.bf16.msra.mxu0 %v362
  %453 = vmatpush.bf16.msra.mxu0 %v361
  %454 = vmatpush.bf16.msra.mxu0 %v360
  %455 = vmatpush.bf16.msra.mxu0 %v359
  %456 = vmatpush.bf16.msra.mxu0 %v358
  %457 = vmatpush.bf16.msra.mxu0 %v357
  %458 = vmatpush.bf16.msra.mxu0 %v356
  %459 = vmatpush.bf16.msra.mxu0 %v355
  %460 = vmatmul.bf16.gmra.mxu0 %v95
  %v461 = vpop.f32.mrf.mxu0
  %v462 = vadd.f32 %v209, %v461
  %v463 = vpop.f32.mrf.mxu0
  %v464 = vadd.f32 %v209, %v463
  %465 = vmatmul.bf16.gmra.mxu0 %v100
  %v466 = vpop.f32.mrf.mxu0
  %v467 = vadd.f32 %v209, %v466
  %v468 = vpop.f32.mrf.mxu0
  %v469 = vadd.f32 %v209, %v468
  %470 = vmatmul.bf16.gmra.mxu0 %v105
  %v471 = vpop.f32.mrf.mxu0
  %v472 = vadd.f32 %v209, %v471
  %v473 = vpop.f32.mrf.mxu0
  %v474 = vadd.f32 %v209, %v473
  %475 = vmatmul.bf16.gmra.mxu0 %v110
  %v476 = vpop.f32.mrf.mxu0
  %v477 = vadd.f32 %v209, %v476
  %v478 = vpop.f32.mrf.mxu0
  %v479 = vadd.f32 %v209, %v478
  %480 = vmatmul.bf16.gmra.mxu0 %v115
  %v481 = vpop.f32.mrf.mxu0
  %v482 = vadd.f32 %v209, %v481
  %v483 = vpop.f32.mrf.mxu0
  %v484 = vadd.f32 %v209, %v483
  %485 = vmatmul.bf16.gmra.mxu0 %v120
  %v486 = vpop.f32.mrf.mxu0
  %v487 = vadd.f32 %v209, %v486
  %v488 = vpop.f32.mrf.mxu0
  %v489 = vadd.f32 %v209, %v488
  %490 = vmatmul.bf16.gmra.mxu0 %v125
  %v491 = vpop.f32.mrf.mxu0
  %v492 = vadd.f32 %v209, %v491
  %v493 = vpop.f32.mrf.mxu0
  %v494 = vadd.f32 %v209, %v493
  %495 = vmatmul.bf16.gmra.mxu0 %v130
  %v496 = vpop.f32.mrf.mxu0
  %v497 = vadd.f32 %v209, %v496
  %v498 = vpop.f32.mrf.mxu0
  %v499 = vadd.f32 %v209, %v498
  %500 = vdwg.mxu0
  %501 = vmatpush.bf16.msra.mxu0 %v370
  %502 = vmatpush.bf16.msra.mxu0 %v369
  %503 = vmatpush.bf16.msra.mxu0 %v368
  %504 = vmatpush.bf16.msra.mxu0 %v367
  %505 = vmatpush.bf16.msra.mxu0 %v366
  %506 = vmatpush.bf16.msra.mxu0 %v365
  %507 = vmatpush.bf16.msra.mxu0 %v364
  %508 = vmatpush.bf16.msra.mxu0 %v363
  %509 = vmatmul.bf16.gmra.mxu0 %v96
  %v510 = vpop.f32.mrf.mxu0
  %v511 = vadd.f32 %v462, %v510
  %v512 = vpop.f32.mrf.mxu0
  %v513 = vadd.f32 %v464, %v512
  %514 = vmatmul.bf16.gmra.mxu0 %v101
  %v515 = vpop.f32.mrf.mxu0
  %v516 = vadd.f32 %v467, %v515
  %v517 = vpop.f32.mrf.mxu0
  %v518 = vadd.f32 %v469, %v517
  %519 = vmatmul.bf16.gmra.mxu0 %v106
  %v520 = vpop.f32.mrf.mxu0
  %v521 = vadd.f32 %v472, %v520
  %v522 = vpop.f32.mrf.mxu0
  %v523 = vadd.f32 %v474, %v522
  %524 = vmatmul.bf16.gmra.mxu0 %v111
  %v525 = vpop.f32.mrf.mxu0
  %v526 = vadd.f32 %v477, %v525
  %v527 = vpop.f32.mrf.mxu0
  %v528 = vadd.f32 %v479, %v527
  %529 = vmatmul.bf16.gmra.mxu0 %v116
  %v530 = vpop.f32.mrf.mxu0
  %v531 = vadd.f32 %v482, %v530
  %v532 = vpop.f32.mrf.mxu0
  %v533 = vadd.f32 %v484, %v532
  %534 = vmatmul.bf16.gmra.mxu0 %v121
  %v535 = vpop.f32.mrf.mxu0
  %v536 = vadd.f32 %v487, %v535
  %v537 = vpop.f32.mrf.mxu0
  %v538 = vadd.f32 %v489, %v537
  %539 = vmatmul.bf16.gmra.mxu0 %v126
  %v540 = vpop.f32.mrf.mxu0
  %v541 = vadd.f32 %v492, %v540
  %v542 = vpop.f32.mrf.mxu0
  %v543 = vadd.f32 %v494, %v542
  %544 = vmatmul.bf16.gmra.mxu0 %v131
  %v545 = vpop.f32.mrf.mxu0
  %v546 = vadd.f32 %v497, %v545
  %v547 = vpop.f32.mrf.mxu0
  %v548 = vadd.f32 %v499, %v547
  %549 = vdwg.mxu0
  %550 = vmatpush.bf16.msra.mxu0 %v378
  %551 = vmatpush.bf16.msra.mxu0 %v377
  %552 = vmatpush.bf16.msra.mxu0 %v376
  %553 = vmatpush.bf16.msra.mxu0 %v375
  %554 = vmatpush.bf16.msra.mxu0 %v374
  %555 = vmatpush.bf16.msra.mxu0 %v373
  %556 = vmatpush.bf16.msra.mxu0 %v372
  %557 = vmatpush.bf16.msra.mxu0 %v371
  %558 = vmatmul.bf16.gmra.mxu0 %v97
  %v559 = vpop.f32.mrf.mxu0
  %v560 = vadd.f32 %v511, %v559
  %v561 = vpop.f32.mrf.mxu0
  %v562 = vadd.f32 %v513, %v561
  %563 = vmatmul.bf16.gmra.mxu0 %v102
  %v564 = vpop.f32.mrf.mxu0
  %v565 = vadd.f32 %v516, %v564
  %v566 = vpop.f32.mrf.mxu0
  %v567 = vadd.f32 %v518, %v566
  %568 = vmatmul.bf16.gmra.mxu0 %v107
  %v569 = vpop.f32.mrf.mxu0
  %v570 = vadd.f32 %v521, %v569
  %v571 = vpop.f32.mrf.mxu0
  %v572 = vadd.f32 %v523, %v571
  %573 = vmatmul.bf16.gmra.mxu0 %v112
  %v574 = vpop.f32.mrf.mxu0
  %v575 = vadd.f32 %v526, %v574
  %v576 = vpop.f32.mrf.mxu0
  %v577 = vadd.f32 %v528, %v576
  %578 = vmatmul.bf16.gmra.mxu0 %v117
  %v579 = vpop.f32.mrf.mxu0
  %v580 = vadd.f32 %v531, %v579
  %v581 = vpop.f32.mrf.mxu0
  %v582 = vadd.f32 %v533, %v581
  %583 = vmatmul.bf16.gmra.mxu0 %v122
  %v584 = vpop.f32.mrf.mxu0
  %v585 = vadd.f32 %v536, %v584
  %v586 = vpop.f32.mrf.mxu0
  %v587 = vadd.f32 %v538, %v586
  %588 = vmatmul.bf16.gmra.mxu0 %v127
  %v589 = vpop.f32.mrf.mxu0
  %v590 = vadd.f32 %v541, %v589
  %v591 = vpop.f32.mrf.mxu0
  %v592 = vadd.f32 %v543, %v591
  %593 = vmatmul.bf16.gmra.mxu0 %v132
  %v594 = vpop.f32.mrf.mxu0
  %v595 = vadd.f32 %v546, %v594
  %v596 = vpop.f32.mrf.mxu0
  %v597 = vadd.f32 %v548, %v596
  %598 = vdwg.mxu0
  %599 = vmatpush.bf16.msra.mxu0 %v386
  %600 = vmatpush.bf16.msra.mxu0 %v385
  %601 = vmatpush.bf16.msra.mxu0 %v384
  %602 = vmatpush.bf16.msra.mxu0 %v383
  %603 = vmatpush.bf16.msra.mxu0 %v382
  %604 = vmatpush.bf16.msra.mxu0 %v381
  %605 = vmatpush.bf16.msra.mxu0 %v380
  %606 = vmatpush.bf16.msra.mxu0 %v379
  %607 = vmatmul.bf16.gmra.mxu0 %v98
  %v608 = vpop.f32.mrf.mxu0
  %v609 = vadd.f32 %v560, %v608
  %v610 = vpop.f32.mrf.mxu0
  %v611 = vadd.f32 %v562, %v610
  %612 = vmatmul.bf16.gmra.mxu0 %v103
  %v613 = vpop.f32.mrf.mxu0
  %v614 = vadd.f32 %v565, %v613
  %v615 = vpop.f32.mrf.mxu0
  %v616 = vadd.f32 %v567, %v615
  %617 = vmatmul.bf16.gmra.mxu0 %v108
  %v618 = vpop.f32.mrf.mxu0
  %v619 = vadd.f32 %v570, %v618
  %v620 = vpop.f32.mrf.mxu0
  %v621 = vadd.f32 %v572, %v620
  %622 = vmatmul.bf16.gmra.mxu0 %v113
  %v623 = vpop.f32.mrf.mxu0
  %v624 = vadd.f32 %v575, %v623
  %v625 = vpop.f32.mrf.mxu0
  %v626 = vadd.f32 %v577, %v625
  %627 = vmatmul.bf16.gmra.mxu0 %v118
  %v628 = vpop.f32.mrf.mxu0
  %v629 = vadd.f32 %v580, %v628
  %v630 = vpop.f32.mrf.mxu0
  %v631 = vadd.f32 %v582, %v630
  %632 = vmatmul.bf16.gmra.mxu0 %v123
  %v633 = vpop.f32.mrf.mxu0
  %v634 = vadd.f32 %v585, %v633
  %v635 = vpop.f32.mrf.mxu0
  %v636 = vadd.f32 %v587, %v635
  %637 = vmatmul.bf16.gmra.mxu0 %v128
  %v638 = vpop.f32.mrf.mxu0
  %v639 = vadd.f32 %v590, %v638
  %v640 = vpop.f32.mrf.mxu0
  %v641 = vadd.f32 %v592, %v640
  %642 = vmatmul.bf16.gmra.mxu0 %v133
  %v643 = vpop.f32.mrf.mxu0
  %v644 = vadd.f32 %v595, %v643
  %v645 = vpop.f32.mrf.mxu0
  %v646 = vadd.f32 %v597, %v645
  %647 = vdwg.mxu0
  %648 = vmatpush.bf16.msra.mxu0 0
  %649 = vmatpush.bf16.msra.mxu0 0
  %650 = vmatpush.bf16.msra.mxu0 0
  %651 = vmatpush.bf16.msra.mxu0 0
  %652 = vmatpush.bf16.msra.mxu0 %v390
  %653 = vmatpush.bf16.msra.mxu0 %v389
  %654 = vmatpush.bf16.msra.mxu0 %v388
  %655 = vmatpush.bf16.msra.mxu0 %v387
  %656 = vmatmul.bf16.gmra.mxu0 %v429
  %v657 = vpop.f32.mrf.mxu0
  %v658 = vadd.f32 %v609, %v657
  %v659 = vpop.f32.mrf.mxu0
  %v660 = vadd.f32 %v611, %v659
  %661 = vmatmul.bf16.gmra.mxu0 %v432
  %v662 = vpop.f32.mrf.mxu0
  %v663 = vadd.f32 %v614, %v662
  %v664 = vpop.f32.mrf.mxu0
  %v665 = vadd.f32 %v616, %v664
  %666 = vmatmul.bf16.gmra.mxu0 %v435
  %v667 = vpop.f32.mrf.mxu0
  %v668 = vadd.f32 %v619, %v667
  %v669 = vpop.f32.mrf.mxu0
  %v670 = vadd.f32 %v621, %v669
  %671 = vmatmul.bf16.gmra.mxu0 %v438
  %v672 = vpop.f32.mrf.mxu0
  %v673 = vadd.f32 %v624, %v672
  %v674 = vpop.f32.mrf.mxu0
  %v675 = vadd.f32 %v626, %v674
  %676 = vmatmul.bf16.gmra.mxu0 %v441
  %v677 = vpop.f32.mrf.mxu0
  %v678 = vadd.f32 %v629, %v677
  %v679 = vpop.f32.mrf.mxu0
  %v680 = vadd.f32 %v631, %v679
  %681 = vmatmul.bf16.gmra.mxu0 %v444
  %v682 = vpop.f32.mrf.mxu0
  %v683 = vadd.f32 %v634, %v682
  %v684 = vpop.f32.mrf.mxu0
  %v685 = vadd.f32 %v636, %v684
  %686 = vmatmul.bf16.gmra.mxu0 %v447
  %v687 = vpop.f32.mrf.mxu0
  %v688 = vadd.f32 %v639, %v687
  %v689 = vpop.f32.mrf.mxu0
  %v690 = vadd.f32 %v641, %v689
  %691 = vmatmul.bf16.gmra.mxu0 %v450
  %v692 = vpop.f32.mrf.mxu0
  %v693 = vadd.f32 %v644, %v692
  %v694 = vpop.f32.mrf.mxu0
  %v695 = vadd.f32 %v646, %v694
  %696 = vdwg.mxu0
  %v697 = vmax.f32 %v658, 0.0
  %v698 = vmax.f32 %v660, 0.0
  %v699 = vmax.f32 %v663, 0.0
  %v700 = vmax.f32 %v665, 0.0
  %v701 = vmax.f32 %v668, 0.0
  %v702 = vmax.f32 %v670, 0.0
  %v703 = vmax.f32 %v673, 0.0
  %v704 = vmax.f32 %v675, 0.0
  %v705 = vmax.f32 %v678, 0.0
  %v706 = vmax.f32 %v680, 0.0
  %v707 = vmax.f32 %v683, 0.0
  %v708 = vmax.f32 %v685, 0.0
  %v709 = vmax.f32 %v688, 0.0
  %v710 = vmax.f32 %v690, 0.0
  %v711 = vmax.f32 %v693, 0.0
  %v712 = vmax.f32 %v695, 0.0
  %vm713 = vcmask 785408
  %714 = vst.msk [vmem:[%s3] sm:$0xff] %vm713, %v697
  %715 = vst.msk [vmem:[%s3 + $0x8] sm:$0xff] %vm713, %v698
  %716 = vst.msk [vmem:[%s3 + $0x10] sm:$0xff] %vm713, %v699
  %717 = vst.msk [vmem:[%s3 + $0x18] sm:$0xff] %vm713, %v700
  %718 = vst.msk [vmem:[%s3 + $0x20] sm:$0xff] %vm713, %v701
  %719 = vst.msk [vmem:[%s3 + $0x28] sm:$0xff] %vm713, %v702
  %720 = vst.msk [vmem:[%s3 + $0x30] sm:$0xff] %vm713, %v703
  %721 = vst.msk [vmem:[%s3 + $0x38] sm:$0xff] %vm713, %v704
  %722 = vst.msk [vmem:[%s3 + $0x40] sm:$0xff] %vm713, %v705
  %723 = vst.msk [vmem:[%s3 + $0x48] sm:$0xff] %vm713, %v706
  %724 = vst.msk [vmem:[%s3 + $0x50] sm:$0xff] %vm713, %v707
  %725 = vst.msk [vmem:[%s3 + $0x58] sm:$0xff] %vm713, %v708
  %726 = vst.msk [vmem:[%s3 + $0x60] sm:$0xff] %vm713, %v709
  %727 = vst.msk [vmem:[%s3 + $0x68] sm:$0xff] %vm713, %v710
  %728 = vst.msk [vmem:[%s3 + $0x70] sm:$0xff] %vm713, %v711
  %729 = vst.msk [vmem:[%s3 + $0x78] sm:$0xff] %vm713, %v712
  // Predicated region
  $region14: #{mpii_1_forward.17} parent=0 // pred_check
    _
  $region15: #{mpii_1_forward.17} parent=0 // pred_check_branch
    %731 = sbr.rel (0) target = $region17
  $region16: #{mpii_1_forward.17} parent=0 // pred_region
    _
  $region17: #{mpii_1_forward.17} parent=0 // pred_fallthru
    _
  // Predicated region
  $region18: #{mpii_1_forward.17} parent=0 // pred_check
    _
  $region19: #{mpii_1_forward.17} parent=0 // pred_check_branch
    %733 = sbr.rel (0) target = $region21
  $region20: #{mpii_1_forward.17} parent=0 // pred_region
    _
  $region21: #{mpii_1_forward.17} parent=0 // pred_fallthru
    _

// kernel: mpii_1_forward.18
$region0: #{mpii_1_forward.18}
  #allocation0 [shape = 'u32[]', space=smem, size = 0x4, offset = 0x4, fixed_abs, tag = 'smem constant byte address 0x4 - core index']
  #allocation1 [shape = 'u32[72,128]{1,0:T(1,128)}', space=vmem, size = 0x9000, scoped, tag = 'internal scratch']
  %s0 = inlined_call_operand.vmem [shape: f32[128,160], index: 0, kind: input, shape index: {}]
  %s1 = inlined_call_operand.vmem [shape: bf16[160,128], index: 1, kind: input, shape index: {}]
  %s2 = inlined_call_operand.vmem [shape: f32[1,128], index: 2, kind: input, shape index: {}]
  %s3 = inlined_call_operand.vmem [shape: f32[128,128], index: 3, kind: output, shape index: {}]
  %s4 = sld [smem:[#allocation0]]
  $region22: #{mpii_1_forward.18} parent=0
    _
  %s6 = ssub.s32 1, %s4
  %s7 = scalar_select 0, %s6, %s4
  // Predicated region
  $region2: #{mpii_1_forward.18} parent=0 // pred_check
    _
  $region3: #{mpii_1_forward.18} parent=0 // pred_check_branch
    %9 = sbr.rel (0) target = $region5
  $region4: #{mpii_1_forward.18} parent=0 // pred_region
    _
  $region5: #{mpii_1_forward.18} parent=0 // pred_fallthru
    _
  // Predicated region
  $region6: #{mpii_1_forward.18} parent=0 // pred_check
    _
  $region7: #{mpii_1_forward.18} parent=0 // pred_check_branch
    %11 = sbr.rel (0) target = $region9
  $region8: #{mpii_1_forward.18} parent=0 // pred_region
    _
  $region9: #{mpii_1_forward.18} parent=0 // pred_fallthru
    _
  // Predicated region
  $region10: #{mpii_1_forward.18} parent=0 // pred_check
    _
  $region11: #{mpii_1_forward.18} parent=0 // pred_check_branch
    %13 = sbr.rel (0) target = $region13
  $region12: #{mpii_1_forward.18} parent=0 // pred_region
    _
  $region13: #{mpii_1_forward.18} parent=0 // pred_fallthru
    _
  %v15 = vld [vmem:[%s0] sm:$0xff]
  %v16 = vld [vmem:[%s0 + $0x8] sm:$0xff]
  %v17 = vld [vmem:[%s0 + $0x10] sm:$0xff]
  %v18 = vld [vmem:[%s0 + $0x18] sm:$0xff]
  %v19 = vld [vmem:[%s0 + $0x20] sm:$0xff]
  %v20 = vld [vmem:[%s0 + $0x28] sm:$0xff]
  %v21 = vld [vmem:[%s0 + $0x30] sm:$0xff]
  %v22 = vld [vmem:[%s0 + $0x38] sm:$0xff]
  %v23 = vld [vmem:[%s0 + $0x40] sm:$0xff]
  %v24 = vld [vmem:[%s0 + $0x48] sm:$0xff]
  %v25 = vld [vmem:[%s0 + $0x50] sm:$0xff]
  %v26 = vld [vmem:[%s0 + $0x58] sm:$0xff]
  %v27 = vld [vmem:[%s0 + $0x60] sm:$0xff]
  %v28 = vld [vmem:[%s0 + $0x68] sm:$0xff]
  %v29 = vld [vmem:[%s0 + $0x70] sm:$0xff]
  %v30 = vld [vmem:[%s0 + $0x78] sm:$0xff]
  %v31 = vld [vmem:[%s0 + $0x80] sm:$0xff]
  %v32 = vld [vmem:[%s0 + $0x88] sm:$0xff]
  %v33 = vld [vmem:[%s0 + $0x90] sm:$0xff]
  %v34 = vld [vmem:[%s0 + $0x98] sm:$0xff]
  %v35 = vld [vmem:[%s0 + $0xa0] sm:$0xff]
  %v36 = vld [vmem:[%s0 + $0xa8] sm:$0xff]
  %v37 = vld [vmem:[%s0 + $0xb0] sm:$0xff]
  %v38 = vld [vmem:[%s0 + $0xb8] sm:$0xff]
  %v39 = vld [vmem:[%s0 + $0xc0] sm:$0xff]
  %v40 = vld [vmem:[%s0 + $0xc8] sm:$0xff]
  %v41 = vld [vmem:[%s0 + $0xd0] sm:$0xff]
  %v42 = vld [vmem:[%s0 + $0xd8] sm:$0xff]
  %v43 = vld [vmem:[%s0 + $0xe0] sm:$0xff]
  %v44 = vld [vmem:[%s0 + $0xe8] sm:$0xff]
  %v45 = vld [vmem:[%s0 + $0xf0] sm:$0xff]
  %v46 = vld [vmem:[%s0 + $0xf8] sm:$0xff]
  %v47 = vpack.c.bf16 %v17, %v15
  %v48 = vpack.c.bf16 %v18, %v16
  %v49 = vpack.c.bf16 %v21, %v19
  %v50 = vpack.c.bf16 %v22, %v20
  %v51 = vpack.c.bf16 %v25, %v23
  %v52 = vpack.c.bf16 %v26, %v24
  %v53 = vpack.c.bf16 %v29, %v27
  %v54 = vpack.c.bf16 %v30, %v28
  %v55 = vpack.c.bf16 %v33, %v31
  %v56 = vpack.c.bf16 %v34, %v32
  %v57 = vpack.c.bf16 %v37, %v35
  %v58 = vpack.c.bf16 %v38, %v36
  %v59 = vpack.c.bf16 %v41, %v39
  %v60 = vpack.c.bf16 %v42, %v40
  %v61 = vpack.c.bf16 %v45, %v43
  %v62 = vpack.c.bf16 %v46, %v44
  %v63 = vld [vmem:[%s1] sm:$0xf]
  %v64 = vld [vmem:[%s1 + $0x4] sm:$0xf]
  %v65 = vld [vmem:[%s1 + $0x8] sm:$0xf]
  %v66 = vld [vmem:[%s1 + $0xc] sm:$0xf]
  %v67 = vld [vmem:[%s1 + $0x10] sm:$0xf]
  %v68 = vld [vmem:[%s1 + $0x14] sm:$0xf]
  %v69 = vld [vmem:[%s1 + $0x18] sm:$0xf]
  %v70 = vld [vmem:[%s1 + $0x1c] sm:$0xf]
  %v71 = vld [vmem:[%s1 + $0x20] sm:$0xf]
  %v72 = vld [vmem:[%s1 + $0x24] sm:$0xf]
  %v73 = vld [vmem:[%s1 + $0x28] sm:$0xf]
  %v74 = vld [vmem:[%s1 + $0x2c] sm:$0xf]
  %v75 = vld [vmem:[%s1 + $0x30] sm:$0xf]
  %v76 = vld [vmem:[%s1 + $0x34] sm:$0xf]
  %v77 = vld [vmem:[%s1 + $0x38] sm:$0xf]
  %v78 = vld [vmem:[%s1 + $0x3c] sm:$0xf]
  %v79 = vld [vmem:[%s1 + $0x40] sm:$0xf]
  %v80 = vld [vmem:[%s1 + $0x44] sm:$0xf]
  %v81 = vld [vmem:[%s1 + $0x48] sm:$0xf]
  %v82 = vld [vmem:[%s1 + $0x4c] sm:$0xf]
  %v83 = vld [vmem:[%s2] sm:$0x1]
  %v85 = vperm.slane %v83, 0
  %v107 = vunpack.c.l.b16 %v63
  %v108 = vunpack.c.l.b16 %v64
  %v109 = vunpack.c.l.b16 %v65
  %v110 = vunpack.c.l.b16 %v66
  %v111 = vunpack.c.l.b16 %v67
  %v112 = vunpack.c.l.b16 %v68
  %v113 = vunpack.c.l.b16 %v69
  %v114 = vunpack.c.l.b16 %v70
  %v115 = vunpack.c.l.b16 %v71
  %v116 = vunpack.c.l.b16 %v72
  %v117 = vunpack.c.l.b16 %v73
  %v118 = vunpack.c.l.b16 %v74
  %v119 = vunpack.c.l.b16 %v75
  %v120 = vunpack.c.l.b16 %v76
  %v121 = vunpack.c.l.b16 %v77
  %v122 = vunpack.c.l.b16 %v78
  %v123 = vunpack.c.l.b16 %v79
  %v124 = vunpack.c.l.b16 %v80
  %v125 = vunpack.c.l.b16 %v81
  %v126 = vunpack.c.l.b16 %v82
  %v127 = vpack.c.b16 %v108, %v107
  %v128 = vpack.c.b16 %v110, %v109
  %v129 = vpack.c.b16 %v112, %v111
  %v130 = vpack.c.b16 %v114, %v113
  %v131 = vpack.c.b16 %v116, %v115
  %v132 = vpack.c.b16 %v118, %v117
  %v133 = vpack.c.b16 %v120, %v119
  %v134 = vpack.c.b16 %v122, %v121
  %v135 = vpack.c.b16 %v124, %v123
  %v136 = vpack.c.b16 %v126, %v125
  %vm147 = vcmask 261120
  %v149 = vsel %vm147, %v48, 0
  %v152 = vsel %vm147, %v50, 0
  %v155 = vsel %vm147, %v52, 0
  %v158 = vsel %vm147, %v54, 0
  %v161 = vsel %vm147, %v56, 0
  %v164 = vsel %vm147, %v58, 0
  %v167 = vsel %vm147, %v60, 0
  %v170 = vsel %vm147, %v62, 0
  %172 = vmatpush.bf16.msra.mxu0 %v134
  %173 = vmatpush.bf16.msra.mxu0 %v133
  %174 = vmatpush.bf16.msra.mxu0 %v132
  %175 = vmatpush.bf16.msra.mxu0 %v131
  %176 = vmatpush.bf16.msra.mxu0 %v130
  %177 = vmatpush.bf16.msra.mxu0 %v129
  %178 = vmatpush.bf16.msra.mxu0 %v128
  %179 = vmatpush.bf16.msra.mxu0 %v127
  %180 = vmatmul.bf16.gmra.mxu0 %v47
  %v181 = vpop.f32.mrf.mxu0
  %v182 = vadd.f32 %v85, %v181
  %v183 = vpop.f32.mrf.mxu0
  %v184 = vadd.f32 %v85, %v183
  %185 = vmatmul.bf16.gmra.mxu0 %v49
  %v186 = vpop.f32.mrf.mxu0
  %v187 = vadd.f32 %v85, %v186
  %v188 = vpop.f32.mrf.mxu0
  %v189 = vadd.f32 %v85, %v188
  %190 = vmatmul.bf16.gmra.mxu0 %v51
  %v191 = vpop.f32.mrf.mxu0
  %v192 = vadd.f32 %v85, %v191
  %v193 = vpop.f32.mrf.mxu0
  %v194 = vadd.f32 %v85, %v193
  %195 = vmatmul.bf16.gmra.mxu0 %v53
  %v196 = vpop.f32.mrf.mxu0
  %v197 = vadd.f32 %v85, %v196
  %v198 = vpop.f32.mrf.mxu0
  %v199 = vadd.f32 %v85, %v198
  %200 = vmatmul.bf16.gmra.mxu0 %v55
  %v201 = vpop.f32.mrf.mxu0
  %v202 = vadd.f32 %v85, %v201
  %v203 = vpop.f32.mrf.mxu0
  %v204 = vadd.f32 %v85, %v203
  %205 = vmatmul.bf16.gmra.mxu0 %v57
  %v206 = vpop.f32.mrf.mxu0
  %v207 = vadd.f32 %v85, %v206
  %v208 = vpop.f32.mrf.mxu0
  %v209 = vadd.f32 %v85, %v208
  %210 = vmatmul.bf16.gmra.mxu0 %v59
  %v211 = vpop.f32.mrf.mxu0
  %v212 = vadd.f32 %v85, %v211
  %v213 = vpop.f32.mrf.mxu0
  %v214 = vadd.f32 %v85, %v213
  %215 = vmatmul.bf16.gmra.mxu0 %v61
  %v216 = vpop.f32.mrf.mxu0
  %v217 = vadd.f32 %v85, %v216
  %v218 = vpop.f32.mrf.mxu0
  %v219 = vadd.f32 %v85, %v218
  %220 = vdwg.mxu0
  %221 = vmatpush.bf16.msra.mxu0 0
  %222 = vmatpush.bf16.msra.mxu0 0
  %223 = vmatpush.bf16.msra.mxu0 0
  %224 = vmatpush.bf16.msra.mxu0 0
  %225 = vmatpush.bf16.msra.mxu0 0
  %226 = vmatpush.bf16.msra.mxu0 0
  %227 = vmatpush.bf16.msra.mxu0 %v136
  %228 = vmatpush.bf16.msra.mxu0 %v135
  %229 = vmatmul.bf16.gmra.mxu0 %v149
  %v230 = vpop.f32.mrf.mxu0
  %v231 = vadd.f32 %v182, %v230
  %v232 = vpop.f32.mrf.mxu0
  %v233 = vadd.f32 %v184, %v232
  %234 = vmatmul.bf16.gmra.mxu0 %v152
  %v235 = vpop.f32.mrf.mxu0
  %v236 = vadd.f32 %v187, %v235
  %v237 = vpop.f32.mrf.mxu0
  %v238 = vadd.f32 %v189, %v237
  %239 = vmatmul.bf16.gmra.mxu0 %v155
  %v240 = vpop.f32.mrf.mxu0
  %v241 = vadd.f32 %v192, %v240
  %v242 = vpop.f32.mrf.mxu0
  %v243 = vadd.f32 %v194, %v242
  %244 = vmatmul.bf16.gmra.mxu0 %v158
  %v245 = vpop.f32.mrf.mxu0
  %v246 = vadd.f32 %v197, %v245
  %v247 = vpop.f32.mrf.mxu0
  %v248 = vadd.f32 %v199, %v247
  %249 = vmatmul.bf16.gmra.mxu0 %v161
  %v250 = vpop.f32.mrf.mxu0
  %v251 = vadd.f32 %v202, %v250
  %v252 = vpop.f32.mrf.mxu0
  %v253 = vadd.f32 %v204, %v252
  %254 = vmatmul.bf16.gmra.mxu0 %v164
  %v255 = vpop.f32.mrf.mxu0
  %v256 = vadd.f32 %v207, %v255
  %v257 = vpop.f32.mrf.mxu0
  %v258 = vadd.f32 %v209, %v257
  %259 = vmatmul.bf16.gmra.mxu0 %v167
  %v260 = vpop.f32.mrf.mxu0
  %v261 = vadd.f32 %v212, %v260
  %v262 = vpop.f32.mrf.mxu0
  %v263 = vadd.f32 %v214, %v262
  %264 = vmatmul.bf16.gmra.mxu0 %v170
  %v265 = vpop.f32.mrf.mxu0
  %v266 = vadd.f32 %v217, %v265
  %v267 = vpop.f32.mrf.mxu0
  %v268 = vadd.f32 %v219, %v267
  %269 = vdwg.mxu0
  %v270 = vmax.f32 %v231, 0.0
  %v271 = vmax.f32 %v233, 0.0
  %v272 = vmax.f32 %v236, 0.0
  %v273 = vmax.f32 %v238, 0.0
  %v274 = vmax.f32 %v241, 0.0
  %v275 = vmax.f32 %v243, 0.0
  %v276 = vmax.f32 %v246, 0.0
  %v277 = vmax.f32 %v248, 0.0
  %v278 = vmax.f32 %v251, 0.0
  %v279 = vmax.f32 %v253, 0.0
  %v280 = vmax.f32 %v256, 0.0
  %v281 = vmax.f32 %v258, 0.0
  %v282 = vmax.f32 %v261, 0.0
  %v283 = vmax.f32 %v263, 0.0
  %v284 = vmax.f32 %v266, 0.0
  %v285 = vmax.f32 %v268, 0.0
  %286 = vst [vmem:[%s3] sm:$0xff] %v270
  %287 = vst [vmem:[%s3 + $0x8] sm:$0xff] %v271
  %288 = vst [vmem:[%s3 + $0x10] sm:$0xff] %v272
  %289 = vst [vmem:[%s3 + $0x18] sm:$0xff] %v273
  %290 = vst [vmem:[%s3 + $0x20] sm:$0xff] %v274
  %291 = vst [vmem:[%s3 + $0x28] sm:$0xff] %v275
  %292 = vst [vmem:[%s3 + $0x30] sm:$0xff] %v276
  %293 = vst [vmem:[%s3 + $0x38] sm:$0xff] %v277
  %294 = vst [vmem:[%s3 + $0x40] sm:$0xff] %v278
  %295 = vst [vmem:[%s3 + $0x48] sm:$0xff] %v279
  %296 = vst [vmem:[%s3 + $0x50] sm:$0xff] %v280
  %297 = vst [vmem:[%s3 + $0x58] sm:$0xff] %v281
  %298 = vst [vmem:[%s3 + $0x60] sm:$0xff] %v282
  %299 = vst [vmem:[%s3 + $0x68] sm:$0xff] %v283
  %300 = vst [vmem:[%s3 + $0x70] sm:$0xff] %v284
  %301 = vst [vmem:[%s3 + $0x78] sm:$0xff] %v285
  // Predicated region
  $region14: #{mpii_1_forward.18} parent=0 // pred_check
    _
  $region15: #{mpii_1_forward.18} parent=0 // pred_check_branch
    %303 = sbr.rel (0) target = $region17
  $region16: #{mpii_1_forward.18} parent=0 // pred_region
    _
  $region17: #{mpii_1_forward.18} parent=0 // pred_fallthru
    _
  // Predicated region
  $region18: #{mpii_1_forward.18} parent=0 // pred_check
    _
  $region19: #{mpii_1_forward.18} parent=0 // pred_check_branch
    %305 = sbr.rel (0) target = $region21
  $region20: #{mpii_1_forward.18} parent=0 // pred_region
    _
  $region21: #{mpii_1_forward.18} parent=0 // pred_fallthru
    _

// kernel: mpii_1_forward.20
$region0: #{mpii_1_forward.20}
  #allocation0 [shape = 'u32[]', space=smem, size = 0x4, offset = 0x4, fixed_abs, tag = 'smem constant byte address 0x4 - core index']
  #allocation1 [shape = 'u32[72,128]{1,0:T(1,128)}', space=vmem, size = 0x9000, scoped, tag = 'internal scratch']
  %s0 = inlined_call_operand.vmem [shape: f32[128,320], index: 0, kind: input, shape index: {}]
  %s1 = inlined_call_operand.vmem [shape: bf16[320,64], index: 1, kind: input, shape index: {}]
  %s2 = inlined_call_operand.vmem [shape: f32[1,64], index: 2, kind: input, shape index: {}]
  %s3 = inlined_call_operand.vmem [shape: f32[128,64], index: 3, kind: output, shape index: {}]
  %s4 = sld [smem:[#allocation0]]
  $region22: #{mpii_1_forward.20} parent=0
    _
  %s6 = ssub.s32 1, %s4
  %s7 = scalar_select 0, %s6, %s4
  // Predicated region
  $region2: #{mpii_1_forward.20} parent=0 // pred_check
    _
  $region3: #{mpii_1_forward.20} parent=0 // pred_check_branch
    %9 = sbr.rel (0) target = $region5
  $region4: #{mpii_1_forward.20} parent=0 // pred_region
    _
  $region5: #{mpii_1_forward.20} parent=0 // pred_fallthru
    _
  // Predicated region
  $region6: #{mpii_1_forward.20} parent=0 // pred_check
    _
  $region7: #{mpii_1_forward.20} parent=0 // pred_check_branch
    %11 = sbr.rel (0) target = $region9
  $region8: #{mpii_1_forward.20} parent=0 // pred_region
    _
  $region9: #{mpii_1_forward.20} parent=0 // pred_fallthru
    _
  // Predicated region
  $region10: #{mpii_1_forward.20} parent=0 // pred_check
    _
  $region11: #{mpii_1_forward.20} parent=0 // pred_check_branch
    %13 = sbr.rel (0) target = $region13
  $region12: #{mpii_1_forward.20} parent=0 // pred_region
    _
  $region13: #{mpii_1_forward.20} parent=0 // pred_fallthru
    _
  %v15 = vld [vmem:[%s0] sm:$0xff]
  %v16 = vld [vmem:[%s0 + $0x8] sm:$0xff]
  %v17 = vld [vmem:[%s0 + $0x10] sm:$0xff]
  %v18 = vld [vmem:[%s0 + $0x18] sm:$0xff]
  %v19 = vld [vmem:[%s0 + $0x20] sm:$0xff]
  %v20 = vld [vmem:[%s0 + $0x28] sm:$0xff]
  %v21 = vld [vmem:[%s0 + $0x30] sm:$0xff]
  %v22 = vld [vmem:[%s0 + $0x38] sm:$0xff]
  %v23 = vld [vmem:[%s0 + $0x40] sm:$0xff]
  %v24 = vld [vmem:[%s0 + $0x48] sm:$0xff]
  %v25 = vld [vmem:[%s0 + $0x50] sm:$0xff]
  %v26 = vld [vmem:[%s0 + $0x58] sm:$0xff]
  %v27 = vld [vmem:[%s0 + $0x60] sm:$0xff]
  %v28 = vld [vmem:[%s0 + $0x68] sm:$0xff]
  %v29 = vld [vmem:[%s0 + $0x70] sm:$0xff]
  %v30 = vld [vmem:[%s0 + $0x78] sm:$0xff]
  %v31 = vld [vmem:[%s0 + $0x80] sm:$0xff]
  %v32 = vld [vmem:[%s0 + $0x88] sm:$0xff]
  %v33 = vld [vmem:[%s0 + $0x90] sm:$0xff]
  %v34 = vld [vmem:[%s0 + $0x98] sm:$0xff]
  %v35 = vld [vmem:[%s0 + $0xa0] sm:$0xff]
  %v36 = vld [vmem:[%s0 + $0xa8] sm:$0xff]
  %v37 = vld [vmem:[%s0 + $0xb0] sm:$0xff]
  %v38 = vld [vmem:[%s0 + $0xb8] sm:$0xff]
  %v39 = vld [vmem:[%s0 + $0xc0] sm:$0xff]
  %v40 = vld [vmem:[%s0 + $0xc8] sm:$0xff]
  %v41 = vld [vmem:[%s0 + $0xd0] sm:$0xff]
  %v42 = vld [vmem:[%s0 + $0xd8] sm:$0xff]
  %v43 = vld [vmem:[%s0 + $0xe0] sm:$0xff]
  %v44 = vld [vmem:[%s0 + $0xe8] sm:$0xff]
  %v45 = vld [vmem:[%s0 + $0xf0] sm:$0xff]
  %v46 = vld [vmem:[%s0 + $0xf8] sm:$0xff]
  %v47 = vld [vmem:[%s0 + $0x100] sm:$0xff]
  %v48 = vld [vmem:[%s0 + $0x108] sm:$0xff]
  %v49 = vld [vmem:[%s0 + $0x110] sm:$0xff]
  %v50 = vld [vmem:[%s0 + $0x118] sm:$0xff]
  %v51 = vld [vmem:[%s0 + $0x120] sm:$0xff]
  %v52 = vld [vmem:[%s0 + $0x128] sm:$0xff]
  %v53 = vld [vmem:[%s0 + $0x130] sm:$0xff]
  %v54 = vld [vmem:[%s0 + $0x138] sm:$0xff]
  %v55 = vld [vmem:[%s0 + $0x140] sm:$0xff]
  %v56 = vld [vmem:[%s0 + $0x148] sm:$0xff]
  %v57 = vld [vmem:[%s0 + $0x150] sm:$0xff]
  %v58 = vld [vmem:[%s0 + $0x158] sm:$0xff]
  %v59 = vld [vmem:[%s0 + $0x160] sm:$0xff]
  %v60 = vld [vmem:[%s0 + $0x168] sm:$0xff]
  %v61 = vld [vmem:[%s0 + $0x170] sm:$0xff]
  %v62 = vld [vmem:[%s0 + $0x178] sm:$0xff]
  %v63 = vpack.c.bf16 %v18, %v15
  %v64 = vpack.c.bf16 %v19, %v16
  %v65 = vpack.c.bf16 %v20, %v17
  %v66 = vpack.c.bf16 %v24, %v21
  %v67 = vpack.c.bf16 %v25, %v22
  %v68 = vpack.c.bf16 %v26, %v23
  %v69 = vpack.c.bf16 %v30, %v27
  %v70 = vpack.c.bf16 %v31, %v28
  %v71 = vpack.c.bf16 %v32, %v29
  %v72 = vpack.c.bf16 %v36, %v33
  %v73 = vpack.c.bf16 %v37, %v34
  %v74 = vpack.c.bf16 %v38, %v35
  %v75 = vpack.c.bf16 %v42, %v39
  %v76 = vpack.c.bf16 %v43, %v40
  %v77 = vpack.c.bf16 %v44, %v41
  %v78 = vpack.c.bf16 %v48, %v45
  %v79 = vpack.c.bf16 %v49, %v46
  %v80 = vpack.c.bf16 %v50, %v47
  %v81 = vpack.c.bf16 %v54, %v51
  %v82 = vpack.c.bf16 %v55, %v52
  %v83 = vpack.c.bf16 %v56, %v53
  %v84 = vpack.c.bf16 %v60, %v57
  %v85 = vpack.c.bf16 %v61, %v58
  %v86 = vpack.c.bf16 %v62, %v59
  %v87 = vld [vmem:[%s1] sm:$0xf]
  %v88 = vld [vmem:[%s1 + $0x4] sm:$0xf]
  %v89 = vld [vmem:[%s1 + $0x8] sm:$0xf]
  %v90 = vld [vmem:[%s1 + $0xc] sm:$0xf]
  %v91 = vld [vmem:[%s1 + $0x10] sm:$0xf]
  %v92 = vld [vmem:[%s1 + $0x14] sm:$0xf]
  %v93 = vld [vmem:[%s1 + $0x18] sm:$0xf]
  %v94 = vld [vmem:[%s1 + $0x1c] sm:$0xf]
  %v95 = vld [vmem:[%s1 + $0x20] sm:$0xf]
  %v96 = vld [vmem:[%s1 + $0x24] sm:$0xf]
  %v97 = vld [vmem:[%s1 + $0x28] sm:$0xf]
  %v98 = vld [vmem:[%s1 + $0x2c] sm:$0xf]
  %v99 = vld [vmem:[%s1 + $0x30] sm:$0xf]
  %v100 = vld [vmem:[%s1 + $0x34] sm:$0xf]
  %v101 = vld [vmem:[%s1 + $0x38] sm:$0xf]
  %v102 = vld [vmem:[%s1 + $0x3c] sm:$0xf]
  %v103 = vld [vmem:[%s1 + $0x40] sm:$0xf]
  %v104 = vld [vmem:[%s1 + $0x44] sm:$0xf]
  %v105 = vld [vmem:[%s1 + $0x48] sm:$0xf]
  %v106 = vld [vmem:[%s1 + $0x4c] sm:$0xf]
  %v107 = vld [vmem:[%s1 + $0x50] sm:$0xf]
  %v108 = vld [vmem:[%s1 + $0x54] sm:$0xf]
  %v109 = vld [vmem:[%s1 + $0x58] sm:$0xf]
  %v110 = vld [vmem:[%s1 + $0x5c] sm:$0xf]
  %v111 = vld [vmem:[%s1 + $0x60] sm:$0xf]
  %v112 = vld [vmem:[%s1 + $0x64] sm:$0xf]
  %v113 = vld [vmem:[%s1 + $0x68] sm:$0xf]
  %v114 = vld [vmem:[%s1 + $0x6c] sm:$0xf]
  %v115 = vld [vmem:[%s1 + $0x70] sm:$0xf]
  %v116 = vld [vmem:[%s1 + $0x74] sm:$0xf]
  %v117 = vld [vmem:[%s1 + $0x78] sm:$0xf]
  %v118 = vld [vmem:[%s1 + $0x7c] sm:$0xf]
  %v119 = vld [vmem:[%s1 + $0x80] sm:$0xf]
  %v120 = vld [vmem:[%s1 + $0x84] sm:$0xf]
  %v121 = vld [vmem:[%s1 + $0x88] sm:$0xf]
  %v122 = vld [vmem:[%s1 + $0x8c] sm:$0xf]
  %v123 = vld [vmem:[%s1 + $0x90] sm:$0xf]
  %v124 = vld [vmem:[%s1 + $0x94] sm:$0xf]
  %v125 = vld [vmem:[%s1 + $0x98] sm:$0xf]
  %v126 = vld [vmem:[%s1 + $0x9c] sm:$0xf]
  %v127 = vld [vmem:[%s2] sm:$0x1]
  %v129 = vperm.slane %v127, 0
  %v171 = vunpack.c.l.b16 %v87
  %v172 = vunpack.c.l.b16 %v88
  %v173 = vunpack.c.l.b16 %v89
  %v174 = vunpack.c.l.b16 %v90
  %v175 = vunpack.c.l.b16 %v91
  %v176 = vunpack.c.l.b16 %v92
  %v177 = vunpack.c.l.b16 %v93
  %v178 = vunpack.c.l.b16 %v94
  %v179 = vunpack.c.l.b16 %v95
  %v180 = vunpack.c.l.b16 %v96
  %v181 = vunpack.c.l.b16 %v97
  %v182 = vunpack.c.l.b16 %v98
  %v183 = vunpack.c.l.b16 %v99
  %v184 = vunpack.c.l.b16 %v100
  %v185 = vunpack.c.l.b16 %v101
  %v186 = vunpack.c.l.b16 %v102
  %v187 = vunpack.c.l.b16 %v103
  %v188 = vunpack.c.l.b16 %v104
  %v189 = vunpack.c.l.b16 %v105
  %v190 = vunpack.c.l.b16 %v106
  %v191 = vunpack.c.l.b16 %v107
  %v192 = vunpack.c.l.b16 %v108
  %v193 = vunpack.c.l.b16 %v109
  %v194 = vunpack.c.l.b16 %v110
  %v195 = vunpack.c.l.b16 %v111
  %v196 = vunpack.c.l.b16 %v112
  %v197 = vunpack.c.l.b16 %v113
  %v198 = vunpack.c.l.b16 %v114
  %v199 = vunpack.c.l.b16 %v115
  %v200 = vunpack.c.l.b16 %v116
  %v201 = vunpack.c.l.b16 %v117
  %v202 = vunpack.c.l.b16 %v118
  %v203 = vunpack.c.l.b16 %v119
  %v204 = vunpack.c.l.b16 %v120
  %v205 = vunpack.c.l.b16 %v121
  %v206 = vunpack.c.l.b16 %v122
  %v207 = vunpack.c.l.b16 %v123
  %v208 = vunpack.c.l.b16 %v124
  %v209 = vunpack.c.l.b16 %v125
  %v210 = vunpack.c.l.b16 %v126
  %v211 = vpack.c.b16 %v172, %v171
  %v212 = vpack.c.b16 %v174, %v173
  %v213 = vpack.c.b16 %v176, %v175
  %v214 = vpack.c.b16 %v178, %v177
  %v215 = vpack.c.b16 %v180, %v179
  %v216 = vpack.c.b16 %v182, %v181
  %v217 = vpack.c.b16 %v184, %v183
  %v218 = vpack.c.b16 %v186, %v185
  %v219 = vpack.c.b16 %v188, %v187
  %v220 = vpack.c.b16 %v190, %v189
  %v221 = vpack.c.b16 %v192, %v191
  %v222 = vpack.c.b16 %v194, %v193
  %v223 = vpack.c.b16 %v196, %v195
  %v224 = vpack.c.b16 %v198, %v197
  %v225 = vpack.c.b16 %v200, %v199
  %v226 = vpack.c.b16 %v202, %v201
  %v227 = vpack.c.b16 %v204, %v203
  %v228 = vpack.c.b16 %v206, %v205
  %v229 = vpack.c.b16 %v208, %v207
  %v230 = vpack.c.b16 %v210, %v209
  %vm251 = vcmask 523264
  %v253 = vsel %vm251, %v65, 0
  %v256 = vsel %vm251, %v68, 0
  %v259 = vsel %vm251, %v71, 0
  %v262 = vsel %vm251, %v74, 0
  %v265 = vsel %vm251, %v77, 0
  %v268 = vsel %vm251, %v80, 0
  %v271 = vsel %vm251, %v83, 0
  %v274 = vsel %vm251, %v86, 0
  %276 = vmatpush.bf16.msra.mxu0 %v218
  %277 = vmatpush.bf16.msra.mxu0 %v217
  %278 = vmatpush.bf16.msra.mxu0 %v216
  %279 = vmatpush.bf16.msra.mxu0 %v215
  %280 = vmatpush.bf16.msra.mxu0 %v214
  %281 = vmatpush.bf16.msra.mxu0 %v213
  %282 = vmatpush.bf16.msra.mxu0 %v212
  %283 = vmatpush.bf16.msra.mxu0 %v211
  %284 = vmatmul.bf16.gmra.mxu0 %v63
  %v285 = vpop.f32.mrf.mxu0
  %v286 = vadd.f32 %v129, %v285
  %v287 = vpop.f32.mrf.mxu0
  %v288 = vadd.f32 %v129, %v287
  %289 = vmatmul.bf16.gmra.mxu0 %v66
  %v290 = vpop.f32.mrf.mxu0
  %v291 = vadd.f32 %v129, %v290
  %v292 = vpop.f32.mrf.mxu0
  %v293 = vadd.f32 %v129, %v292
  %294 = vmatmul.bf16.gmra.mxu0 %v69
  %v295 = vpop.f32.mrf.mxu0
  %v296 = vadd.f32 %v129, %v295
  %v297 = vpop.f32.mrf.mxu0
  %v298 = vadd.f32 %v129, %v297
  %299 = vmatmul.bf16.gmra.mxu0 %v72
  %v300 = vpop.f32.mrf.mxu0
  %v301 = vadd.f32 %v129, %v300
  %v302 = vpop.f32.mrf.mxu0
  %v303 = vadd.f32 %v129, %v302
  %304 = vmatmul.bf16.gmra.mxu0 %v75
  %v305 = vpop.f32.mrf.mxu0
  %v306 = vadd.f32 %v129, %v305
  %v307 = vpop.f32.mrf.mxu0
  %v308 = vadd.f32 %v129, %v307
  %309 = vmatmul.bf16.gmra.mxu0 %v78
  %v310 = vpop.f32.mrf.mxu0
  %v311 = vadd.f32 %v129, %v310
  %v312 = vpop.f32.mrf.mxu0
  %v313 = vadd.f32 %v129, %v312
  %314 = vmatmul.bf16.gmra.mxu0 %v81
  %v315 = vpop.f32.mrf.mxu0
  %v316 = vadd.f32 %v129, %v315
  %v317 = vpop.f32.mrf.mxu0
  %v318 = vadd.f32 %v129, %v317
  %319 = vmatmul.bf16.gmra.mxu0 %v84
  %v320 = vpop.f32.mrf.mxu0
  %v321 = vadd.f32 %v129, %v320
  %v322 = vpop.f32.mrf.mxu0
  %v323 = vadd.f32 %v129, %v322
  %324 = vdwg.mxu0
  %325 = vmatpush.bf16.msra.mxu0 %v226
  %326 = vmatpush.bf16.msra.mxu0 %v225
  %327 = vmatpush.bf16.msra.mxu0 %v224
  %328 = vmatpush.bf16.msra.mxu0 %v223
  %329 = vmatpush.bf16.msra.mxu0 %v222
  %330 = vmatpush.bf16.msra.mxu0 %v221
  %331 = vmatpush.bf16.msra.mxu0 %v220
  %332 = vmatpush.bf16.msra.mxu0 %v219
  %333 = vmatmul.bf16.gmra.mxu0 %v64
  %v334 = vpop.f32.mrf.mxu0
  %v335 = vadd.f32 %v286, %v334
  %v336 = vpop.f32.mrf.mxu0
  %v337 = vadd.f32 %v288, %v336
  %338 = vmatmul.bf16.gmra.mxu0 %v67
  %v339 = vpop.f32.mrf.mxu0
  %v340 = vadd.f32 %v291, %v339
  %v341 = vpop.f32.mrf.mxu0
  %v342 = vadd.f32 %v293, %v341
  %343 = vmatmul.bf16.gmra.mxu0 %v70
  %v344 = vpop.f32.mrf.mxu0
  %v345 = vadd.f32 %v296, %v344
  %v346 = vpop.f32.mrf.mxu0
  %v347 = vadd.f32 %v298, %v346
  %348 = vmatmul.bf16.gmra.mxu0 %v73
  %v349 = vpop.f32.mrf.mxu0
  %v350 = vadd.f32 %v301, %v349
  %v351 = vpop.f32.mrf.mxu0
  %v352 = vadd.f32 %v303, %v351
  %353 = vmatmul.bf16.gmra.mxu0 %v76
  %v354 = vpop.f32.mrf.mxu0
  %v355 = vadd.f32 %v306, %v354
  %v356 = vpop.f32.mrf.mxu0
  %v357 = vadd.f32 %v308, %v356
  %358 = vmatmul.bf16.gmra.mxu0 %v79
  %v359 = vpop.f32.mrf.mxu0
  %v360 = vadd.f32 %v311, %v359
  %v361 = vpop.f32.mrf.mxu0
  %v362 = vadd.f32 %v313, %v361
  %363 = vmatmul.bf16.gmra.mxu0 %v82
  %v364 = vpop.f32.mrf.mxu0
  %v365 = vadd.f32 %v316, %v364
  %v366 = vpop.f32.mrf.mxu0
  %v367 = vadd.f32 %v318, %v366
  %368 = vmatmul.bf16.gmra.mxu0 %v85
  %v369 = vpop.f32.mrf.mxu0
  %v370 = vadd.f32 %v321, %v369
  %v371 = vpop.f32.mrf.mxu0
  %v372 = vadd.f32 %v323, %v371
  %373 = vdwg.mxu0
  %374 = vmatpush.bf16.msra.mxu0 0
  %375 = vmatpush.bf16.msra.mxu0 0
  %376 = vmatpush.bf16.msra.mxu0 0
  %377 = vmatpush.bf16.msra.mxu0 0
  %378 = vmatpush.bf16.msra.mxu0 %v230
  %379 = vmatpush.bf16.msra.mxu0 %v229
  %380 = vmatpush.bf16.msra.mxu0 %v228
  %381 = vmatpush.bf16.msra.mxu0 %v227
  %382 = vmatmul.bf16.gmra.mxu0 %v253
  %v383 = vpop.f32.mrf.mxu0
  %v384 = vadd.f32 %v335, %v383
  %v385 = vpop.f32.mrf.mxu0
  %v386 = vadd.f32 %v337, %v385
  %387 = vmatmul.bf16.gmra.mxu0 %v256
  %v388 = vpop.f32.mrf.mxu0
  %v389 = vadd.f32 %v340, %v388
  %v390 = vpop.f32.mrf.mxu0
  %v391 = vadd.f32 %v342, %v390
  %392 = vmatmul.bf16.gmra.mxu0 %v259
  %v393 = vpop.f32.mrf.mxu0
  %v394 = vadd.f32 %v345, %v393
  %v395 = vpop.f32.mrf.mxu0
  %v396 = vadd.f32 %v347, %v395
  %397 = vmatmul.bf16.gmra.mxu0 %v262
  %v398 = vpop.f32.mrf.mxu0
  %v399 = vadd.f32 %v350, %v398
  %v400 = vpop.f32.mrf.mxu0
  %v401 = vadd.f32 %v352, %v400
  %402 = vmatmul.bf16.gmra.mxu0 %v265
  %v403 = vpop.f32.mrf.mxu0
  %v404 = vadd.f32 %v355, %v403
  %v405 = vpop.f32.mrf.mxu0
  %v406 = vadd.f32 %v357, %v405
  %407 = vmatmul.bf16.gmra.mxu0 %v268
  %v408 = vpop.f32.mrf.mxu0
  %v409 = vadd.f32 %v360, %v408
  %v410 = vpop.f32.mrf.mxu0
  %v411 = vadd.f32 %v362, %v410
  %412 = vmatmul.bf16.gmra.mxu0 %v271
  %v413 = vpop.f32.mrf.mxu0
  %v414 = vadd.f32 %v365, %v413
  %v415 = vpop.f32.mrf.mxu0
  %v416 = vadd.f32 %v367, %v415
  %417 = vmatmul.bf16.gmra.mxu0 %v274
  %v418 = vpop.f32.mrf.mxu0
  %v419 = vadd.f32 %v370, %v418
  %v420 = vpop.f32.mrf.mxu0
  %v421 = vadd.f32 %v372, %v420
  %422 = vdwg.mxu0
  %v423 = vmax.f32 %v384, 0.0
  %v424 = vmax.f32 %v386, 0.0
  %v425 = vmax.f32 %v389, 0.0
  %v426 = vmax.f32 %v391, 0.0
  %v427 = vmax.f32 %v394, 0.0
  %v428 = vmax.f32 %v396, 0.0
  %v429 = vmax.f32 %v399, 0.0
  %v430 = vmax.f32 %v401, 0.0
  %v431 = vmax.f32 %v404, 0.0
  %v432 = vmax.f32 %v406, 0.0
  %v433 = vmax.f32 %v409, 0.0
  %v434 = vmax.f32 %v411, 0.0
  %v435 = vmax.f32 %v414, 0.0
  %v436 = vmax.f32 %v416, 0.0
  %v437 = vmax.f32 %v419, 0.0
  %v438 = vmax.f32 %v421, 0.0
  %439 = vst.msk [vmem:[%s3] sm:$0xff] %vm251, %v423
  %440 = vst.msk [vmem:[%s3 + $0x8] sm:$0xff] %vm251, %v424
  %441 = vst.msk [vmem:[%s3 + $0x10] sm:$0xff] %vm251, %v425
  %442 = vst.msk [vmem:[%s3 + $0x18] sm:$0xff] %vm251, %v426
  %443 = vst.msk [vmem:[%s3 + $0x20] sm:$0xff] %vm251, %v427
  %444 = vst.msk [vmem:[%s3 + $0x28] sm:$0xff] %vm251, %v428
  %445 = vst.msk [vmem:[%s3 + $0x30] sm:$0xff] %vm251, %v429
  %446 = vst.msk [vmem:[%s3 + $0x38] sm:$0xff] %vm251, %v430
  %447 = vst.msk [vmem:[%s3 + $0x40] sm:$0xff] %vm251, %v431
  %448 = vst.msk [vmem:[%s3 + $0x48] sm:$0xff] %vm251, %v432
  %449 = vst.msk [vmem:[%s3 + $0x50] sm:$0xff] %vm251, %v433
  %450 = vst.msk [vmem:[%s3 + $0x58] sm:$0xff] %vm251, %v434
  %451 = vst.msk [vmem:[%s3 + $0x60] sm:$0xff] %vm251, %v435
  %452 = vst.msk [vmem:[%s3 + $0x68] sm:$0xff] %vm251, %v436
  %453 = vst.msk [vmem:[%s3 + $0x70] sm:$0xff] %vm251, %v437
  %454 = vst.msk [vmem:[%s3 + $0x78] sm:$0xff] %vm251, %v438
  // Predicated region
  $region14: #{mpii_1_forward.20} parent=0 // pred_check
    _
  $region15: #{mpii_1_forward.20} parent=0 // pred_check_branch
    %456 = sbr.rel (0) target = $region17
  $region16: #{mpii_1_forward.20} parent=0 // pred_region
    _
  $region17: #{mpii_1_forward.20} parent=0 // pred_fallthru
    _
  // Predicated region
  $region18: #{mpii_1_forward.20} parent=0 // pred_check
    _
  $region19: #{mpii_1_forward.20} parent=0 // pred_check_branch
    %458 = sbr.rel (0) target = $region21
  $region20: #{mpii_1_forward.20} parent=0 // pred_region
    _
  $region21: #{mpii_1_forward.20} parent=0 // pred_fallthru
    _

// kernel: mpii_1_forward.19
$region0: #{mpii_1_forward.19}
  #allocation0 [shape = 'u32[]', space=smem, size = 0x4, offset = 0x4, fixed_abs, tag = 'smem constant byte address 0x4 - core index']
  #allocation1 [shape = 'u32[72,128]{1,0:T(1,128)}', space=vmem, size = 0x9000, scoped, tag = 'internal scratch']
  %s0 = inlined_call_operand.vmem [shape: f32[128,576], index: 0, kind: input, shape index: {}]
  %s1 = inlined_call_operand.vmem [shape: bf16[576,96], index: 1, kind: input, shape index: {}]
  %s2 = inlined_call_operand.vmem [shape: f32[1,96], index: 2, kind: input, shape index: {}]
  %s3 = inlined_call_operand.vmem [shape: f32[128,96], index: 3, kind: output, shape index: {}]
  %s4 = sld [smem:[#allocation0]]
  $region22: #{mpii_1_forward.19} parent=0
    _
  %s6 = ssub.s32 1, %s4
  %s7 = scalar_select 0, %s6, %s4
  // Predicated region
  $region2: #{mpii_1_forward.19} parent=0 // pred_check
    _
  $region3: #{mpii_1_forward.19} parent=0 // pred_check_branch
    %9 = sbr.rel (0) target = $region5
  $region4: #{mpii_1_forward.19} parent=0 // pred_region
    _
  $region5: #{mpii_1_forward.19} parent=0 // pred_fallthru
    _
  // Predicated region
  $region6: #{mpii_1_forward.19} parent=0 // pred_check
    _
  $region7: #{mpii_1_forward.19} parent=0 // pred_check_branch
    %11 = sbr.rel (0) target = $region9
  $region8: #{mpii_1_forward.19} parent=0 // pred_region
    _
  $region9: #{mpii_1_forward.19} parent=0 // pred_fallthru
    _
  // Predicated region
  $region10: #{mpii_1_forward.19} parent=0 // pred_check
    _
  $region11: #{mpii_1_forward.19} parent=0 // pred_check_branch
    %13 = sbr.rel (0) target = $region13
  $region12: #{mpii_1_forward.19} parent=0 // pred_region
    _
  $region13: #{mpii_1_forward.19} parent=0 // pred_fallthru
    _
  %v15 = vld [vmem:[%s0] sm:$0xff]
  %v16 = vld [vmem:[%s0 + $0x8] sm:$0xff]
  %v17 = vld [vmem:[%s0 + $0x10] sm:$0xff]
  %v18 = vld [vmem:[%s0 + $0x18] sm:$0xff]
  %v19 = vld [vmem:[%s0 + $0x20] sm:$0xff]
  %v20 = vld [vmem:[%s0 + $0x28] sm:$0xff]
  %v21 = vld [vmem:[%s0 + $0x30] sm:$0xff]
  %v22 = vld [vmem:[%s0 + $0x38] sm:$0xff]
  %v23 = vld [vmem:[%s0 + $0x40] sm:$0xff]
  %v24 = vld [vmem:[%s0 + $0x48] sm:$0xff]
  %v25 = vld [vmem:[%s0 + $0x50] sm:$0xff]
  %v26 = vld [vmem:[%s0 + $0x58] sm:$0xff]
  %v27 = vld [vmem:[%s0 + $0x60] sm:$0xff]
  %v28 = vld [vmem:[%s0 + $0x68] sm:$0xff]
  %v29 = vld [vmem:[%s0 + $0x70] sm:$0xff]
  %v30 = vld [vmem:[%s0 + $0x78] sm:$0xff]
  %v31 = vld [vmem:[%s0 + $0x80] sm:$0xff]
  %v32 = vld [vmem:[%s0 + $0x88] sm:$0xff]
  %v33 = vld [vmem:[%s0 + $0x90] sm:$0xff]
  %v34 = vld [vmem:[%s0 + $0x98] sm:$0xff]
  %v35 = vld [vmem:[%s0 + $0xa0] sm:$0xff]
  %v36 = vld [vmem:[%s0 + $0xa8] sm:$0xff]
  %v37 = vld [vmem:[%s0 + $0xb0] sm:$0xff]
  %v38 = vld [vmem:[%s0 + $0xb8] sm:$0xff]
  %v39 = vld [vmem:[%s0 + $0xc0] sm:$0xff]
  %v40 = vld [vmem:[%s0 + $0xc8] sm:$0xff]
  %v41 = vld [vmem:[%s0 + $0xd0] sm:$0xff]
  %v42 = vld [vmem:[%s0 + $0xd8] sm:$0xff]
  %v43 = vld [vmem:[%s0 + $0xe0] sm:$0xff]
  %v44 = vld [vmem:[%s0 + $0xe8] sm:$0xff]
  %v45 = vld [vmem:[%s0 + $0xf0] sm:$0xff]
  %v46 = vld [vmem:[%s0 + $0xf8] sm:$0xff]
  %v47 = vld [vmem:[%s0 + $0x100] sm:$0xff]
  %v48 = vld [vmem:[%s0 + $0x108] sm:$0xff]
  %v49 = vld [vmem:[%s0 + $0x110] sm:$0xff]
  %v50 = vld [vmem:[%s0 + $0x118] sm:$0xff]
  %v51 = vld [vmem:[%s0 + $0x120] sm:$0xff]
  %v52 = vld [vmem:[%s0 + $0x128] sm:$0xff]
  %v53 = vld [vmem:[%s0 + $0x130] sm:$0xff]
  %v54 = vld [vmem:[%s0 + $0x138] sm:$0xff]
  %v55 = vld [vmem:[%s0 + $0x140] sm:$0xff]
  %v56 = vld [vmem:[%s0 + $0x148] sm:$0xff]
  %v57 = vld [vmem:[%s0 + $0x150] sm:$0xff]
  %v58 = vld [vmem:[%s0 + $0x158] sm:$0xff]
  %v59 = vld [vmem:[%s0 + $0x160] sm:$0xff]
  %v60 = vld [vmem:[%s0 + $0x168] sm:$0xff]
  %v61 = vld [vmem:[%s0 + $0x170] sm:$0xff]
  %v62 = vld [vmem:[%s0 + $0x178] sm:$0xff]
  %v63 = vld [vmem:[%s0 + $0x180] sm:$0xff]
  %v64 = vld [vmem:[%s0 + $0x188] sm:$0xff]
  %v65 = vld [vmem:[%s0 + $0x190] sm:$0xff]
  %v66 = vld [vmem:[%s0 + $0x198] sm:$0xff]
  %v67 = vld [vmem:[%s0 + $0x1a0] sm:$0xff]
  %v68 = vld [vmem:[%s0 + $0x1a8] sm:$0xff]
  %v69 = vld [vmem:[%s0 + $0x1b0] sm:$0xff]
  %v70 = vld [vmem:[%s0 + $0x1b8] sm:$0xff]
  %v71 = vld [vmem:[%s0 + $0x1c0] sm:$0xff]
  %v72 = vld [vmem:[%s0 + $0x1c8] sm:$0xff]
  %v73 = vld [vmem:[%s0 + $0x1d0] sm:$0xff]
  %v74 = vld [vmem:[%s0 + $0x1d8] sm:$0xff]
  %v75 = vld [vmem:[%s0 + $0x1e0] sm:$0xff]
  %v76 = vld [vmem:[%s0 + $0x1e8] sm:$0xff]
  %v77 = vld [vmem:[%s0 + $0x1f0] sm:$0xff]
  %v78 = vld [vmem:[%s0 + $0x1f8] sm:$0xff]
  %v79 = vld [vmem:[%s0 + $0x200] sm:$0xff]
  %v80 = vld [vmem:[%s0 + $0x208] sm:$0xff]
  %v81 = vld [vmem:[%s0 + $0x210] sm:$0xff]
  %v82 = vld [vmem:[%s0 + $0x218] sm:$0xff]
  %v83 = vld [vmem:[%s0 + $0x220] sm:$0xff]
  %v84 = vld [vmem:[%s0 + $0x228] sm:$0xff]
  %v85 = vld [vmem:[%s0 + $0x230] sm:$0xff]
  %v86 = vld [vmem:[%s0 + $0x238] sm:$0xff]
  %v87 = vld [vmem:[%s0 + $0x240] sm:$0xff]
  %v88 = vld [vmem:[%s0 + $0x248] sm:$0xff]
  %v89 = vld [vmem:[%s0 + $0x250] sm:$0xff]
  %v90 = vld [vmem:[%s0 + $0x258] sm:$0xff]
  %v91 = vld [vmem:[%s0 + $0x260] sm:$0xff]
  %v92 = vld [vmem:[%s0 + $0x268] sm:$0xff]
  %v93 = vld [vmem:[%s0 + $0x270] sm:$0xff]
  %v94 = vld [vmem:[%s0 + $0x278] sm:$0xff]
  %v95 = vpack.c.bf16 %v20, %v15
  %v96 = vpack.c.bf16 %v21, %v16
  %v97 = vpack.c.bf16 %v22, %v17
  %v98 = vpack.c.bf16 %v23, %v18
  %v99 = vpack.c.bf16 %v24, %v19
  %v100 = vpack.c.bf16 %v30, %v25
  %v101 = vpack.c.bf16 %v31, %v26
  %v102 = vpack.c.bf16 %v32, %v27
  %v103 = vpack.c.bf16 %v33, %v28
  %v104 = vpack.c.bf16 %v34, %v29
  %v105 = vpack.c.bf16 %v40, %v35
  %v106 = vpack.c.bf16 %v41, %v36
  %v107 = vpack.c.bf16 %v42, %v37
  %v108 = vpack.c.bf16 %v43, %v38
  %v109 = vpack.c.bf16 %v44, %v39
  %v110 = vpack.c.bf16 %v50, %v45
  %v111 = vpack.c.bf16 %v51, %v46
  %v112 = vpack.c.bf16 %v52, %v47
  %v113 = vpack.c.bf16 %v53, %v48
  %v114 = vpack.c.bf16 %v54, %v49
  %v115 = vpack.c.bf16 %v60, %v55
  %v116 = vpack.c.bf16 %v61, %v56
  %v117 = vpack.c.bf16 %v62, %v57
  %v118 = vpack.c.bf16 %v63, %v58
  %v119 = vpack.c.bf16 %v64, %v59
  %v120 = vpack.c.bf16 %v70, %v65
  %v121 = vpack.c.bf16 %v71, %v66
  %v122 = vpack.c.bf16 %v72, %v67
  %v123 = vpack.c.bf16 %v73, %v68
  %v124 = vpack.c.bf16 %v74, %v69
  %v125 = vpack.c.bf16 %v80, %v75
  %v126 = vpack.c.bf16 %v81, %v76
  %v127 = vpack.c.bf16 %v82, %v77
  %v128 = vpack.c.bf16 %v83, %v78
  %v129 = vpack.c.bf16 %v84, %v79
  %v130 = vpack.c.bf16 %v90, %v85
  %v131 = vpack.c.bf16 %v91, %v86
  %v132 = vpack.c.bf16 %v92, %v87
  %v133 = vpack.c.bf16 %v93, %v88
  %v134 = vpack.c.bf16 %v94, %v89
  %v135 = vld [vmem:[%s1] sm:$0xf]
  %v136 = vld [vmem:[%s1 + $0x4] sm:$0xf]
  %v137 = vld [vmem:[%s1 + $0x8] sm:$0xf]
  %v138 = vld [vmem:[%s1 + $0xc] sm:$0xf]
  %v139 = vld [vmem:[%s1 + $0x10] sm:$0xf]
  %v140 = vld [vmem:[%s1 + $0x14] sm:$0xf]
  %v141 = vld [vmem:[%s1 + $0x18] sm:$0xf]
  %v142 = vld [vmem:[%s1 + $0x1c] sm:$0xf]
  %v143 = vld [vmem:[%s1 + $0x20] sm:$0xf]
  %v144 = vld [vmem:[%s1 + $0x24] sm:$0xf]
  %v145 = vld [vmem:[%s1 + $0x28] sm:$0xf]
  %v146 = vld [vmem:[%s1 + $0x2c] sm:$0xf]
  %v147 = vld [vmem:[%s1 + $0x30] sm:$0xf]
  %v148 = vld [vmem:[%s1 + $0x34] sm:$0xf]
  %v149 = vld [vmem:[%s1 + $0x38] sm:$0xf]
  %v150 = vld [vmem:[%s1 + $0x3c] sm:$0xf]
  %v151 = vld [vmem:[%s1 + $0x40] sm:$0xf]
  %v152 = vld [vmem:[%s1 + $0x44] sm:$0xf]
  %v153 = vld [vmem:[%s1 + $0x48] sm:$0xf]
  %v154 = vld [vmem:[%s1 + $0x4c] sm:$0xf]
  %v155 = vld [vmem:[%s1 + $0x50] sm:$0xf]
  %v156 = vld [vmem:[%s1 + $0x54] sm:$0xf]
  %v157 = vld [vmem:[%s1 + $0x58] sm:$0xf]
  %v158 = vld [vmem:[%s1 + $0x5c] sm:$0xf]
  %v159 = vld [vmem:[%s1 + $0x60] sm:$0xf]
  %v160 = vld [vmem:[%s1 + $0x64] sm:$0xf]
  %v161 = vld [vmem:[%s1 + $0x68] sm:$0xf]
  %v162 = vld [vmem:[%s1 + $0x6c] sm:$0xf]
  %v163 = vld [vmem:[%s1 + $0x70] sm:$0xf]
  %v164 = vld [vmem:[%s1 + $0x74] sm:$0xf]
  %v165 = vld [vmem:[%s1 + $0x78] sm:$0xf]
  %v166 = vld [vmem:[%s1 + $0x7c] sm:$0xf]
  %v167 = vld [vmem:[%s1 + $0x80] sm:$0xf]
  %v168 = vld [vmem:[%s1 + $0x84] sm:$0xf]
  %v169 = vld [vmem:[%s1 + $0x88] sm:$0xf]
  %v170 = vld [vmem:[%s1 + $0x8c] sm:$0xf]
  %v171 = vld [vmem:[%s1 + $0x90] sm:$0xf]
  %v172 = vld [vmem:[%s1 + $0x94] sm:$0xf]
  %v173 = vld [vmem:[%s1 + $0x98] sm:$0xf]
  %v174 = vld [vmem:[%s1 + $0x9c] sm:$0xf]
  %v175 = vld [vmem:[%s1 + $0xa0] sm:$0xf]
  %v176 = vld [vmem:[%s1 + $0xa4] sm:$0xf]
  %v177 = vld [vmem:[%s1 + $0xa8] sm:$0xf]
  %v178 = vld [vmem:[%s1 + $0xac] sm:$0xf]
  %v179 = vld [vmem:[%s1 + $0xb0] sm:$0xf]
  %v180 = vld [vmem:[%s1 + $0xb4] sm:$0xf]
  %v181 = vld [vmem:[%s1 + $0xb8] sm:$0xf]
  %v182 = vld [vmem:[%s1 + $0xbc] sm:$0xf]
  %v183 = vld [vmem:[%s1 + $0xc0] sm:$0xf]
  %v184 = vld [vmem:[%s1 + $0xc4] sm:$0xf]
  %v185 = vld [vmem:[%s1 + $0xc8] sm:$0xf]
  %v186 = vld [vmem:[%s1 + $0xcc] sm:$0xf]
  %v187 = vld [vmem:[%s1 + $0xd0] sm:$0xf]
  %v188 = vld [vmem:[%s1 + $0xd4] sm:$0xf]
  %v189 = vld [vmem:[%s1 + $0xd8] sm:$0xf]
  %v190 = vld [vmem:[%s1 + $0xdc] sm:$0xf]
  %v191 = vld [vmem:[%s1 + $0xe0] sm:$0xf]
  %v192 = vld [vmem:[%s1 + $0xe4] sm:$0xf]
  %v193 = vld [vmem:[%s1 + $0xe8] sm:$0xf]
  %v194 = vld [vmem:[%s1 + $0xec] sm:$0xf]
  %v195 = vld [vmem:[%s1 + $0xf0] sm:$0xf]
  %v196 = vld [vmem:[%s1 + $0xf4] sm:$0xf]
  %v197 = vld [vmem:[%s1 + $0xf8] sm:$0xf]
  %v198 = vld [vmem:[%s1 + $0xfc] sm:$0xf]
  %v199 = vld [vmem:[%s1 + $0x100] sm:$0xf]
  %v200 = vld [vmem:[%s1 + $0x104] sm:$0xf]
  %v201 = vld [vmem:[%s1 + $0x108] sm:$0xf]
  %v202 = vld [vmem:[%s1 + $0x10c] sm:$0xf]
  %v203 = vld [vmem:[%s1 + $0x110] sm:$0xf]
  %v204 = vld [vmem:[%s1 + $0x114] sm:$0xf]
  %v205 = vld [vmem:[%s1 + $0x118] sm:$0xf]
  %v206 = vld [vmem:[%s1 + $0x11c] sm:$0xf]
  %v207 = vld [vmem:[%s2] sm:$0x1]
  %v209 = vperm.slane %v207, 0
  %v283 = vunpack.c.l.b16 %v135
  %v284 = vunpack.c.l.b16 %v136
  %v285 = vunpack.c.l.b16 %v137
  %v286 = vunpack.c.l.b16 %v138
  %v287 = vunpack.c.l.b16 %v139
  %v288 = vunpack.c.l.b16 %v140
  %v289 = vunpack.c.l.b16 %v141
  %v290 = vunpack.c.l.b16 %v142
  %v291 = vunpack.c.l.b16 %v143
  %v292 = vunpack.c.l.b16 %v144
  %v293 = vunpack.c.l.b16 %v145
  %v294 = vunpack.c.l.b16 %v146
  %v295 = vunpack.c.l.b16 %v147
  %v296 = vunpack.c.l.b16 %v148
  %v297 = vunpack.c.l.b16 %v149
  %v298 = vunpack.c.l.b16 %v150
  %v299 = vunpack.c.l.b16 %v151
  %v300 = vunpack.c.l.b16 %v152
  %v301 = vunpack.c.l.b16 %v153
  %v302 = vunpack.c.l.b16 %v154
  %v303 = vunpack.c.l.b16 %v155
  %v304 = vunpack.c.l.b16 %v156
  %v305 = vunpack.c.l.b16 %v157
  %v306 = vunpack.c.l.b16 %v158
  %v307 = vunpack.c.l.b16 %v159
  %v308 = vunpack.c.l.b16 %v160
  %v309 = vunpack.c.l.b16 %v161
  %v310 = vunpack.c.l.b16 %v162
  %v311 = vunpack.c.l.b16 %v163
  %v312 = vunpack.c.l.b16 %v164
  %v313 = vunpack.c.l.b16 %v165
  %v314 = vunpack.c.l.b16 %v166
  %v315 = vunpack.c.l.b16 %v167
  %v316 = vunpack.c.l.b16 %v168
  %v317 = vunpack.c.l.b16 %v169
  %v318 = vunpack.c.l.b16 %v170
  %v319 = vunpack.c.l.b16 %v171
  %v320 = vunpack.c.l.b16 %v172
  %v321 = vunpack.c.l.b16 %v173
  %v322 = vunpack.c.l.b16 %v174
  %v323 = vunpack.c.l.b16 %v175
  %v324 = vunpack.c.l.b16 %v176
  %v325 = vunpack.c.l.b16 %v177
  %v326 = vunpack.c.l.b16 %v178
  %v327 = vunpack.c.l.b16 %v179
  %v328 = vunpack.c.l.b16 %v180
  %v329 = vunpack.c.l.b16 %v181
  %v330 = vunpack.c.l.b16 %v182
  %v331 = vunpack.c.l.b16 %v183
  %v332 = vunpack.c.l.b16 %v184
  %v333 = vunpack.c.l.b16 %v185
  %v334 = vunpack.c.l.b16 %v186
  %v335 = vunpack.c.l.b16 %v187
  %v336 = vunpack.c.l.b16 %v188
  %v337 = vunpack.c.l.b16 %v189
  %v338 = vunpack.c.l.b16 %v190
  %v339 = vunpack.c.l.b16 %v191
  %v340 = vunpack.c.l.b16 %v192
  %v341 = vunpack.c.l.b16 %v193
  %v342 = vunpack.c.l.b16 %v194
  %v343 = vunpack.c.l.b16 %v195
  %v344 = vunpack.c.l.b16 %v196
  %v345 = vunpack.c.l.b16 %v197
  %v346 = vunpack.c.l.b16 %v198
  %v347 = vunpack.c.l.b16 %v199
  %v348 = vunpack.c.l.b16 %v200
  %v349 = vunpack.c.l.b16 %v201
  %v350 = vunpack.c.l.b16 %v202
  %v351 = vunpack.c.l.b16 %v203
  %v352 = vunpack.c.l.b16 %v204
  %v353 = vunpack.c.l.b16 %v205
  %v354 = vunpack.c.l.b16 %v206
  %v355 = vpack.c.b16 %v284, %v283
  %v356 = vpack.c.b16 %v286, %v285
  %v357 = vpack.c.b16 %v288, %v287
  %v358 = vpack.c.b16 %v290, %v289
  %v359 = vpack.c.b16 %v292, %v291
  %v360 = vpack.c.b16 %v294, %v293
  %v361 = vpack.c.b16 %v296, %v295
  %v362 = vpack.c.b16 %v298, %v297
  %v363 = vpack.c.b16 %v300, %v299
  %v364 = vpack.c.b16 %v302, %v301
  %v365 = vpack.c.b16 %v304, %v303
  %v366 = vpack.c.b16 %v306, %v305
  %v367 = vpack.c.b16 %v308, %v307
  %v368 = vpack.c.b16 %v310, %v309
  %v369 = vpack.c.b16 %v312, %v311
  %v370 = vpack.c.b16 %v314, %v313
  %v371 = vpack.c.b16 %v316, %v315
  %v372 = vpack.c.b16 %v318, %v317
  %v373 = vpack.c.b16 %v320, %v319
  %v374 = vpack.c.b16 %v322, %v321
  %v375 = vpack.c.b16 %v324, %v323
  %v376 = vpack.c.b16 %v326, %v325
  %v377 = vpack.c.b16 %v328, %v327
  %v378 = vpack.c.b16 %v330, %v329
  %v379 = vpack.c.b16 %v332, %v331
  %v380 = vpack.c.b16 %v334, %v333
  %v381 = vpack.c.b16 %v336, %v335
  %v382 = vpack.c.b16 %v338, %v337
  %v383 = vpack.c.b16 %v340, %v339
  %v384 = vpack.c.b16 %v342, %v341
  %v385 = vpack.c.b16 %v344, %v343
  %v386 = vpack.c.b16 %v346, %v345
  %v387 = vpack.c.b16 %v348, %v347
  %v388 = vpack.c.b16 %v350, %v349
  %v389 = vpack.c.b16 %v352, %v351
  %v390 = vpack.c.b16 %v354, %v353
  %vm427 = vcmask 523264
  %v429 = vsel %vm427, %v99, 0
  %v432 = vsel %vm427, %v104, 0
  %v435 = vsel %vm427, %v109, 0
  %v438 = vsel %vm427, %v114, 0
  %v441 = vsel %vm427, %v119, 0
  %v444 = vsel %vm427, %v124, 0
  %v447 = vsel %vm427, %v129, 0
  %v450 = vsel %vm427, %v134, 0
  %452 = vmatpush.bf16.msra.mxu0 %v362
  %453 = vmatpush.bf16.msra.mxu0 %v361
  %454 = vmatpush.bf16.msra.mxu0 %v360
  %455 = vmatpush.bf16.msra.mxu0 %v359
  %456 = vmatpush.bf16.msra.mxu0 %v358
  %457 = vmatpush.bf16.msra.mxu0 %v357
  %458 = vmatpush.bf16.msra.mxu0 %v356
  %459 = vmatpush.bf16.msra.mxu0 %v355
  %460 = vmatmul.bf16.gmra.mxu0 %v95
  %v461 = vpop.f32.mrf.mxu0
  %v462 = vadd.f32 %v209, %v461
  %v463 = vpop.f32.mrf.mxu0
  %v464 = vadd.f32 %v209, %v463
  %465 = vmatmul.bf16.gmra.mxu0 %v100
  %v466 = vpop.f32.mrf.mxu0
  %v467 = vadd.f32 %v209, %v466
  %v468 = vpop.f32.mrf.mxu0
  %v469 = vadd.f32 %v209, %v468
  %470 = vmatmul.bf16.gmra.mxu0 %v105
  %v471 = vpop.f32.mrf.mxu0
  %v472 = vadd.f32 %v209, %v471
  %v473 = vpop.f32.mrf.mxu0
  %v474 = vadd.f32 %v209, %v473
  %475 = vmatmul.bf16.gmra.mxu0 %v110
  %v476 = vpop.f32.mrf.mxu0
  %v477 = vadd.f32 %v209, %v476
  %v478 = vpop.f32.mrf.mxu0
  %v479 = vadd.f32 %v209, %v478
  %480 = vmatmul.bf16.gmra.mxu0 %v115
  %v481 = vpop.f32.mrf.mxu0
  %v482 = vadd.f32 %v209, %v481
  %v483 = vpop.f32.mrf.mxu0
  %v484 = vadd.f32 %v209, %v483
  %485 = vmatmul.bf16.gmra.mxu0 %v120
  %v486 = vpop.f32.mrf.mxu0
  %v487 = vadd.f32 %v209, %v486
  %v488 = vpop.f32.mrf.mxu0
  %v489 = vadd.f32 %v209, %v488
  %490 = vmatmul.bf16.gmra.mxu0 %v125
  %v491 = vpop.f32.mrf.mxu0
  %v492 = vadd.f32 %v209, %v491
  %v493 = vpop.f32.mrf.mxu0
  %v494 = vadd.f32 %v209, %v493
  %495 = vmatmul.bf16.gmra.mxu0 %v130
  %v496 = vpop.f32.mrf.mxu0
  %v497 = vadd.f32 %v209, %v496
  %v498 = vpop.f32.mrf.mxu0
  %v499 = vadd.f32 %v209, %v498
  %500 = vdwg.mxu0
  %501 = vmatpush.bf16.msra.mxu0 %v370
  %502 = vmatpush.bf16.msra.mxu0 %v369
  %503 = vmatpush.bf16.msra.mxu0 %v368
  %504 = vmatpush.bf16.msra.mxu0 %v367
  %505 = vmatpush.bf16.msra.mxu0 %v366
  %506 = vmatpush.bf16.msra.mxu0 %v365
  %507 = vmatpush.bf16.msra.mxu0 %v364
  %508 = vmatpush.bf16.msra.mxu0 %v363
  %509 = vmatmul.bf16.gmra.mxu0 %v96
  %v510 = vpop.f32.mrf.mxu0
  %v511 = vadd.f32 %v462, %v510
  %v512 = vpop.f32.mrf.mxu0
  %v513 = vadd.f32 %v464, %v512
  %514 = vmatmul.bf16.gmra.mxu0 %v101
  %v515 = vpop.f32.mrf.mxu0
  %v516 = vadd.f32 %v467, %v515
  %v517 = vpop.f32.mrf.mxu0
  %v518 = vadd.f32 %v469, %v517
  %519 = vmatmul.bf16.gmra.mxu0 %v106
  %v520 = vpop.f32.mrf.mxu0
  %v521 = vadd.f32 %v472, %v520
  %v522 = vpop.f32.mrf.mxu0
  %v523 = vadd.f32 %v474, %v522
  %524 = vmatmul.bf16.gmra.mxu0 %v111
  %v525 = vpop.f32.mrf.mxu0
  %v526 = vadd.f32 %v477, %v525
  %v527 = vpop.f32.mrf.mxu0
  %v528 = vadd.f32 %v479, %v527
  %529 = vmatmul.bf16.gmra.mxu0 %v116
  %v530 = vpop.f32.mrf.mxu0
  %v531 = vadd.f32 %v482, %v530
  %v532 = vpop.f32.mrf.mxu0
  %v533 = vadd.f32 %v484, %v532
  %534 = vmatmul.bf16.gmra.mxu0 %v121
  %v535 = vpop.f32.mrf.mxu0
  %v536 = vadd.f32 %v487, %v535
  %v537 = vpop.f32.mrf.mxu0
  %v538 = vadd.f32 %v489, %v537
  %539 = vmatmul.bf16.gmra.mxu0 %v126
  %v540 = vpop.f32.mrf.mxu0
  %v541 = vadd.f32 %v492, %v540
  %v542 = vpop.f32.mrf.mxu0
  %v543 = vadd.f32 %v494, %v542
  %544 = vmatmul.bf16.gmra.mxu0 %v131
  %v545 = vpop.f32.mrf.mxu0
  %v546 = vadd.f32 %v497, %v545
  %v547 = vpop.f32.mrf.mxu0
  %v548 = vadd.f32 %v499, %v547
  %549 = vdwg.mxu0
  %550 = vmatpush.bf16.msra.mxu0 %v378
  %551 = vmatpush.bf16.msra.mxu0 %v377
  %552 = vmatpush.bf16.msra.mxu0 %v376
  %553 = vmatpush.bf16.msra.mxu0 %v375
  %554 = vmatpush.bf16.msra.mxu0 %v374
  %555 = vmatpush.bf16.msra.mxu0 %v373
  %556 = vmatpush.bf16.msra.mxu0 %v372
  %557 = vmatpush.bf16.msra.mxu0 %v371
  %558 = vmatmul.bf16.gmra.mxu0 %v97
  %v559 = vpop.f32.mrf.mxu0
  %v560 = vadd.f32 %v511, %v559
  %v561 = vpop.f32.mrf.mxu0
  %v562 = vadd.f32 %v513, %v561
  %563 = vmatmul.bf16.gmra.mxu0 %v102
  %v564 = vpop.f32.mrf.mxu0
  %v565 = vadd.f32 %v516, %v564
  %v566 = vpop.f32.mrf.mxu0
  %v567 = vadd.f32 %v518, %v566
  %568 = vmatmul.bf16.gmra.mxu0 %v107
  %v569 = vpop.f32.mrf.mxu0
  %v570 = vadd.f32 %v521, %v569
  %v571 = vpop.f32.mrf.mxu0
  %v572 = vadd.f32 %v523, %v571
  %573 = vmatmul.bf16.gmra.mxu0 %v112
  %v574 = vpop.f32.mrf.mxu0
  %v575 = vadd.f32 %v526, %v574
  %v576 = vpop.f32.mrf.mxu0
  %v577 = vadd.f32 %v528, %v576
  %578 = vmatmul.bf16.gmra.mxu0 %v117
  %v579 = vpop.f32.mrf.mxu0
  %v580 = vadd.f32 %v531, %v579
  %v581 = vpop.f32.mrf.mxu0
  %v582 = vadd.f32 %v533, %v581
  %583 = vmatmul.bf16.gmra.mxu0 %v122
  %v584 = vpop.f32.mrf.mxu0
  %v585 = vadd.f32 %v536, %v584
  %v586 = vpop.f32.mrf.mxu0
  %v587 = vadd.f32 %v538, %v586
  %588 = vmatmul.bf16.gmra.mxu0 %v127
  %v589 = vpop.f32.mrf.mxu0
  %v590 = vadd.f32 %v541, %v589
  %v591 = vpop.f32.mrf.mxu0
  %v592 = vadd.f32 %v543, %v591
  %593 = vmatmul.bf16.gmra.mxu0 %v132
  %v594 = vpop.f32.mrf.mxu0
  %v595 = vadd.f32 %v546, %v594
  %v596 = vpop.f32.mrf.mxu0
  %v597 = vadd.f32 %v548, %v596
  %598 = vdwg.mxu0
  %599 = vmatpush.bf16.msra.mxu0 %v386
  %600 = vmatpush.bf16.msra.mxu0 %v385
  %601 = vmatpush.bf16.msra.mxu0 %v384
  %602 = vmatpush.bf16.msra.mxu0 %v383
  %603 = vmatpush.bf16.msra.mxu0 %v382
  %604 = vmatpush.bf16.msra.mxu0 %v381
  %605 = vmatpush.bf16.msra.mxu0 %v380
  %606 = vmatpush.bf16.msra.mxu0 %v379
  %607 = vmatmul.bf16.gmra.mxu0 %v98
  %v608 = vpop.f32.mrf.mxu0
  %v609 = vadd.f32 %v560, %v608
  %v610 = vpop.f32.mrf.mxu0
  %v611 = vadd.f32 %v562, %v610
  %612 = vmatmul.bf16.gmra.mxu0 %v103
  %v613 = vpop.f32.mrf.mxu0
  %v614 = vadd.f32 %v565, %v613
  %v615 = vpop.f32.mrf.mxu0
  %v616 = vadd.f32 %v567, %v615
  %617 = vmatmul.bf16.gmra.mxu0 %v108
  %v618 = vpop.f32.mrf.mxu0
  %v619 = vadd.f32 %v570, %v618
  %v620 = vpop.f32.mrf.mxu0
  %v621 = vadd.f32 %v572, %v620
  %622 = vmatmul.bf16.gmra.mxu0 %v113
  %v623 = vpop.f32.mrf.mxu0
  %v624 = vadd.f32 %v575, %v623
  %v625 = vpop.f32.mrf.mxu0
  %v626 = vadd.f32 %v577, %v625
  %627 = vmatmul.bf16.gmra.mxu0 %v118
  %v628 = vpop.f32.mrf.mxu0
  %v629 = vadd.f32 %v580, %v628
  %v630 = vpop.f32.mrf.mxu0
  %v631 = vadd.f32 %v582, %v630
  %632 = vmatmul.bf16.gmra.mxu0 %v123
  %v633 = vpop.f32.mrf.mxu0
  %v634 = vadd.f32 %v585, %v633
  %v635 = vpop.f32.mrf.mxu0
  %v636 = vadd.f32 %v587, %v635
  %637 = vmatmul.bf16.gmra.mxu0 %v128
  %v638 = vpop.f32.mrf.mxu0
  %v639 = vadd.f32 %v590, %v638
  %v640 = vpop.f32.mrf.mxu0
  %v641 = vadd.f32 %v592, %v640
  %642 = vmatmul.bf16.gmra.mxu0 %v133
  %v643 = vpop.f32.mrf.mxu0
  %v644 = vadd.f32 %v595, %v643
  %v645 = vpop.f32.mrf.mxu0
  %v646 = vadd.f32 %v597, %v645
  %647 = vdwg.mxu0
  %648 = vmatpush.bf16.msra.mxu0 0
  %649 = vmatpush.bf16.msra.mxu0 0
  %650 = vmatpush.bf16.msra.mxu0 0
  %651 = vmatpush.bf16.msra.mxu0 0
  %652 = vmatpush.bf16.msra.mxu0 %v390
  %653 = vmatpush.bf16.msra.mxu0 %v389
  %654 = vmatpush.bf16.msra.mxu0 %v388
  %655 = vmatpush.bf16.msra.mxu0 %v387
  %656 = vmatmul.bf16.gmra.mxu0 %v429
  %v657 = vpop.f32.mrf.mxu0
  %v658 = vadd.f32 %v609, %v657
  %v659 = vpop.f32.mrf.mxu0
  %v660 = vadd.f32 %v611, %v659
  %661 = vmatmul.bf16.gmra.mxu0 %v432
  %v662 = vpop.f32.mrf.mxu0
  %v663 = vadd.f32 %v614, %v662
  %v664 = vpop.f32.mrf.mxu0
  %v665 = vadd.f32 %v616, %v664
  %666 = vmatmul.bf16.gmra.mxu0 %v435
  %v667 = vpop.f32.mrf.mxu0
  %v668 = vadd.f32 %v619, %v667
  %v669 = vpop.f32.mrf.mxu0
  %v670 = vadd.f32 %v621, %v669
  %671 = vmatmul.bf16.gmra.mxu0 %v438
  %v672 = vpop.f32.mrf.mxu0
  %v673 = vadd.f32 %v624, %v672
  %v674 = vpop.f32.mrf.mxu0
  %v675 = vadd.f32 %v626, %v674
  %676 = vmatmul.bf16.gmra.mxu0 %v441
  %v677 = vpop.f32.mrf.mxu0
  %v678 = vadd.f32 %v629, %v677
  %v679 = vpop.f32.mrf.mxu0
  %v680 = vadd.f32 %v631, %v679
  %681 = vmatmul.bf16.gmra.mxu0 %v444
  %v682 = vpop.f32.mrf.mxu0
  %v683 = vadd.f32 %v634, %v682
  %v684 = vpop.f32.mrf.mxu0
  %v685 = vadd.f32 %v636, %v684
  %686 = vmatmul.bf16.gmra.mxu0 %v447
  %v687 = vpop.f32.mrf.mxu0
  %v688 = vadd.f32 %v639, %v687
  %v689 = vpop.f32.mrf.mxu0
  %v690 = vadd.f32 %v641, %v689
  %691 = vmatmul.bf16.gmra.mxu0 %v450
  %v692 = vpop.f32.mrf.mxu0
  %v693 = vadd.f32 %v644, %v692
  %v694 = vpop.f32.mrf.mxu0
  %v695 = vadd.f32 %v646, %v694
  %696 = vdwg.mxu0
  %vm697 = vcmask 785408
  %698 = vst.msk [vmem:[%s3] sm:$0xff] %vm697, %v658
  %699 = vst.msk [vmem:[%s3 + $0x8] sm:$0xff] %vm697, %v660
  %700 = vst.msk [vmem:[%s3 + $0x10] sm:$0xff] %vm697, %v663
  %701 = vst.msk [vmem:[%s3 + $0x18] sm:$0xff] %vm697, %v665
  %702 = vst.msk [vmem:[%s3 + $0x20] sm:$0xff] %vm697, %v668
  %703 = vst.msk [vmem:[%s3 + $0x28] sm:$0xff] %vm697, %v670
  %704 = vst.msk [vmem:[%s3 + $0x30] sm:$0xff] %vm697, %v673
  %705 = vst.msk [vmem:[%s3 + $0x38] sm:$0xff] %vm697, %v675
  %706 = vst.msk [vmem:[%s3 + $0x40] sm:$0xff] %vm697, %v678
  %707 = vst.msk [vmem:[%s3 + $0x48] sm:$0xff] %vm697, %v680
  %708 = vst.msk [vmem:[%s3 + $0x50] sm:$0xff] %vm697, %v683
  %709 = vst.msk [vmem:[%s3 + $0x58] sm:$0xff] %vm697, %v685
  %710 = vst.msk [vmem:[%s3 + $0x60] sm:$0xff] %vm697, %v688
  %711 = vst.msk [vmem:[%s3 + $0x68] sm:$0xff] %vm697, %v690
  %712 = vst.msk [vmem:[%s3 + $0x70] sm:$0xff] %vm697, %v693
  %713 = vst.msk [vmem:[%s3 + $0x78] sm:$0xff] %vm697, %v695
  // Predicated region
  $region14: #{mpii_1_forward.19} parent=0 // pred_check
    _
  $region15: #{mpii_1_forward.19} parent=0 // pred_check_branch
    %715 = sbr.rel (0) target = $region17
  $region16: #{mpii_1_forward.19} parent=0 // pred_region
    _
  $region17: #{mpii_1_forward.19} parent=0 // pred_fallthru
    _
  // Predicated region
  $region18: #{mpii_1_forward.19} parent=0 // pred_check
    _
  $region19: #{mpii_1_forward.19} parent=0 // pred_check_branch
    %717 = sbr.rel (0) target = $region21
  $region20: #{mpii_1_forward.19} parent=0 // pred_region
    _
  $region21: #{mpii_1_forward.19} parent=0 // pred_fallthru
    _

// kernel: mpii_1_forward.23
$region0: #{mpii_1_forward.23}
  #allocation0 [shape = 'u32[]', space=smem, size = 0x4, offset = 0x4, fixed_abs, tag = 'smem constant byte address 0x4 - core index']
  #allocation1 [shape = 'u32[72,128]{1,0:T(1,128)}', space=vmem, size = 0x9000, scoped, tag = 'internal scratch']
  %s0 = inlined_call_operand.vmem [shape: f32[32,1728], index: 0, kind: input, shape index: {}]
  %s1 = inlined_call_operand.vmem [shape: bf16[1728,192], index: 1, kind: input, shape index: {}]
  %s2 = inlined_call_operand.vmem [shape: f32[1,192], index: 2, kind: input, shape index: {}]
  %s3 = inlined_call_operand.vmem [shape: f32[32,192], index: 3, kind: output, shape index: {}]
  %s4 = sld [smem:[#allocation0]]
  $region22: #{mpii_1_forward.23} parent=0
    _
  %s6 = ssub.s32 1, %s4
  %s7 = scalar_select 0, %s6, %s4
  // Predicated region
  $region2: #{mpii_1_forward.23} parent=0 // pred_check
    _
  $region3: #{mpii_1_forward.23} parent=0 // pred_check_branch
    %9 = sbr.rel (0) target = $region5
  $region4: #{mpii_1_forward.23} parent=0 // pred_region
    _
  $region5: #{mpii_1_forward.23} parent=0 // pred_fallthru
    _
  // Predicated region
  $region6: #{mpii_1_forward.23} parent=0 // pred_check
    _
  $region7: #{mpii_1_forward.23} parent=0 // pred_check_branch
    %11 = sbr.rel (0) target = $region9
  $region8: #{mpii_1_forward.23} parent=0 // pred_region
    _
  $region9: #{mpii_1_forward.23} parent=0 // pred_fallthru
    _
  // Predicated region
  $region10: #{mpii_1_forward.23} parent=0 // pred_check
    _
  $region11: #{mpii_1_forward.23} parent=0 // pred_check_branch
    %13 = sbr.rel (0) target = $region13
  $region12: #{mpii_1_forward.23} parent=0 // pred_region
    _
  $region13: #{mpii_1_forward.23} parent=0 // pred_fallthru
    _
  %v15 = vld [vmem:[%s0] sm:$0xff]
  %v16 = vld [vmem:[%s0 + $0x8] sm:$0xff]
  %v17 = vld [vmem:[%s0 + $0x10] sm:$0xff]
  %v18 = vld [vmem:[%s0 + $0x18] sm:$0xff]
  %v19 = vld [vmem:[%s0 + $0x20] sm:$0xff]
  %v20 = vld [vmem:[%s0 + $0x28] sm:$0xff]
  %v21 = vld [vmem:[%s0 + $0x30] sm:$0xff]
  %v22 = vld [vmem:[%s0 + $0x38] sm:$0xff]
  %v23 = vld [vmem:[%s0 + $0x40] sm:$0xff]
  %v24 = vld [vmem:[%s0 + $0x48] sm:$0xff]
  %v25 = vld [vmem:[%s0 + $0x50] sm:$0xff]
  %v26 = vld [vmem:[%s0 + $0x58] sm:$0xff]
  %v27 = vld [vmem:[%s0 + $0x60] sm:$0xff]
  %v28 = vld [vmem:[%s0 + $0x68] sm:$0xff]
  %v29 = vld [vmem:[%s0 + $0x70] sm:$0xff]
  %v30 = vld [vmem:[%s0 + $0x78] sm:$0xff]
  %v31 = vld [vmem:[%s0 + $0x80] sm:$0xff]
  %v32 = vld [vmem:[%s0 + $0x88] sm:$0xff]
  %v33 = vld [vmem:[%s0 + $0x90] sm:$0xff]
  %v34 = vld [vmem:[%s0 + $0x98] sm:$0xff]
  %v35 = vld [vmem:[%s0 + $0xa0] sm:$0xff]
  %v36 = vld [vmem:[%s0 + $0xa8] sm:$0xff]
  %v37 = vld [vmem:[%s0 + $0xb0] sm:$0xff]
  %v38 = vld [vmem:[%s0 + $0xb8] sm:$0xff]
  %v39 = vld [vmem:[%s0 + $0xc0] sm:$0xff]
  %v40 = vld [vmem:[%s0 + $0xc8] sm:$0xff]
  %v41 = vld [vmem:[%s0 + $0xd0] sm:$0xff]
  %v42 = vld [vmem:[%s0 + $0xd8] sm:$0xff]
  %v43 = vld [vmem:[%s0 + $0xe0] sm:$0xff]
  %v44 = vld [vmem:[%s0 + $0xe8] sm:$0xff]
  %v45 = vld [vmem:[%s0 + $0xf0] sm:$0xff]
  %v46 = vld [vmem:[%s0 + $0xf8] sm:$0xff]
  %v47 = vld [vmem:[%s0 + $0x100] sm:$0xff]
  %v48 = vld [vmem:[%s0 + $0x108] sm:$0xff]
  %v49 = vld [vmem:[%s0 + $0x110] sm:$0xff]
  %v50 = vld [vmem:[%s0 + $0x118] sm:$0xff]
  %v51 = vld [vmem:[%s0 + $0x120] sm:$0xff]
  %v52 = vld [vmem:[%s0 + $0x128] sm:$0xff]
  %v53 = vld [vmem:[%s0 + $0x130] sm:$0xff]
  %v54 = vld [vmem:[%s0 + $0x138] sm:$0xff]
  %v55 = vld [vmem:[%s0 + $0x140] sm:$0xff]
  %v56 = vld [vmem:[%s0 + $0x148] sm:$0xff]
  %v57 = vld [vmem:[%s0 + $0x150] sm:$0xff]
  %v58 = vld [vmem:[%s0 + $0x158] sm:$0xff]
  %v59 = vld [vmem:[%s0 + $0x160] sm:$0xff]
  %v60 = vld [vmem:[%s0 + $0x168] sm:$0xff]
  %v61 = vld [vmem:[%s0 + $0x170] sm:$0xff]
  %v62 = vld [vmem:[%s0 + $0x178] sm:$0xff]
  %v63 = vld [vmem:[%s0 + $0x180] sm:$0xff]
  %v64 = vld [vmem:[%s0 + $0x188] sm:$0xff]
  %v65 = vld [vmem:[%s0 + $0x190] sm:$0xff]
  %v66 = vld [vmem:[%s0 + $0x198] sm:$0xff]
  %v67 = vld [vmem:[%s0 + $0x1a0] sm:$0xff]
  %v68 = vld [vmem:[%s0 + $0x1a8] sm:$0xff]
  %v69 = vld [vmem:[%s0 + $0x1b0] sm:$0xff]
  %v70 = vld [vmem:[%s0 + $0x1b8] sm:$0xff]
  %v71 = vpack.c.bf16 %v29, %v15
  %v72 = vpack.c.bf16 %v30, %v16
  %v73 = vpack.c.bf16 %v31, %v17
  %v74 = vpack.c.bf16 %v32, %v18
  %v75 = vpack.c.bf16 %v33, %v19
  %v76 = vpack.c.bf16 %v34, %v20
  %v77 = vpack.c.bf16 %v35, %v21
  %v78 = vpack.c.bf16 %v36, %v22
  %v79 = vpack.c.bf16 %v37, %v23
  %v80 = vpack.c.bf16 %v38, %v24
  %v81 = vpack.c.bf16 %v39, %v25
  %v82 = vpack.c.bf16 %v40, %v26
  %v83 = vpack.c.bf16 %v41, %v27
  %v84 = vpack.c.bf16 %v42, %v28
  %v85 = vpack.c.bf16 %v57, %v43
  %v86 = vpack.c.bf16 %v58, %v44
  %v87 = vpack.c.bf16 %v59, %v45
  %v88 = vpack.c.bf16 %v60, %v46
  %v89 = vpack.c.bf16 %v61, %v47
  %v90 = vpack.c.bf16 %v62, %v48
  %v91 = vpack.c.bf16 %v63, %v49
  %v92 = vpack.c.bf16 %v64, %v50
  %v93 = vpack.c.bf16 %v65, %v51
  %v94 = vpack.c.bf16 %v66, %v52
  %v95 = vpack.c.bf16 %v67, %v53
  %v96 = vpack.c.bf16 %v68, %v54
  %v97 = vpack.c.bf16 %v69, %v55
  %v98 = vpack.c.bf16 %v70, %v56
  %v99 = vld [vmem:[%s1] sm:$0xff]
  %v100 = vld [vmem:[%s1 + $0x8] sm:$0xff]
  %v101 = vld [vmem:[%s1 + $0x10] sm:$0xff]
  %v102 = vld [vmem:[%s1 + $0x18] sm:$0xff]
  %v103 = vld [vmem:[%s1 + $0x20] sm:$0xff]
  %v104 = vld [vmem:[%s1 + $0x28] sm:$0xff]
  %v105 = vld [vmem:[%s1 + $0x30] sm:$0xff]
  %v106 = vld [vmem:[%s1 + $0x38] sm:$0xff]
  %v107 = vld [vmem:[%s1 + $0x40] sm:$0xff]
  %v108 = vld [vmem:[%s1 + $0x48] sm:$0xff]
  %v109 = vld [vmem:[%s1 + $0x50] sm:$0xff]
  %v110 = vld [vmem:[%s1 + $0x58] sm:$0xff]
  %v111 = vld [vmem:[%s1 + $0x60] sm:$0xff]
  %v112 = vld [vmem:[%s1 + $0x68] sm:$0xff]
  %v113 = vld [vmem:[%s1 + $0x70] sm:$0xff]
  %v114 = vld [vmem:[%s1 + $0x78] sm:$0xff]
  %v115 = vld [vmem:[%s1 + $0x80] sm:$0xff]
  %v116 = vld [vmem:[%s1 + $0x88] sm:$0xff]
  %v117 = vld [vmem:[%s1 + $0x90] sm:$0xff]
  %v118 = vld [vmem:[%s1 + $0x98] sm:$0xff]
  %v119 = vld [vmem:[%s1 + $0xa0] sm:$0xff]
  %v120 = vld [vmem:[%s1 + $0xa8] sm:$0xff]
  %v121 = vld [vmem:[%s1 + $0xb0] sm:$0xff]
  %v122 = vld [vmem:[%s1 + $0xb8] sm:$0xff]
  %v123 = vld [vmem:[%s1 + $0xc0] sm:$0xff]
  %v124 = vld [vmem:[%s1 + $0xc8] sm:$0xff]
  %v125 = vld [vmem:[%s1 + $0xd0] sm:$0xff]
  %v126 = vld [vmem:[%s1 + $0xd8] sm:$0xff]
  %v127 = vld [vmem:[%s1 + $0xe0] sm:$0xff]
  %v128 = vld [vmem:[%s1 + $0xe8] sm:$0xff]
  %v129 = vld [vmem:[%s1 + $0xf0] sm:$0xff]
  %v130 = vld [vmem:[%s1 + $0xf8] sm:$0xff]
  %v131 = vld [vmem:[%s1 + $0x100] sm:$0xff]
  %v132 = vld [vmem:[%s1 + $0x108] sm:$0xff]
  %v133 = vld [vmem:[%s1 + $0x110] sm:$0xff]
  %v134 = vld [vmem:[%s1 + $0x118] sm:$0xff]
  %v135 = vld [vmem:[%s1 + $0x120] sm:$0xff]
  %v136 = vld [vmem:[%s1 + $0x128] sm:$0xff]
  %v137 = vld [vmem:[%s1 + $0x130] sm:$0xff]
  %v138 = vld [vmem:[%s1 + $0x138] sm:$0xff]
  %v139 = vld [vmem:[%s1 + $0x140] sm:$0xff]
  %v140 = vld [vmem:[%s1 + $0x148] sm:$0xff]
  %v141 = vld [vmem:[%s1 + $0x150] sm:$0xff]
  %v142 = vld [vmem:[%s1 + $0x158] sm:$0xff]
  %v143 = vld [vmem:[%s1 + $0x160] sm:$0xff]
  %v144 = vld [vmem:[%s1 + $0x168] sm:$0xff]
  %v145 = vld [vmem:[%s1 + $0x170] sm:$0xff]
  %v146 = vld [vmem:[%s1 + $0x178] sm:$0xff]
  %v147 = vld [vmem:[%s1 + $0x180] sm:$0xff]
  %v148 = vld [vmem:[%s1 + $0x188] sm:$0xff]
  %v149 = vld [vmem:[%s1 + $0x190] sm:$0xff]
  %v150 = vld [vmem:[%s1 + $0x198] sm:$0xff]
  %v151 = vld [vmem:[%s1 + $0x1a0] sm:$0xff]
  %v152 = vld [vmem:[%s1 + $0x1a8] sm:$0xff]
  %v153 = vld [vmem:[%s1 + $0x1b0] sm:$0xff]
  %v154 = vld [vmem:[%s1 + $0x1b8] sm:$0xff]
  %v155 = vld [vmem:[%s1 + $0x1c0] sm:$0xff]
  %v156 = vld [vmem:[%s1 + $0x1c8] sm:$0xff]
  %v157 = vld [vmem:[%s1 + $0x1d0] sm:$0xff]
  %v158 = vld [vmem:[%s1 + $0x1d8] sm:$0xff]
  %v159 = vld [vmem:[%s1 + $0x1e0] sm:$0xff]
  %v160 = vld [vmem:[%s1 + $0x1e8] sm:$0xff]
  %v161 = vld [vmem:[%s1 + $0x1f0] sm:$0xff]
  %v162 = vld [vmem:[%s1 + $0x1f8] sm:$0xff]
  %v163 = vld [vmem:[%s1 + $0x200] sm:$0xff]
  %v164 = vld [vmem:[%s1 + $0x208] sm:$0xff]
  %v165 = vld [vmem:[%s1 + $0x210] sm:$0xff]
  %v166 = vld [vmem:[%s1 + $0x218] sm:$0xff]
  %v167 = vld [vmem:[%s1 + $0x220] sm:$0xff]
  %v168 = vld [vmem:[%s1 + $0x228] sm:$0xff]
  %v169 = vld [vmem:[%s1 + $0x230] sm:$0xff]
  %v170 = vld [vmem:[%s1 + $0x238] sm:$0xff]
  %v171 = vld [vmem:[%s1 + $0x240] sm:$0xff]
  %v172 = vld [vmem:[%s1 + $0x248] sm:$0xff]
  %v173 = vld [vmem:[%s1 + $0x250] sm:$0xff]
  %v174 = vld [vmem:[%s1 + $0x258] sm:$0xff]
  %v175 = vld [vmem:[%s1 + $0x260] sm:$0xff]
  %v176 = vld [vmem:[%s1 + $0x268] sm:$0xff]
  %v177 = vld [vmem:[%s1 + $0x270] sm:$0xff]
  %v178 = vld [vmem:[%s1 + $0x278] sm:$0xff]
  %v179 = vld [vmem:[%s1 + $0x280] sm:$0xff]
  %v180 = vld [vmem:[%s1 + $0x288] sm:$0xff]
  %v181 = vld [vmem:[%s1 + $0x290] sm:$0xff]
  %v182 = vld [vmem:[%s1 + $0x298] sm:$0xff]
  %v183 = vld [vmem:[%s1 + $0x2a0] sm:$0xff]
  %v184 = vld [vmem:[%s1 + $0x2a8] sm:$0xff]
  %v185 = vld [vmem:[%s1 + $0x2b0] sm:$0xff]
  %v186 = vld [vmem:[%s1 + $0x2b8] sm:$0xff]
  %v187 = vld [vmem:[%s1 + $0x2c0] sm:$0xff]
  %v188 = vld [vmem:[%s1 + $0x2c8] sm:$0xff]
  %v189 = vld [vmem:[%s1 + $0x2d0] sm:$0xff]
  %v190 = vld [vmem:[%s1 + $0x2d8] sm:$0xff]
  %v191 = vld [vmem:[%s1 + $0x2e0] sm:$0xff]
  %v192 = vld [vmem:[%s1 + $0x2e8] sm:$0xff]
  %v193 = vld [vmem:[%s1 + $0x2f0] sm:$0xff]
  %v194 = vld [vmem:[%s1 + $0x2f8] sm:$0xff]
  %v195 = vld [vmem:[%s1 + $0x300] sm:$0xff]
  %v196 = vld [vmem:[%s1 + $0x308] sm:$0xff]
  %v197 = vld [vmem:[%s1 + $0x310] sm:$0xff]
  %v198 = vld [vmem:[%s1 + $0x318] sm:$0xff]
  %v199 = vld [vmem:[%s1 + $0x320] sm:$0xff]
  %v200 = vld [vmem:[%s1 + $0x328] sm:$0xff]
  %v201 = vld [vmem:[%s1 + $0x330] sm:$0xff]
  %v202 = vld [vmem:[%s1 + $0x338] sm:$0xff]
  %v203 = vld [vmem:[%s1 + $0x340] sm:$0xff]
  %v204 = vld [vmem:[%s1 + $0x348] sm:$0xff]
  %v205 = vld [vmem:[%s1 + $0x350] sm:$0xff]
  %v206 = vld [vmem:[%s1 + $0x358] sm:$0xff]
  %v207 = vld [vmem:[%s1 + $0x360] sm:$0xff]
  %v208 = vld [vmem:[%s1 + $0x368] sm:$0xff]
  %v209 = vld [vmem:[%s1 + $0x370] sm:$0xff]
  %v210 = vld [vmem:[%s1 + $0x378] sm:$0xff]
  %v211 = vld [vmem:[%s1 + $0x380] sm:$0xff]
  %v212 = vld [vmem:[%s1 + $0x388] sm:$0xff]
  %v213 = vld [vmem:[%s1 + $0x390] sm:$0xff]
  %v214 = vld [vmem:[%s1 + $0x398] sm:$0xff]
  %v215 = vld [vmem:[%s1 + $0x3a0] sm:$0xff]
  %v216 = vld [vmem:[%s1 + $0x3a8] sm:$0xff]
  %v217 = vld [vmem:[%s1 + $0x3b0] sm:$0xff]
  %v218 = vld [vmem:[%s1 + $0x3b8] sm:$0xff]
  %v219 = vld [vmem:[%s1 + $0x3c0] sm:$0xff]
  %v220 = vld [vmem:[%s1 + $0x3c8] sm:$0xff]
  %v221 = vld [vmem:[%s1 + $0x3d0] sm:$0xff]
  %v222 = vld [vmem:[%s1 + $0x3d8] sm:$0xff]
  %v223 = vld [vmem:[%s1 + $0x3e0] sm:$0xff]
  %v224 = vld [vmem:[%s1 + $0x3e8] sm:$0xff]
  %v225 = vld [vmem:[%s1 + $0x3f0] sm:$0xff]
  %v226 = vld [vmem:[%s1 + $0x3f8] sm:$0xff]
  %v227 = vld [vmem:[%s1 + $0x400] sm:$0xff]
  %v228 = vld [vmem:[%s1 + $0x408] sm:$0xff]
  %v229 = vld [vmem:[%s1 + $0x410] sm:$0xff]
  %v230 = vld [vmem:[%s1 + $0x418] sm:$0xff]
  %v231 = vld [vmem:[%s1 + $0x420] sm:$0xff]
  %v232 = vld [vmem:[%s1 + $0x428] sm:$0xff]
  %v233 = vld [vmem:[%s1 + $0x430] sm:$0xff]
  %v234 = vld [vmem:[%s1 + $0x438] sm:$0xff]
  %v235 = vld [vmem:[%s1 + $0x440] sm:$0xff]
  %v236 = vld [vmem:[%s1 + $0x448] sm:$0xff]
  %v237 = vld [vmem:[%s1 + $0x450] sm:$0xff]
  %v238 = vld [vmem:[%s1 + $0x458] sm:$0xff]
  %v239 = vld [vmem:[%s1 + $0x460] sm:$0xff]
  %v240 = vld [vmem:[%s1 + $0x468] sm:$0xff]
  %v241 = vld [vmem:[%s1 + $0x470] sm:$0xff]
  %v242 = vld [vmem:[%s1 + $0x478] sm:$0xff]
  %v243 = vld [vmem:[%s1 + $0x480] sm:$0xff]
  %v244 = vld [vmem:[%s1 + $0x488] sm:$0xff]
  %v245 = vld [vmem:[%s1 + $0x490] sm:$0xff]
  %v246 = vld [vmem:[%s1 + $0x498] sm:$0xff]
  %v247 = vld [vmem:[%s1 + $0x4a0] sm:$0xff]
  %v248 = vld [vmem:[%s1 + $0x4a8] sm:$0xff]
  %v249 = vld [vmem:[%s1 + $0x4b0] sm:$0xff]
  %v250 = vld [vmem:[%s1 + $0x4b8] sm:$0xff]
  %v251 = vld [vmem:[%s1 + $0x4c0] sm:$0xff]
  %v252 = vld [vmem:[%s1 + $0x4c8] sm:$0xff]
  %v253 = vld [vmem:[%s1 + $0x4d0] sm:$0xff]
  %v254 = vld [vmem:[%s1 + $0x4d8] sm:$0xff]
  %v255 = vld [vmem:[%s1 + $0x4e0] sm:$0xff]
  %v256 = vld [vmem:[%s1 + $0x4e8] sm:$0xff]
  %v257 = vld [vmem:[%s1 + $0x4f0] sm:$0xff]
  %v258 = vld [vmem:[%s1 + $0x4f8] sm:$0xff]
  %v259 = vld [vmem:[%s1 + $0x500] sm:$0xff]
  %v260 = vld [vmem:[%s1 + $0x508] sm:$0xff]
  %v261 = vld [vmem:[%s1 + $0x510] sm:$0xff]
  %v262 = vld [vmem:[%s1 + $0x518] sm:$0xff]
  %v263 = vld [vmem:[%s1 + $0x520] sm:$0xff]
  %v264 = vld [vmem:[%s1 + $0x528] sm:$0xff]
  %v265 = vld [vmem:[%s1 + $0x530] sm:$0xff]
  %v266 = vld [vmem:[%s1 + $0x538] sm:$0xff]
  %v267 = vld [vmem:[%s1 + $0x540] sm:$0xff]
  %v268 = vld [vmem:[%s1 + $0x548] sm:$0xff]
  %v269 = vld [vmem:[%s1 + $0x550] sm:$0xff]
  %v270 = vld [vmem:[%s1 + $0x558] sm:$0xff]
  %v271 = vld [vmem:[%s1 + $0x560] sm:$0xff]
  %v272 = vld [vmem:[%s1 + $0x568] sm:$0xff]
  %v273 = vld [vmem:[%s1 + $0x570] sm:$0xff]
  %v274 = vld [vmem:[%s1 + $0x578] sm:$0xff]
  %v275 = vld [vmem:[%s1 + $0x580] sm:$0xff]
  %v276 = vld [vmem:[%s1 + $0x588] sm:$0xff]
  %v277 = vld [vmem:[%s1 + $0x590] sm:$0xff]
  %v278 = vld [vmem:[%s1 + $0x598] sm:$0xff]
  %v279 = vld [vmem:[%s1 + $0x5a0] sm:$0xff]
  %v280 = vld [vmem:[%s1 + $0x5a8] sm:$0xff]
  %v281 = vld [vmem:[%s1 + $0x5b0] sm:$0xff]
  %v282 = vld [vmem:[%s1 + $0x5b8] sm:$0xff]
  %v283 = vld [vmem:[%s1 + $0x5c0] sm:$0xff]
  %v284 = vld [vmem:[%s1 + $0x5c8] sm:$0xff]
  %v285 = vld [vmem:[%s1 + $0x5d0] sm:$0xff]
  %v286 = vld [vmem:[%s1 + $0x5d8] sm:$0xff]
  %v287 = vld [vmem:[%s1 + $0x5e0] sm:$0xff]
  %v288 = vld [vmem:[%s1 + $0x5e8] sm:$0xff]
  %v289 = vld [vmem:[%s1 + $0x5f0] sm:$0xff]
  %v290 = vld [vmem:[%s1 + $0x5f8] sm:$0xff]
  %v291 = vld [vmem:[%s1 + $0x600] sm:$0xff]
  %v292 = vld [vmem:[%s1 + $0x608] sm:$0xff]
  %v293 = vld [vmem:[%s1 + $0x610] sm:$0xff]
  %v294 = vld [vmem:[%s1 + $0x618] sm:$0xff]
  %v295 = vld [vmem:[%s1 + $0x620] sm:$0xff]
  %v296 = vld [vmem:[%s1 + $0x628] sm:$0xff]
  %v297 = vld [vmem:[%s1 + $0x630] sm:$0xff]
  %v298 = vld [vmem:[%s1 + $0x638] sm:$0xff]
  %v299 = vld [vmem:[%s1 + $0x640] sm:$0xff]
  %v300 = vld [vmem:[%s1 + $0x648] sm:$0xff]
  %v301 = vld [vmem:[%s1 + $0x650] sm:$0xff]
  %v302 = vld [vmem:[%s1 + $0x658] sm:$0xff]
  %v303 = vld [vmem:[%s1 + $0x660] sm:$0xff]
  %v304 = vld [vmem:[%s1 + $0x668] sm:$0xff]
  %v305 = vld [vmem:[%s1 + $0x670] sm:$0xff]
  %v306 = vld [vmem:[%s1 + $0x678] sm:$0xff]
  %v307 = vld [vmem:[%s1 + $0x680] sm:$0xff]
  %v308 = vld [vmem:[%s1 + $0x688] sm:$0xff]
  %v309 = vld [vmem:[%s1 + $0x690] sm:$0xff]
  %v310 = vld [vmem:[%s1 + $0x698] sm:$0xff]
  %v311 = vld [vmem:[%s1 + $0x6a0] sm:$0xff]
  %v312 = vld [vmem:[%s1 + $0x6a8] sm:$0xff]
  %v313 = vld [vmem:[%s1 + $0x6b0] sm:$0xff]
  %v314 = vld [vmem:[%s1 + $0x6b8] sm:$0xff]
  %v315 = vld [vmem:[%s2] sm:$0x3]
  %v317 = vperm.slane %v315, 0
  %v318 = vperm.slane %v315, 1
  %v537 = vunpack.c.l.b16 %v99
  %v538 = vunpack.c.h.b16 %v99
  %v539 = vunpack.c.l.b16 %v100
  %v540 = vunpack.c.h.b16 %v100
  %v541 = vunpack.c.l.b16 %v101
  %v542 = vunpack.c.h.b16 %v101
  %v543 = vunpack.c.l.b16 %v102
  %v544 = vunpack.c.h.b16 %v102
  %v545 = vunpack.c.l.b16 %v103
  %v546 = vunpack.c.h.b16 %v103
  %v547 = vunpack.c.l.b16 %v104
  %v548 = vunpack.c.h.b16 %v104
  %v549 = vunpack.c.l.b16 %v105
  %v550 = vunpack.c.h.b16 %v105
  %v551 = vunpack.c.l.b16 %v106
  %v552 = vunpack.c.h.b16 %v106
  %v553 = vunpack.c.l.b16 %v107
  %v554 = vunpack.c.h.b16 %v107
  %v555 = vunpack.c.l.b16 %v108
  %v556 = vunpack.c.h.b16 %v108
  %v557 = vunpack.c.l.b16 %v109
  %v558 = vunpack.c.h.b16 %v109
  %v559 = vunpack.c.l.b16 %v110
  %v560 = vunpack.c.h.b16 %v110
  %v561 = vunpack.c.l.b16 %v111
  %v562 = vunpack.c.h.b16 %v111
  %v563 = vunpack.c.l.b16 %v112
  %v564 = vunpack.c.h.b16 %v112
  %v565 = vunpack.c.l.b16 %v113
  %v566 = vunpack.c.h.b16 %v113
  %v567 = vunpack.c.l.b16 %v114
  %v568 = vunpack.c.h.b16 %v114
  %v569 = vunpack.c.l.b16 %v115
  %v570 = vunpack.c.h.b16 %v115
  %v571 = vunpack.c.l.b16 %v116
  %v572 = vunpack.c.h.b16 %v116
  %v573 = vunpack.c.l.b16 %v117
  %v574 = vunpack.c.h.b16 %v117
  %v575 = vunpack.c.l.b16 %v118
  %v576 = vunpack.c.h.b16 %v118
  %v577 = vunpack.c.l.b16 %v119
  %v578 = vunpack.c.h.b16 %v119
  %v579 = vunpack.c.l.b16 %v120
  %v580 = vunpack.c.h.b16 %v120
  %v581 = vunpack.c.l.b16 %v121
  %v582 = vunpack.c.h.b16 %v121
  %v583 = vunpack.c.l.b16 %v122
  %v584 = vunpack.c.h.b16 %v122
  %v585 = vunpack.c.l.b16 %v123
  %v586 = vunpack.c.h.b16 %v123
  %v587 = vunpack.c.l.b16 %v124
  %v588 = vunpack.c.h.b16 %v124
  %v589 = vunpack.c.l.b16 %v125
  %v590 = vunpack.c.h.b16 %v125
  %v591 = vunpack.c.l.b16 %v126
  %v592 = vunpack.c.h.b16 %v126
  %v593 = vunpack.c.l.b16 %v127
  %v594 = vunpack.c.h.b16 %v127
  %v595 = vunpack.c.l.b16 %v128
  %v596 = vunpack.c.h.b16 %v128
  %v597 = vunpack.c.l.b16 %v129
  %v598 = vunpack.c.h.b16 %v129
  %v599 = vunpack.c.l.b16 %v130
  %v600 = vunpack.c.h.b16 %v130
  %v601 = vunpack.c.l.b16 %v131
  %v602 = vunpack.c.h.b16 %v131
  %v603 = vunpack.c.l.b16 %v132
  %v604 = vunpack.c.h.b16 %v132
  %v605 = vunpack.c.l.b16 %v133
  %v606 = vunpack.c.h.b16 %v133
  %v607 = vunpack.c.l.b16 %v134
  %v608 = vunpack.c.h.b16 %v134
  %v609 = vunpack.c.l.b16 %v135
  %v610 = vunpack.c.h.b16 %v135
  %v611 = vunpack.c.l.b16 %v136
  %v612 = vunpack.c.h.b16 %v136
  %v613 = vunpack.c.l.b16 %v137
  %v614 = vunpack.c.h.b16 %v137
  %v615 = vunpack.c.l.b16 %v138
  %v616 = vunpack.c.h.b16 %v138
  %v617 = vunpack.c.l.b16 %v139
  %v618 = vunpack.c.h.b16 %v139
  %v619 = vunpack.c.l.b16 %v140
  %v620 = vunpack.c.h.b16 %v140
  %v621 = vunpack.c.l.b16 %v141
  %v622 = vunpack.c.h.b16 %v141
  %v623 = vunpack.c.l.b16 %v142
  %v624 = vunpack.c.h.b16 %v142
  %v625 = vunpack.c.l.b16 %v143
  %v626 = vunpack.c.h.b16 %v143
  %v627 = vunpack.c.l.b16 %v144
  %v628 = vunpack.c.h.b16 %v144
  %v629 = vunpack.c.l.b16 %v145
  %v630 = vunpack.c.h.b16 %v145
  %v631 = vunpack.c.l.b16 %v146
  %v632 = vunpack.c.h.b16 %v146
  %v633 = vunpack.c.l.b16 %v147
  %v634 = vunpack.c.h.b16 %v147
  %v635 = vunpack.c.l.b16 %v148
  %v636 = vunpack.c.h.b16 %v148
  %v637 = vunpack.c.l.b16 %v149
  %v638 = vunpack.c.h.b16 %v149
  %v639 = vunpack.c.l.b16 %v150
  %v640 = vunpack.c.h.b16 %v150
  %v641 = vunpack.c.l.b16 %v151
  %v642 = vunpack.c.h.b16 %v151
  %v643 = vunpack.c.l.b16 %v152
  %v644 = vunpack.c.h.b16 %v152
  %v645 = vunpack.c.l.b16 %v153
  %v646 = vunpack.c.h.b16 %v153
  %v647 = vunpack.c.l.b16 %v154
  %v648 = vunpack.c.h.b16 %v154
  %v649 = vunpack.c.l.b16 %v155
  %v650 = vunpack.c.h.b16 %v155
  %v651 = vunpack.c.l.b16 %v156
  %v652 = vunpack.c.h.b16 %v156
  %v653 = vunpack.c.l.b16 %v157
  %v654 = vunpack.c.h.b16 %v157
  %v655 = vunpack.c.l.b16 %v158
  %v656 = vunpack.c.h.b16 %v158
  %v657 = vunpack.c.l.b16 %v159
  %v658 = vunpack.c.h.b16 %v159
  %v659 = vunpack.c.l.b16 %v160
  %v660 = vunpack.c.h.b16 %v160
  %v661 = vunpack.c.l.b16 %v161
  %v662 = vunpack.c.h.b16 %v161
  %v663 = vunpack.c.l.b16 %v162
  %v664 = vunpack.c.h.b16 %v162
  %v665 = vunpack.c.l.b16 %v163
  %v666 = vunpack.c.h.b16 %v163
  %v667 = vunpack.c.l.b16 %v164
  %v668 = vunpack.c.h.b16 %v164
  %v669 = vunpack.c.l.b16 %v165
  %v670 = vunpack.c.h.b16 %v165
  %v671 = vunpack.c.l.b16 %v166
  %v672 = vunpack.c.h.b16 %v166
  %v673 = vunpack.c.l.b16 %v167
  %v674 = vunpack.c.h.b16 %v167
  %v675 = vunpack.c.l.b16 %v168
  %v676 = vunpack.c.h.b16 %v168
  %v677 = vunpack.c.l.b16 %v169
  %v678 = vunpack.c.h.b16 %v169
  %v679 = vunpack.c.l.b16 %v170
  %v680 = vunpack.c.h.b16 %v170
  %v681 = vunpack.c.l.b16 %v171
  %v682 = vunpack.c.h.b16 %v171
  %v683 = vunpack.c.l.b16 %v172
  %v684 = vunpack.c.h.b16 %v172
  %v685 = vunpack.c.l.b16 %v173
  %v686 = vunpack.c.h.b16 %v173
  %v687 = vunpack.c.l.b16 %v174
  %v688 = vunpack.c.h.b16 %v174
  %v689 = vunpack.c.l.b16 %v175
  %v690 = vunpack.c.h.b16 %v175
  %v691 = vunpack.c.l.b16 %v176
  %v692 = vunpack.c.h.b16 %v176
  %v693 = vunpack.c.l.b16 %v177
  %v694 = vunpack.c.h.b16 %v177
  %v695 = vunpack.c.l.b16 %v178
  %v696 = vunpack.c.h.b16 %v178
  %v697 = vunpack.c.l.b16 %v179
  %v698 = vunpack.c.h.b16 %v179
  %v699 = vunpack.c.l.b16 %v180
  %v700 = vunpack.c.h.b16 %v180
  %v701 = vunpack.c.l.b16 %v181
  %v702 = vunpack.c.h.b16 %v181
  %v703 = vunpack.c.l.b16 %v182
  %v704 = vunpack.c.h.b16 %v182
  %v705 = vunpack.c.l.b16 %v183
  %v706 = vunpack.c.h.b16 %v183
  %v707 = vunpack.c.l.b16 %v184
  %v708 = vunpack.c.h.b16 %v184
  %v709 = vunpack.c.l.b16 %v185
  %v710 = vunpack.c.h.b16 %v185
  %v711 = vunpack.c.l.b16 %v186
  %v712 = vunpack.c.h.b16 %v186
  %v713 = vunpack.c.l.b16 %v187
  %v714 = vunpack.c.h.b16 %v187
  %v715 = vunpack.c.l.b16 %v188
  %v716 = vunpack.c.h.b16 %v188
  %v717 = vunpack.c.l.b16 %v189
  %v718 = vunpack.c.h.b16 %v189
  %v719 = vunpack.c.l.b16 %v190
  %v720 = vunpack.c.h.b16 %v190
  %v721 = vunpack.c.l.b16 %v191
  %v722 = vunpack.c.h.b16 %v191
  %v723 = vunpack.c.l.b16 %v192
  %v724 = vunpack.c.h.b16 %v192
  %v725 = vunpack.c.l.b16 %v193
  %v726 = vunpack.c.h.b16 %v193
  %v727 = vunpack.c.l.b16 %v194
  %v728 = vunpack.c.h.b16 %v194
  %v729 = vunpack.c.l.b16 %v195
  %v730 = vunpack.c.h.b16 %v195
  %v731 = vunpack.c.l.b16 %v196
  %v732 = vunpack.c.h.b16 %v196
  %v733 = vunpack.c.l.b16 %v197
  %v734 = vunpack.c.h.b16 %v197
  %v735 = vunpack.c.l.b16 %v198
  %v736 = vunpack.c.h.b16 %v198
  %v737 = vunpack.c.l.b16 %v199
  %v738 = vunpack.c.h.b16 %v199
  %v739 = vunpack.c.l.b16 %v200
  %v740 = vunpack.c.h.b16 %v200
  %v741 = vunpack.c.l.b16 %v201
  %v742 = vunpack.c.h.b16 %v201
  %v743 = vunpack.c.l.b16 %v202
  %v744 = vunpack.c.h.b16 %v202
  %v745 = vunpack.c.l.b16 %v203
  %v746 = vunpack.c.h.b16 %v203
  %v747 = vunpack.c.l.b16 %v204
  %v748 = vunpack.c.h.b16 %v204
  %v749 = vunpack.c.l.b16 %v205
  %v750 = vunpack.c.h.b16 %v205
  %v751 = vunpack.c.l.b16 %v206
  %v752 = vunpack.c.h.b16 %v206
  %v753 = vunpack.c.l.b16 %v207
  %v754 = vunpack.c.h.b16 %v207
  %v755 = vunpack.c.l.b16 %v208
  %v756 = vunpack.c.h.b16 %v208
  %v757 = vunpack.c.l.b16 %v209
  %v758 = vunpack.c.h.b16 %v209
  %v759 = vunpack.c.l.b16 %v210
  %v760 = vunpack.c.h.b16 %v210
  %v761 = vunpack.c.l.b16 %v211
  %v762 = vunpack.c.h.b16 %v211
  %v763 = vunpack.c.l.b16 %v212
  %v764 = vunpack.c.h.b16 %v212
  %v765 = vunpack.c.l.b16 %v213
  %v766 = vunpack.c.h.b16 %v213
  %v767 = vunpack.c.l.b16 %v214
  %v768 = vunpack.c.h.b16 %v214
  %v769 = vunpack.c.l.b16 %v215
  %v770 = vunpack.c.h.b16 %v215
  %v771 = vunpack.c.l.b16 %v216
  %v772 = vunpack.c.h.b16 %v216
  %v773 = vunpack.c.l.b16 %v217
  %v774 = vunpack.c.h.b16 %v217
  %v775 = vunpack.c.l.b16 %v218
  %v776 = vunpack.c.h.b16 %v218
  %v777 = vunpack.c.l.b16 %v219
  %v778 = vunpack.c.h.b16 %v219
  %v779 = vunpack.c.l.b16 %v220
  %v780 = vunpack.c.h.b16 %v220
  %v781 = vunpack.c.l.b16 %v221
  %v782 = vunpack.c.h.b16 %v221
  %v783 = vunpack.c.l.b16 %v222
  %v784 = vunpack.c.h.b16 %v222
  %v785 = vunpack.c.l.b16 %v223
  %v786 = vunpack.c.h.b16 %v223
  %v787 = vunpack.c.l.b16 %v224
  %v788 = vunpack.c.h.b16 %v224
  %v789 = vunpack.c.l.b16 %v225
  %v790 = vunpack.c.h.b16 %v225
  %v791 = vunpack.c.l.b16 %v226
  %v792 = vunpack.c.h.b16 %v226
  %v793 = vunpack.c.l.b16 %v227
  %v794 = vunpack.c.h.b16 %v227
  %v795 = vunpack.c.l.b16 %v228
  %v796 = vunpack.c.h.b16 %v228
  %v797 = vunpack.c.l.b16 %v229
  %v798 = vunpack.c.h.b16 %v229
  %v799 = vunpack.c.l.b16 %v230
  %v800 = vunpack.c.h.b16 %v230
  %v801 = vunpack.c.l.b16 %v231
  %v802 = vunpack.c.h.b16 %v231
  %v803 = vunpack.c.l.b16 %v232
  %v804 = vunpack.c.h.b16 %v232
  %v805 = vunpack.c.l.b16 %v233
  %v806 = vunpack.c.h.b16 %v233
  %v807 = vunpack.c.l.b16 %v234
  %v808 = vunpack.c.h.b16 %v234
  %v809 = vunpack.c.l.b16 %v235
  %v810 = vunpack.c.h.b16 %v235
  %v811 = vunpack.c.l.b16 %v236
  %v812 = vunpack.c.h.b16 %v236
  %v813 = vunpack.c.l.b16 %v237
  %v814 = vunpack.c.h.b16 %v237
  %v815 = vunpack.c.l.b16 %v238
  %v816 = vunpack.c.h.b16 %v238
  %v817 = vunpack.c.l.b16 %v239
  %v818 = vunpack.c.h.b16 %v239
  %v819 = vunpack.c.l.b16 %v240
  %v820 = vunpack.c.h.b16 %v240
  %v821 = vunpack.c.l.b16 %v241
  %v822 = vunpack.c.h.b16 %v241
  %v823 = vunpack.c.l.b16 %v242
  %v824 = vunpack.c.h.b16 %v242
  %v825 = vunpack.c.l.b16 %v243
  %v826 = vunpack.c.h.b16 %v243
  %v827 = vunpack.c.l.b16 %v244
  %v828 = vunpack.c.h.b16 %v244
  %v829 = vunpack.c.l.b16 %v245
  %v830 = vunpack.c.h.b16 %v245
  %v831 = vunpack.c.l.b16 %v246
  %v832 = vunpack.c.h.b16 %v246
  %v833 = vunpack.c.l.b16 %v247
  %v834 = vunpack.c.h.b16 %v247
  %v835 = vunpack.c.l.b16 %v248
  %v836 = vunpack.c.h.b16 %v248
  %v837 = vunpack.c.l.b16 %v249
  %v838 = vunpack.c.h.b16 %v249
  %v839 = vunpack.c.l.b16 %v250
  %v840 = vunpack.c.h.b16 %v250
  %v841 = vunpack.c.l.b16 %v251
  %v842 = vunpack.c.h.b16 %v251
  %v843 = vunpack.c.l.b16 %v252
  %v844 = vunpack.c.h.b16 %v252
  %v845 = vunpack.c.l.b16 %v253
  %v846 = vunpack.c.h.b16 %v253
  %v847 = vunpack.c.l.b16 %v254
  %v848 = vunpack.c.h.b16 %v254
  %v849 = vunpack.c.l.b16 %v255
  %v850 = vunpack.c.h.b16 %v255
  %v851 = vunpack.c.l.b16 %v256
  %v852 = vunpack.c.h.b16 %v256
  %v853 = vunpack.c.l.b16 %v257
  %v854 = vunpack.c.h.b16 %v257
  %v855 = vunpack.c.l.b16 %v258
  %v856 = vunpack.c.h.b16 %v258
  %v857 = vunpack.c.l.b16 %v259
  %v858 = vunpack.c.h.b16 %v259
  %v859 = vunpack.c.l.b16 %v260
  %v860 = vunpack.c.h.b16 %v260
  %v861 = vunpack.c.l.b16 %v261
  %v862 = vunpack.c.h.b16 %v261
  %v863 = vunpack.c.l.b16 %v262
  %v864 = vunpack.c.h.b16 %v262
  %v865 = vunpack.c.l.b16 %v263
  %v866 = vunpack.c.h.b16 %v263
  %v867 = vunpack.c.l.b16 %v264
  %v868 = vunpack.c.h.b16 %v264
  %v869 = vunpack.c.l.b16 %v265
  %v870 = vunpack.c.h.b16 %v265
  %v871 = vunpack.c.l.b16 %v266
  %v872 = vunpack.c.h.b16 %v266
  %v873 = vunpack.c.l.b16 %v267
  %v874 = vunpack.c.h.b16 %v267
  %v875 = vunpack.c.l.b16 %v268
  %v876 = vunpack.c.h.b16 %v268
  %v877 = vunpack.c.l.b16 %v269
  %v878 = vunpack.c.h.b16 %v269
  %v879 = vunpack.c.l.b16 %v270
  %v880 = vunpack.c.h.b16 %v270
  %v881 = vunpack.c.l.b16 %v271
  %v882 = vunpack.c.h.b16 %v271
  %v883 = vunpack.c.l.b16 %v272
  %v884 = vunpack.c.h.b16 %v272
  %v885 = vunpack.c.l.b16 %v273
  %v886 = vunpack.c.h.b16 %v273
  %v887 = vunpack.c.l.b16 %v274
  %v888 = vunpack.c.h.b16 %v274
  %v889 = vunpack.c.l.b16 %v275
  %v890 = vunpack.c.h.b16 %v275
  %v891 = vunpack.c.l.b16 %v276
  %v892 = vunpack.c.h.b16 %v276
  %v893 = vunpack.c.l.b16 %v277
  %v894 = vunpack.c.h.b16 %v277
  %v895 = vunpack.c.l.b16 %v278
  %v896 = vunpack.c.h.b16 %v278
  %v897 = vunpack.c.l.b16 %v279
  %v898 = vunpack.c.h.b16 %v279
  %v899 = vunpack.c.l.b16 %v280
  %v900 = vunpack.c.h.b16 %v280
  %v901 = vunpack.c.l.b16 %v281
  %v902 = vunpack.c.h.b16 %v281
  %v903 = vunpack.c.l.b16 %v282
  %v904 = vunpack.c.h.b16 %v282
  %v905 = vunpack.c.l.b16 %v283
  %v906 = vunpack.c.h.b16 %v283
  %v907 = vunpack.c.l.b16 %v284
  %v908 = vunpack.c.h.b16 %v284
  %v909 = vunpack.c.l.b16 %v285
  %v910 = vunpack.c.h.b16 %v285
  %v911 = vunpack.c.l.b16 %v286
  %v912 = vunpack.c.h.b16 %v286
  %v913 = vunpack.c.l.b16 %v287
  %v914 = vunpack.c.h.b16 %v287
  %v915 = vunpack.c.l.b16 %v288
  %v916 = vunpack.c.h.b16 %v288
  %v917 = vunpack.c.l.b16 %v289
  %v918 = vunpack.c.h.b16 %v289
  %v919 = vunpack.c.l.b16 %v290
  %v920 = vunpack.c.h.b16 %v290
  %v921 = vunpack.c.l.b16 %v291
  %v922 = vunpack.c.h.b16 %v291
  %v923 = vunpack.c.l.b16 %v292
  %v924 = vunpack.c.h.b16 %v292
  %v925 = vunpack.c.l.b16 %v293
  %v926 = vunpack.c.h.b16 %v293
  %v927 = vunpack.c.l.b16 %v294
  %v928 = vunpack.c.h.b16 %v294
  %v929 = vunpack.c.l.b16 %v295
  %v930 = vunpack.c.h.b16 %v295
  %v931 = vunpack.c.l.b16 %v296
  %v932 = vunpack.c.h.b16 %v296
  %v933 = vunpack.c.l.b16 %v297
  %v934 = vunpack.c.h.b16 %v297
  %v935 = vunpack.c.l.b16 %v298
  %v936 = vunpack.c.h.b16 %v298
  %v937 = vunpack.c.l.b16 %v299
  %v938 = vunpack.c.h.b16 %v299
  %v939 = vunpack.c.l.b16 %v300
  %v940 = vunpack.c.h.b16 %v300
  %v941 = vunpack.c.l.b16 %v301
  %v942 = vunpack.c.h.b16 %v301
  %v943 = vunpack.c.l.b16 %v302
  %v944 = vunpack.c.h.b16 %v302
  %v945 = vunpack.c.l.b16 %v303
  %v946 = vunpack.c.h.b16 %v303
  %v947 = vunpack.c.l.b16 %v304
  %v948 = vunpack.c.h.b16 %v304
  %v949 = vunpack.c.l.b16 %v305
  %v950 = vunpack.c.h.b16 %v305
  %v951 = vunpack.c.l.b16 %v306
  %v952 = vunpack.c.h.b16 %v306
  %v953 = vunpack.c.l.b16 %v307
  %v954 = vunpack.c.h.b16 %v307
  %v955 = vunpack.c.l.b16 %v308
  %v956 = vunpack.c.h.b16 %v308
  %v957 = vunpack.c.l.b16 %v309
  %v958 = vunpack.c.h.b16 %v309
  %v959 = vunpack.c.l.b16 %v310
  %v960 = vunpack.c.h.b16 %v310
  %v961 = vunpack.c.l.b16 %v311
  %v962 = vunpack.c.h.b16 %v311
  %v963 = vunpack.c.l.b16 %v312
  %v964 = vunpack.c.h.b16 %v312
  %v965 = vunpack.c.l.b16 %v313
  %v966 = vunpack.c.h.b16 %v313
  %v967 = vunpack.c.l.b16 %v314
  %v968 = vunpack.c.h.b16 %v314
  %v969 = vpack.c.b16 %v539, %v537
  %v970 = vpack.c.b16 %v540, %v538
  %v971 = vpack.c.b16 %v543, %v541
  %v972 = vpack.c.b16 %v544, %v542
  %v973 = vpack.c.b16 %v547, %v545
  %v974 = vpack.c.b16 %v548, %v546
  %v975 = vpack.c.b16 %v551, %v549
  %v976 = vpack.c.b16 %v552, %v550
  %v977 = vpack.c.b16 %v555, %v553
  %v978 = vpack.c.b16 %v556, %v554
  %v979 = vpack.c.b16 %v559, %v557
  %v980 = vpack.c.b16 %v560, %v558
  %v981 = vpack.c.b16 %v563, %v561
  %v982 = vpack.c.b16 %v564, %v562
  %v983 = vpack.c.b16 %v567, %v565
  %v984 = vpack.c.b16 %v568, %v566
  %v985 = vpack.c.b16 %v571, %v569
  %v986 = vpack.c.b16 %v572, %v570
  %v987 = vpack.c.b16 %v575, %v573
  %v988 = vpack.c.b16 %v576, %v574
  %v989 = vpack.c.b16 %v579, %v577
  %v990 = vpack.c.b16 %v580, %v578
  %v991 = vpack.c.b16 %v583, %v581
  %v992 = vpack.c.b16 %v584, %v582
  %v993 = vpack.c.b16 %v587, %v585
  %v994 = vpack.c.b16 %v588, %v586
  %v995 = vpack.c.b16 %v591, %v589
  %v996 = vpack.c.b16 %v592, %v590
  %v997 = vpack.c.b16 %v595, %v593
  %v998 = vpack.c.b16 %v596, %v594
  %v999 = vpack.c.b16 %v599, %v597
  %v1000 = vpack.c.b16 %v600, %v598
  %v1001 = vpack.c.b16 %v603, %v601
  %v1002 = vpack.c.b16 %v604, %v602
  %v1003 = vpack.c.b16 %v607, %v605
  %v1004 = vpack.c.b16 %v608, %v606
  %v1005 = vpack.c.b16 %v611, %v609
  %v1006 = vpack.c.b16 %v612, %v610
  %v1007 = vpack.c.b16 %v615, %v613
  %v1008 = vpack.c.b16 %v616, %v614
  %v1009 = vpack.c.b16 %v619, %v617
  %v1010 = vpack.c.b16 %v620, %v618
  %v1011 = vpack.c.b16 %v623, %v621
  %v1012 = vpack.c.b16 %v624, %v622
  %v1013 = vpack.c.b16 %v627, %v625
  %v1014 = vpack.c.b16 %v628, %v626
  %v1015 = vpack.c.b16 %v631, %v629
  %v1016 = vpack.c.b16 %v632, %v630
  %v1017 = vpack.c.b16 %v635, %v633
  %v1018 = vpack.c.b16 %v636, %v634
  %v1019 = vpack.c.b16 %v639, %v637
  %v1020 = vpack.c.b16 %v640, %v638
  %v1021 = vpack.c.b16 %v643, %v641
  %v1022 = vpack.c.b16 %v644, %v642
  %v1023 = vpack.c.b16 %v647, %v645
  %v1024 = vpack.c.b16 %v648, %v646
  %v1025 = vpack.c.b16 %v651, %v649
  %v1026 = vpack.c.b16 %v652, %v650
  %v1027 = vpack.c.b16 %v655, %v653
  %v1028 = vpack.c.b16 %v656, %v654
  %v1029 = vpack.c.b16 %v659, %v657
  %v1030 = vpack.c.b16 %v660, %v658
  %v1031 = vpack.c.b16 %v663, %v661
  %v1032 = vpack.c.b16 %v664, %v662
  %v1033 = vpack.c.b16 %v667, %v665
  %v1034 = vpack.c.b16 %v668, %v666
  %v1035 = vpack.c.b16 %v671, %v669
  %v1036 = vpack.c.b16 %v672, %v670
  %v1037 = vpack.c.b16 %v675, %v673
  %v1038 = vpack.c.b16 %v676, %v674
  %v1039 = vpack.c.b16 %v679, %v677
  %v1040 = vpack.c.b16 %v680, %v678
  %v1041 = vpack.c.b16 %v683, %v681
  %v1042 = vpack.c.b16 %v684, %v682
  %v1043 = vpack.c.b16 %v687, %v685
  %v1044 = vpack.c.b16 %v688, %v686
  %v1045 = vpack.c.b16 %v691, %v689
  %v1046 = vpack.c.b16 %v692, %v690
  %v1047 = vpack.c.b16 %v695, %v693
  %v1048 = vpack.c.b16 %v696, %v694
  %v1049 = vpack.c.b16 %v699, %v697
  %v1050 = vpack.c.b16 %v700, %v698
  %v1051 = vpack.c.b16 %v703, %v701
  %v1052 = vpack.c.b16 %v704, %v702
  %v1053 = vpack.c.b16 %v707, %v705
  %v1054 = vpack.c.b16 %v708, %v706
  %v1055 = vpack.c.b16 %v711, %v709
  %v1056 = vpack.c.b16 %v712, %v710
  %v1057 = vpack.c.b16 %v715, %v713
  %v1058 = vpack.c.b16 %v716, %v714
  %v1059 = vpack.c.b16 %v719, %v717
  %v1060 = vpack.c.b16 %v720, %v718
  %v1061 = vpack.c.b16 %v723, %v721
  %v1062 = vpack.c.b16 %v724, %v722
  %v1063 = vpack.c.b16 %v727, %v725
  %v1064 = vpack.c.b16 %v728, %v726
  %v1065 = vpack.c.b16 %v731, %v729
  %v1066 = vpack.c.b16 %v732, %v730
  %v1067 = vpack.c.b16 %v735, %v733
  %v1068 = vpack.c.b16 %v736, %v734
  %v1069 = vpack.c.b16 %v739, %v737
  %v1070 = vpack.c.b16 %v740, %v738
  %v1071 = vpack.c.b16 %v743, %v741
  %v1072 = vpack.c.b16 %v744, %v742
  %v1073 = vpack.c.b16 %v747, %v745
  %v1074 = vpack.c.b16 %v748, %v746
  %v1075 = vpack.c.b16 %v751, %v749
  %v1076 = vpack.c.b16 %v752, %v750
  %v1077 = vpack.c.b16 %v755, %v753
  %v1078 = vpack.c.b16 %v756, %v754
  %v1079 = vpack.c.b16 %v759, %v757
  %v1080 = vpack.c.b16 %v760, %v758
  %v1081 = vpack.c.b16 %v763, %v761
  %v1082 = vpack.c.b16 %v764, %v762
  %v1083 = vpack.c.b16 %v767, %v765
  %v1084 = vpack.c.b16 %v768, %v766
  %v1085 = vpack.c.b16 %v771, %v769
  %v1086 = vpack.c.b16 %v772, %v770
  %v1087 = vpack.c.b16 %v775, %v773
  %v1088 = vpack.c.b16 %v776, %v774
  %v1089 = vpack.c.b16 %v779, %v777
  %v1090 = vpack.c.b16 %v780, %v778
  %v1091 = vpack.c.b16 %v783, %v781
  %v1092 = vpack.c.b16 %v784, %v782
  %v1093 = vpack.c.b16 %v787, %v785
  %v1094 = vpack.c.b16 %v788, %v786
  %v1095 = vpack.c.b16 %v791, %v789
  %v1096 = vpack.c.b16 %v792, %v790
  %v1097 = vpack.c.b16 %v795, %v793
  %v1098 = vpack.c.b16 %v796, %v794
  %v1099 = vpack.c.b16 %v799, %v797
  %v1100 = vpack.c.b16 %v800, %v798
  %v1101 = vpack.c.b16 %v803, %v801
  %v1102 = vpack.c.b16 %v804, %v802
  %v1103 = vpack.c.b16 %v807, %v805
  %v1104 = vpack.c.b16 %v808, %v806
  %v1105 = vpack.c.b16 %v811, %v809
  %v1106 = vpack.c.b16 %v812, %v810
  %v1107 = vpack.c.b16 %v815, %v813
  %v1108 = vpack.c.b16 %v816, %v814
  %v1109 = vpack.c.b16 %v819, %v817
  %v1110 = vpack.c.b16 %v820, %v818
  %v1111 = vpack.c.b16 %v823, %v821
  %v1112 = vpack.c.b16 %v824, %v822
  %v1113 = vpack.c.b16 %v827, %v825
  %v1114 = vpack.c.b16 %v828, %v826
  %v1115 = vpack.c.b16 %v831, %v829
  %v1116 = vpack.c.b16 %v832, %v830
  %v1117 = vpack.c.b16 %v835, %v833
  %v1118 = vpack.c.b16 %v836, %v834
  %v1119 = vpack.c.b16 %v839, %v837
  %v1120 = vpack.c.b16 %v840, %v838
  %v1121 = vpack.c.b16 %v843, %v841
  %v1122 = vpack.c.b16 %v844, %v842
  %v1123 = vpack.c.b16 %v847, %v845
  %v1124 = vpack.c.b16 %v848, %v846
  %v1125 = vpack.c.b16 %v851, %v849
  %v1126 = vpack.c.b16 %v852, %v850
  %v1127 = vpack.c.b16 %v855, %v853
  %v1128 = vpack.c.b16 %v856, %v854
  %v1129 = vpack.c.b16 %v859, %v857
  %v1130 = vpack.c.b16 %v860, %v858
  %v1131 = vpack.c.b16 %v863, %v861
  %v1132 = vpack.c.b16 %v864, %v862
  %v1133 = vpack.c.b16 %v867, %v865
  %v1134 = vpack.c.b16 %v868, %v866
  %v1135 = vpack.c.b16 %v871, %v869
  %v1136 = vpack.c.b16 %v872, %v870
  %v1137 = vpack.c.b16 %v875, %v873
  %v1138 = vpack.c.b16 %v876, %v874
  %v1139 = vpack.c.b16 %v879, %v877
  %v1140 = vpack.c.b16 %v880, %v878
  %v1141 = vpack.c.b16 %v883, %v881
  %v1142 = vpack.c.b16 %v884, %v882
  %v1143 = vpack.c.b16 %v887, %v885
  %v1144 = vpack.c.b16 %v888, %v886
  %v1145 = vpack.c.b16 %v891, %v889
  %v1146 = vpack.c.b16 %v892, %v890
  %v1147 = vpack.c.b16 %v895, %v893
  %v1148 = vpack.c.b16 %v896, %v894
  %v1149 = vpack.c.b16 %v899, %v897
  %v1150 = vpack.c.b16 %v900, %v898
  %v1151 = vpack.c.b16 %v903, %v901
  %v1152 = vpack.c.b16 %v904, %v902
  %v1153 = vpack.c.b16 %v907, %v905
  %v1154 = vpack.c.b16 %v908, %v906
  %v1155 = vpack.c.b16 %v911, %v909
  %v1156 = vpack.c.b16 %v912, %v910
  %v1157 = vpack.c.b16 %v915, %v913
  %v1158 = vpack.c.b16 %v916, %v914
  %v1159 = vpack.c.b16 %v919, %v917
  %v1160 = vpack.c.b16 %v920, %v918
  %v1161 = vpack.c.b16 %v923, %v921
  %v1162 = vpack.c.b16 %v924, %v922
  %v1163 = vpack.c.b16 %v927, %v925
  %v1164 = vpack.c.b16 %v928, %v926
  %v1165 = vpack.c.b16 %v931, %v929
  %v1166 = vpack.c.b16 %v932, %v930
  %v1167 = vpack.c.b16 %v935, %v933
  %v1168 = vpack.c.b16 %v936, %v934
  %v1169 = vpack.c.b16 %v939, %v937
  %v1170 = vpack.c.b16 %v940, %v938
  %v1171 = vpack.c.b16 %v943, %v941
  %v1172 = vpack.c.b16 %v944, %v942
  %v1173 = vpack.c.b16 %v947, %v945
  %v1174 = vpack.c.b16 %v948, %v946
  %v1175 = vpack.c.b16 %v951, %v949
  %v1176 = vpack.c.b16 %v952, %v950
  %v1177 = vpack.c.b16 %v955, %v953
  %v1178 = vpack.c.b16 %v956, %v954
  %v1179 = vpack.c.b16 %v959, %v957
  %v1180 = vpack.c.b16 %v960, %v958
  %v1181 = vpack.c.b16 %v963, %v961
  %v1182 = vpack.c.b16 %v964, %v962
  %v1183 = vpack.c.b16 %v967, %v965
  %v1184 = vpack.c.b16 %v968, %v966
  %vm1401 = vcmask 523264
  %v1403 = vsel %vm1401, %v84, 0
  %v1406 = vsel %vm1401, %v98, 0
  %1408 = vmatpush.bf16.msra.mxu0 %v983
  %1409 = vmatpush.bf16.msra.mxu0 %v981
  %1410 = vmatpush.bf16.msra.mxu0 %v979
  %1411 = vmatpush.bf16.msra.mxu0 %v977
  %1412 = vmatpush.bf16.msra.mxu0 %v975
  %1413 = vmatpush.bf16.msra.mxu0 %v973
  %1414 = vmatpush.bf16.msra.mxu0 %v971
  %1415 = vmatpush.bf16.msra.mxu0 %v969
  %1416 = vmatmul.bf16.gmra.mxu0 %v71
  %v1417 = vpop.f32.mrf.mxu0
  %v1418 = vadd.f32 %v317, %v1417
  %v1419 = vpop.f32.mrf.mxu0
  %v1420 = vadd.f32 %v317, %v1419
  %1421 = vmatmul.bf16.gmra.mxu0 %v85
  %v1422 = vpop.f32.mrf.mxu0
  %v1423 = vadd.f32 %v317, %v1422
  %v1424 = vpop.f32.mrf.mxu0
  %v1425 = vadd.f32 %v317, %v1424
  %1426 = vdwg.mxu0
  %1427 = vmatpush.bf16.msra.mxu0 %v999
  %1428 = vmatpush.bf16.msra.mxu0 %v997
  %1429 = vmatpush.bf16.msra.mxu0 %v995
  %1430 = vmatpush.bf16.msra.mxu0 %v993
  %1431 = vmatpush.bf16.msra.mxu0 %v991
  %1432 = vmatpush.bf16.msra.mxu0 %v989
  %1433 = vmatpush.bf16.msra.mxu0 %v987
  %1434 = vmatpush.bf16.msra.mxu0 %v985
  %1435 = vmatmul.bf16.gmra.mxu0 %v72
  %v1436 = vpop.f32.mrf.mxu0
  %v1437 = vadd.f32 %v1418, %v1436
  %v1438 = vpop.f32.mrf.mxu0
  %v1439 = vadd.f32 %v1420, %v1438
  %1440 = vmatmul.bf16.gmra.mxu0 %v86
  %v1441 = vpop.f32.mrf.mxu0
  %v1442 = vadd.f32 %v1423, %v1441
  %v1443 = vpop.f32.mrf.mxu0
  %v1444 = vadd.f32 %v1425, %v1443
  %1445 = vdwg.mxu0
  %1446 = vmatpush.bf16.msra.mxu0 %v1015
  %1447 = vmatpush.bf16.msra.mxu0 %v1013
  %1448 = vmatpush.bf16.msra.mxu0 %v1011
  %1449 = vmatpush.bf16.msra.mxu0 %v1009
  %1450 = vmatpush.bf16.msra.mxu0 %v1007
  %1451 = vmatpush.bf16.msra.mxu0 %v1005
  %1452 = vmatpush.bf16.msra.mxu0 %v1003
  %1453 = vmatpush.bf16.msra.mxu0 %v1001
  %1454 = vmatmul.bf16.gmra.mxu0 %v73
  %v1455 = vpop.f32.mrf.mxu0
  %v1456 = vadd.f32 %v1437, %v1455
  %v1457 = vpop.f32.mrf.mxu0
  %v1458 = vadd.f32 %v1439, %v1457
  %1459 = vmatmul.bf16.gmra.mxu0 %v87
  %v1460 = vpop.f32.mrf.mxu0
  %v1461 = vadd.f32 %v1442, %v1460
  %v1462 = vpop.f32.mrf.mxu0
  %v1463 = vadd.f32 %v1444, %v1462
  %1464 = vdwg.mxu0
  %1465 = vmatpush.bf16.msra.mxu0 %v1031
  %1466 = vmatpush.bf16.msra.mxu0 %v1029
  %1467 = vmatpush.bf16.msra.mxu0 %v1027
  %1468 = vmatpush.bf16.msra.mxu0 %v1025
  %1469 = vmatpush.bf16.msra.mxu0 %v1023
  %1470 = vmatpush.bf16.msra.mxu0 %v1021
  %1471 = vmatpush.bf16.msra.mxu0 %v1019
  %1472 = vmatpush.bf16.msra.mxu0 %v1017
  %1473 = vmatmul.bf16.gmra.mxu0 %v74
  %v1474 = vpop.f32.mrf.mxu0
  %v1475 = vadd.f32 %v1456, %v1474
  %v1476 = vpop.f32.mrf.mxu0
  %v1477 = vadd.f32 %v1458, %v1476
  %1478 = vmatmul.bf16.gmra.mxu0 %v88
  %v1479 = vpop.f32.mrf.mxu0
  %v1480 = vadd.f32 %v1461, %v1479
  %v1481 = vpop.f32.mrf.mxu0
  %v1482 = vadd.f32 %v1463, %v1481
  %1483 = vdwg.mxu0
  %1484 = vmatpush.bf16.msra.mxu0 %v1047
  %1485 = vmatpush.bf16.msra.mxu0 %v1045
  %1486 = vmatpush.bf16.msra.mxu0 %v1043
  %1487 = vmatpush.bf16.msra.mxu0 %v1041
  %1488 = vmatpush.bf16.msra.mxu0 %v1039
  %1489 = vmatpush.bf16.msra.mxu0 %v1037
  %1490 = vmatpush.bf16.msra.mxu0 %v1035
  %1491 = vmatpush.bf16.msra.mxu0 %v1033
  %1492 = vmatmul.bf16.gmra.mxu0 %v75
  %v1493 = vpop.f32.mrf.mxu0
  %v1494 = vadd.f32 %v1475, %v1493
  %v1495 = vpop.f32.mrf.mxu0
  %v1496 = vadd.f32 %v1477, %v1495
  %1497 = vmatmul.bf16.gmra.mxu0 %v89
  %v1498 = vpop.f32.mrf.mxu0
  %v1499 = vadd.f32 %v1480, %v1498
  %v1500 = vpop.f32.mrf.mxu0
  %v1501 = vadd.f32 %v1482, %v1500
  %1502 = vdwg.mxu0
  %1503 = vmatpush.bf16.msra.mxu0 %v1063
  %1504 = vmatpush.bf16.msra.mxu0 %v1061
  %1505 = vmatpush.bf16.msra.mxu0 %v1059
  %1506 = vmatpush.bf16.msra.mxu0 %v1057
  %1507 = vmatpush.bf16.msra.mxu0 %v1055
  %1508 = vmatpush.bf16.msra.mxu0 %v1053
  %1509 = vmatpush.bf16.msra.mxu0 %v1051
  %1510 = vmatpush.bf16.msra.mxu0 %v1049
  %1511 = vmatmul.bf16.gmra.mxu0 %v76
  %v1512 = vpop.f32.mrf.mxu0
  %v1513 = vadd.f32 %v1494, %v1512
  %v1514 = vpop.f32.mrf.mxu0
  %v1515 = vadd.f32 %v1496, %v1514
  %1516 = vmatmul.bf16.gmra.mxu0 %v90
  %v1517 = vpop.f32.mrf.mxu0
  %v1518 = vadd.f32 %v1499, %v1517
  %v1519 = vpop.f32.mrf.mxu0
  %v1520 = vadd.f32 %v1501, %v1519
  %1521 = vdwg.mxu0
  %1522 = vmatpush.bf16.msra.mxu0 %v1079
  %1523 = vmatpush.bf16.msra.mxu0 %v1077
  %1524 = vmatpush.bf16.msra.mxu0 %v1075
  %1525 = vmatpush.bf16.msra.mxu0 %v1073
  %1526 = vmatpush.bf16.msra.mxu0 %v1071
  %1527 = vmatpush.bf16.msra.mxu0 %v1069
  %1528 = vmatpush.bf16.msra.mxu0 %v1067
  %1529 = vmatpush.bf16.msra.mxu0 %v1065
  %1530 = vmatmul.bf16.gmra.mxu0 %v77
  %v1531 = vpop.f32.mrf.mxu0
  %v1532 = vadd.f32 %v1513, %v1531
  %v1533 = vpop.f32.mrf.mxu0
  %v1534 = vadd.f32 %v1515, %v1533
  %1535 = vmatmul.bf16.gmra.mxu0 %v91
  %v1536 = vpop.f32.mrf.mxu0
  %v1537 = vadd.f32 %v1518, %v1536
  %v1538 = vpop.f32.mrf.mxu0
  %v1539 = vadd.f32 %v1520, %v1538
  %1540 = vdwg.mxu0
  %1541 = vmatpush.bf16.msra.mxu0 %v1095
  %1542 = vmatpush.bf16.msra.mxu0 %v1093
  %1543 = vmatpush.bf16.msra.mxu0 %v1091
  %1544 = vmatpush.bf16.msra.mxu0 %v1089
  %1545 = vmatpush.bf16.msra.mxu0 %v1087
  %1546 = vmatpush.bf16.msra.mxu0 %v1085
  %1547 = vmatpush.bf16.msra.mxu0 %v1083
  %1548 = vmatpush.bf16.msra.mxu0 %v1081
  %1549 = vmatmul.bf16.gmra.mxu0 %v78
  %v1550 = vpop.f32.mrf.mxu0
  %v1551 = vadd.f32 %v1532, %v1550
  %v1552 = vpop.f32.mrf.mxu0
  %v1553 = vadd.f32 %v1534, %v1552
  %1554 = vmatmul.bf16.gmra.mxu0 %v92
  %v1555 = vpop.f32.mrf.mxu0
  %v1556 = vadd.f32 %v1537, %v1555
  %v1557 = vpop.f32.mrf.mxu0
  %v1558 = vadd.f32 %v1539, %v1557
  %1559 = vdwg.mxu0
  %1560 = vmatpush.bf16.msra.mxu0 %v1111
  %1561 = vmatpush.bf16.msra.mxu0 %v1109
  %1562 = vmatpush.bf16.msra.mxu0 %v1107
  %1563 = vmatpush.bf16.msra.mxu0 %v1105
  %1564 = vmatpush.bf16.msra.mxu0 %v1103
  %1565 = vmatpush.bf16.msra.mxu0 %v1101
  %1566 = vmatpush.bf16.msra.mxu0 %v1099
  %1567 = vmatpush.bf16.msra.mxu0 %v1097
  %1568 = vmatmul.bf16.gmra.mxu0 %v79
  %v1569 = vpop.f32.mrf.mxu0
  %v1570 = vadd.f32 %v1551, %v1569
  %v1571 = vpop.f32.mrf.mxu0
  %v1572 = vadd.f32 %v1553, %v1571
  %1573 = vmatmul.bf16.gmra.mxu0 %v93
  %v1574 = vpop.f32.mrf.mxu0
  %v1575 = vadd.f32 %v1556, %v1574
  %v1576 = vpop.f32.mrf.mxu0
  %v1577 = vadd.f32 %v1558, %v1576
  %1578 = vdwg.mxu0
  %1579 = vmatpush.bf16.msra.mxu0 %v1127
  %1580 = vmatpush.bf16.msra.mxu0 %v1125
  %1581 = vmatpush.bf16.msra.mxu0 %v1123
  %1582 = vmatpush.bf16.msra.mxu0 %v1121
  %1583 = vmatpush.bf16.msra.mxu0 %v1119
  %1584 = vmatpush.bf16.msra.mxu0 %v1117
  %1585 = vmatpush.bf16.msra.mxu0 %v1115
  %1586 = vmatpush.bf16.msra.mxu0 %v1113
  %1587 = vmatmul.bf16.gmra.mxu0 %v80
  %v1588 = vpop.f32.mrf.mxu0
  %v1589 = vadd.f32 %v1570, %v1588
  %v1590 = vpop.f32.mrf.mxu0
  %v1591 = vadd.f32 %v1572, %v1590
  %1592 = vmatmul.bf16.gmra.mxu0 %v94
  %v1593 = vpop.f32.mrf.mxu0
  %v1594 = vadd.f32 %v1575, %v1593
  %v1595 = vpop.f32.mrf.mxu0
  %v1596 = vadd.f32 %v1577, %v1595
  %1597 = vdwg.mxu0
  %1598 = vmatpush.bf16.msra.mxu0 %v1143
  %1599 = vmatpush.bf16.msra.mxu0 %v1141
  %1600 = vmatpush.bf16.msra.mxu0 %v1139
  %1601 = vmatpush.bf16.msra.mxu0 %v1137
  %1602 = vmatpush.bf16.msra.mxu0 %v1135
  %1603 = vmatpush.bf16.msra.mxu0 %v1133
  %1604 = vmatpush.bf16.msra.mxu0 %v1131
  %1605 = vmatpush.bf16.msra.mxu0 %v1129
  %1606 = vmatmul.bf16.gmra.mxu0 %v81
  %v1607 = vpop.f32.mrf.mxu0
  %v1608 = vadd.f32 %v1589, %v1607
  %v1609 = vpop.f32.mrf.mxu0
  %v1610 = vadd.f32 %v1591, %v1609
  %1611 = vmatmul.bf16.gmra.mxu0 %v95
  %v1612 = vpop.f32.mrf.mxu0
  %v1613 = vadd.f32 %v1594, %v1612
  %v1614 = vpop.f32.mrf.mxu0
  %v1615 = vadd.f32 %v1596, %v1614
  %1616 = vdwg.mxu0
  %1617 = vmatpush.bf16.msra.mxu0 %v1159
  %1618 = vmatpush.bf16.msra.mxu0 %v1157
  %1619 = vmatpush.bf16.msra.mxu0 %v1155
  %1620 = vmatpush.bf16.msra.mxu0 %v1153
  %1621 = vmatpush.bf16.msra.mxu0 %v1151
  %1622 = vmatpush.bf16.msra.mxu0 %v1149
  %1623 = vmatpush.bf16.msra.mxu0 %v1147
  %1624 = vmatpush.bf16.msra.mxu0 %v1145
  %1625 = vmatmul.bf16.gmra.mxu0 %v82
  %v1626 = vpop.f32.mrf.mxu0
  %v1627 = vadd.f32 %v1608, %v1626
  %v1628 = vpop.f32.mrf.mxu0
  %v1629 = vadd.f32 %v1610, %v1628
  %1630 = vmatmul.bf16.gmra.mxu0 %v96
  %v1631 = vpop.f32.mrf.mxu0
  %v1632 = vadd.f32 %v1613, %v1631
  %v1633 = vpop.f32.mrf.mxu0
  %v1634 = vadd.f32 %v1615, %v1633
  %1635 = vdwg.mxu0
  %1636 = vmatpush.bf16.msra.mxu0 %v1175
  %1637 = vmatpush.bf16.msra.mxu0 %v1173
  %1638 = vmatpush.bf16.msra.mxu0 %v1171
  %1639 = vmatpush.bf16.msra.mxu0 %v1169
  %1640 = vmatpush.bf16.msra.mxu0 %v1167
  %1641 = vmatpush.bf16.msra.mxu0 %v1165
  %1642 = vmatpush.bf16.msra.mxu0 %v1163
  %1643 = vmatpush.bf16.msra.mxu0 %v1161
  %1644 = vmatmul.bf16.gmra.mxu0 %v83
  %v1645 = vpop.f32.mrf.mxu0
  %v1646 = vadd.f32 %v1627, %v1645
  %v1647 = vpop.f32.mrf.mxu0
  %v1648 = vadd.f32 %v1629, %v1647
  %1649 = vmatmul.bf16.gmra.mxu0 %v97
  %v1650 = vpop.f32.mrf.mxu0
  %v1651 = vadd.f32 %v1632, %v1650
  %v1652 = vpop.f32.mrf.mxu0
  %v1653 = vadd.f32 %v1634, %v1652
  %1654 = vdwg.mxu0
  %1655 = vmatpush.bf16.msra.mxu0 0
  %1656 = vmatpush.bf16.msra.mxu0 0
  %1657 = vmatpush.bf16.msra.mxu0 0
  %1658 = vmatpush.bf16.msra.mxu0 0
  %1659 = vmatpush.bf16.msra.mxu0 %v1183
  %1660 = vmatpush.bf16.msra.mxu0 %v1181
  %1661 = vmatpush.bf16.msra.mxu0 %v1179
  %1662 = vmatpush.bf16.msra.mxu0 %v1177
  %1663 = vmatmul.bf16.gmra.mxu0 %v1403
  %v1664 = vpop.f32.mrf.mxu0
  %v1665 = vadd.f32 %v1646, %v1664
  %v1666 = vpop.f32.mrf.mxu0
  %v1667 = vadd.f32 %v1648, %v1666
  %1668 = vmatmul.bf16.gmra.mxu0 %v1406
  %v1669 = vpop.f32.mrf.mxu0
  %v1670 = vadd.f32 %v1651, %v1669
  %v1671 = vpop.f32.mrf.mxu0
  %v1672 = vadd.f32 %v1653, %v1671
  %1673 = vdwg.mxu0
  %1674 = vmatpush.bf16.msra.mxu0 %v984
  %1675 = vmatpush.bf16.msra.mxu0 %v982
  %1676 = vmatpush.bf16.msra.mxu0 %v980
  %1677 = vmatpush.bf16.msra.mxu0 %v978
  %1678 = vmatpush.bf16.msra.mxu0 %v976
  %1679 = vmatpush.bf16.msra.mxu0 %v974
  %1680 = vmatpush.bf16.msra.mxu0 %v972
  %1681 = vmatpush.bf16.msra.mxu0 %v970
  %1682 = vmatmul.bf16.gmra.mxu0 %v71
  %v1683 = vpop.f32.mrf.mxu0
  %v1684 = vadd.f32 %v318, %v1683
  %v1685 = vpop.f32.mrf.mxu0
  %v1686 = vadd.f32 %v318, %v1685
  %1687 = vmatmul.bf16.gmra.mxu0 %v85
  %v1688 = vpop.f32.mrf.mxu0
  %v1689 = vadd.f32 %v318, %v1688
  %v1690 = vpop.f32.mrf.mxu0
  %v1691 = vadd.f32 %v318, %v1690
  %1692 = vdwg.mxu0
  %1693 = vmatpush.bf16.msra.mxu0 %v1000
  %1694 = vmatpush.bf16.msra.mxu0 %v998
  %1695 = vmatpush.bf16.msra.mxu0 %v996
  %1696 = vmatpush.bf16.msra.mxu0 %v994
  %1697 = vmatpush.bf16.msra.mxu0 %v992
  %1698 = vmatpush.bf16.msra.mxu0 %v990
  %1699 = vmatpush.bf16.msra.mxu0 %v988
  %1700 = vmatpush.bf16.msra.mxu0 %v986
  %1701 = vmatmul.bf16.gmra.mxu0 %v72
  %v1702 = vpop.f32.mrf.mxu0
  %v1703 = vadd.f32 %v1684, %v1702
  %v1704 = vpop.f32.mrf.mxu0
  %v1705 = vadd.f32 %v1686, %v1704
  %1706 = vmatmul.bf16.gmra.mxu0 %v86
  %v1707 = vpop.f32.mrf.mxu0
  %v1708 = vadd.f32 %v1689, %v1707
  %v1709 = vpop.f32.mrf.mxu0
  %v1710 = vadd.f32 %v1691, %v1709
  %1711 = vdwg.mxu0
  %1712 = vmatpush.bf16.msra.mxu0 %v1016
  %1713 = vmatpush.bf16.msra.mxu0 %v1014
  %1714 = vmatpush.bf16.msra.mxu0 %v1012
  %1715 = vmatpush.bf16.msra.mxu0 %v1010
  %1716 = vmatpush.bf16.msra.mxu0 %v1008
  %1717 = vmatpush.bf16.msra.mxu0 %v1006
  %1718 = vmatpush.bf16.msra.mxu0 %v1004
  %1719 = vmatpush.bf16.msra.mxu0 %v1002
  %1720 = vmatmul.bf16.gmra.mxu0 %v73
  %v1721 = vpop.f32.mrf.mxu0
  %v1722 = vadd.f32 %v1703, %v1721
  %v1723 = vpop.f32.mrf.mxu0
  %v1724 = vadd.f32 %v1705, %v1723
  %1725 = vmatmul.bf16.gmra.mxu0 %v87
  %v1726 = vpop.f32.mrf.mxu0
  %v1727 = vadd.f32 %v1708, %v1726
  %v1728 = vpop.f32.mrf.mxu0
  %v1729 = vadd.f32 %v1710, %v1728
  %1730 = vdwg.mxu0
  %1731 = vmatpush.bf16.msra.mxu0 %v1032
  %1732 = vmatpush.bf16.msra.mxu0 %v1030
  %1733 = vmatpush.bf16.msra.mxu0 %v1028
  %1734 = vmatpush.bf16.msra.mxu0 %v1026
  %1735 = vmatpush.bf16.msra.mxu0 %v1024
  %1736 = vmatpush.bf16.msra.mxu0 %v1022
  %1737 = vmatpush.bf16.msra.mxu0 %v1020
  %1738 = vmatpush.bf16.msra.mxu0 %v1018
  %1739 = vmatmul.bf16.gmra.mxu0 %v74
  %v1740 = vpop.f32.mrf.mxu0
  %v1741 = vadd.f32 %v1722, %v1740
  %v1742 = vpop.f32.mrf.mxu0
  %v1743 = vadd.f32 %v1724, %v1742
  %1744 = vmatmul.bf16.gmra.mxu0 %v88
  %v1745 = vpop.f32.mrf.mxu0
  %v1746 = vadd.f32 %v1727, %v1745
  %v1747 = vpop.f32.mrf.mxu0
  %v1748 = vadd.f32 %v1729, %v1747
  %1749 = vdwg.mxu0
  %1750 = vmatpush.bf16.msra.mxu0 %v1048
  %1751 = vmatpush.bf16.msra.mxu0 %v1046
  %1752 = vmatpush.bf16.msra.mxu0 %v1044
  %1753 = vmatpush.bf16.msra.mxu0 %v1042
  %1754 = vmatpush.bf16.msra.mxu0 %v1040
  %1755 = vmatpush.bf16.msra.mxu0 %v1038
  %1756 = vmatpush.bf16.msra.mxu0 %v1036
  %1757 = vmatpush.bf16.msra.mxu0 %v1034
  %1758 = vmatmul.bf16.gmra.mxu0 %v75
  %v1759 = vpop.f32.mrf.mxu0
  %v1760 = vadd.f32 %v1741, %v1759
  %v1761 = vpop.f32.mrf.mxu0
  %v1762 = vadd.f32 %v1743, %v1761
  %1763 = vmatmul.bf16.gmra.mxu0 %v89
  %v1764 = vpop.f32.mrf.mxu0
  %v1765 = vadd.f32 %v1746, %v1764
  %v1766 = vpop.f32.mrf.mxu0
  %v1767 = vadd.f32 %v1748, %v1766
  %1768 = vdwg.mxu0
  %1769 = vmatpush.bf16.msra.mxu0 %v1064
  %1770 = vmatpush.bf16.msra.mxu0 %v1062
  %1771 = vmatpush.bf16.msra.mxu0 %v1060
  %1772 = vmatpush.bf16.msra.mxu0 %v1058
  %1773 = vmatpush.bf16.msra.mxu0 %v1056
  %1774 = vmatpush.bf16.msra.mxu0 %v1054
  %1775 = vmatpush.bf16.msra.mxu0 %v1052
  %1776 = vmatpush.bf16.msra.mxu0 %v1050
  %1777 = vmatmul.bf16.gmra.mxu0 %v76
  %v1778 = vpop.f32.mrf.mxu0
  %v1779 = vadd.f32 %v1760, %v1778
  %v1780 = vpop.f32.mrf.mxu0
  %v1781 = vadd.f32 %v1762, %v1780
  %1782 = vmatmul.bf16.gmra.mxu0 %v90
  %v1783 = vpop.f32.mrf.mxu0
  %v1784 = vadd.f32 %v1765, %v1783
  %v1785 = vpop.f32.mrf.mxu0
  %v1786 = vadd.f32 %v1767, %v1785
  %1787 = vdwg.mxu0
  %1788 = vmatpush.bf16.msra.mxu0 %v1080
  %1789 = vmatpush.bf16.msra.mxu0 %v1078
  %1790 = vmatpush.bf16.msra.mxu0 %v1076
  %1791 = vmatpush.bf16.msra.mxu0 %v1074
  %1792 = vmatpush.bf16.msra.mxu0 %v1072
  %1793 = vmatpush.bf16.msra.mxu0 %v1070
  %1794 = vmatpush.bf16.msra.mxu0 %v1068
  %1795 = vmatpush.bf16.msra.mxu0 %v1066
  %1796 = vmatmul.bf16.gmra.mxu0 %v77
  %v1797 = vpop.f32.mrf.mxu0
  %v1798 = vadd.f32 %v1779, %v1797
  %v1799 = vpop.f32.mrf.mxu0
  %v1800 = vadd.f32 %v1781, %v1799
  %1801 = vmatmul.bf16.gmra.mxu0 %v91
  %v1802 = vpop.f32.mrf.mxu0
  %v1803 = vadd.f32 %v1784, %v1802
  %v1804 = vpop.f32.mrf.mxu0
  %v1805 = vadd.f32 %v1786, %v1804
  %1806 = vdwg.mxu0
  %1807 = vmatpush.bf16.msra.mxu0 %v1096
  %1808 = vmatpush.bf16.msra.mxu0 %v1094
  %1809 = vmatpush.bf16.msra.mxu0 %v1092
  %1810 = vmatpush.bf16.msra.mxu0 %v1090
  %1811 = vmatpush.bf16.msra.mxu0 %v1088
  %1812 = vmatpush.bf16.msra.mxu0 %v1086
  %1813 = vmatpush.bf16.msra.mxu0 %v1084
  %1814 = vmatpush.bf16.msra.mxu0 %v1082
  %1815 = vmatmul.bf16.gmra.mxu0 %v78
  %v1816 = vpop.f32.mrf.mxu0
  %v1817 = vadd.f32 %v1798, %v1816
  %v1818 = vpop.f32.mrf.mxu0
  %v1819 = vadd.f32 %v1800, %v1818
  %1820 = vmatmul.bf16.gmra.mxu0 %v92
  %v1821 = vpop.f32.mrf.mxu0
  %v1822 = vadd.f32 %v1803, %v1821
  %v1823 = vpop.f32.mrf.mxu0
  %v1824 = vadd.f32 %v1805, %v1823
  %1825 = vdwg.mxu0
  %1826 = vmatpush.bf16.msra.mxu0 %v1112
  %1827 = vmatpush.bf16.msra.mxu0 %v1110
  %1828 = vmatpush.bf16.msra.mxu0 %v1108
  %1829 = vmatpush.bf16.msra.mxu0 %v1106
  %1830 = vmatpush.bf16.msra.mxu0 %v1104
  %1831 = vmatpush.bf16.msra.mxu0 %v1102
  %1832 = vmatpush.bf16.msra.mxu0 %v1100
  %1833 = vmatpush.bf16.msra.mxu0 %v1098
  %1834 = vmatmul.bf16.gmra.mxu0 %v79
  %v1835 = vpop.f32.mrf.mxu0
  %v1836 = vadd.f32 %v1817, %v1835
  %v1837 = vpop.f32.mrf.mxu0
  %v1838 = vadd.f32 %v1819, %v1837
  %1839 = vmatmul.bf16.gmra.mxu0 %v93
  %v1840 = vpop.f32.mrf.mxu0
  %v1841 = vadd.f32 %v1822, %v1840
  %v1842 = vpop.f32.mrf.mxu0
  %v1843 = vadd.f32 %v1824, %v1842
  %1844 = vdwg.mxu0
  %1845 = vmatpush.bf16.msra.mxu0 %v1128
  %1846 = vmatpush.bf16.msra.mxu0 %v1126
  %1847 = vmatpush.bf16.msra.mxu0 %v1124
  %1848 = vmatpush.bf16.msra.mxu0 %v1122
  %1849 = vmatpush.bf16.msra.mxu0 %v1120
  %1850 = vmatpush.bf16.msra.mxu0 %v1118
  %1851 = vmatpush.bf16.msra.mxu0 %v1116
  %1852 = vmatpush.bf16.msra.mxu0 %v1114
  %1853 = vmatmul.bf16.gmra.mxu0 %v80
  %v1854 = vpop.f32.mrf.mxu0
  %v1855 = vadd.f32 %v1836, %v1854
  %v1856 = vpop.f32.mrf.mxu0
  %v1857 = vadd.f32 %v1838, %v1856
  %1858 = vmatmul.bf16.gmra.mxu0 %v94
  %v1859 = vpop.f32.mrf.mxu0
  %v1860 = vadd.f32 %v1841, %v1859
  %v1861 = vpop.f32.mrf.mxu0
  %v1862 = vadd.f32 %v1843, %v1861
  %1863 = vdwg.mxu0
  %1864 = vmatpush.bf16.msra.mxu0 %v1144
  %1865 = vmatpush.bf16.msra.mxu0 %v1142
  %1866 = vmatpush.bf16.msra.mxu0 %v1140
  %1867 = vmatpush.bf16.msra.mxu0 %v1138
  %1868 = vmatpush.bf16.msra.mxu0 %v1136
  %1869 = vmatpush.bf16.msra.mxu0 %v1134
  %1870 = vmatpush.bf16.msra.mxu0 %v1132
  %1871 = vmatpush.bf16.msra.mxu0 %v1130
  %1872 = vmatmul.bf16.gmra.mxu0 %v81
  %v1873 = vpop.f32.mrf.mxu0
  %v1874 = vadd.f32 %v1855, %v1873
  %v1875 = vpop.f32.mrf.mxu0
  %v1876 = vadd.f32 %v1857, %v1875
  %1877 = vmatmul.bf16.gmra.mxu0 %v95
  %v1878 = vpop.f32.mrf.mxu0
  %v1879 = vadd.f32 %v1860, %v1878
  %v1880 = vpop.f32.mrf.mxu0
  %v1881 = vadd.f32 %v1862, %v1880
  %1882 = vdwg.mxu0
  %1883 = vmatpush.bf16.msra.mxu0 %v1160
  %1884 = vmatpush.bf16.msra.mxu0 %v1158
  %1885 = vmatpush.bf16.msra.mxu0 %v1156
  %1886 = vmatpush.bf16.msra.mxu0 %v1154
  %1887 = vmatpush.bf16.msra.mxu0 %v1152
  %1888 = vmatpush.bf16.msra.mxu0 %v1150
  %1889 = vmatpush.bf16.msra.mxu0 %v1148
  %1890 = vmatpush.bf16.msra.mxu0 %v1146
  %1891 = vmatmul.bf16.gmra.mxu0 %v82
  %v1892 = vpop.f32.mrf.mxu0
  %v1893 = vadd.f32 %v1874, %v1892
  %v1894 = vpop.f32.mrf.mxu0
  %v1895 = vadd.f32 %v1876, %v1894
  %1896 = vmatmul.bf16.gmra.mxu0 %v96
  %v1897 = vpop.f32.mrf.mxu0
  %v1898 = vadd.f32 %v1879, %v1897
  %v1899 = vpop.f32.mrf.mxu0
  %v1900 = vadd.f32 %v1881, %v1899
  %1901 = vdwg.mxu0
  %1902 = vmatpush.bf16.msra.mxu0 %v1176
  %1903 = vmatpush.bf16.msra.mxu0 %v1174
  %1904 = vmatpush.bf16.msra.mxu0 %v1172
  %1905 = vmatpush.bf16.msra.mxu0 %v1170
  %1906 = vmatpush.bf16.msra.mxu0 %v1168
  %1907 = vmatpush.bf16.msra.mxu0 %v1166
  %1908 = vmatpush.bf16.msra.mxu0 %v1164
  %1909 = vmatpush.bf16.msra.mxu0 %v1162
  %1910 = vmatmul.bf16.gmra.mxu0 %v83
  %v1911 = vpop.f32.mrf.mxu0
  %v1912 = vadd.f32 %v1893, %v1911
  %v1913 = vpop.f32.mrf.mxu0
  %v1914 = vadd.f32 %v1895, %v1913
  %1915 = vmatmul.bf16.gmra.mxu0 %v97
  %v1916 = vpop.f32.mrf.mxu0
  %v1917 = vadd.f32 %v1898, %v1916
  %v1918 = vpop.f32.mrf.mxu0
  %v1919 = vadd.f32 %v1900, %v1918
  %1920 = vdwg.mxu0
  %1921 = vmatpush.bf16.msra.mxu0 0
  %1922 = vmatpush.bf16.msra.mxu0 0
  %1923 = vmatpush.bf16.msra.mxu0 0
  %1924 = vmatpush.bf16.msra.mxu0 0
  %1925 = vmatpush.bf16.msra.mxu0 %v1184
  %1926 = vmatpush.bf16.msra.mxu0 %v1182
  %1927 = vmatpush.bf16.msra.mxu0 %v1180
  %1928 = vmatpush.bf16.msra.mxu0 %v1178
  %1929 = vmatmul.bf16.gmra.mxu0 %v1403
  %v1930 = vpop.f32.mrf.mxu0
  %v1931 = vadd.f32 %v1912, %v1930
  %v1932 = vpop.f32.mrf.mxu0
  %v1933 = vadd.f32 %v1914, %v1932
  %1934 = vmatmul.bf16.gmra.mxu0 %v1406
  %v1935 = vpop.f32.mrf.mxu0
  %v1936 = vadd.f32 %v1917, %v1935
  %v1937 = vpop.f32.mrf.mxu0
  %v1938 = vadd.f32 %v1919, %v1937
  %1939 = vdwg.mxu0
  %v1940 = vmax.f32 %v1665, 0.0
  %v1941 = vmax.f32 %v1931, 0.0
  %v1942 = vmax.f32 %v1667, 0.0
  %v1943 = vmax.f32 %v1933, 0.0
  %v1944 = vmax.f32 %v1670, 0.0
  %v1945 = vmax.f32 %v1936, 0.0
  %v1946 = vmax.f32 %v1672, 0.0
  %v1947 = vmax.f32 %v1938, 0.0
  %1948 = vst [vmem:[%s3] sm:$0xff] %v1940
  %1949 = vst.msk [vmem:[%s3 + $0x8] sm:$0xff] %vm1401, %v1941
  %1950 = vst [vmem:[%s3 + $0x10] sm:$0xff] %v1942
  %1951 = vst.msk [vmem:[%s3 + $0x18] sm:$0xff] %vm1401, %v1943
  %1952 = vst [vmem:[%s3 + $0x20] sm:$0xff] %v1944
  %1953 = vst.msk [vmem:[%s3 + $0x28] sm:$0xff] %vm1401, %v1945
  %1954 = vst [vmem:[%s3 + $0x30] sm:$0xff] %v1946
  %1955 = vst.msk [vmem:[%s3 + $0x38] sm:$0xff] %vm1401, %v1947
  // Predicated region
  $region14: #{mpii_1_forward.23} parent=0 // pred_check
    _
  $region15: #{mpii_1_forward.23} parent=0 // pred_check_branch
    %1957 = sbr.rel (0) target = $region17
  $region16: #{mpii_1_forward.23} parent=0 // pred_region
    _
  $region17: #{mpii_1_forward.23} parent=0 // pred_fallthru
    _
  // Predicated region
  $region18: #{mpii_1_forward.23} parent=0 // pred_check
    _
  $region19: #{mpii_1_forward.23} parent=0 // pred_check_branch
    %1959 = sbr.rel (0) target = $region21
  $region20: #{mpii_1_forward.23} parent=0 // pred_region
    _
  $region21: #{mpii_1_forward.23} parent=0 // pred_fallthru
    _

// kernel: mpii_1_forward.24
$region0: #{mpii_1_forward.24}
  #allocation0 [shape = 'u32[]', space=smem, size = 0x4, offset = 0x4, fixed_abs, tag = 'smem constant byte address 0x4 - core index']
  #allocation1 [shape = 'u32[72,128]{1,0:T(1,128)}', space=vmem, size = 0x9000, scoped, tag = 'internal scratch']
  %s0 = inlined_call_operand.vmem [shape: f32[32,384], index: 0, kind: input, shape index: {}]
  %s1 = inlined_call_operand.vmem [shape: bf16[384,576], index: 1, kind: input, shape index: {}]
  %s2 = inlined_call_operand.vmem [shape: f32[1,576], index: 2, kind: input, shape index: {}]
  %s3 = inlined_call_operand.vmem [shape: f32[32,576], index: 3, kind: output, shape index: {}]
  %s4 = sld [smem:[#allocation0]]
  $region22: #{mpii_1_forward.24} parent=0
    _
  %s6 = ssub.s32 1, %s4
  %s7 = scalar_select 0, %s6, %s4
  // Predicated region
  $region2: #{mpii_1_forward.24} parent=0 // pred_check
    _
  $region3: #{mpii_1_forward.24} parent=0 // pred_check_branch
    %9 = sbr.rel (0) target = $region5
  $region4: #{mpii_1_forward.24} parent=0 // pred_region
    _
  $region5: #{mpii_1_forward.24} parent=0 // pred_fallthru
    _
  // Predicated region
  $region6: #{mpii_1_forward.24} parent=0 // pred_check
    _
  $region7: #{mpii_1_forward.24} parent=0 // pred_check_branch
    %11 = sbr.rel (0) target = $region9
  $region8: #{mpii_1_forward.24} parent=0 // pred_region
    _
  $region9: #{mpii_1_forward.24} parent=0 // pred_fallthru
    _
  // Predicated region
  $region10: #{mpii_1_forward.24} parent=0 // pred_check
    _
  $region11: #{mpii_1_forward.24} parent=0 // pred_check_branch
    %13 = sbr.rel (0) target = $region13
  $region12: #{mpii_1_forward.24} parent=0 // pred_region
    _
  $region13: #{mpii_1_forward.24} parent=0 // pred_fallthru
    _
  %v14 = vld [vmem:[%s0] sm:$0xff]
  %v15 = vld [vmem:[%s0 + $0x8] sm:$0xff]
  %v16 = vld [vmem:[%s0 + $0x10] sm:$0xff]
  %v17 = vld [vmem:[%s0 + $0x18] sm:$0xff]
  %v18 = vld [vmem:[%s0 + $0x20] sm:$0xff]
  %v19 = vld [vmem:[%s0 + $0x28] sm:$0xff]
  %v20 = vld [vmem:[%s0 + $0x30] sm:$0xff]
  %v21 = vld [vmem:[%s0 + $0x38] sm:$0xff]
  %v22 = vld [vmem:[%s0 + $0x40] sm:$0xff]
  %v23 = vld [vmem:[%s0 + $0x48] sm:$0xff]
  %v24 = vld [vmem:[%s0 + $0x50] sm:$0xff]
  %v25 = vld [vmem:[%s0 + $0x58] sm:$0xff]
  %v26 = vpack.c.bf16 %v17, %v14
  %v27 = vpack.c.bf16 %v18, %v15
  %v28 = vpack.c.bf16 %v19, %v16
  %v29 = vpack.c.bf16 %v23, %v20
  %v30 = vpack.c.bf16 %v24, %v21
  %v31 = vpack.c.bf16 %v25, %v22
  %v32 = vld [vmem:[%s1] sm:$0xff]
  %v33 = vld [vmem:[%s1 + $0x8] sm:$0xff]
  %v34 = vld [vmem:[%s1 + $0x10] sm:$0xf]
  %v35 = vld [vmem:[%s1 + $0x14] sm:$0xff]
  %v36 = vld [vmem:[%s1 + $0x1c] sm:$0xff]
  %v37 = vld [vmem:[%s1 + $0x24] sm:$0xf]
  %v38 = vld [vmem:[%s1 + $0x28] sm:$0xff]
  %v39 = vld [vmem:[%s1 + $0x30] sm:$0xff]
  %v40 = vld [vmem:[%s1 + $0x38] sm:$0xf]
  %v41 = vld [vmem:[%s1 + $0x3c] sm:$0xff]
  %v42 = vld [vmem:[%s1 + $0x44] sm:$0xff]
  %v43 = vld [vmem:[%s1 + $0x4c] sm:$0xf]
  %v44 = vld [vmem:[%s1 + $0x50] sm:$0xff]
  %v45 = vld [vmem:[%s1 + $0x58] sm:$0xff]
  %v46 = vld [vmem:[%s1 + $0x60] sm:$0xf]
  %v47 = vld [vmem:[%s1 + $0x64] sm:$0xff]
  %v48 = vld [vmem:[%s1 + $0x6c] sm:$0xff]
  %v49 = vld [vmem:[%s1 + $0x74] sm:$0xf]
  %v50 = vld [vmem:[%s1 + $0x78] sm:$0xff]
  %v51 = vld [vmem:[%s1 + $0x80] sm:$0xff]
  %v52 = vld [vmem:[%s1 + $0x88] sm:$0xf]
  %v53 = vld [vmem:[%s1 + $0x8c] sm:$0xff]
  %v54 = vld [vmem:[%s1 + $0x94] sm:$0xff]
  %v55 = vld [vmem:[%s1 + $0x9c] sm:$0xf]
  %v56 = vld [vmem:[%s1 + $0xa0] sm:$0xff]
  %v57 = vld [vmem:[%s1 + $0xa8] sm:$0xff]
  %v58 = vld [vmem:[%s1 + $0xb0] sm:$0xf]
  %v59 = vld [vmem:[%s1 + $0xb4] sm:$0xff]
  %v60 = vld [vmem:[%s1 + $0xbc] sm:$0xff]
  %v61 = vld [vmem:[%s1 + $0xc4] sm:$0xf]
  %v62 = vld [vmem:[%s1 + $0xc8] sm:$0xff]
  %v63 = vld [vmem:[%s1 + $0xd0] sm:$0xff]
  %v64 = vld [vmem:[%s1 + $0xd8] sm:$0xf]
  %v65 = vld [vmem:[%s1 + $0xdc] sm:$0xff]
  %v66 = vld [vmem:[%s1 + $0xe4] sm:$0xff]
  %v67 = vld [vmem:[%s1 + $0xec] sm:$0xf]
  %v68 = vld [vmem:[%s1 + $0xf0] sm:$0xff]
  %v69 = vld [vmem:[%s1 + $0xf8] sm:$0xff]
  %v70 = vld [vmem:[%s1 + $0x100] sm:$0xf]
  %v71 = vld [vmem:[%s1 + $0x104] sm:$0xff]
  %v72 = vld [vmem:[%s1 + $0x10c] sm:$0xff]
  %v73 = vld [vmem:[%s1 + $0x114] sm:$0xf]
  %v74 = vld [vmem:[%s1 + $0x118] sm:$0xff]
  %v75 = vld [vmem:[%s1 + $0x120] sm:$0xff]
  %v76 = vld [vmem:[%s1 + $0x128] sm:$0xf]
  %v77 = vld [vmem:[%s1 + $0x12c] sm:$0xff]
  %v78 = vld [vmem:[%s1 + $0x134] sm:$0xff]
  %v79 = vld [vmem:[%s1 + $0x13c] sm:$0xf]
  %v80 = vld [vmem:[%s1 + $0x140] sm:$0xff]
  %v81 = vld [vmem:[%s1 + $0x148] sm:$0xff]
  %v82 = vld [vmem:[%s1 + $0x150] sm:$0xf]
  %v83 = vld [vmem:[%s1 + $0x154] sm:$0xff]
  %v84 = vld [vmem:[%s1 + $0x15c] sm:$0xff]
  %v85 = vld [vmem:[%s1 + $0x164] sm:$0xf]
  %v86 = vld [vmem:[%s1 + $0x168] sm:$0xff]
  %v87 = vld [vmem:[%s1 + $0x170] sm:$0xff]
  %v88 = vld [vmem:[%s1 + $0x178] sm:$0xf]
  %v89 = vld [vmem:[%s1 + $0x17c] sm:$0xff]
  %v90 = vld [vmem:[%s1 + $0x184] sm:$0xff]
  %v91 = vld [vmem:[%s1 + $0x18c] sm:$0xf]
  %v92 = vld [vmem:[%s1 + $0x190] sm:$0xff]
  %v93 = vld [vmem:[%s1 + $0x198] sm:$0xff]
  %v94 = vld [vmem:[%s1 + $0x1a0] sm:$0xf]
  %v95 = vld [vmem:[%s1 + $0x1a4] sm:$0xff]
  %v96 = vld [vmem:[%s1 + $0x1ac] sm:$0xff]
  %v97 = vld [vmem:[%s1 + $0x1b4] sm:$0xf]
  %v98 = vld [vmem:[%s1 + $0x1b8] sm:$0xff]
  %v99 = vld [vmem:[%s1 + $0x1c0] sm:$0xff]
  %v100 = vld [vmem:[%s1 + $0x1c8] sm:$0xf]
  %v101 = vld [vmem:[%s1 + $0x1cc] sm:$0xff]
  %v102 = vld [vmem:[%s1 + $0x1d4] sm:$0xff]
  %v103 = vld [vmem:[%s1 + $0x1dc] sm:$0xf]
  %v104 = vld [vmem:[%s1 + $0x1e0] sm:$0xff]
  %v105 = vld [vmem:[%s1 + $0x1e8] sm:$0xff]
  %v106 = vld [vmem:[%s1 + $0x1f0] sm:$0xf]
  %v107 = vld [vmem:[%s1 + $0x1f4] sm:$0xff]
  %v108 = vld [vmem:[%s1 + $0x1fc] sm:$0xff]
  %v109 = vld [vmem:[%s1 + $0x204] sm:$0xf]
  %v110 = vld [vmem:[%s1 + $0x208] sm:$0xff]
  %v111 = vld [vmem:[%s1 + $0x210] sm:$0xff]
  %v112 = vld [vmem:[%s1 + $0x218] sm:$0xf]
  %v113 = vld [vmem:[%s1 + $0x21c] sm:$0xff]
  %v114 = vld [vmem:[%s1 + $0x224] sm:$0xff]
  %v115 = vld [vmem:[%s1 + $0x22c] sm:$0xf]
  %v116 = vld [vmem:[%s1 + $0x230] sm:$0xff]
  %v117 = vld [vmem:[%s1 + $0x238] sm:$0xff]
  %v118 = vld [vmem:[%s1 + $0x240] sm:$0xf]
  %v119 = vld [vmem:[%s1 + $0x244] sm:$0xff]
  %v120 = vld [vmem:[%s1 + $0x24c] sm:$0xff]
  %v121 = vld [vmem:[%s1 + $0x254] sm:$0xf]
  %v122 = vld [vmem:[%s1 + $0x258] sm:$0xff]
  %v123 = vld [vmem:[%s1 + $0x260] sm:$0xff]
  %v124 = vld [vmem:[%s1 + $0x268] sm:$0xf]
  %v125 = vld [vmem:[%s1 + $0x26c] sm:$0xff]
  %v126 = vld [vmem:[%s1 + $0x274] sm:$0xff]
  %v127 = vld [vmem:[%s1 + $0x27c] sm:$0xf]
  %v128 = vld [vmem:[%s1 + $0x280] sm:$0xff]
  %v129 = vld [vmem:[%s1 + $0x288] sm:$0xff]
  %v130 = vld [vmem:[%s1 + $0x290] sm:$0xf]
  %v131 = vld [vmem:[%s1 + $0x294] sm:$0xff]
  %v132 = vld [vmem:[%s1 + $0x29c] sm:$0xff]
  %v133 = vld [vmem:[%s1 + $0x2a4] sm:$0xf]
  %v134 = vld [vmem:[%s1 + $0x2a8] sm:$0xff]
  %v135 = vld [vmem:[%s1 + $0x2b0] sm:$0xff]
  %v136 = vld [vmem:[%s1 + $0x2b8] sm:$0xf]
  %v137 = vld [vmem:[%s1 + $0x2bc] sm:$0xff]
  %v138 = vld [vmem:[%s1 + $0x2c4] sm:$0xff]
  %v139 = vld [vmem:[%s1 + $0x2cc] sm:$0xf]
  %v140 = vld [vmem:[%s1 + $0x2d0] sm:$0xff]
  %v141 = vld [vmem:[%s1 + $0x2d8] sm:$0xff]
  %v142 = vld [vmem:[%s1 + $0x2e0] sm:$0xf]
  %v143 = vld [vmem:[%s1 + $0x2e4] sm:$0xff]
  %v144 = vld [vmem:[%s1 + $0x2ec] sm:$0xff]
  %v145 = vld [vmem:[%s1 + $0x2f4] sm:$0xf]
  %v146 = vld [vmem:[%s1 + $0x2f8] sm:$0xff]
  %v147 = vld [vmem:[%s1 + $0x300] sm:$0xff]
  %v148 = vld [vmem:[%s1 + $0x308] sm:$0xf]
  %v149 = vld [vmem:[%s1 + $0x30c] sm:$0xff]
  %v150 = vld [vmem:[%s1 + $0x314] sm:$0xff]
  %v151 = vld [vmem:[%s1 + $0x31c] sm:$0xf]
  %v152 = vld [vmem:[%s1 + $0x320] sm:$0xff]
  %v153 = vld [vmem:[%s1 + $0x328] sm:$0xff]
  %v154 = vld [vmem:[%s1 + $0x330] sm:$0xf]
  %v155 = vld [vmem:[%s1 + $0x334] sm:$0xff]
  %v156 = vld [vmem:[%s1 + $0x33c] sm:$0xff]
  %v157 = vld [vmem:[%s1 + $0x344] sm:$0xf]
  %v158 = vld [vmem:[%s1 + $0x348] sm:$0xff]
  %v159 = vld [vmem:[%s1 + $0x350] sm:$0xff]
  %v160 = vld [vmem:[%s1 + $0x358] sm:$0xf]
  %v161 = vld [vmem:[%s1 + $0x35c] sm:$0xff]
  %v162 = vld [vmem:[%s1 + $0x364] sm:$0xff]
  %v163 = vld [vmem:[%s1 + $0x36c] sm:$0xf]
  %v164 = vld [vmem:[%s1 + $0x370] sm:$0xff]
  %v165 = vld [vmem:[%s1 + $0x378] sm:$0xff]
  %v166 = vld [vmem:[%s1 + $0x380] sm:$0xf]
  %v167 = vld [vmem:[%s1 + $0x384] sm:$0xff]
  %v168 = vld [vmem:[%s1 + $0x38c] sm:$0xff]
  %v169 = vld [vmem:[%s1 + $0x394] sm:$0xf]
  %v170 = vld [vmem:[%s1 + $0x398] sm:$0xff]
  %v171 = vld [vmem:[%s1 + $0x3a0] sm:$0xff]
  %v172 = vld [vmem:[%s1 + $0x3a8] sm:$0xf]
  %v173 = vld [vmem:[%s1 + $0x3ac] sm:$0xff]
  %v174 = vld [vmem:[%s1 + $0x3b4] sm:$0xff]
  %v175 = vld [vmem:[%s1 + $0x3bc] sm:$0xf]
  %v176 = vld [vmem:[%s2] sm:$0x1f]
  %v178 = vperm.slane %v176, 0
  %v179 = vperm.slane %v176, 1
  %v180 = vperm.slane %v176, 2
  %v181 = vperm.slane %v176, 3
  %v182 = vperm.slane %v176, 4
  %v332 = vunpack.c.l.b16 %v32
  %v333 = vunpack.c.h.b16 %v32
  %v334 = vunpack.c.l.b16 %v33
  %v335 = vunpack.c.h.b16 %v33
  %v336 = vunpack.c.l.b16 %v34
  %v337 = vunpack.c.l.b16 %v35
  %v338 = vunpack.c.h.b16 %v35
  %v339 = vunpack.c.l.b16 %v36
  %v340 = vunpack.c.h.b16 %v36
  %v341 = vunpack.c.l.b16 %v37
  %v342 = vunpack.c.l.b16 %v38
  %v343 = vunpack.c.h.b16 %v38
  %v344 = vunpack.c.l.b16 %v39
  %v345 = vunpack.c.h.b16 %v39
  %v346 = vunpack.c.l.b16 %v40
  %v347 = vunpack.c.l.b16 %v41
  %v348 = vunpack.c.h.b16 %v41
  %v349 = vunpack.c.l.b16 %v42
  %v350 = vunpack.c.h.b16 %v42
  %v351 = vunpack.c.l.b16 %v43
  %v352 = vunpack.c.l.b16 %v44
  %v353 = vunpack.c.h.b16 %v44
  %v354 = vunpack.c.l.b16 %v45
  %v355 = vunpack.c.h.b16 %v45
  %v356 = vunpack.c.l.b16 %v46
  %v357 = vunpack.c.l.b16 %v47
  %v358 = vunpack.c.h.b16 %v47
  %v359 = vunpack.c.l.b16 %v48
  %v360 = vunpack.c.h.b16 %v48
  %v361 = vunpack.c.l.b16 %v49
  %v362 = vunpack.c.l.b16 %v50
  %v363 = vunpack.c.h.b16 %v50
  %v364 = vunpack.c.l.b16 %v51
  %v365 = vunpack.c.h.b16 %v51
  %v366 = vunpack.c.l.b16 %v52
  %v367 = vunpack.c.l.b16 %v53
  %v368 = vunpack.c.h.b16 %v53
  %v369 = vunpack.c.l.b16 %v54
  %v370 = vunpack.c.h.b16 %v54
  %v371 = vunpack.c.l.b16 %v55
  %v372 = vunpack.c.l.b16 %v56
  %v373 = vunpack.c.h.b16 %v56
  %v374 = vunpack.c.l.b16 %v57
  %v375 = vunpack.c.h.b16 %v57
  %v376 = vunpack.c.l.b16 %v58
  %v377 = vunpack.c.l.b16 %v59
  %v378 = vunpack.c.h.b16 %v59
  %v379 = vunpack.c.l.b16 %v60
  %v380 = vunpack.c.h.b16 %v60
  %v381 = vunpack.c.l.b16 %v61
  %v382 = vunpack.c.l.b16 %v62
  %v383 = vunpack.c.h.b16 %v62
  %v384 = vunpack.c.l.b16 %v63
  %v385 = vunpack.c.h.b16 %v63
  %v386 = vunpack.c.l.b16 %v64
  %v387 = vunpack.c.l.b16 %v65
  %v388 = vunpack.c.h.b16 %v65
  %v389 = vunpack.c.l.b16 %v66
  %v390 = vunpack.c.h.b16 %v66
  %v391 = vunpack.c.l.b16 %v67
  %v392 = vunpack.c.l.b16 %v68
  %v393 = vunpack.c.h.b16 %v68
  %v394 = vunpack.c.l.b16 %v69
  %v395 = vunpack.c.h.b16 %v69
  %v396 = vunpack.c.l.b16 %v70
  %v397 = vunpack.c.l.b16 %v71
  %v398 = vunpack.c.h.b16 %v71
  %v399 = vunpack.c.l.b16 %v72
  %v400 = vunpack.c.h.b16 %v72
  %v401 = vunpack.c.l.b16 %v73
  %v402 = vunpack.c.l.b16 %v74
  %v403 = vunpack.c.h.b16 %v74
  %v404 = vunpack.c.l.b16 %v75
  %v405 = vunpack.c.h.b16 %v75
  %v406 = vunpack.c.l.b16 %v76
  %v407 = vunpack.c.l.b16 %v77
  %v408 = vunpack.c.h.b16 %v77
  %v409 = vunpack.c.l.b16 %v78
  %v410 = vunpack.c.h.b16 %v78
  %v411 = vunpack.c.l.b16 %v79
  %v412 = vunpack.c.l.b16 %v80
  %v413 = vunpack.c.h.b16 %v80
  %v414 = vunpack.c.l.b16 %v81
  %v415 = vunpack.c.h.b16 %v81
  %v416 = vunpack.c.l.b16 %v82
  %v417 = vunpack.c.l.b16 %v83
  %v418 = vunpack.c.h.b16 %v83
  %v419 = vunpack.c.l.b16 %v84
  %v420 = vunpack.c.h.b16 %v84
  %v421 = vunpack.c.l.b16 %v85
  %v422 = vunpack.c.l.b16 %v86
  %v423 = vunpack.c.h.b16 %v86
  %v424 = vunpack.c.l.b16 %v87
  %v425 = vunpack.c.h.b16 %v87
  %v426 = vunpack.c.l.b16 %v88
  %v427 = vunpack.c.l.b16 %v89
  %v428 = vunpack.c.h.b16 %v89
  %v429 = vunpack.c.l.b16 %v90
  %v430 = vunpack.c.h.b16 %v90
  %v431 = vunpack.c.l.b16 %v91
  %v432 = vunpack.c.l.b16 %v92
  %v433 = vunpack.c.h.b16 %v92
  %v434 = vunpack.c.l.b16 %v93
  %v435 = vunpack.c.h.b16 %v93
  %v436 = vunpack.c.l.b16 %v94
  %v437 = vunpack.c.l.b16 %v95
  %v438 = vunpack.c.h.b16 %v95
  %v439 = vunpack.c.l.b16 %v96
  %v440 = vunpack.c.h.b16 %v96
  %v441 = vunpack.c.l.b16 %v97
  %v442 = vunpack.c.l.b16 %v98
  %v443 = vunpack.c.h.b16 %v98
  %v444 = vunpack.c.l.b16 %v99
  %v445 = vunpack.c.h.b16 %v99
  %v446 = vunpack.c.l.b16 %v100
  %v447 = vunpack.c.l.b16 %v101
  %v448 = vunpack.c.h.b16 %v101
  %v449 = vunpack.c.l.b16 %v102
  %v450 = vunpack.c.h.b16 %v102
  %v451 = vunpack.c.l.b16 %v103
  %v452 = vunpack.c.l.b16 %v104
  %v453 = vunpack.c.h.b16 %v104
  %v454 = vunpack.c.l.b16 %v105
  %v455 = vunpack.c.h.b16 %v105
  %v456 = vunpack.c.l.b16 %v106
  %v457 = vunpack.c.l.b16 %v107
  %v458 = vunpack.c.h.b16 %v107
  %v459 = vunpack.c.l.b16 %v108
  %v460 = vunpack.c.h.b16 %v108
  %v461 = vunpack.c.l.b16 %v109
  %v462 = vunpack.c.l.b16 %v110
  %v463 = vunpack.c.h.b16 %v110
  %v464 = vunpack.c.l.b16 %v111
  %v465 = vunpack.c.h.b16 %v111
  %v466 = vunpack.c.l.b16 %v112
  %v467 = vunpack.c.l.b16 %v113
  %v468 = vunpack.c.h.b16 %v113
  %v469 = vunpack.c.l.b16 %v114
  %v470 = vunpack.c.h.b16 %v114
  %v471 = vunpack.c.l.b16 %v115
  %v472 = vunpack.c.l.b16 %v116
  %v473 = vunpack.c.h.b16 %v116
  %v474 = vunpack.c.l.b16 %v117
  %v475 = vunpack.c.h.b16 %v117
  %v476 = vunpack.c.l.b16 %v118
  %v477 = vunpack.c.l.b16 %v119
  %v478 = vunpack.c.h.b16 %v119
  %v479 = vunpack.c.l.b16 %v120
  %v480 = vunpack.c.h.b16 %v120
  %v481 = vunpack.c.l.b16 %v121
  %v482 = vunpack.c.l.b16 %v122
  %v483 = vunpack.c.h.b16 %v122
  %v484 = vunpack.c.l.b16 %v123
  %v485 = vunpack.c.h.b16 %v123
  %v486 = vunpack.c.l.b16 %v124
  %v487 = vunpack.c.l.b16 %v125
  %v488 = vunpack.c.h.b16 %v125
  %v489 = vunpack.c.l.b16 %v126
  %v490 = vunpack.c.h.b16 %v126
  %v491 = vunpack.c.l.b16 %v127
  %v492 = vunpack.c.l.b16 %v128
  %v493 = vunpack.c.h.b16 %v128
  %v494 = vunpack.c.l.b16 %v129
  %v495 = vunpack.c.h.b16 %v129
  %v496 = vunpack.c.l.b16 %v130
  %v497 = vunpack.c.l.b16 %v131
  %v498 = vunpack.c.h.b16 %v131
  %v499 = vunpack.c.l.b16 %v132
  %v500 = vunpack.c.h.b16 %v132
  %v501 = vunpack.c.l.b16 %v133
  %v502 = vunpack.c.l.b16 %v134
  %v503 = vunpack.c.h.b16 %v134
  %v504 = vunpack.c.l.b16 %v135
  %v505 = vunpack.c.h.b16 %v135
  %v506 = vunpack.c.l.b16 %v136
  %v507 = vunpack.c.l.b16 %v137
  %v508 = vunpack.c.h.b16 %v137
  %v509 = vunpack.c.l.b16 %v138
  %v510 = vunpack.c.h.b16 %v138
  %v511 = vunpack.c.l.b16 %v139
  %v512 = vunpack.c.l.b16 %v140
  %v513 = vunpack.c.h.b16 %v140
  %v514 = vunpack.c.l.b16 %v141
  %v515 = vunpack.c.h.b16 %v141
  %v516 = vunpack.c.l.b16 %v142
  %v517 = vunpack.c.l.b16 %v143
  %v518 = vunpack.c.h.b16 %v143
  %v519 = vunpack.c.l.b16 %v144
  %v520 = vunpack.c.h.b16 %v144
  %v521 = vunpack.c.l.b16 %v145
  %v522 = vunpack.c.l.b16 %v146
  %v523 = vunpack.c.h.b16 %v146
  %v524 = vunpack.c.l.b16 %v147
  %v525 = vunpack.c.h.b16 %v147
  %v526 = vunpack.c.l.b16 %v148
  %v527 = vunpack.c.l.b16 %v149
  %v528 = vunpack.c.h.b16 %v149
  %v529 = vunpack.c.l.b16 %v150
  %v530 = vunpack.c.h.b16 %v150
  %v531 = vunpack.c.l.b16 %v151
  %v532 = vunpack.c.l.b16 %v152
  %v533 = vunpack.c.h.b16 %v152
  %v534 = vunpack.c.l.b16 %v153
  %v535 = vunpack.c.h.b16 %v153
  %v536 = vunpack.c.l.b16 %v154
  %v537 = vunpack.c.l.b16 %v155
  %v538 = vunpack.c.h.b16 %v155
  %v539 = vunpack.c.l.b16 %v156
  %v540 = vunpack.c.h.b16 %v156
  %v541 = vunpack.c.l.b16 %v157
  %v542 = vunpack.c.l.b16 %v158
  %v543 = vunpack.c.h.b16 %v158
  %v544 = vunpack.c.l.b16 %v159
  %v545 = vunpack.c.h.b16 %v159
  %v546 = vunpack.c.l.b16 %v160
  %v547 = vunpack.c.l.b16 %v161
  %v548 = vunpack.c.h.b16 %v161
  %v549 = vunpack.c.l.b16 %v162
  %v550 = vunpack.c.h.b16 %v162
  %v551 = vunpack.c.l.b16 %v163
  %v552 = vunpack.c.l.b16 %v164
  %v553 = vunpack.c.h.b16 %v164
  %v554 = vunpack.c.l.b16 %v165
  %v555 = vunpack.c.h.b16 %v165
  %v556 = vunpack.c.l.b16 %v166
  %v557 = vunpack.c.l.b16 %v167
  %v558 = vunpack.c.h.b16 %v167
  %v559 = vunpack.c.l.b16 %v168
  %v560 = vunpack.c.h.b16 %v168
  %v561 = vunpack.c.l.b16 %v169
  %v562 = vunpack.c.l.b16 %v170
  %v563 = vunpack.c.h.b16 %v170
  %v564 = vunpack.c.l.b16 %v171
  %v565 = vunpack.c.h.b16 %v171
  %v566 = vunpack.c.l.b16 %v172
  %v567 = vunpack.c.l.b16 %v173
  %v568 = vunpack.c.h.b16 %v173
  %v569 = vunpack.c.l.b16 %v174
  %v570 = vunpack.c.h.b16 %v174
  %v571 = vunpack.c.l.b16 %v175
  %v572 = vpack.c.b16 %v337, %v332
  %v573 = vpack.c.b16 %v338, %v333
  %v574 = vpack.c.b16 %v339, %v334
  %v575 = vpack.c.b16 %v340, %v335
  %v576 = vpack.c.b16 %v341, %v336
  %v577 = vpack.c.b16 %v347, %v342
  %v578 = vpack.c.b16 %v348, %v343
  %v579 = vpack.c.b16 %v349, %v344
  %v580 = vpack.c.b16 %v350, %v345
  %v581 = vpack.c.b16 %v351, %v346
  %v582 = vpack.c.b16 %v357, %v352
  %v583 = vpack.c.b16 %v358, %v353
  %v584 = vpack.c.b16 %v359, %v354
  %v585 = vpack.c.b16 %v360, %v355
  %v586 = vpack.c.b16 %v361, %v356
  %v587 = vpack.c.b16 %v367, %v362
  %v588 = vpack.c.b16 %v368, %v363
  %v589 = vpack.c.b16 %v369, %v364
  %v590 = vpack.c.b16 %v370, %v365
  %v591 = vpack.c.b16 %v371, %v366
  %v592 = vpack.c.b16 %v377, %v372
  %v593 = vpack.c.b16 %v378, %v373
  %v594 = vpack.c.b16 %v379, %v374
  %v595 = vpack.c.b16 %v380, %v375
  %v596 = vpack.c.b16 %v381, %v376
  %v597 = vpack.c.b16 %v387, %v382
  %v598 = vpack.c.b16 %v388, %v383
  %v599 = vpack.c.b16 %v389, %v384
  %v600 = vpack.c.b16 %v390, %v385
  %v601 = vpack.c.b16 %v391, %v386
  %v602 = vpack.c.b16 %v397, %v392
  %v603 = vpack.c.b16 %v398, %v393
  %v604 = vpack.c.b16 %v399, %v394
  %v605 = vpack.c.b16 %v400, %v395
  %v606 = vpack.c.b16 %v401, %v396
  %v607 = vpack.c.b16 %v407, %v402
  %v608 = vpack.c.b16 %v408, %v403
  %v609 = vpack.c.b16 %v409, %v404
  %v610 = vpack.c.b16 %v410, %v405
  %v611 = vpack.c.b16 %v411, %v406
  %v612 = vpack.c.b16 %v417, %v412
  %v613 = vpack.c.b16 %v418, %v413
  %v614 = vpack.c.b16 %v419, %v414
  %v615 = vpack.c.b16 %v420, %v415
  %v616 = vpack.c.b16 %v421, %v416
  %v617 = vpack.c.b16 %v427, %v422
  %v618 = vpack.c.b16 %v428, %v423
  %v619 = vpack.c.b16 %v429, %v424
  %v620 = vpack.c.b16 %v430, %v425
  %v621 = vpack.c.b16 %v431, %v426
  %v622 = vpack.c.b16 %v437, %v432
  %v623 = vpack.c.b16 %v438, %v433
  %v624 = vpack.c.b16 %v439, %v434
  %v625 = vpack.c.b16 %v440, %v435
  %v626 = vpack.c.b16 %v441, %v436
  %v627 = vpack.c.b16 %v447, %v442
  %v628 = vpack.c.b16 %v448, %v443
  %v629 = vpack.c.b16 %v449, %v444
  %v630 = vpack.c.b16 %v450, %v445
  %v631 = vpack.c.b16 %v451, %v446
  %v632 = vpack.c.b16 %v457, %v452
  %v633 = vpack.c.b16 %v458, %v453
  %v634 = vpack.c.b16 %v459, %v454
  %v635 = vpack.c.b16 %v460, %v455
  %v636 = vpack.c.b16 %v461, %v456
  %v637 = vpack.c.b16 %v467, %v462
  %v638 = vpack.c.b16 %v468, %v463
  %v639 = vpack.c.b16 %v469, %v464
  %v640 = vpack.c.b16 %v470, %v465
  %v641 = vpack.c.b16 %v471, %v466
  %v642 = vpack.c.b16 %v477, %v472
  %v643 = vpack.c.b16 %v478, %v473
  %v644 = vpack.c.b16 %v479, %v474
  %v645 = vpack.c.b16 %v480, %v475
  %v646 = vpack.c.b16 %v481, %v476
  %v647 = vpack.c.b16 %v487, %v482
  %v648 = vpack.c.b16 %v488, %v483
  %v649 = vpack.c.b16 %v489, %v484
  %v650 = vpack.c.b16 %v490, %v485
  %v651 = vpack.c.b16 %v491, %v486
  %v652 = vpack.c.b16 %v497, %v492
  %v653 = vpack.c.b16 %v498, %v493
  %v654 = vpack.c.b16 %v499, %v494
  %v655 = vpack.c.b16 %v500, %v495
  %v656 = vpack.c.b16 %v501, %v496
  %v657 = vpack.c.b16 %v507, %v502
  %v658 = vpack.c.b16 %v508, %v503
  %v659 = vpack.c.b16 %v509, %v504
  %v660 = vpack.c.b16 %v510, %v505
  %v661 = vpack.c.b16 %v511, %v506
  %v662 = vpack.c.b16 %v517, %v512
  %v663 = vpack.c.b16 %v518, %v513
  %v664 = vpack.c.b16 %v519, %v514
  %v665 = vpack.c.b16 %v520, %v515
  %v666 = vpack.c.b16 %v521, %v516
  %v667 = vpack.c.b16 %v527, %v522
  %v668 = vpack.c.b16 %v528, %v523
  %v669 = vpack.c.b16 %v529, %v524
  %v670 = vpack.c.b16 %v530, %v525
  %v671 = vpack.c.b16 %v531, %v526
  %v672 = vpack.c.b16 %v537, %v532
  %v673 = vpack.c.b16 %v538, %v533
  %v674 = vpack.c.b16 %v539, %v534
  %v675 = vpack.c.b16 %v540, %v535
  %v676 = vpack.c.b16 %v541, %v536
  %v677 = vpack.c.b16 %v547, %v542
  %v678 = vpack.c.b16 %v548, %v543
  %v679 = vpack.c.b16 %v549, %v544
  %v680 = vpack.c.b16 %v550, %v545
  %v681 = vpack.c.b16 %v551, %v546
  %v682 = vpack.c.b16 %v557, %v552
  %v683 = vpack.c.b16 %v558, %v553
  %v684 = vpack.c.b16 %v559, %v554
  %v685 = vpack.c.b16 %v560, %v555
  %v686 = vpack.c.b16 %v561, %v556
  %v687 = vpack.c.b16 %v567, %v562
  %v688 = vpack.c.b16 %v568, %v563
  %v689 = vpack.c.b16 %v569, %v564
  %v690 = vpack.c.b16 %v570, %v565
  %v691 = vpack.c.b16 %v571, %v566
  %812 = vmatpush.bf16.msra.mxu0 %v607
  %813 = vmatpush.bf16.msra.mxu0 %v602
  %814 = vmatpush.bf16.msra.mxu0 %v597
  %815 = vmatpush.bf16.msra.mxu0 %v592
  %816 = vmatpush.bf16.msra.mxu0 %v587
  %817 = vmatpush.bf16.msra.mxu0 %v582
  %818 = vmatpush.bf16.msra.mxu0 %v577
  %819 = vmatpush.bf16.msra.mxu0 %v572
  %820 = vmatmul.bf16.gmra.mxu0 %v26
  %v821 = vpop.f32.mrf.mxu0
  %v822 = vadd.f32 %v178, %v821
  %v823 = vpop.f32.mrf.mxu0
  %v824 = vadd.f32 %v178, %v823
  %825 = vmatmul.bf16.gmra.mxu0 %v29
  %v826 = vpop.f32.mrf.mxu0
  %v827 = vadd.f32 %v178, %v826
  %v828 = vpop.f32.mrf.mxu0
  %v829 = vadd.f32 %v178, %v828
  %830 = vdwg.mxu0
  %831 = vmatpush.bf16.msra.mxu0 %v647
  %832 = vmatpush.bf16.msra.mxu0 %v642
  %833 = vmatpush.bf16.msra.mxu0 %v637
  %834 = vmatpush.bf16.msra.mxu0 %v632
  %835 = vmatpush.bf16.msra.mxu0 %v627
  %836 = vmatpush.bf16.msra.mxu0 %v622
  %837 = vmatpush.bf16.msra.mxu0 %v617
  %838 = vmatpush.bf16.msra.mxu0 %v612
  %839 = vmatmul.bf16.gmra.mxu0 %v27
  %v840 = vpop.f32.mrf.mxu0
  %v841 = vadd.f32 %v822, %v840
  %v842 = vpop.f32.mrf.mxu0
  %v843 = vadd.f32 %v824, %v842
  %844 = vmatmul.bf16.gmra.mxu0 %v30
  %v845 = vpop.f32.mrf.mxu0
  %v846 = vadd.f32 %v827, %v845
  %v847 = vpop.f32.mrf.mxu0
  %v848 = vadd.f32 %v829, %v847
  %849 = vdwg.mxu0
  %850 = vmatpush.bf16.msra.mxu0 %v687
  %851 = vmatpush.bf16.msra.mxu0 %v682
  %852 = vmatpush.bf16.msra.mxu0 %v677
  %853 = vmatpush.bf16.msra.mxu0 %v672
  %854 = vmatpush.bf16.msra.mxu0 %v667
  %855 = vmatpush.bf16.msra.mxu0 %v662
  %856 = vmatpush.bf16.msra.mxu0 %v657
  %857 = vmatpush.bf16.msra.mxu0 %v652
  %858 = vmatmul.bf16.gmra.mxu0 %v28
  %v859 = vpop.f32.mrf.mxu0
  %v860 = vadd.f32 %v841, %v859
  %v861 = vpop.f32.mrf.mxu0
  %v862 = vadd.f32 %v843, %v861
  %863 = vmatmul.bf16.gmra.mxu0 %v31
  %v864 = vpop.f32.mrf.mxu0
  %v865 = vadd.f32 %v846, %v864
  %v866 = vpop.f32.mrf.mxu0
  %v867 = vadd.f32 %v848, %v866
  %868 = vdwg.mxu0
  %869 = vmatpush.bf16.msra.mxu0 %v608
  %870 = vmatpush.bf16.msra.mxu0 %v603
  %871 = vmatpush.bf16.msra.mxu0 %v598
  %872 = vmatpush.bf16.msra.mxu0 %v593
  %873 = vmatpush.bf16.msra.mxu0 %v588
  %874 = vmatpush.bf16.msra.mxu0 %v583
  %875 = vmatpush.bf16.msra.mxu0 %v578
  %876 = vmatpush.bf16.msra.mxu0 %v573
  %877 = vmatmul.bf16.gmra.mxu0 %v26
  %v878 = vpop.f32.mrf.mxu0
  %v879 = vadd.f32 %v179, %v878
  %v880 = vpop.f32.mrf.mxu0
  %v881 = vadd.f32 %v179, %v880
  %882 = vmatmul.bf16.gmra.mxu0 %v29
  %v883 = vpop.f32.mrf.mxu0
  %v884 = vadd.f32 %v179, %v883
  %v885 = vpop.f32.mrf.mxu0
  %v886 = vadd.f32 %v179, %v885
  %887 = vdwg.mxu0
  %888 = vmatpush.bf16.msra.mxu0 %v648
  %889 = vmatpush.bf16.msra.mxu0 %v643
  %890 = vmatpush.bf16.msra.mxu0 %v638
  %891 = vmatpush.bf16.msra.mxu0 %v633
  %892 = vmatpush.bf16.msra.mxu0 %v628
  %893 = vmatpush.bf16.msra.mxu0 %v623
  %894 = vmatpush.bf16.msra.mxu0 %v618
  %895 = vmatpush.bf16.msra.mxu0 %v613
  %896 = vmatmul.bf16.gmra.mxu0 %v27
  %v897 = vpop.f32.mrf.mxu0
  %v898 = vadd.f32 %v879, %v897
  %v899 = vpop.f32.mrf.mxu0
  %v900 = vadd.f32 %v881, %v899
  %901 = vmatmul.bf16.gmra.mxu0 %v30
  %v902 = vpop.f32.mrf.mxu0
  %v903 = vadd.f32 %v884, %v902
  %v904 = vpop.f32.mrf.mxu0
  %v905 = vadd.f32 %v886, %v904
  %906 = vdwg.mxu0
  %907 = vmatpush.bf16.msra.mxu0 %v688
  %908 = vmatpush.bf16.msra.mxu0 %v683
  %909 = vmatpush.bf16.msra.mxu0 %v678
  %910 = vmatpush.bf16.msra.mxu0 %v673
  %911 = vmatpush.bf16.msra.mxu0 %v668
  %912 = vmatpush.bf16.msra.mxu0 %v663
  %913 = vmatpush.bf16.msra.mxu0 %v658
  %914 = vmatpush.bf16.msra.mxu0 %v653
  %915 = vmatmul.bf16.gmra.mxu0 %v28
  %v916 = vpop.f32.mrf.mxu0
  %v917 = vadd.f32 %v898, %v916
  %v918 = vpop.f32.mrf.mxu0
  %v919 = vadd.f32 %v900, %v918
  %920 = vmatmul.bf16.gmra.mxu0 %v31
  %v921 = vpop.f32.mrf.mxu0
  %v922 = vadd.f32 %v903, %v921
  %v923 = vpop.f32.mrf.mxu0
  %v924 = vadd.f32 %v905, %v923
  %925 = vdwg.mxu0
  %926 = vmatpush.bf16.msra.mxu0 %v609
  %927 = vmatpush.bf16.msra.mxu0 %v604
  %928 = vmatpush.bf16.msra.mxu0 %v599
  %929 = vmatpush.bf16.msra.mxu0 %v594
  %930 = vmatpush.bf16.msra.mxu0 %v589
  %931 = vmatpush.bf16.msra.mxu0 %v584
  %932 = vmatpush.bf16.msra.mxu0 %v579
  %933 = vmatpush.bf16.msra.mxu0 %v574
  %934 = vmatmul.bf16.gmra.mxu0 %v26
  %v935 = vpop.f32.mrf.mxu0
  %v936 = vadd.f32 %v180, %v935
  %v937 = vpop.f32.mrf.mxu0
  %v938 = vadd.f32 %v180, %v937
  %939 = vmatmul.bf16.gmra.mxu0 %v29
  %v940 = vpop.f32.mrf.mxu0
  %v941 = vadd.f32 %v180, %v940
  %v942 = vpop.f32.mrf.mxu0
  %v943 = vadd.f32 %v180, %v942
  %944 = vdwg.mxu0
  %945 = vmatpush.bf16.msra.mxu0 %v649
  %946 = vmatpush.bf16.msra.mxu0 %v644
  %947 = vmatpush.bf16.msra.mxu0 %v639
  %948 = vmatpush.bf16.msra.mxu0 %v634
  %949 = vmatpush.bf16.msra.mxu0 %v629
  %950 = vmatpush.bf16.msra.mxu0 %v624
  %951 = vmatpush.bf16.msra.mxu0 %v619
  %952 = vmatpush.bf16.msra.mxu0 %v614
  %953 = vmatmul.bf16.gmra.mxu0 %v27
  %v954 = vpop.f32.mrf.mxu0
  %v955 = vadd.f32 %v936, %v954
  %v956 = vpop.f32.mrf.mxu0
  %v957 = vadd.f32 %v938, %v956
  %958 = vmatmul.bf16.gmra.mxu0 %v30
  %v959 = vpop.f32.mrf.mxu0
  %v960 = vadd.f32 %v941, %v959
  %v961 = vpop.f32.mrf.mxu0
  %v962 = vadd.f32 %v943, %v961
  %963 = vdwg.mxu0
  %964 = vmatpush.bf16.msra.mxu0 %v689
  %965 = vmatpush.bf16.msra.mxu0 %v684
  %966 = vmatpush.bf16.msra.mxu0 %v679
  %967 = vmatpush.bf16.msra.mxu0 %v674
  %968 = vmatpush.bf16.msra.mxu0 %v669
  %969 = vmatpush.bf16.msra.mxu0 %v664
  %970 = vmatpush.bf16.msra.mxu0 %v659
  %971 = vmatpush.bf16.msra.mxu0 %v654
  %972 = vmatmul.bf16.gmra.mxu0 %v28
  %v973 = vpop.f32.mrf.mxu0
  %v974 = vadd.f32 %v955, %v973
  %v975 = vpop.f32.mrf.mxu0
  %v976 = vadd.f32 %v957, %v975
  %977 = vmatmul.bf16.gmra.mxu0 %v31
  %v978 = vpop.f32.mrf.mxu0
  %v979 = vadd.f32 %v960, %v978
  %v980 = vpop.f32.mrf.mxu0
  %v981 = vadd.f32 %v962, %v980
  %982 = vdwg.mxu0
  %983 = vmatpush.bf16.msra.mxu0 %v610
  %984 = vmatpush.bf16.msra.mxu0 %v605
  %985 = vmatpush.bf16.msra.mxu0 %v600
  %986 = vmatpush.bf16.msra.mxu0 %v595
  %987 = vmatpush.bf16.msra.mxu0 %v590
  %988 = vmatpush.bf16.msra.mxu0 %v585
  %989 = vmatpush.bf16.msra.mxu0 %v580
  %990 = vmatpush.bf16.msra.mxu0 %v575
  %991 = vmatmul.bf16.gmra.mxu0 %v26
  %v992 = vpop.f32.mrf.mxu0
  %v993 = vadd.f32 %v181, %v992
  %v994 = vpop.f32.mrf.mxu0
  %v995 = vadd.f32 %v181, %v994
  %996 = vmatmul.bf16.gmra.mxu0 %v29
  %v997 = vpop.f32.mrf.mxu0
  %v998 = vadd.f32 %v181, %v997
  %v999 = vpop.f32.mrf.mxu0
  %v1000 = vadd.f32 %v181, %v999
  %1001 = vdwg.mxu0
  %1002 = vmatpush.bf16.msra.mxu0 %v650
  %1003 = vmatpush.bf16.msra.mxu0 %v645
  %1004 = vmatpush.bf16.msra.mxu0 %v640
  %1005 = vmatpush.bf16.msra.mxu0 %v635
  %1006 = vmatpush.bf16.msra.mxu0 %v630
  %1007 = vmatpush.bf16.msra.mxu0 %v625
  %1008 = vmatpush.bf16.msra.mxu0 %v620
  %1009 = vmatpush.bf16.msra.mxu0 %v615
  %1010 = vmatmul.bf16.gmra.mxu0 %v27
  %v1011 = vpop.f32.mrf.mxu0
  %v1012 = vadd.f32 %v993, %v1011
  %v1013 = vpop.f32.mrf.mxu0
  %v1014 = vadd.f32 %v995, %v1013
  %1015 = vmatmul.bf16.gmra.mxu0 %v30
  %v1016 = vpop.f32.mrf.mxu0
  %v1017 = vadd.f32 %v998, %v1016
  %v1018 = vpop.f32.mrf.mxu0
  %v1019 = vadd.f32 %v1000, %v1018
  %1020 = vdwg.mxu0
  %1021 = vmatpush.bf16.msra.mxu0 %v690
  %1022 = vmatpush.bf16.msra.mxu0 %v685
  %1023 = vmatpush.bf16.msra.mxu0 %v680
  %1024 = vmatpush.bf16.msra.mxu0 %v675
  %1025 = vmatpush.bf16.msra.mxu0 %v670
  %1026 = vmatpush.bf16.msra.mxu0 %v665
  %1027 = vmatpush.bf16.msra.mxu0 %v660
  %1028 = vmatpush.bf16.msra.mxu0 %v655
  %1029 = vmatmul.bf16.gmra.mxu0 %v28
  %v1030 = vpop.f32.mrf.mxu0
  %v1031 = vadd.f32 %v1012, %v1030
  %v1032 = vpop.f32.mrf.mxu0
  %v1033 = vadd.f32 %v1014, %v1032
  %1034 = vmatmul.bf16.gmra.mxu0 %v31
  %v1035 = vpop.f32.mrf.mxu0
  %v1036 = vadd.f32 %v1017, %v1035
  %v1037 = vpop.f32.mrf.mxu0
  %v1038 = vadd.f32 %v1019, %v1037
  %1039 = vdwg.mxu0
  %1040 = vmatpush.bf16.msra.mxu0 %v611
  %1041 = vmatpush.bf16.msra.mxu0 %v606
  %1042 = vmatpush.bf16.msra.mxu0 %v601
  %1043 = vmatpush.bf16.msra.mxu0 %v596
  %1044 = vmatpush.bf16.msra.mxu0 %v591
  %1045 = vmatpush.bf16.msra.mxu0 %v586
  %1046 = vmatpush.bf16.msra.mxu0 %v581
  %1047 = vmatpush.bf16.msra.mxu0 %v576
  %1048 = vmatmul.bf16.gmra.mxu0 %v26
  %v1049 = vpop.f32.mrf.mxu0
  %v1050 = vadd.f32 %v182, %v1049
  %v1051 = vpop.f32.mrf.mxu0
  %v1052 = vadd.f32 %v182, %v1051
  %1053 = vmatmul.bf16.gmra.mxu0 %v29
  %v1054 = vpop.f32.mrf.mxu0
  %v1055 = vadd.f32 %v182, %v1054
  %v1056 = vpop.f32.mrf.mxu0
  %v1057 = vadd.f32 %v182, %v1056
  %1058 = vdwg.mxu0
  %1059 = vmatpush.bf16.msra.mxu0 %v651
  %1060 = vmatpush.bf16.msra.mxu0 %v646
  %1061 = vmatpush.bf16.msra.mxu0 %v641
  %1062 = vmatpush.bf16.msra.mxu0 %v636
  %1063 = vmatpush.bf16.msra.mxu0 %v631
  %1064 = vmatpush.bf16.msra.mxu0 %v626
  %1065 = vmatpush.bf16.msra.mxu0 %v621
  %1066 = vmatpush.bf16.msra.mxu0 %v616
  %1067 = vmatmul.bf16.gmra.mxu0 %v27
  %v1068 = vpop.f32.mrf.mxu0
  %v1069 = vadd.f32 %v1050, %v1068
  %v1070 = vpop.f32.mrf.mxu0
  %v1071 = vadd.f32 %v1052, %v1070
  %1072 = vmatmul.bf16.gmra.mxu0 %v30
  %v1073 = vpop.f32.mrf.mxu0
  %v1074 = vadd.f32 %v1055, %v1073
  %v1075 = vpop.f32.mrf.mxu0
  %v1076 = vadd.f32 %v1057, %v1075
  %1077 = vdwg.mxu0
  %1078 = vmatpush.bf16.msra.mxu0 %v691
  %1079 = vmatpush.bf16.msra.mxu0 %v686
  %1080 = vmatpush.bf16.msra.mxu0 %v681
  %1081 = vmatpush.bf16.msra.mxu0 %v676
  %1082 = vmatpush.bf16.msra.mxu0 %v671
  %1083 = vmatpush.bf16.msra.mxu0 %v666
  %1084 = vmatpush.bf16.msra.mxu0 %v661
  %1085 = vmatpush.bf16.msra.mxu0 %v656
  %1086 = vmatmul.bf16.gmra.mxu0 %v28
  %v1087 = vpop.f32.mrf.mxu0
  %v1088 = vadd.f32 %v1069, %v1087
  %v1089 = vpop.f32.mrf.mxu0
  %v1090 = vadd.f32 %v1071, %v1089
  %1091 = vmatmul.bf16.gmra.mxu0 %v31
  %v1092 = vpop.f32.mrf.mxu0
  %v1093 = vadd.f32 %v1074, %v1092
  %v1094 = vpop.f32.mrf.mxu0
  %v1095 = vadd.f32 %v1076, %v1094
  %1096 = vdwg.mxu0
  %v1097 = vmax.f32 %v860, 0.0
  %v1098 = vmax.f32 %v917, 0.0
  %v1099 = vmax.f32 %v974, 0.0
  %v1100 = vmax.f32 %v1031, 0.0
  %v1101 = vmax.f32 %v1088, 0.0
  %v1102 = vmax.f32 %v862, 0.0
  %v1103 = vmax.f32 %v919, 0.0
  %v1104 = vmax.f32 %v976, 0.0
  %v1105 = vmax.f32 %v1033, 0.0
  %v1106 = vmax.f32 %v1090, 0.0
  %v1107 = vmax.f32 %v865, 0.0
  %v1108 = vmax.f32 %v922, 0.0
  %v1109 = vmax.f32 %v979, 0.0
  %v1110 = vmax.f32 %v1036, 0.0
  %v1111 = vmax.f32 %v1093, 0.0
  %v1112 = vmax.f32 %v867, 0.0
  %v1113 = vmax.f32 %v924, 0.0
  %v1114 = vmax.f32 %v981, 0.0
  %v1115 = vmax.f32 %v1038, 0.0
  %v1116 = vmax.f32 %v1095, 0.0
  %1117 = vst [vmem:[%s3] sm:$0xff] %v1097
  %1118 = vst [vmem:[%s3 + $0x8] sm:$0xff] %v1098
  %1119 = vst [vmem:[%s3 + $0x10] sm:$0xff] %v1099
  %1120 = vst [vmem:[%s3 + $0x18] sm:$0xff] %v1100
  %vm1121 = vcmask 523264
  %1122 = vst.msk [vmem:[%s3 + $0x20] sm:$0xff] %vm1121, %v1101
  %1123 = vst [vmem:[%s3 + $0x28] sm:$0xff] %v1102
  %1124 = vst [vmem:[%s3 + $0x30] sm:$0xff] %v1103
  %1125 = vst [vmem:[%s3 + $0x38] sm:$0xff] %v1104
  %1126 = vst [vmem:[%s3 + $0x40] sm:$0xff] %v1105
  %1127 = vst.msk [vmem:[%s3 + $0x48] sm:$0xff] %vm1121, %v1106
  %1128 = vst [vmem:[%s3 + $0x50] sm:$0xff] %v1107
  %1129 = vst [vmem:[%s3 + $0x58] sm:$0xff] %v1108
  %1130 = vst [vmem:[%s3 + $0x60] sm:$0xff] %v1109
  %1131 = vst [vmem:[%s3 + $0x68] sm:$0xff] %v1110
  %1132 = vst.msk [vmem:[%s3 + $0x70] sm:$0xff] %vm1121, %v1111
  %1133 = vst [vmem:[%s3 + $0x78] sm:$0xff] %v1112
  %1134 = vst [vmem:[%s3 + $0x80] sm:$0xff] %v1113
  %1135 = vst [vmem:[%s3 + $0x88] sm:$0xff] %v1114
  %1136 = vst [vmem:[%s3 + $0x90] sm:$0xff] %v1115
  %1137 = vst.msk [vmem:[%s3 + $0x98] sm:$0xff] %vm1121, %v1116
  // Predicated region
  $region14: #{mpii_1_forward.24} parent=0 // pred_check
    _
  $region15: #{mpii_1_forward.24} parent=0 // pred_check_branch
    %1139 = sbr.rel (0) target = $region17
  $region16: #{mpii_1_forward.24} parent=0 // pred_region
    _
  $region17: #{mpii_1_forward.24} parent=0 // pred_fallthru
    _
  // Predicated region
  $region18: #{mpii_1_forward.24} parent=0 // pred_check
    _
  $region19: #{mpii_1_forward.24} parent=0 // pred_check_branch
    %1141 = sbr.rel (0) target = $region21
  $region20: #{mpii_1_forward.24} parent=0 // pred_region
    _
  $region21: #{mpii_1_forward.24} parent=0 // pred_fallthru
    _

// kernel: tile.8
$region0: #{tile.8}
  #allocation0 [shape = 's32[1]{0}', space=sflag, size = 0x4, scoped, tag = 'scoped memory for tile.8']
  %s0 = inlined_call_operand.vmem [shape: f32[4], index: 0, kind: input, shape index: {}]
  %s1 = inlined_call_operand.vmem [shape: f32[4,4], index: 1, kind: output, shape index: {}]
  // Predicated region
  $region2: #{tile.8} parent=0 // pred_check
    _
  $region3: #{tile.8} parent=0 // pred_check_branch
    %3 = sbr.rel (0) target = $region5
  $region4: #{tile.8} parent=0 // pred_region
    _
  $region5: #{tile.8} parent=0 // pred_fallthru
    _
  %v4 = vld [vmem:[%s0] ss:$0 sm:$0xff]
  %5 = vst [vmem:[%s1] sm:$0xf] %v4

// kernel: mpii_1_forward.25
$region0: #{mpii_1_forward.25}
  #allocation0 [shape = 'u32[]', space=smem, size = 0x4, offset = 0x4, fixed_abs, tag = 'smem constant byte address 0x4 - core index']
  #allocation1 [shape = 'u32[72,128]{1,0:T(1,128)}', space=vmem, size = 0x9000, scoped, tag = 'internal scratch']
  %s0 = inlined_call_operand.vmem [shape: f32[9,8,576], index: 0, kind: input, shape index: {}]
  %s1 = inlined_call_operand.vmem [shape: f32[9,576], index: 1, kind: input, shape index: {}]
  %s2 = inlined_call_operand.vmem [shape: bf16[576,576], index: 2, kind: input, shape index: {}]
  %s3 = inlined_call_operand.vmem [shape: f32[1,576], index: 3, kind: input, shape index: {}]
  %s4 = inlined_call_operand.vmem [shape: f32[8,576], index: 4, kind: output, shape index: {}]
  %s5 = sld [smem:[#allocation0]]
  $region26: #{mpii_1_forward.25} parent=0
    _
  %s7 = ssub.s32 1, %s5
  %s8 = scalar_select 0, %s7, %s5
  // Predicated region
  $region2: #{mpii_1_forward.25} parent=0 // pred_check
    _
  $region3: #{mpii_1_forward.25} parent=0 // pred_check_branch
    %10 = sbr.rel (0) target = $region5
  $region4: #{mpii_1_forward.25} parent=0 // pred_region
    _
  $region5: #{mpii_1_forward.25} parent=0 // pred_fallthru
    _
  // Predicated region
  $region6: #{mpii_1_forward.25} parent=0 // pred_check
    _
  $region7: #{mpii_1_forward.25} parent=0 // pred_check_branch
    %12 = sbr.rel (0) target = $region9
  $region8: #{mpii_1_forward.25} parent=0 // pred_region
    _
  $region9: #{mpii_1_forward.25} parent=0 // pred_fallthru
    _
  // Predicated region
  $region10: #{mpii_1_forward.25} parent=0 // pred_check
    _
  $region11: #{mpii_1_forward.25} parent=0 // pred_check_branch
    %14 = sbr.rel (0) target = $region13
  $region12: #{mpii_1_forward.25} parent=0 // pred_region
    _
  $region13: #{mpii_1_forward.25} parent=0 // pred_fallthru
    _
  // Predicated region
  $region14: #{mpii_1_forward.25} parent=0 // pred_check
    _
  $region15: #{mpii_1_forward.25} parent=0 // pred_check_branch
    %16 = sbr.rel (0) target = $region17
  $region16: #{mpii_1_forward.25} parent=0 // pred_region
    _
  $region17: #{mpii_1_forward.25} parent=0 // pred_fallthru
    _
  %v18 = vld [vmem:[%s1] sm:$0xff]
  %v19 = vld [vmem:[%s1 + $0x8] sm:$0xff]
  %v20 = vld [vmem:[%s1 + $0x10] sm:$0xff]
  %v21 = vld [vmem:[%s1 + $0x18] sm:$0xff]
  %v22 = vld [vmem:[%s1 + $0x20] sm:$0xff]
  %v23 = vld [vmem:[%s1 + $0x28] sm:$0x1]
  %v24 = vld [vmem:[%s1 + $0x30] sm:$0x1]
  %v25 = vld [vmem:[%s1 + $0x38] sm:$0x1]
  %v26 = vld [vmem:[%s1 + $0x40] sm:$0x1]
  %v27 = vld [vmem:[%s1 + $0x48] sm:$0x1]
  %v28 = vld [vmem:[%s0] sm:$0xff]
  %v29 = vld [vmem:[%s0 + $0x8] sm:$0xff]
  %v30 = vld [vmem:[%s0 + $0x10] sm:$0xff]
  %v31 = vld [vmem:[%s0 + $0x18] sm:$0xff]
  %v32 = vld [vmem:[%s0 + $0x20] sm:$0xff]
  %v33 = vperm.slane %v18, 0
  %v34 = vperm.slane %v19, 0
  %v35 = vperm.slane %v20, 0
  %v36 = vperm.slane %v21, 0
  %v37 = vperm.slane %v22, 0
  %v38 = vmul.f32 %v28, %v33
  %v39 = vmul.f32 %v29, %v34
  %v40 = vmul.f32 %v30, %v35
  %v41 = vmul.f32 %v31, %v36
  %v42 = vmul.f32 %v32, %v37
  %s43 = scalar_lea.vmem %s0, 40
  %v44 = vld [vmem:[%s43] sm:$0xff]
  %v45 = vld [vmem:[%s43 + $0x8] sm:$0xff]
  %v46 = vld [vmem:[%s43 + $0x10] sm:$0xff]
  %v47 = vld [vmem:[%s43 + $0x18] sm:$0xff]
  %v48 = vld [vmem:[%s43 + $0x20] sm:$0xff]
  %v49 = vperm.slane %v18, 1
  %v50 = vperm.slane %v19, 1
  %v51 = vperm.slane %v20, 1
  %v52 = vperm.slane %v21, 1
  %v53 = vperm.slane %v22, 1
  %v54 = vmul.f32 %v44, %v49
  %v55 = vmul.f32 %v45, %v50
  %v56 = vmul.f32 %v46, %v51
  %v57 = vmul.f32 %v47, %v52
  %v58 = vmul.f32 %v48, %v53
  %v59 = vadd.f32 %v38, %v54
  %v60 = vadd.f32 %v39, %v55
  %v61 = vadd.f32 %v40, %v56
  %v62 = vadd.f32 %v41, %v57
  %v63 = vadd.f32 %v42, %v58
  %s64 = scalar_lea.vmem %s0, 80
  %v65 = vld [vmem:[%s64] sm:$0xff]
  %v66 = vld [vmem:[%s64 + $0x8] sm:$0xff]
  %v67 = vld [vmem:[%s64 + $0x10] sm:$0xff]
  %v68 = vld [vmem:[%s64 + $0x18] sm:$0xff]
  %v69 = vld [vmem:[%s64 + $0x20] sm:$0xff]
  %v70 = vperm.slane %v18, 2
  %v71 = vperm.slane %v19, 2
  %v72 = vperm.slane %v20, 2
  %v73 = vperm.slane %v21, 2
  %v74 = vperm.slane %v22, 2
  %v75 = vmul.f32 %v65, %v70
  %v76 = vmul.f32 %v66, %v71
  %v77 = vmul.f32 %v67, %v72
  %v78 = vmul.f32 %v68, %v73
  %v79 = vmul.f32 %v69, %v74
  %v80 = vadd.f32 %v59, %v75
  %v81 = vadd.f32 %v60, %v76
  %v82 = vadd.f32 %v61, %v77
  %v83 = vadd.f32 %v62, %v78
  %v84 = vadd.f32 %v63, %v79
  %s85 = scalar_lea.vmem %s0, 120
  %v86 = vld [vmem:[%s85] sm:$0xff]
  %v87 = vld [vmem:[%s85 + $0x8] sm:$0xff]
  %v88 = vld [vmem:[%s85 + $0x10] sm:$0xff]
  %v89 = vld [vmem:[%s85 + $0x18] sm:$0xff]
  %v90 = vld [vmem:[%s85 + $0x20] sm:$0xff]
  %v91 = vperm.slane %v18, 3
  %v92 = vperm.slane %v19, 3
  %v93 = vperm.slane %v20, 3
  %v94 = vperm.slane %v21, 3
  %v95 = vperm.slane %v22, 3
  %v96 = vmul.f32 %v86, %v91
  %v97 = vmul.f32 %v87, %v92
  %v98 = vmul.f32 %v88, %v93
  %v99 = vmul.f32 %v89, %v94
  %v100 = vmul.f32 %v90, %v95
  %v101 = vadd.f32 %v80, %v96
  %v102 = vadd.f32 %v81, %v97
  %v103 = vadd.f32 %v82, %v98
  %v104 = vadd.f32 %v83, %v99
  %v105 = vadd.f32 %v84, %v100
  %s106 = scalar_lea.vmem %s0, 160
  %v107 = vld [vmem:[%s106] sm:$0xff]
  %v108 = vld [vmem:[%s106 + $0x8] sm:$0xff]
  %v109 = vld [vmem:[%s106 + $0x10] sm:$0xff]
  %v110 = vld [vmem:[%s106 + $0x18] sm:$0xff]
  %v111 = vld [vmem:[%s106 + $0x20] sm:$0xff]
  %v112 = vperm.slane %v18, 4
  %v113 = vperm.slane %v19, 4
  %v114 = vperm.slane %v20, 4
  %v115 = vperm.slane %v21, 4
  %v116 = vperm.slane %v22, 4
  %v117 = vmul.f32 %v107, %v112
  %v118 = vmul.f32 %v108, %v113
  %v119 = vmul.f32 %v109, %v114
  %v120 = vmul.f32 %v110, %v115
  %v121 = vmul.f32 %v111, %v116
  %v122 = vadd.f32 %v101, %v117
  %v123 = vadd.f32 %v102, %v118
  %v124 = vadd.f32 %v103, %v119
  %v125 = vadd.f32 %v104, %v120
  %v126 = vadd.f32 %v105, %v121
  %s127 = scalar_lea.vmem %s0, 200
  %v128 = vld [vmem:[%s127] sm:$0xff]
  %v129 = vld [vmem:[%s127 + $0x8] sm:$0xff]
  %v130 = vld [vmem:[%s127 + $0x10] sm:$0xff]
  %v131 = vld [vmem:[%s127 + $0x18] sm:$0xff]
  %v132 = vld [vmem:[%s127 + $0x20] sm:$0xff]
  %v133 = vperm.slane %v18, 5
  %v134 = vperm.slane %v19, 5
  %v135 = vperm.slane %v20, 5
  %v136 = vperm.slane %v21, 5
  %v137 = vperm.slane %v22, 5
  %v138 = vmul.f32 %v128, %v133
  %v139 = vmul.f32 %v129, %v134
  %v140 = vmul.f32 %v130, %v135
  %v141 = vmul.f32 %v131, %v136
  %v142 = vmul.f32 %v132, %v137
  %v143 = vadd.f32 %v122, %v138
  %v144 = vadd.f32 %v123, %v139
  %v145 = vadd.f32 %v124, %v140
  %v146 = vadd.f32 %v125, %v141
  %v147 = vadd.f32 %v126, %v142
  %s148 = scalar_lea.vmem %s0, 240
  %v149 = vld [vmem:[%s148] sm:$0xff]
  %v150 = vld [vmem:[%s148 + $0x8] sm:$0xff]
  %v151 = vld [vmem:[%s148 + $0x10] sm:$0xff]
  %v152 = vld [vmem:[%s148 + $0x18] sm:$0xff]
  %v153 = vld [vmem:[%s148 + $0x20] sm:$0xff]
  %v154 = vperm.slane %v18, 6
  %v155 = vperm.slane %v19, 6
  %v156 = vperm.slane %v20, 6
  %v157 = vperm.slane %v21, 6
  %v158 = vperm.slane %v22, 6
  %v159 = vmul.f32 %v149, %v154
  %v160 = vmul.f32 %v150, %v155
  %v161 = vmul.f32 %v151, %v156
  %v162 = vmul.f32 %v152, %v157
  %v163 = vmul.f32 %v153, %v158
  %v164 = vadd.f32 %v143, %v159
  %v165 = vadd.f32 %v144, %v160
  %v166 = vadd.f32 %v145, %v161
  %v167 = vadd.f32 %v146, %v162
  %v168 = vadd.f32 %v147, %v163
  %s169 = scalar_lea.vmem %s0, 280
  %v170 = vld [vmem:[%s169] sm:$0xff]
  %v171 = vld [vmem:[%s169 + $0x8] sm:$0xff]
  %v172 = vld [vmem:[%s169 + $0x10] sm:$0xff]
  %v173 = vld [vmem:[%s169 + $0x18] sm:$0xff]
  %v174 = vld [vmem:[%s169 + $0x20] sm:$0xff]
  %v175 = vperm.slane %v18, 7
  %v176 = vperm.slane %v19, 7
  %v177 = vperm.slane %v20, 7
  %v178 = vperm.slane %v21, 7
  %v179 = vperm.slane %v22, 7
  %v180 = vmul.f32 %v170, %v175
  %v181 = vmul.f32 %v171, %v176
  %v182 = vmul.f32 %v172, %v177
  %v183 = vmul.f32 %v173, %v178
  %v184 = vmul.f32 %v174, %v179
  %v185 = vadd.f32 %v164, %v180
  %v186 = vadd.f32 %v165, %v181
  %v187 = vadd.f32 %v166, %v182
  %v188 = vadd.f32 %v167, %v183
  %v189 = vadd.f32 %v168, %v184
  %s190 = scalar_lea.vmem %s0, 320
  %v191 = vld [vmem:[%s190] sm:$0xff]
  %v192 = vld [vmem:[%s190 + $0x8] sm:$0xff]
  %v193 = vld [vmem:[%s190 + $0x10] sm:$0xff]
  %v194 = vld [vmem:[%s190 + $0x18] sm:$0xff]
  %v195 = vld [vmem:[%s190 + $0x20] sm:$0xff]
  %v196 = vperm.slane %v23, 0
  %v197 = vperm.slane %v24, 0
  %v198 = vperm.slane %v25, 0
  %v199 = vperm.slane %v26, 0
  %v200 = vperm.slane %v27, 0
  %v201 = vmul.f32 %v191, %v196
  %v202 = vmul.f32 %v192, %v197
  %v203 = vmul.f32 %v193, %v198
  %v204 = vmul.f32 %v194, %v199
  %v205 = vmul.f32 %v195, %v200
  %v206 = vadd.f32 %v185, %v201
  %v207 = vadd.f32 %v186, %v202
  %v208 = vadd.f32 %v187, %v203
  %v209 = vadd.f32 %v188, %v204
  %v210 = vadd.f32 %v189, %v205
  %v211 = vpack.c.bf16 %v206, %v206
  %v212 = vpack.c.bf16 %v207, %v207
  %v213 = vpack.c.bf16 %v208, %v208
  %v214 = vpack.c.bf16 %v209, %v209
  %v215 = vpack.c.bf16 %v210, %v210
  %v216 = vld [vmem:[%s2] sm:$0xff]
  %v217 = vld [vmem:[%s2 + $0x8] sm:$0xff]
  %v218 = vld [vmem:[%s2 + $0x10] sm:$0xf]
  %v219 = vld [vmem:[%s2 + $0x14] sm:$0xff]
  %v220 = vld [vmem:[%s2 + $0x1c] sm:$0xff]
  %v221 = vld [vmem:[%s2 + $0x24] sm:$0xf]
  %v222 = vld [vmem:[%s2 + $0x28] sm:$0xff]
  %v223 = vld [vmem:[%s2 + $0x30] sm:$0xff]
  %v224 = vld [vmem:[%s2 + $0x38] sm:$0xf]
  %v225 = vld [vmem:[%s2 + $0x3c] sm:$0xff]
  %v226 = vld [vmem:[%s2 + $0x44] sm:$0xff]
  %v227 = vld [vmem:[%s2 + $0x4c] sm:$0xf]
  %v228 = vld [vmem:[%s2 + $0x50] sm:$0xff]
  %v229 = vld [vmem:[%s2 + $0x58] sm:$0xff]
  %v230 = vld [vmem:[%s2 + $0x60] sm:$0xf]
  %v231 = vld [vmem:[%s2 + $0x64] sm:$0xff]
  %v232 = vld [vmem:[%s2 + $0x6c] sm:$0xff]
  %v233 = vld [vmem:[%s2 + $0x74] sm:$0xf]
  %v234 = vld [vmem:[%s2 + $0x78] sm:$0xff]
  %v235 = vld [vmem:[%s2 + $0x80] sm:$0xff]
  %v236 = vld [vmem:[%s2 + $0x88] sm:$0xf]
  %v237 = vld [vmem:[%s2 + $0x8c] sm:$0xff]
  %v238 = vld [vmem:[%s2 + $0x94] sm:$0xff]
  %v239 = vld [vmem:[%s2 + $0x9c] sm:$0xf]
  %v240 = vld [vmem:[%s2 + $0xa0] sm:$0xff]
  %v241 = vld [vmem:[%s2 + $0xa8] sm:$0xff]
  %v242 = vld [vmem:[%s2 + $0xb0] sm:$0xf]
  %v243 = vld [vmem:[%s2 + $0xb4] sm:$0xff]
  %v244 = vld [vmem:[%s2 + $0xbc] sm:$0xff]
  %v245 = vld [vmem:[%s2 + $0xc4] sm:$0xf]
  %v246 = vld [vmem:[%s2 + $0xc8] sm:$0xff]
  %v247 = vld [vmem:[%s2 + $0xd0] sm:$0xff]
  %v248 = vld [vmem:[%s2 + $0xd8] sm:$0xf]
  %v249 = vld [vmem:[%s2 + $0xdc] sm:$0xff]
  %v250 = vld [vmem:[%s2 + $0xe4] sm:$0xff]
  %v251 = vld [vmem:[%s2 + $0xec] sm:$0xf]
  %v252 = vld [vmem:[%s2 + $0xf0] sm:$0xff]
  %v253 = vld [vmem:[%s2 + $0xf8] sm:$0xff]
  %v254 = vld [vmem:[%s2 + $0x100] sm:$0xf]
  %v255 = vld [vmem:[%s2 + $0x104] sm:$0xff]
  %v256 = vld [vmem:[%s2 + $0x10c] sm:$0xff]
  %v257 = vld [vmem:[%s2 + $0x114] sm:$0xf]
  %v258 = vld [vmem:[%s2 + $0x118] sm:$0xff]
  %v259 = vld [vmem:[%s2 + $0x120] sm:$0xff]
  %v260 = vld [vmem:[%s2 + $0x128] sm:$0xf]
  %v261 = vld [vmem:[%s2 + $0x12c] sm:$0xff]
  %v262 = vld [vmem:[%s2 + $0x134] sm:$0xff]
  %v263 = vld [vmem:[%s2 + $0x13c] sm:$0xf]
  %v264 = vld [vmem:[%s2 + $0x140] sm:$0xff]
  %v265 = vld [vmem:[%s2 + $0x148] sm:$0xff]
  %v266 = vld [vmem:[%s2 + $0x150] sm:$0xf]
  %v267 = vld [vmem:[%s2 + $0x154] sm:$0xff]
  %v268 = vld [vmem:[%s2 + $0x15c] sm:$0xff]
  %v269 = vld [vmem:[%s2 + $0x164] sm:$0xf]
  %v270 = vld [vmem:[%s2 + $0x168] sm:$0xff]
  %v271 = vld [vmem:[%s2 + $0x170] sm:$0xff]
  %v272 = vld [vmem:[%s2 + $0x178] sm:$0xf]
  %v273 = vld [vmem:[%s2 + $0x17c] sm:$0xff]
  %v274 = vld [vmem:[%s2 + $0x184] sm:$0xff]
  %v275 = vld [vmem:[%s2 + $0x18c] sm:$0xf]
  %v276 = vld [vmem:[%s2 + $0x190] sm:$0xff]
  %v277 = vld [vmem:[%s2 + $0x198] sm:$0xff]
  %v278 = vld [vmem:[%s2 + $0x1a0] sm:$0xf]
  %v279 = vld [vmem:[%s2 + $0x1a4] sm:$0xff]
  %v280 = vld [vmem:[%s2 + $0x1ac] sm:$0xff]
  %v281 = vld [vmem:[%s2 + $0x1b4] sm:$0xf]
  %v282 = vld [vmem:[%s2 + $0x1b8] sm:$0xff]
  %v283 = vld [vmem:[%s2 + $0x1c0] sm:$0xff]
  %v284 = vld [vmem:[%s2 + $0x1c8] sm:$0xf]
  %v285 = vld [vmem:[%s2 + $0x1cc] sm:$0xff]
  %v286 = vld [vmem:[%s2 + $0x1d4] sm:$0xff]
  %v287 = vld [vmem:[%s2 + $0x1dc] sm:$0xf]
  %v288 = vld [vmem:[%s2 + $0x1e0] sm:$0xff]
  %v289 = vld [vmem:[%s2 + $0x1e8] sm:$0xff]
  %v290 = vld [vmem:[%s2 + $0x1f0] sm:$0xf]
  %v291 = vld [vmem:[%s2 + $0x1f4] sm:$0xff]
  %v292 = vld [vmem:[%s2 + $0x1fc] sm:$0xff]
  %v293 = vld [vmem:[%s2 + $0x204] sm:$0xf]
  %v294 = vld [vmem:[%s2 + $0x208] sm:$0xff]
  %v295 = vld [vmem:[%s2 + $0x210] sm:$0xff]
  %v296 = vld [vmem:[%s2 + $0x218] sm:$0xf]
  %v297 = vld [vmem:[%s2 + $0x21c] sm:$0xff]
  %v298 = vld [vmem:[%s2 + $0x224] sm:$0xff]
  %v299 = vld [vmem:[%s2 + $0x22c] sm:$0xf]
  %v300 = vld [vmem:[%s2 + $0x230] sm:$0xff]
  %v301 = vld [vmem:[%s2 + $0x238] sm:$0xff]
  %v302 = vld [vmem:[%s2 + $0x240] sm:$0xf]
  %v303 = vld [vmem:[%s2 + $0x244] sm:$0xff]
  %v304 = vld [vmem:[%s2 + $0x24c] sm:$0xff]
  %v305 = vld [vmem:[%s2 + $0x254] sm:$0xf]
  %v306 = vld [vmem:[%s2 + $0x258] sm:$0xff]
  %v307 = vld [vmem:[%s2 + $0x260] sm:$0xff]
  %v308 = vld [vmem:[%s2 + $0x268] sm:$0xf]
  %v309 = vld [vmem:[%s2 + $0x26c] sm:$0xff]
  %v310 = vld [vmem:[%s2 + $0x274] sm:$0xff]
  %v311 = vld [vmem:[%s2 + $0x27c] sm:$0xf]
  %v312 = vld [vmem:[%s2 + $0x280] sm:$0xff]
  %v313 = vld [vmem:[%s2 + $0x288] sm:$0xff]
  %v314 = vld [vmem:[%s2 + $0x290] sm:$0xf]
  %v315 = vld [vmem:[%s2 + $0x294] sm:$0xff]
  %v316 = vld [vmem:[%s2 + $0x29c] sm:$0xff]
  %v317 = vld [vmem:[%s2 + $0x2a4] sm:$0xf]
  %v318 = vld [vmem:[%s2 + $0x2a8] sm:$0xff]
  %v319 = vld [vmem:[%s2 + $0x2b0] sm:$0xff]
  %v320 = vld [vmem:[%s2 + $0x2b8] sm:$0xf]
  %v321 = vld [vmem:[%s2 + $0x2bc] sm:$0xff]
  %v322 = vld [vmem:[%s2 + $0x2c4] sm:$0xff]
  %v323 = vld [vmem:[%s2 + $0x2cc] sm:$0xf]
  %v324 = vld [vmem:[%s2 + $0x2d0] sm:$0xff]
  %v325 = vld [vmem:[%s2 + $0x2d8] sm:$0xff]
  %v326 = vld [vmem:[%s2 + $0x2e0] sm:$0xf]
  %v327 = vld [vmem:[%s2 + $0x2e4] sm:$0xff]
  %v328 = vld [vmem:[%s2 + $0x2ec] sm:$0xff]
  %v329 = vld [vmem:[%s2 + $0x2f4] sm:$0xf]
  %v330 = vld [vmem:[%s2 + $0x2f8] sm:$0xff]
  %v331 = vld [vmem:[%s2 + $0x300] sm:$0xff]
  %v332 = vld [vmem:[%s2 + $0x308] sm:$0xf]
  %v333 = vld [vmem:[%s2 + $0x30c] sm:$0xff]
  %v334 = vld [vmem:[%s2 + $0x314] sm:$0xff]
  %v335 = vld [vmem:[%s2 + $0x31c] sm:$0xf]
  %v336 = vld [vmem:[%s2 + $0x320] sm:$0xff]
  %v337 = vld [vmem:[%s2 + $0x328] sm:$0xff]
  %v338 = vld [vmem:[%s2 + $0x330] sm:$0xf]
  %v339 = vld [vmem:[%s2 + $0x334] sm:$0xff]
  %v340 = vld [vmem:[%s2 + $0x33c] sm:$0xff]
  %v341 = vld [vmem:[%s2 + $0x344] sm:$0xf]
  %v342 = vld [vmem:[%s2 + $0x348] sm:$0xff]
  %v343 = vld [vmem:[%s2 + $0x350] sm:$0xff]
  %v344 = vld [vmem:[%s2 + $0x358] sm:$0xf]
  %v345 = vld [vmem:[%s2 + $0x35c] sm:$0xff]
  %v346 = vld [vmem:[%s2 + $0x364] sm:$0xff]
  %v347 = vld [vmem:[%s2 + $0x36c] sm:$0xf]
  %v348 = vld [vmem:[%s2 + $0x370] sm:$0xff]
  %v349 = vld [vmem:[%s2 + $0x378] sm:$0xff]
  %v350 = vld [vmem:[%s2 + $0x380] sm:$0xf]
  %v351 = vld [vmem:[%s2 + $0x384] sm:$0xff]
  %v352 = vld [vmem:[%s2 + $0x38c] sm:$0xff]
  %v353 = vld [vmem:[%s2 + $0x394] sm:$0xf]
  %v354 = vld [vmem:[%s2 + $0x398] sm:$0xff]
  %v355 = vld [vmem:[%s2 + $0x3a0] sm:$0xff]
  %v356 = vld [vmem:[%s2 + $0x3a8] sm:$0xf]
  %v357 = vld [vmem:[%s2 + $0x3ac] sm:$0xff]
  %v358 = vld [vmem:[%s2 + $0x3b4] sm:$0xff]
  %v359 = vld [vmem:[%s2 + $0x3bc] sm:$0xf]
  %v360 = vld [vmem:[%s2 + $0x3c0] sm:$0xff]
  %v361 = vld [vmem:[%s2 + $0x3c8] sm:$0xff]
  %v362 = vld [vmem:[%s2 + $0x3d0] sm:$0xf]
  %v363 = vld [vmem:[%s2 + $0x3d4] sm:$0xff]
  %v364 = vld [vmem:[%s2 + $0x3dc] sm:$0xff]
  %v365 = vld [vmem:[%s2 + $0x3e4] sm:$0xf]
  %v366 = vld [vmem:[%s2 + $0x3e8] sm:$0xff]
  %v367 = vld [vmem:[%s2 + $0x3f0] sm:$0xff]
  %v368 = vld [vmem:[%s2 + $0x3f8] sm:$0xf]
  %v369 = vld [vmem:[%s2 + $0x3fc] sm:$0xff]
  %v370 = vld [vmem:[%s2 + $0x404] sm:$0xff]
  %v371 = vld [vmem:[%s2 + $0x40c] sm:$0xf]
  %v372 = vld [vmem:[%s2 + $0x410] sm:$0xff]
  %v373 = vld [vmem:[%s2 + $0x418] sm:$0xff]
  %v374 = vld [vmem:[%s2 + $0x420] sm:$0xf]
  %v375 = vld [vmem:[%s2 + $0x424] sm:$0xff]
  %v376 = vld [vmem:[%s2 + $0x42c] sm:$0xff]
  %v377 = vld [vmem:[%s2 + $0x434] sm:$0xf]
  %v378 = vld [vmem:[%s2 + $0x438] sm:$0xff]
  %v379 = vld [vmem:[%s2 + $0x440] sm:$0xff]
  %v380 = vld [vmem:[%s2 + $0x448] sm:$0xf]
  %v381 = vld [vmem:[%s2 + $0x44c] sm:$0xff]
  %v382 = vld [vmem:[%s2 + $0x454] sm:$0xff]
  %v383 = vld [vmem:[%s2 + $0x45c] sm:$0xf]
  %v384 = vld [vmem:[%s2 + $0x460] sm:$0xff]
  %v385 = vld [vmem:[%s2 + $0x468] sm:$0xff]
  %v386 = vld [vmem:[%s2 + $0x470] sm:$0xf]
  %v387 = vld [vmem:[%s2 + $0x474] sm:$0xff]
  %v388 = vld [vmem:[%s2 + $0x47c] sm:$0xff]
  %v389 = vld [vmem:[%s2 + $0x484] sm:$0xf]
  %v390 = vld [vmem:[%s2 + $0x488] sm:$0xff]
  %v391 = vld [vmem:[%s2 + $0x490] sm:$0xff]
  %v392 = vld [vmem:[%s2 + $0x498] sm:$0xf]
  %v393 = vld [vmem:[%s2 + $0x49c] sm:$0xff]
  %v394 = vld [vmem:[%s2 + $0x4a4] sm:$0xff]
  %v395 = vld [vmem:[%s2 + $0x4ac] sm:$0xf]
  %v396 = vld [vmem:[%s2 + $0x4b0] sm:$0xff]
  %v397 = vld [vmem:[%s2 + $0x4b8] sm:$0xff]
  %v398 = vld [vmem:[%s2 + $0x4c0] sm:$0xf]
  %v399 = vld [vmem:[%s2 + $0x4c4] sm:$0xff]
  %v400 = vld [vmem:[%s2 + $0x4cc] sm:$0xff]
  %v401 = vld [vmem:[%s2 + $0x4d4] sm:$0xf]
  %v402 = vld [vmem:[%s2 + $0x4d8] sm:$0xff]
  %v403 = vld [vmem:[%s2 + $0x4e0] sm:$0xff]
  %v404 = vld [vmem:[%s2 + $0x4e8] sm:$0xf]
  %v405 = vld [vmem:[%s2 + $0x4ec] sm:$0xff]
  %v406 = vld [vmem:[%s2 + $0x4f4] sm:$0xff]
  %v407 = vld [vmem:[%s2 + $0x4fc] sm:$0xf]
  %v408 = vld [vmem:[%s2 + $0x500] sm:$0xff]
  %v409 = vld [vmem:[%s2 + $0x508] sm:$0xff]
  %v410 = vld [vmem:[%s2 + $0x510] sm:$0xf]
  %v411 = vld [vmem:[%s2 + $0x514] sm:$0xff]
  %v412 = vld [vmem:[%s2 + $0x51c] sm:$0xff]
  %v413 = vld [vmem:[%s2 + $0x524] sm:$0xf]
  %v414 = vld [vmem:[%s2 + $0x528] sm:$0xff]
  %v415 = vld [vmem:[%s2 + $0x530] sm:$0xff]
  %v416 = vld [vmem:[%s2 + $0x538] sm:$0xf]
  %v417 = vld [vmem:[%s2 + $0x53c] sm:$0xff]
  %v418 = vld [vmem:[%s2 + $0x544] sm:$0xff]
  %v419 = vld [vmem:[%s2 + $0x54c] sm:$0xf]
  %v420 = vld [vmem:[%s2 + $0x550] sm:$0xff]
  %v421 = vld [vmem:[%s2 + $0x558] sm:$0xff]
  %v422 = vld [vmem:[%s2 + $0x560] sm:$0xf]
  %v423 = vld [vmem:[%s2 + $0x564] sm:$0xff]
  %v424 = vld [vmem:[%s2 + $0x56c] sm:$0xff]
  %v425 = vld [vmem:[%s2 + $0x574] sm:$0xf]
  %v426 = vld [vmem:[%s2 + $0x578] sm:$0xff]
  %v427 = vld [vmem:[%s2 + $0x580] sm:$0xff]
  %v428 = vld [vmem:[%s2 + $0x588] sm:$0xf]
  %v429 = vld [vmem:[%s2 + $0x58c] sm:$0xff]
  %v430 = vld [vmem:[%s2 + $0x594] sm:$0xff]
  %v431 = vld [vmem:[%s2 + $0x59c] sm:$0xf]
  %v432 = vld [vmem:[%s3] sm:$0x1f]
  %v434 = vperm.slane %v432, 0
  %v435 = vperm.slane %v432, 1
  %v436 = vperm.slane %v432, 2
  %v437 = vperm.slane %v432, 3
  %v438 = vperm.slane %v432, 4
  %v660 = vunpack.c.l.b16 %v216
  %v661 = vunpack.c.h.b16 %v216
  %v662 = vunpack.c.l.b16 %v217
  %v663 = vunpack.c.h.b16 %v217
  %v664 = vunpack.c.l.b16 %v218
  %v665 = vunpack.c.l.b16 %v219
  %v666 = vunpack.c.h.b16 %v219
  %v667 = vunpack.c.l.b16 %v220
  %v668 = vunpack.c.h.b16 %v220
  %v669 = vunpack.c.l.b16 %v221
  %v670 = vunpack.c.l.b16 %v222
  %v671 = vunpack.c.h.b16 %v222
  %v672 = vunpack.c.l.b16 %v223
  %v673 = vunpack.c.h.b16 %v223
  %v674 = vunpack.c.l.b16 %v224
  %v675 = vunpack.c.l.b16 %v225
  %v676 = vunpack.c.h.b16 %v225
  %v677 = vunpack.c.l.b16 %v226
  %v678 = vunpack.c.h.b16 %v226
  %v679 = vunpack.c.l.b16 %v227
  %v680 = vunpack.c.l.b16 %v228
  %v681 = vunpack.c.h.b16 %v228
  %v682 = vunpack.c.l.b16 %v229
  %v683 = vunpack.c.h.b16 %v229
  %v684 = vunpack.c.l.b16 %v230
  %v685 = vunpack.c.l.b16 %v231
  %v686 = vunpack.c.h.b16 %v231
  %v687 = vunpack.c.l.b16 %v232
  %v688 = vunpack.c.h.b16 %v232
  %v689 = vunpack.c.l.b16 %v233
  %v690 = vunpack.c.l.b16 %v234
  %v691 = vunpack.c.h.b16 %v234
  %v692 = vunpack.c.l.b16 %v235
  %v693 = vunpack.c.h.b16 %v235
  %v694 = vunpack.c.l.b16 %v236
  %v695 = vunpack.c.l.b16 %v237
  %v696 = vunpack.c.h.b16 %v237
  %v697 = vunpack.c.l.b16 %v238
  %v698 = vunpack.c.h.b16 %v238
  %v699 = vunpack.c.l.b16 %v239
  %v700 = vunpack.c.l.b16 %v240
  %v701 = vunpack.c.h.b16 %v240
  %v702 = vunpack.c.l.b16 %v241
  %v703 = vunpack.c.h.b16 %v241
  %v704 = vunpack.c.l.b16 %v242
  %v705 = vunpack.c.l.b16 %v243
  %v706 = vunpack.c.h.b16 %v243
  %v707 = vunpack.c.l.b16 %v244
  %v708 = vunpack.c.h.b16 %v244
  %v709 = vunpack.c.l.b16 %v245
  %v710 = vunpack.c.l.b16 %v246
  %v711 = vunpack.c.h.b16 %v246
  %v712 = vunpack.c.l.b16 %v247
  %v713 = vunpack.c.h.b16 %v247
  %v714 = vunpack.c.l.b16 %v248
  %v715 = vunpack.c.l.b16 %v249
  %v716 = vunpack.c.h.b16 %v249
  %v717 = vunpack.c.l.b16 %v250
  %v718 = vunpack.c.h.b16 %v250
  %v719 = vunpack.c.l.b16 %v251
  %v720 = vunpack.c.l.b16 %v252
  %v721 = vunpack.c.h.b16 %v252
  %v722 = vunpack.c.l.b16 %v253
  %v723 = vunpack.c.h.b16 %v253
  %v724 = vunpack.c.l.b16 %v254
  %v725 = vunpack.c.l.b16 %v255
  %v726 = vunpack.c.h.b16 %v255
  %v727 = vunpack.c.l.b16 %v256
  %v728 = vunpack.c.h.b16 %v256
  %v729 = vunpack.c.l.b16 %v257
  %v730 = vunpack.c.l.b16 %v258
  %v731 = vunpack.c.h.b16 %v258
  %v732 = vunpack.c.l.b16 %v259
  %v733 = vunpack.c.h.b16 %v259
  %v734 = vunpack.c.l.b16 %v260
  %v735 = vunpack.c.l.b16 %v261
  %v736 = vunpack.c.h.b16 %v261
  %v737 = vunpack.c.l.b16 %v262
  %v738 = vunpack.c.h.b16 %v262
  %v739 = vunpack.c.l.b16 %v263
  %v740 = vunpack.c.l.b16 %v264
  %v741 = vunpack.c.h.b16 %v264
  %v742 = vunpack.c.l.b16 %v265
  %v743 = vunpack.c.h.b16 %v265
  %v744 = vunpack.c.l.b16 %v266
  %v745 = vunpack.c.l.b16 %v267
  %v746 = vunpack.c.h.b16 %v267
  %v747 = vunpack.c.l.b16 %v268
  %v748 = vunpack.c.h.b16 %v268
  %v749 = vunpack.c.l.b16 %v269
  %v750 = vunpack.c.l.b16 %v270
  %v751 = vunpack.c.h.b16 %v270
  %v752 = vunpack.c.l.b16 %v271
  %v753 = vunpack.c.h.b16 %v271
  %v754 = vunpack.c.l.b16 %v272
  %v755 = vunpack.c.l.b16 %v273
  %v756 = vunpack.c.h.b16 %v273
  %v757 = vunpack.c.l.b16 %v274
  %v758 = vunpack.c.h.b16 %v274
  %v759 = vunpack.c.l.b16 %v275
  %v760 = vunpack.c.l.b16 %v276
  %v761 = vunpack.c.h.b16 %v276
  %v762 = vunpack.c.l.b16 %v277
  %v763 = vunpack.c.h.b16 %v277
  %v764 = vunpack.c.l.b16 %v278
  %v765 = vunpack.c.l.b16 %v279
  %v766 = vunpack.c.h.b16 %v279
  %v767 = vunpack.c.l.b16 %v280
  %v768 = vunpack.c.h.b16 %v280
  %v769 = vunpack.c.l.b16 %v281
  %v770 = vunpack.c.l.b16 %v282
  %v771 = vunpack.c.h.b16 %v282
  %v772 = vunpack.c.l.b16 %v283
  %v773 = vunpack.c.h.b16 %v283
  %v774 = vunpack.c.l.b16 %v284
  %v775 = vunpack.c.l.b16 %v285
  %v776 = vunpack.c.h.b16 %v285
  %v777 = vunpack.c.l.b16 %v286
  %v778 = vunpack.c.h.b16 %v286
  %v779 = vunpack.c.l.b16 %v287
  %v780 = vunpack.c.l.b16 %v288
  %v781 = vunpack.c.h.b16 %v288
  %v782 = vunpack.c.l.b16 %v289
  %v783 = vunpack.c.h.b16 %v289
  %v784 = vunpack.c.l.b16 %v290
  %v785 = vunpack.c.l.b16 %v291
  %v786 = vunpack.c.h.b16 %v291
  %v787 = vunpack.c.l.b16 %v292
  %v788 = vunpack.c.h.b16 %v292
  %v789 = vunpack.c.l.b16 %v293
  %v790 = vunpack.c.l.b16 %v294
  %v791 = vunpack.c.h.b16 %v294
  %v792 = vunpack.c.l.b16 %v295
  %v793 = vunpack.c.h.b16 %v295
  %v794 = vunpack.c.l.b16 %v296
  %v795 = vunpack.c.l.b16 %v297
  %v796 = vunpack.c.h.b16 %v297
  %v797 = vunpack.c.l.b16 %v298
  %v798 = vunpack.c.h.b16 %v298
  %v799 = vunpack.c.l.b16 %v299
  %v800 = vunpack.c.l.b16 %v300
  %v801 = vunpack.c.h.b16 %v300
  %v802 = vunpack.c.l.b16 %v301
  %v803 = vunpack.c.h.b16 %v301
  %v804 = vunpack.c.l.b16 %v302
  %v805 = vunpack.c.l.b16 %v303
  %v806 = vunpack.c.h.b16 %v303
  %v807 = vunpack.c.l.b16 %v304
  %v808 = vunpack.c.h.b16 %v304
  %v809 = vunpack.c.l.b16 %v305
  %v810 = vunpack.c.l.b16 %v306
  %v811 = vunpack.c.h.b16 %v306
  %v812 = vunpack.c.l.b16 %v307
  %v813 = vunpack.c.h.b16 %v307
  %v814 = vunpack.c.l.b16 %v308
  %v815 = vunpack.c.l.b16 %v309
  %v816 = vunpack.c.h.b16 %v309
  %v817 = vunpack.c.l.b16 %v310
  %v818 = vunpack.c.h.b16 %v310
  %v819 = vunpack.c.l.b16 %v311
  %v820 = vunpack.c.l.b16 %v312
  %v821 = vunpack.c.h.b16 %v312
  %v822 = vunpack.c.l.b16 %v313
  %v823 = vunpack.c.h.b16 %v313
  %v824 = vunpack.c.l.b16 %v314
  %v825 = vunpack.c.l.b16 %v315
  %v826 = vunpack.c.h.b16 %v315
  %v827 = vunpack.c.l.b16 %v316
  %v828 = vunpack.c.h.b16 %v316
  %v829 = vunpack.c.l.b16 %v317
  %v830 = vunpack.c.l.b16 %v318
  %v831 = vunpack.c.h.b16 %v318
  %v832 = vunpack.c.l.b16 %v319
  %v833 = vunpack.c.h.b16 %v319
  %v834 = vunpack.c.l.b16 %v320
  %v835 = vunpack.c.l.b16 %v321
  %v836 = vunpack.c.h.b16 %v321
  %v837 = vunpack.c.l.b16 %v322
  %v838 = vunpack.c.h.b16 %v322
  %v839 = vunpack.c.l.b16 %v323
  %v840 = vunpack.c.l.b16 %v324
  %v841 = vunpack.c.h.b16 %v324
  %v842 = vunpack.c.l.b16 %v325
  %v843 = vunpack.c.h.b16 %v325
  %v844 = vunpack.c.l.b16 %v326
  %v845 = vunpack.c.l.b16 %v327
  %v846 = vunpack.c.h.b16 %v327
  %v847 = vunpack.c.l.b16 %v328
  %v848 = vunpack.c.h.b16 %v328
  %v849 = vunpack.c.l.b16 %v329
  %v850 = vunpack.c.l.b16 %v330
  %v851 = vunpack.c.h.b16 %v330
  %v852 = vunpack.c.l.b16 %v331
  %v853 = vunpack.c.h.b16 %v331
  %v854 = vunpack.c.l.b16 %v332
  %v855 = vunpack.c.l.b16 %v333
  %v856 = vunpack.c.h.b16 %v333
  %v857 = vunpack.c.l.b16 %v334
  %v858 = vunpack.c.h.b16 %v334
  %v859 = vunpack.c.l.b16 %v335
  %v860 = vunpack.c.l.b16 %v336
  %v861 = vunpack.c.h.b16 %v336
  %v862 = vunpack.c.l.b16 %v337
  %v863 = vunpack.c.h.b16 %v337
  %v864 = vunpack.c.l.b16 %v338
  %v865 = vunpack.c.l.b16 %v339
  %v866 = vunpack.c.h.b16 %v339
  %v867 = vunpack.c.l.b16 %v340
  %v868 = vunpack.c.h.b16 %v340
  %v869 = vunpack.c.l.b16 %v341
  %v870 = vunpack.c.l.b16 %v342
  %v871 = vunpack.c.h.b16 %v342
  %v872 = vunpack.c.l.b16 %v343
  %v873 = vunpack.c.h.b16 %v343
  %v874 = vunpack.c.l.b16 %v344
  %v875 = vunpack.c.l.b16 %v345
  %v876 = vunpack.c.h.b16 %v345
  %v877 = vunpack.c.l.b16 %v346
  %v878 = vunpack.c.h.b16 %v346
  %v879 = vunpack.c.l.b16 %v347
  %v880 = vunpack.c.l.b16 %v348
  %v881 = vunpack.c.h.b16 %v348
  %v882 = vunpack.c.l.b16 %v349
  %v883 = vunpack.c.h.b16 %v349
  %v884 = vunpack.c.l.b16 %v350
  %v885 = vunpack.c.l.b16 %v351
  %v886 = vunpack.c.h.b16 %v351
  %v887 = vunpack.c.l.b16 %v352
  %v888 = vunpack.c.h.b16 %v352
  %v889 = vunpack.c.l.b16 %v353
  %v890 = vunpack.c.l.b16 %v354
  %v891 = vunpack.c.h.b16 %v354
  %v892 = vunpack.c.l.b16 %v355
  %v893 = vunpack.c.h.b16 %v355
  %v894 = vunpack.c.l.b16 %v356
  %v895 = vunpack.c.l.b16 %v357
  %v896 = vunpack.c.h.b16 %v357
  %v897 = vunpack.c.l.b16 %v358
  %v898 = vunpack.c.h.b16 %v358
  %v899 = vunpack.c.l.b16 %v359
  %v900 = vunpack.c.l.b16 %v360
  %v901 = vunpack.c.h.b16 %v360
  %v902 = vunpack.c.l.b16 %v361
  %v903 = vunpack.c.h.b16 %v361
  %v904 = vunpack.c.l.b16 %v362
  %v905 = vunpack.c.l.b16 %v363
  %v906 = vunpack.c.h.b16 %v363
  %v907 = vunpack.c.l.b16 %v364
  %v908 = vunpack.c.h.b16 %v364
  %v909 = vunpack.c.l.b16 %v365
  %v910 = vunpack.c.l.b16 %v366
  %v911 = vunpack.c.h.b16 %v366
  %v912 = vunpack.c.l.b16 %v367
  %v913 = vunpack.c.h.b16 %v367
  %v914 = vunpack.c.l.b16 %v368
  %v915 = vunpack.c.l.b16 %v369
  %v916 = vunpack.c.h.b16 %v369
  %v917 = vunpack.c.l.b16 %v370
  %v918 = vunpack.c.h.b16 %v370
  %v919 = vunpack.c.l.b16 %v371
  %v920 = vunpack.c.l.b16 %v372
  %v921 = vunpack.c.h.b16 %v372
  %v922 = vunpack.c.l.b16 %v373
  %v923 = vunpack.c.h.b16 %v373
  %v924 = vunpack.c.l.b16 %v374
  %v925 = vunpack.c.l.b16 %v375
  %v926 = vunpack.c.h.b16 %v375
  %v927 = vunpack.c.l.b16 %v376
  %v928 = vunpack.c.h.b16 %v376
  %v929 = vunpack.c.l.b16 %v377
  %v930 = vunpack.c.l.b16 %v378
  %v931 = vunpack.c.h.b16 %v378
  %v932 = vunpack.c.l.b16 %v379
  %v933 = vunpack.c.h.b16 %v379
  %v934 = vunpack.c.l.b16 %v380
  %v935 = vunpack.c.l.b16 %v381
  %v936 = vunpack.c.h.b16 %v381
  %v937 = vunpack.c.l.b16 %v382
  %v938 = vunpack.c.h.b16 %v382
  %v939 = vunpack.c.l.b16 %v383
  %v940 = vunpack.c.l.b16 %v384
  %v941 = vunpack.c.h.b16 %v384
  %v942 = vunpack.c.l.b16 %v385
  %v943 = vunpack.c.h.b16 %v385
  %v944 = vunpack.c.l.b16 %v386
  %v945 = vunpack.c.l.b16 %v387
  %v946 = vunpack.c.h.b16 %v387
  %v947 = vunpack.c.l.b16 %v388
  %v948 = vunpack.c.h.b16 %v388
  %v949 = vunpack.c.l.b16 %v389
  %v950 = vunpack.c.l.b16 %v390
  %v951 = vunpack.c.h.b16 %v390
  %v952 = vunpack.c.l.b16 %v391
  %v953 = vunpack.c.h.b16 %v391
  %v954 = vunpack.c.l.b16 %v392
  %v955 = vunpack.c.l.b16 %v393
  %v956 = vunpack.c.h.b16 %v393
  %v957 = vunpack.c.l.b16 %v394
  %v958 = vunpack.c.h.b16 %v394
  %v959 = vunpack.c.l.b16 %v395
  %v960 = vunpack.c.l.b16 %v396
  %v961 = vunpack.c.h.b16 %v396
  %v962 = vunpack.c.l.b16 %v397
  %v963 = vunpack.c.h.b16 %v397
  %v964 = vunpack.c.l.b16 %v398
  %v965 = vunpack.c.l.b16 %v399
  %v966 = vunpack.c.h.b16 %v399
  %v967 = vunpack.c.l.b16 %v400
  %v968 = vunpack.c.h.b16 %v400
  %v969 = vunpack.c.l.b16 %v401
  %v970 = vunpack.c.l.b16 %v402
  %v971 = vunpack.c.h.b16 %v402
  %v972 = vunpack.c.l.b16 %v403
  %v973 = vunpack.c.h.b16 %v403
  %v974 = vunpack.c.l.b16 %v404
  %v975 = vunpack.c.l.b16 %v405
  %v976 = vunpack.c.h.b16 %v405
  %v977 = vunpack.c.l.b16 %v406
  %v978 = vunpack.c.h.b16 %v406
  %v979 = vunpack.c.l.b16 %v407
  %v980 = vunpack.c.l.b16 %v408
  %v981 = vunpack.c.h.b16 %v408
  %v982 = vunpack.c.l.b16 %v409
  %v983 = vunpack.c.h.b16 %v409
  %v984 = vunpack.c.l.b16 %v410
  %v985 = vunpack.c.l.b16 %v411
  %v986 = vunpack.c.h.b16 %v411
  %v987 = vunpack.c.l.b16 %v412
  %v988 = vunpack.c.h.b16 %v412
  %v989 = vunpack.c.l.b16 %v413
  %v990 = vunpack.c.l.b16 %v414
  %v991 = vunpack.c.h.b16 %v414
  %v992 = vunpack.c.l.b16 %v415
  %v993 = vunpack.c.h.b16 %v415
  %v994 = vunpack.c.l.b16 %v416
  %v995 = vunpack.c.l.b16 %v417
  %v996 = vunpack.c.h.b16 %v417
  %v997 = vunpack.c.l.b16 %v418
  %v998 = vunpack.c.h.b16 %v418
  %v999 = vunpack.c.l.b16 %v419
  %v1000 = vunpack.c.l.b16 %v420
  %v1001 = vunpack.c.h.b16 %v420
  %v1002 = vunpack.c.l.b16 %v421
  %v1003 = vunpack.c.h.b16 %v421
  %v1004 = vunpack.c.l.b16 %v422
  %v1005 = vunpack.c.l.b16 %v423
  %v1006 = vunpack.c.h.b16 %v423
  %v1007 = vunpack.c.l.b16 %v424
  %v1008 = vunpack.c.h.b16 %v424
  %v1009 = vunpack.c.l.b16 %v425
  %v1010 = vunpack.c.l.b16 %v426
  %v1011 = vunpack.c.h.b16 %v426
  %v1012 = vunpack.c.l.b16 %v427
  %v1013 = vunpack.c.h.b16 %v427
  %v1014 = vunpack.c.l.b16 %v428
  %v1015 = vunpack.c.l.b16 %v429
  %v1016 = vunpack.c.h.b16 %v429
  %v1017 = vunpack.c.l.b16 %v430
  %v1018 = vunpack.c.h.b16 %v430
  %v1019 = vunpack.c.l.b16 %v431
  %v1020 = vpack.c.b16 %v665, %v660
  %v1021 = vpack.c.b16 %v666, %v661
  %v1022 = vpack.c.b16 %v667, %v662
  %v1023 = vpack.c.b16 %v668, %v663
  %v1024 = vpack.c.b16 %v669, %v664
  %v1025 = vpack.c.b16 %v675, %v670
  %v1026 = vpack.c.b16 %v676, %v671
  %v1027 = vpack.c.b16 %v677, %v672
  %v1028 = vpack.c.b16 %v678, %v673
  %v1029 = vpack.c.b16 %v679, %v674
  %v1030 = vpack.c.b16 %v685, %v680
  %v1031 = vpack.c.b16 %v686, %v681
  %v1032 = vpack.c.b16 %v687, %v682
  %v1033 = vpack.c.b16 %v688, %v683
  %v1034 = vpack.c.b16 %v689, %v684
  %v1035 = vpack.c.b16 %v695, %v690
  %v1036 = vpack.c.b16 %v696, %v691
  %v1037 = vpack.c.b16 %v697, %v692
  %v1038 = vpack.c.b16 %v698, %v693
  %v1039 = vpack.c.b16 %v699, %v694
  %v1040 = vpack.c.b16 %v705, %v700
  %v1041 = vpack.c.b16 %v706, %v701
  %v1042 = vpack.c.b16 %v707, %v702
  %v1043 = vpack.c.b16 %v708, %v703
  %v1044 = vpack.c.b16 %v709, %v704
  %v1045 = vpack.c.b16 %v715, %v710
  %v1046 = vpack.c.b16 %v716, %v711
  %v1047 = vpack.c.b16 %v717, %v712
  %v1048 = vpack.c.b16 %v718, %v713
  %v1049 = vpack.c.b16 %v719, %v714
  %v1050 = vpack.c.b16 %v725, %v720
  %v1051 = vpack.c.b16 %v726, %v721
  %v1052 = vpack.c.b16 %v727, %v722
  %v1053 = vpack.c.b16 %v728, %v723
  %v1054 = vpack.c.b16 %v729, %v724
  %v1055 = vpack.c.b16 %v735, %v730
  %v1056 = vpack.c.b16 %v736, %v731
  %v1057 = vpack.c.b16 %v737, %v732
  %v1058 = vpack.c.b16 %v738, %v733
  %v1059 = vpack.c.b16 %v739, %v734
  %v1060 = vpack.c.b16 %v745, %v740
  %v1061 = vpack.c.b16 %v746, %v741
  %v1062 = vpack.c.b16 %v747, %v742
  %v1063 = vpack.c.b16 %v748, %v743
  %v1064 = vpack.c.b16 %v749, %v744
  %v1065 = vpack.c.b16 %v755, %v750
  %v1066 = vpack.c.b16 %v756, %v751
  %v1067 = vpack.c.b16 %v757, %v752
  %v1068 = vpack.c.b16 %v758, %v753
  %v1069 = vpack.c.b16 %v759, %v754
  %v1070 = vpack.c.b16 %v765, %v760
  %v1071 = vpack.c.b16 %v766, %v761
  %v1072 = vpack.c.b16 %v767, %v762
  %v1073 = vpack.c.b16 %v768, %v763
  %v1074 = vpack.c.b16 %v769, %v764
  %v1075 = vpack.c.b16 %v775, %v770
  %v1076 = vpack.c.b16 %v776, %v771
  %v1077 = vpack.c.b16 %v777, %v772
  %v1078 = vpack.c.b16 %v778, %v773
  %v1079 = vpack.c.b16 %v779, %v774
  %v1080 = vpack.c.b16 %v785, %v780
  %v1081 = vpack.c.b16 %v786, %v781
  %v1082 = vpack.c.b16 %v787, %v782
  %v1083 = vpack.c.b16 %v788, %v783
  %v1084 = vpack.c.b16 %v789, %v784
  %v1085 = vpack.c.b16 %v795, %v790
  %v1086 = vpack.c.b16 %v796, %v791
  %v1087 = vpack.c.b16 %v797, %v792
  %v1088 = vpack.c.b16 %v798, %v793
  %v1089 = vpack.c.b16 %v799, %v794
  %v1090 = vpack.c.b16 %v805, %v800
  %v1091 = vpack.c.b16 %v806, %v801
  %v1092 = vpack.c.b16 %v807, %v802
  %v1093 = vpack.c.b16 %v808, %v803
  %v1094 = vpack.c.b16 %v809, %v804
  %v1095 = vpack.c.b16 %v815, %v810
  %v1096 = vpack.c.b16 %v816, %v811
  %v1097 = vpack.c.b16 %v817, %v812
  %v1098 = vpack.c.b16 %v818, %v813
  %v1099 = vpack.c.b16 %v819, %v814
  %v1100 = vpack.c.b16 %v825, %v820
  %v1101 = vpack.c.b16 %v826, %v821
  %v1102 = vpack.c.b16 %v827, %v822
  %v1103 = vpack.c.b16 %v828, %v823
  %v1104 = vpack.c.b16 %v829, %v824
  %v1105 = vpack.c.b16 %v835, %v830
  %v1106 = vpack.c.b16 %v836, %v831
  %v1107 = vpack.c.b16 %v837, %v832
  %v1108 = vpack.c.b16 %v838, %v833
  %v1109 = vpack.c.b16 %v839, %v834
  %v1110 = vpack.c.b16 %v845, %v840
  %v1111 = vpack.c.b16 %v846, %v841
  %v1112 = vpack.c.b16 %v847, %v842
  %v1113 = vpack.c.b16 %v848, %v843
  %v1114 = vpack.c.b16 %v849, %v844
  %v1115 = vpack.c.b16 %v855, %v850
  %v1116 = vpack.c.b16 %v856, %v851
  %v1117 = vpack.c.b16 %v857, %v852
  %v1118 = vpack.c.b16 %v858, %v853
  %v1119 = vpack.c.b16 %v859, %v854
  %v1120 = vpack.c.b16 %v865, %v860
  %v1121 = vpack.c.b16 %v866, %v861
  %v1122 = vpack.c.b16 %v867, %v862
  %v1123 = vpack.c.b16 %v868, %v863
  %v1124 = vpack.c.b16 %v869, %v864
  %v1125 = vpack.c.b16 %v875, %v870
  %v1126 = vpack.c.b16 %v876, %v871
  %v1127 = vpack.c.b16 %v877, %v872
  %v1128 = vpack.c.b16 %v878, %v873
  %v1129 = vpack.c.b16 %v879, %v874
  %v1130 = vpack.c.b16 %v885, %v880
  %v1131 = vpack.c.b16 %v886, %v881
  %v1132 = vpack.c.b16 %v887, %v882
  %v1133 = vpack.c.b16 %v888, %v883
  %v1134 = vpack.c.b16 %v889, %v884
  %v1135 = vpack.c.b16 %v895, %v890
  %v1136 = vpack.c.b16 %v896, %v891
  %v1137 = vpack.c.b16 %v897, %v892
  %v1138 = vpack.c.b16 %v898, %v893
  %v1139 = vpack.c.b16 %v899, %v894
  %v1140 = vpack.c.b16 %v905, %v900
  %v1141 = vpack.c.b16 %v906, %v901
  %v1142 = vpack.c.b16 %v907, %v902
  %v1143 = vpack.c.b16 %v908, %v903
  %v1144 = vpack.c.b16 %v909, %v904
  %v1145 = vpack.c.b16 %v915, %v910
  %v1146 = vpack.c.b16 %v916, %v911
  %v1147 = vpack.c.b16 %v917, %v912
  %v1148 = vpack.c.b16 %v918, %v913
  %v1149 = vpack.c.b16 %v919, %v914
  %v1150 = vpack.c.b16 %v925, %v920
  %v1151 = vpack.c.b16 %v926, %v921
  %v1152 = vpack.c.b16 %v927, %v922
  %v1153 = vpack.c.b16 %v928, %v923
  %v1154 = vpack.c.b16 %v929, %v924
  %v1155 = vpack.c.b16 %v935, %v930
  %v1156 = vpack.c.b16 %v936, %v931
  %v1157 = vpack.c.b16 %v937, %v932
  %v1158 = vpack.c.b16 %v938, %v933
  %v1159 = vpack.c.b16 %v939, %v934
  %v1160 = vpack.c.b16 %v945, %v940
  %v1161 = vpack.c.b16 %v946, %v941
  %v1162 = vpack.c.b16 %v947, %v942
  %v1163 = vpack.c.b16 %v948, %v943
  %v1164 = vpack.c.b16 %v949, %v944
  %v1165 = vpack.c.b16 %v955, %v950
  %v1166 = vpack.c.b16 %v956, %v951
  %v1167 = vpack.c.b16 %v957, %v952
  %v1168 = vpack.c.b16 %v958, %v953
  %v1169 = vpack.c.b16 %v959, %v954
  %v1170 = vpack.c.b16 %v965, %v960
  %v1171 = vpack.c.b16 %v966, %v961
  %v1172 = vpack.c.b16 %v967, %v962
  %v1173 = vpack.c.b16 %v968, %v963
  %v1174 = vpack.c.b16 %v969, %v964
  %v1175 = vpack.c.b16 %v975, %v970
  %v1176 = vpack.c.b16 %v976, %v971
  %v1177 = vpack.c.b16 %v977, %v972
  %v1178 = vpack.c.b16 %v978, %v973
  %v1179 = vpack.c.b16 %v979, %v974
  %v1180 = vpack.c.b16 %v985, %v980
  %v1181 = vpack.c.b16 %v986, %v981
  %v1182 = vpack.c.b16 %v987, %v982
  %v1183 = vpack.c.b16 %v988, %v983
  %v1184 = vpack.c.b16 %v989, %v984
  %v1185 = vpack.c.b16 %v995, %v990
  %v1186 = vpack.c.b16 %v996, %v991
  %v1187 = vpack.c.b16 %v997, %v992
  %v1188 = vpack.c.b16 %v998, %v993
  %v1189 = vpack.c.b16 %v999, %v994
  %v1190 = vpack.c.b16 %v1005, %v1000
  %v1191 = vpack.c.b16 %v1006, %v1001
  %v1192 = vpack.c.b16 %v1007, %v1002
  %v1193 = vpack.c.b16 %v1008, %v1003
  %v1194 = vpack.c.b16 %v1009, %v1004
  %v1195 = vpack.c.b16 %v1015, %v1010
  %v1196 = vpack.c.b16 %v1016, %v1011
  %v1197 = vpack.c.b16 %v1017, %v1012
  %v1198 = vpack.c.b16 %v1018, %v1013
  %v1199 = vpack.c.b16 %v1019, %v1014
  %vm1380 = vcmask 523264
  %v1382 = vsel %vm1380, %v215, 0
  %1384 = vmatpush.bf16.msra.mxu0 %v1055
  %1385 = vmatpush.bf16.msra.mxu0 %v1050
  %1386 = vmatpush.bf16.msra.mxu0 %v1045
  %1387 = vmatpush.bf16.msra.mxu0 %v1040
  %1388 = vmatpush.bf16.msra.mxu0 %v1035
  %1389 = vmatpush.bf16.msra.mxu0 %v1030
  %1390 = vmatpush.bf16.msra.mxu0 %v1025
  %1391 = vmatpush.bf16.msra.mxu0 %v1020
  %1392 = vmatmul.bf16.gmra.mxu0 %v211
  %v1393 = vpop.f32.mrf.mxu0
  %v1394 = vadd.f32 %v434, %v1393
  %v1395 = vpop.f32.mrf.mxu0
  %1396 = vdwg.mxu0
  %1397 = vmatpush.bf16.msra.mxu0 %v1095
  %1398 = vmatpush.bf16.msra.mxu0 %v1090
  %1399 = vmatpush.bf16.msra.mxu0 %v1085
  %1400 = vmatpush.bf16.msra.mxu0 %v1080
  %1401 = vmatpush.bf16.msra.mxu0 %v1075
  %1402 = vmatpush.bf16.msra.mxu0 %v1070
  %1403 = vmatpush.bf16.msra.mxu0 %v1065
  %1404 = vmatpush.bf16.msra.mxu0 %v1060
  %1405 = vmatmul.bf16.gmra.mxu0 %v212
  %v1406 = vpop.f32.mrf.mxu0
  %v1407 = vadd.f32 %v1394, %v1406
  %v1408 = vpop.f32.mrf.mxu0
  %1409 = vdwg.mxu0
  %1410 = vmatpush.bf16.msra.mxu0 %v1135
  %1411 = vmatpush.bf16.msra.mxu0 %v1130
  %1412 = vmatpush.bf16.msra.mxu0 %v1125
  %1413 = vmatpush.bf16.msra.mxu0 %v1120
  %1414 = vmatpush.bf16.msra.mxu0 %v1115
  %1415 = vmatpush.bf16.msra.mxu0 %v1110
  %1416 = vmatpush.bf16.msra.mxu0 %v1105
  %1417 = vmatpush.bf16.msra.mxu0 %v1100
  %1418 = vmatmul.bf16.gmra.mxu0 %v213
  %v1419 = vpop.f32.mrf.mxu0
  %v1420 = vadd.f32 %v1407, %v1419
  %v1421 = vpop.f32.mrf.mxu0
  %1422 = vdwg.mxu0
  %1423 = vmatpush.bf16.msra.mxu0 %v1175
  %1424 = vmatpush.bf16.msra.mxu0 %v1170
  %1425 = vmatpush.bf16.msra.mxu0 %v1165
  %1426 = vmatpush.bf16.msra.mxu0 %v1160
  %1427 = vmatpush.bf16.msra.mxu0 %v1155
  %1428 = vmatpush.bf16.msra.mxu0 %v1150
  %1429 = vmatpush.bf16.msra.mxu0 %v1145
  %1430 = vmatpush.bf16.msra.mxu0 %v1140
  %1431 = vmatmul.bf16.gmra.mxu0 %v214
  %v1432 = vpop.f32.mrf.mxu0
  %v1433 = vadd.f32 %v1420, %v1432
  %v1434 = vpop.f32.mrf.mxu0
  %1435 = vdwg.mxu0
  %1436 = vmatpush.bf16.msra.mxu0 0
  %1437 = vmatpush.bf16.msra.mxu0 0
  %1438 = vmatpush.bf16.msra.mxu0 0
  %1439 = vmatpush.bf16.msra.mxu0 0
  %1440 = vmatpush.bf16.msra.mxu0 %v1195
  %1441 = vmatpush.bf16.msra.mxu0 %v1190
  %1442 = vmatpush.bf16.msra.mxu0 %v1185
  %1443 = vmatpush.bf16.msra.mxu0 %v1180
  %1444 = vmatmul.bf16.gmra.mxu0 %v1382
  %v1445 = vpop.f32.mrf.mxu0
  %v1446 = vadd.f32 %v1433, %v1445
  %v1447 = vpop.f32.mrf.mxu0
  %1448 = vdwg.mxu0
  %1449 = vmatpush.bf16.msra.mxu0 %v1056
  %1450 = vmatpush.bf16.msra.mxu0 %v1051
  %1451 = vmatpush.bf16.msra.mxu0 %v1046
  %1452 = vmatpush.bf16.msra.mxu0 %v1041
  %1453 = vmatpush.bf16.msra.mxu0 %v1036
  %1454 = vmatpush.bf16.msra.mxu0 %v1031
  %1455 = vmatpush.bf16.msra.mxu0 %v1026
  %1456 = vmatpush.bf16.msra.mxu0 %v1021
  %1457 = vmatmul.bf16.gmra.mxu0 %v211
  %v1458 = vpop.f32.mrf.mxu0
  %v1459 = vadd.f32 %v435, %v1458
  %v1460 = vpop.f32.mrf.mxu0
  %1461 = vdwg.mxu0
  %1462 = vmatpush.bf16.msra.mxu0 %v1096
  %1463 = vmatpush.bf16.msra.mxu0 %v1091
  %1464 = vmatpush.bf16.msra.mxu0 %v1086
  %1465 = vmatpush.bf16.msra.mxu0 %v1081
  %1466 = vmatpush.bf16.msra.mxu0 %v1076
  %1467 = vmatpush.bf16.msra.mxu0 %v1071
  %1468 = vmatpush.bf16.msra.mxu0 %v1066
  %1469 = vmatpush.bf16.msra.mxu0 %v1061
  %1470 = vmatmul.bf16.gmra.mxu0 %v212
  %v1471 = vpop.f32.mrf.mxu0
  %v1472 = vadd.f32 %v1459, %v1471
  %v1473 = vpop.f32.mrf.mxu0
  %1474 = vdwg.mxu0
  %1475 = vmatpush.bf16.msra.mxu0 %v1136
  %1476 = vmatpush.bf16.msra.mxu0 %v1131
  %1477 = vmatpush.bf16.msra.mxu0 %v1126
  %1478 = vmatpush.bf16.msra.mxu0 %v1121
  %1479 = vmatpush.bf16.msra.mxu0 %v1116
  %1480 = vmatpush.bf16.msra.mxu0 %v1111
  %1481 = vmatpush.bf16.msra.mxu0 %v1106
  %1482 = vmatpush.bf16.msra.mxu0 %v1101
  %1483 = vmatmul.bf16.gmra.mxu0 %v213
  %v1484 = vpop.f32.mrf.mxu0
  %v1485 = vadd.f32 %v1472, %v1484
  %v1486 = vpop.f32.mrf.mxu0
  %1487 = vdwg.mxu0
  %1488 = vmatpush.bf16.msra.mxu0 %v1176
  %1489 = vmatpush.bf16.msra.mxu0 %v1171
  %1490 = vmatpush.bf16.msra.mxu0 %v1166
  %1491 = vmatpush.bf16.msra.mxu0 %v1161
  %1492 = vmatpush.bf16.msra.mxu0 %v1156
  %1493 = vmatpush.bf16.msra.mxu0 %v1151
  %1494 = vmatpush.bf16.msra.mxu0 %v1146
  %1495 = vmatpush.bf16.msra.mxu0 %v1141
  %1496 = vmatmul.bf16.gmra.mxu0 %v214
  %v1497 = vpop.f32.mrf.mxu0
  %v1498 = vadd.f32 %v1485, %v1497
  %v1499 = vpop.f32.mrf.mxu0
  %1500 = vdwg.mxu0
  %1501 = vmatpush.bf16.msra.mxu0 0
  %1502 = vmatpush.bf16.msra.mxu0 0
  %1503 = vmatpush.bf16.msra.mxu0 0
  %1504 = vmatpush.bf16.msra.mxu0 0
  %1505 = vmatpush.bf16.msra.mxu0 %v1196
  %1506 = vmatpush.bf16.msra.mxu0 %v1191
  %1507 = vmatpush.bf16.msra.mxu0 %v1186
  %1508 = vmatpush.bf16.msra.mxu0 %v1181
  %1509 = vmatmul.bf16.gmra.mxu0 %v1382
  %v1510 = vpop.f32.mrf.mxu0
  %v1511 = vadd.f32 %v1498, %v1510
  %v1512 = vpop.f32.mrf.mxu0
  %1513 = vdwg.mxu0
  %1514 = vmatpush.bf16.msra.mxu0 %v1057
  %1515 = vmatpush.bf16.msra.mxu0 %v1052
  %1516 = vmatpush.bf16.msra.mxu0 %v1047
  %1517 = vmatpush.bf16.msra.mxu0 %v1042
  %1518 = vmatpush.bf16.msra.mxu0 %v1037
  %1519 = vmatpush.bf16.msra.mxu0 %v1032
  %1520 = vmatpush.bf16.msra.mxu0 %v1027
  %1521 = vmatpush.bf16.msra.mxu0 %v1022
  %1522 = vmatmul.bf16.gmra.mxu0 %v211
  %v1523 = vpop.f32.mrf.mxu0
  %v1524 = vadd.f32 %v436, %v1523
  %v1525 = vpop.f32.mrf.mxu0
  %1526 = vdwg.mxu0
  %1527 = vmatpush.bf16.msra.mxu0 %v1097
  %1528 = vmatpush.bf16.msra.mxu0 %v1092
  %1529 = vmatpush.bf16.msra.mxu0 %v1087
  %1530 = vmatpush.bf16.msra.mxu0 %v1082
  %1531 = vmatpush.bf16.msra.mxu0 %v1077
  %1532 = vmatpush.bf16.msra.mxu0 %v1072
  %1533 = vmatpush.bf16.msra.mxu0 %v1067
  %1534 = vmatpush.bf16.msra.mxu0 %v1062
  %1535 = vmatmul.bf16.gmra.mxu0 %v212
  %v1536 = vpop.f32.mrf.mxu0
  %v1537 = vadd.f32 %v1524, %v1536
  %v1538 = vpop.f32.mrf.mxu0
  %1539 = vdwg.mxu0
  %1540 = vmatpush.bf16.msra.mxu0 %v1137
  %1541 = vmatpush.bf16.msra.mxu0 %v1132
  %1542 = vmatpush.bf16.msra.mxu0 %v1127
  %1543 = vmatpush.bf16.msra.mxu0 %v1122
  %1544 = vmatpush.bf16.msra.mxu0 %v1117
  %1545 = vmatpush.bf16.msra.mxu0 %v1112
  %1546 = vmatpush.bf16.msra.mxu0 %v1107
  %1547 = vmatpush.bf16.msra.mxu0 %v1102
  %1548 = vmatmul.bf16.gmra.mxu0 %v213
  %v1549 = vpop.f32.mrf.mxu0
  %v1550 = vadd.f32 %v1537, %v1549
  %v1551 = vpop.f32.mrf.mxu0
  %1552 = vdwg.mxu0
  %1553 = vmatpush.bf16.msra.mxu0 %v1177
  %1554 = vmatpush.bf16.msra.mxu0 %v1172
  %1555 = vmatpush.bf16.msra.mxu0 %v1167
  %1556 = vmatpush.bf16.msra.mxu0 %v1162
  %1557 = vmatpush.bf16.msra.mxu0 %v1157
  %1558 = vmatpush.bf16.msra.mxu0 %v1152
  %1559 = vmatpush.bf16.msra.mxu0 %v1147
  %1560 = vmatpush.bf16.msra.mxu0 %v1142
  %1561 = vmatmul.bf16.gmra.mxu0 %v214
  %v1562 = vpop.f32.mrf.mxu0
  %v1563 = vadd.f32 %v1550, %v1562
  %v1564 = vpop.f32.mrf.mxu0
  %1565 = vdwg.mxu0
  %1566 = vmatpush.bf16.msra.mxu0 0
  %1567 = vmatpush.bf16.msra.mxu0 0
  %1568 = vmatpush.bf16.msra.mxu0 0
  %1569 = vmatpush.bf16.msra.mxu0 0
  %1570 = vmatpush.bf16.msra.mxu0 %v1197
  %1571 = vmatpush.bf16.msra.mxu0 %v1192
  %1572 = vmatpush.bf16.msra.mxu0 %v1187
  %1573 = vmatpush.bf16.msra.mxu0 %v1182
  %1574 = vmatmul.bf16.gmra.mxu0 %v1382
  %v1575 = vpop.f32.mrf.mxu0
  %v1576 = vadd.f32 %v1563, %v1575
  %v1577 = vpop.f32.mrf.mxu0
  %1578 = vdwg.mxu0
  %1579 = vmatpush.bf16.msra.mxu0 %v1058
  %1580 = vmatpush.bf16.msra.mxu0 %v1053
  %1581 = vmatpush.bf16.msra.mxu0 %v1048
  %1582 = vmatpush.bf16.msra.mxu0 %v1043
  %1583 = vmatpush.bf16.msra.mxu0 %v1038
  %1584 = vmatpush.bf16.msra.mxu0 %v1033
  %1585 = vmatpush.bf16.msra.mxu0 %v1028
  %1586 = vmatpush.bf16.msra.mxu0 %v1023
  %1587 = vmatmul.bf16.gmra.mxu0 %v211
  %v1588 = vpop.f32.mrf.mxu0
  %v1589 = vadd.f32 %v437, %v1588
  %v1590 = vpop.f32.mrf.mxu0
  %1591 = vdwg.mxu0
  %1592 = vmatpush.bf16.msra.mxu0 %v1098
  %1593 = vmatpush.bf16.msra.mxu0 %v1093
  %1594 = vmatpush.bf16.msra.mxu0 %v1088
  %1595 = vmatpush.bf16.msra.mxu0 %v1083
  %1596 = vmatpush.bf16.msra.mxu0 %v1078
  %1597 = vmatpush.bf16.msra.mxu0 %v1073
  %1598 = vmatpush.bf16.msra.mxu0 %v1068
  %1599 = vmatpush.bf16.msra.mxu0 %v1063
  %1600 = vmatmul.bf16.gmra.mxu0 %v212
  %v1601 = vpop.f32.mrf.mxu0
  %v1602 = vadd.f32 %v1589, %v1601
  %v1603 = vpop.f32.mrf.mxu0
  %1604 = vdwg.mxu0
  %1605 = vmatpush.bf16.msra.mxu0 %v1138
  %1606 = vmatpush.bf16.msra.mxu0 %v1133
  %1607 = vmatpush.bf16.msra.mxu0 %v1128
  %1608 = vmatpush.bf16.msra.mxu0 %v1123
  %1609 = vmatpush.bf16.msra.mxu0 %v1118
  %1610 = vmatpush.bf16.msra.mxu0 %v1113
  %1611 = vmatpush.bf16.msra.mxu0 %v1108
  %1612 = vmatpush.bf16.msra.mxu0 %v1103
  %1613 = vmatmul.bf16.gmra.mxu0 %v213
  %v1614 = vpop.f32.mrf.mxu0
  %v1615 = vadd.f32 %v1602, %v1614
  %v1616 = vpop.f32.mrf.mxu0
  %1617 = vdwg.mxu0
  %1618 = vmatpush.bf16.msra.mxu0 %v1178
  %1619 = vmatpush.bf16.msra.mxu0 %v1173
  %1620 = vmatpush.bf16.msra.mxu0 %v1168
  %1621 = vmatpush.bf16.msra.mxu0 %v1163
  %1622 = vmatpush.bf16.msra.mxu0 %v1158
  %1623 = vmatpush.bf16.msra.mxu0 %v1153
  %1624 = vmatpush.bf16.msra.mxu0 %v1148
  %1625 = vmatpush.bf16.msra.mxu0 %v1143
  %1626 = vmatmul.bf16.gmra.mxu0 %v214
  %v1627 = vpop.f32.mrf.mxu0
  %v1628 = vadd.f32 %v1615, %v1627
  %v1629 = vpop.f32.mrf.mxu0
  %1630 = vdwg.mxu0
  %1631 = vmatpush.bf16.msra.mxu0 0
  %1632 = vmatpush.bf16.msra.mxu0 0
  %1633 = vmatpush.bf16.msra.mxu0 0
  %1634 = vmatpush.bf16.msra.mxu0 0
  %1635 = vmatpush.bf16.msra.mxu0 %v1198
  %1636 = vmatpush.bf16.msra.mxu0 %v1193
  %1637 = vmatpush.bf16.msra.mxu0 %v1188
  %1638 = vmatpush.bf16.msra.mxu0 %v1183
  %1639 = vmatmul.bf16.gmra.mxu0 %v1382
  %v1640 = vpop.f32.mrf.mxu0
  %v1641 = vadd.f32 %v1628, %v1640
  %v1642 = vpop.f32.mrf.mxu0
  %1643 = vdwg.mxu0
  %1644 = vmatpush.bf16.msra.mxu0 %v1059
  %1645 = vmatpush.bf16.msra.mxu0 %v1054
  %1646 = vmatpush.bf16.msra.mxu0 %v1049
  %1647 = vmatpush.bf16.msra.mxu0 %v1044
  %1648 = vmatpush.bf16.msra.mxu0 %v1039
  %1649 = vmatpush.bf16.msra.mxu0 %v1034
  %1650 = vmatpush.bf16.msra.mxu0 %v1029
  %1651 = vmatpush.bf16.msra.mxu0 %v1024
  %1652 = vmatmul.bf16.gmra.mxu0 %v211
  %v1653 = vpop.f32.mrf.mxu0
  %v1654 = vadd.f32 %v438, %v1653
  %v1655 = vpop.f32.mrf.mxu0
  %1656 = vdwg.mxu0
  %1657 = vmatpush.bf16.msra.mxu0 %v1099
  %1658 = vmatpush.bf16.msra.mxu0 %v1094
  %1659 = vmatpush.bf16.msra.mxu0 %v1089
  %1660 = vmatpush.bf16.msra.mxu0 %v1084
  %1661 = vmatpush.bf16.msra.mxu0 %v1079
  %1662 = vmatpush.bf16.msra.mxu0 %v1074
  %1663 = vmatpush.bf16.msra.mxu0 %v1069
  %1664 = vmatpush.bf16.msra.mxu0 %v1064
  %1665 = vmatmul.bf16.gmra.mxu0 %v212
  %v1666 = vpop.f32.mrf.mxu0
  %v1667 = vadd.f32 %v1654, %v1666
  %v1668 = vpop.f32.mrf.mxu0
  %1669 = vdwg.mxu0
  %1670 = vmatpush.bf16.msra.mxu0 %v1139
  %1671 = vmatpush.bf16.msra.mxu0 %v1134
  %1672 = vmatpush.bf16.msra.mxu0 %v1129
  %1673 = vmatpush.bf16.msra.mxu0 %v1124
  %1674 = vmatpush.bf16.msra.mxu0 %v1119
  %1675 = vmatpush.bf16.msra.mxu0 %v1114
  %1676 = vmatpush.bf16.msra.mxu0 %v1109
  %1677 = vmatpush.bf16.msra.mxu0 %v1104
  %1678 = vmatmul.bf16.gmra.mxu0 %v213
  %v1679 = vpop.f32.mrf.mxu0
  %v1680 = vadd.f32 %v1667, %v1679
  %v1681 = vpop.f32.mrf.mxu0
  %1682 = vdwg.mxu0
  %1683 = vmatpush.bf16.msra.mxu0 %v1179
  %1684 = vmatpush.bf16.msra.mxu0 %v1174
  %1685 = vmatpush.bf16.msra.mxu0 %v1169
  %1686 = vmatpush.bf16.msra.mxu0 %v1164
  %1687 = vmatpush.bf16.msra.mxu0 %v1159
  %1688 = vmatpush.bf16.msra.mxu0 %v1154
  %1689 = vmatpush.bf16.msra.mxu0 %v1149
  %1690 = vmatpush.bf16.msra.mxu0 %v1144
  %1691 = vmatmul.bf16.gmra.mxu0 %v214
  %v1692 = vpop.f32.mrf.mxu0
  %v1693 = vadd.f32 %v1680, %v1692
  %v1694 = vpop.f32.mrf.mxu0
  %1695 = vdwg.mxu0
  %1696 = vmatpush.bf16.msra.mxu0 0
  %1697 = vmatpush.bf16.msra.mxu0 0
  %1698 = vmatpush.bf16.msra.mxu0 0
  %1699 = vmatpush.bf16.msra.mxu0 0
  %1700 = vmatpush.bf16.msra.mxu0 %v1199
  %1701 = vmatpush.bf16.msra.mxu0 %v1194
  %1702 = vmatpush.bf16.msra.mxu0 %v1189
  %1703 = vmatpush.bf16.msra.mxu0 %v1184
  %1704 = vmatmul.bf16.gmra.mxu0 %v1382
  %v1705 = vpop.f32.mrf.mxu0
  %v1706 = vadd.f32 %v1693, %v1705
  %v1707 = vpop.f32.mrf.mxu0
  %1708 = vdwg.mxu0
  %v1709 = vmax.f32 %v1446, 0.0
  %v1710 = vmax.f32 %v1511, 0.0
  %v1711 = vmax.f32 %v1576, 0.0
  %v1712 = vmax.f32 %v1641, 0.0
  %v1713 = vmax.f32 %v1706, 0.0
  %1714 = vst [vmem:[%s4] sm:$0xff] %v1709
  %1715 = vst [vmem:[%s4 + $0x8] sm:$0xff] %v1710
  %1716 = vst [vmem:[%s4 + $0x10] sm:$0xff] %v1711
  %1717 = vst [vmem:[%s4 + $0x18] sm:$0xff] %v1712
  %1718 = vst.msk [vmem:[%s4 + $0x20] sm:$0xff] %vm1380, %v1713
  // Predicated region
  $region18: #{mpii_1_forward.25} parent=0 // pred_check
    _
  $region19: #{mpii_1_forward.25} parent=0 // pred_check_branch
    %1720 = sbr.rel (0) target = $region21
  $region20: #{mpii_1_forward.25} parent=0 // pred_region
    _
  $region21: #{mpii_1_forward.25} parent=0 // pred_fallthru
    _
  // Predicated region
  $region22: #{mpii_1_forward.25} parent=0 // pred_check
    _
  $region23: #{mpii_1_forward.25} parent=0 // pred_check_branch
    %1722 = sbr.rel (0) target = $region25
  $region24: #{mpii_1_forward.25} parent=0 // pred_region
    _
  $region25: #{mpii_1_forward.25} parent=0 // pred_fallthru
    _

// kernel: mpii_1_forward.27
$region0: #{mpii_1_forward.27}
  #allocation0 [shape = 'u32[]', space=smem, size = 0x4, offset = 0x4, fixed_abs, tag = 'smem constant byte address 0x4 - core index']
  #allocation1 [shape = 'u32[72,128]{1,0:T(1,128)}', space=vmem, size = 0x9000, scoped, tag = 'internal scratch']
  %s0 = inlined_call_operand.vmem [shape: f32[2,16,576], index: 0, kind: input, shape index: {}]
  %s1 = inlined_call_operand.vmem [shape: bf16[576,16], index: 1, kind: input, shape index: {}]
  %s2 = inlined_call_operand.vmem [shape: f32[1,16], index: 2, kind: input, shape index: {}]
  %s3 = inlined_call_operand.vmem [shape: f32[16,1], index: 3, kind: input, shape index: {}]
  %s4 = inlined_call_operand.vmem [shape: f32[16,1], index: 4, kind: input, shape index: {}]
  %s5 = inlined_call_operand.hbm [shape: f32[2,16,16], index: 5, kind: output, shape index: {0}]
  %s6 = inlined_call_operand.hbm [shape: f32[2,2,16], index: 6, kind: output, shape index: {1}]
  %7 = xla_tuple %s5, %s6
  %s8 = sld [smem:[#allocation0]]
  $region61: #{mpii_1_forward.27} parent=0
    _
  %s10 = ssub.s32 1, %s8
  %s11 = scalar_select 0, %s10, %s8
  $region1: #{mpii_1_forward.27} parent=0
    #allocation2 [shape = 'u8[16384]{0}', space=vmem, size = 0x4000, scoped, tag = 'output window, operand 0']
    #allocation3 [shape = 's32[2]{0}', space=sflag, size = 0x8, scoped, tag = 'scoped memory for mpii_1_forward.27']
    #allocation4 [shape = 'u8[2048]{0}', space=vmem, size = 0x800, scoped, tag = 'output window, operand 1']
    #allocation5 [shape = 's32[2]{0}', space=sflag, size = 0x8, scoped, tag = 'scoped memory for mpii_1_forward.27']
    %12 = vsyncpa [#allocation3], 0
    %s13 = scalar_lea.sflag [#allocation3], 1
    %14 = vsyncpa %s13, 0
    %15 = vsyncpa [#allocation5], 0
    %s16 = scalar_lea.sflag [#allocation5], 1
    %17 = vsyncpa %s16, 0
    loop: start=0, step=1, limit=4
    $region2: #{mpii_1_forward.27} parent=1 // loop_pre_header
      _
    $region3: #{mpii_1_forward.27} parent=1 // loop_header
      %s19 = sphi 0, %s23
      %p20 = scmp.ge.s32.totalorder %s19, 4
      %s29 = sphi 0, %s31
      %s32 = sphi 0, %s29
      %s33 = sphi 0, %s32
      %s49 = sphi 0, %s33
      %s53 = sphi 0, %s53
      %s55 = sphi 0, %s53
      %s56 = sphi 0, %s55
      %s70 = sphi 0, %s56
      %s74 = sphi 0, %s74
      %s76 = sphi 0, %s74
      %s77 = sphi 0, %s76
      %s91 = sphi 0, %s77
      %s95 = sphi 0, %s95
      %s97 = sphi 0, %s95
      %s98 = sphi 0, %s97
      %s112 = sphi 0, %s98
      %s116 = sphi 0, %s116
      %s118 = sphi 0, %s116
      %s119 = sphi 0, %s118
      %s133 = sphi 0, %s119
      %s139 = sphi 0, %s141
      %s142 = sphi 0, %s139
      %s143 = sphi 0, %s142
      %s159 = sphi 0, %s143
      %s165 = sphi 0, %s167
      %s168 = sphi 0, %s165
      %s169 = sphi 0, %s168
      %s185 = sphi 0, %s169
    $region4: #{mpii_1_forward.27} parent=1 // loop_header_branch
      %22 = sbr.rel (%p20) target = $region8
    $region5: #{mpii_1_forward.27} parent=1 // loop_body
      %s24 = ssub.s32 %s19, 1
      %s25 = ssub.s32 %s19, 2
      %s26 = sadd.s32 %s19, 1
      %s27 = ssub.s32 %s19, %s26
      %p28 = scmp.eq.s32.totalorder %s27, 0
      %s30 = sadd.s32 %s29, 1
      %s31 = scalar_select %p28, %s29, %s30
      %p34 = pneg %p28
      %p35 = scmp.eq.s32.totalorder %s19, 1
      %p36 = por %p34, %p35
      %p37 = scmp.ne.s32.totalorder %s29, %s32
      %p38 = scmp.eq.s32.totalorder %s19, 0
      %p39 = por %p37, %p38
      %p40 = scmp.ne.s32.totalorder %s29, %s32
      %p41 = scmp.eq.s32.totalorder %s24, 1
      %p42 = por %p40, %p41
      %p43 = scmp.ne.s32.totalorder %s32, %s33
      %p44 = scmp.eq.s32.totalorder %s24, 0
      %p45 = por %p43, %p44
      %p46 = scmp.ne.s32.totalorder %s32, %s33
      %p47 = scmp.eq.s32.totalorder %s25, 1
      %p48 = por %p46, %p47
      %p50 = scmp.ne.s32.totalorder %s33, %s49
      %p51 = scmp.eq.s32.totalorder %s25, 0
      %p52 = por %p50, %p51
      %s54 = sadd.s32 %s53, 1
      %p57 = scmp.eq.s32.totalorder %s19, 1
      %p58 = scmp.ne.s32.totalorder %s53, %s55
      %p59 = scmp.eq.s32.totalorder %s19, 0
      %p60 = por %p58, %p59
      %p61 = scmp.ne.s32.totalorder %s53, %s55
      %p62 = scmp.eq.s32.totalorder %s24, 1
      %p63 = por %p61, %p62
      %p64 = scmp.ne.s32.totalorder %s55, %s56
      %p65 = scmp.eq.s32.totalorder %s24, 0
      %p66 = por %p64, %p65
      %p67 = scmp.ne.s32.totalorder %s55, %s56
      %p68 = scmp.eq.s32.totalorder %s25, 1
      %p69 = por %p67, %p68
      %p71 = scmp.ne.s32.totalorder %s56, %s70
      %p72 = scmp.eq.s32.totalorder %s25, 0
      %p73 = por %p71, %p72
      %s75 = sadd.s32 %s74, 1
      %p78 = scmp.eq.s32.totalorder %s19, 1
      %p79 = scmp.ne.s32.totalorder %s74, %s76
      %p80 = scmp.eq.s32.totalorder %s19, 0
      %p81 = por %p79, %p80
      %p82 = scmp.ne.s32.totalorder %s74, %s76
      %p83 = scmp.eq.s32.totalorder %s24, 1
      %p84 = por %p82, %p83
      %p85 = scmp.ne.s32.totalorder %s76, %s77
      %p86 = scmp.eq.s32.totalorder %s24, 0
      %p87 = por %p85, %p86
      %p88 = scmp.ne.s32.totalorder %s76, %s77
      %p89 = scmp.eq.s32.totalorder %s25, 1
      %p90 = por %p88, %p89
      %p92 = scmp.ne.s32.totalorder %s77, %s91
      %p93 = scmp.eq.s32.totalorder %s25, 0
      %p94 = por %p92, %p93
      %s96 = sadd.s32 %s95, 1
      %p99 = scmp.eq.s32.totalorder %s19, 1
      %p100 = scmp.ne.s32.totalorder %s95, %s97
      %p101 = scmp.eq.s32.totalorder %s19, 0
      %p102 = por %p100, %p101
      %p103 = scmp.ne.s32.totalorder %s95, %s97
      %p104 = scmp.eq.s32.totalorder %s24, 1
      %p105 = por %p103, %p104
      %p106 = scmp.ne.s32.totalorder %s97, %s98
      %p107 = scmp.eq.s32.totalorder %s24, 0
      %p108 = por %p106, %p107
      %p109 = scmp.ne.s32.totalorder %s97, %s98
      %p110 = scmp.eq.s32.totalorder %s25, 1
      %p111 = por %p109, %p110
      %p113 = scmp.ne.s32.totalorder %s98, %s112
      %p114 = scmp.eq.s32.totalorder %s25, 0
      %p115 = por %p113, %p114
      %s117 = sadd.s32 %s116, 1
      %p120 = scmp.eq.s32.totalorder %s19, 1
      %p121 = scmp.ne.s32.totalorder %s116, %s118
      %p122 = scmp.eq.s32.totalorder %s19, 0
      %p123 = por %p121, %p122
      %p124 = scmp.ne.s32.totalorder %s116, %s118
      %p125 = scmp.eq.s32.totalorder %s24, 1
      %p126 = por %p124, %p125
      %p127 = scmp.ne.s32.totalorder %s118, %s119
      %p128 = scmp.eq.s32.totalorder %s24, 0
      %p129 = por %p127, %p128
      %p130 = scmp.ne.s32.totalorder %s118, %s119
      %p131 = scmp.eq.s32.totalorder %s25, 1
      %p132 = por %p130, %p131
      %p134 = scmp.ne.s32.totalorder %s119, %s133
      %p135 = scmp.eq.s32.totalorder %s25, 0
      %p136 = por %p134, %p135
      %s137 = ssub.s32 %s19, %s26
      %p138 = scmp.eq.s32.totalorder %s137, 0
      %s140 = sadd.s32 %s139, 1
      %s141 = scalar_select %p138, %s139, %s140
      %p144 = pneg %p138
      %p145 = scmp.eq.s32.totalorder %s19, 1
      %p146 = por %p144, %p145
      %p147 = scmp.ne.s32.totalorder %s139, %s142
      %p148 = scmp.eq.s32.totalorder %s19, 0
      %p149 = por %p147, %p148
      %p150 = scmp.ne.s32.totalorder %s139, %s142
      %p151 = scmp.eq.s32.totalorder %s24, 1
      %p152 = por %p150, %p151
      %p153 = scmp.ne.s32.totalorder %s142, %s143
      %p154 = scmp.eq.s32.totalorder %s24, 0
      %p155 = por %p153, %p154
      %p156 = scmp.ne.s32.totalorder %s142, %s143
      %p157 = scmp.eq.s32.totalorder %s25, 1
      %p158 = por %p156, %p157
      %p160 = scmp.ne.s32.totalorder %s143, %s159
      %p161 = scmp.eq.s32.totalorder %s25, 0
      %p162 = por %p160, %p161
      %s163 = ssub.s32 %s19, %s26
      %p164 = scmp.eq.s32.totalorder %s163, 0
      %s166 = sadd.s32 %s165, 1
      %s167 = scalar_select %p164, %s165, %s166
      %p170 = pneg %p164
      %p171 = scmp.eq.s32.totalorder %s19, 1
      %p172 = por %p170, %p171
      %p173 = scmp.ne.s32.totalorder %s165, %s168
      %p174 = scmp.eq.s32.totalorder %s19, 0
      %p175 = por %p173, %p174
      %p176 = scmp.ne.s32.totalorder %s165, %s168
      %p177 = scmp.eq.s32.totalorder %s24, 1
      %p178 = por %p176, %p177
      %p179 = scmp.ne.s32.totalorder %s168, %s169
      %p180 = scmp.eq.s32.totalorder %s24, 0
      %p181 = por %p179, %p180
      %p182 = scmp.ne.s32.totalorder %s168, %s169
      %p183 = scmp.eq.s32.totalorder %s25, 1
      %p184 = por %p182, %p183
      %p186 = scmp.ne.s32.totalorder %s169, %s185
      %p187 = scmp.eq.s32.totalorder %s25, 0
      %p188 = por %p186, %p187
      %p189 = scmp.le.s32.totalorder 1, %s19
      %p190 = scmp.lt.s32.totalorder %s19, 3
      %p191 = pnand %p189, %p190
      %p192 = pneg %p191
      // Predicated region
      $region9: #{mpii_1_forward.27} parent=5 // pred_check
        _
      $region10: #{mpii_1_forward.27} parent=5 // pred_check_branch
        %194 = sbr.rel (%p191) target = $region12
      $region11: #{mpii_1_forward.27} parent=5 // pred_region
        %s195 = ssub.s32 %s19, 1
        // Predicated region
        $region13: #{mpii_1_forward.27} parent=11 // pred_check
          %p196 = pneg %p66
        $region14: #{mpii_1_forward.27} parent=11 // pred_check_branch
          %198 = sbr.rel (%p196) target = $region16
        $region15: #{mpii_1_forward.27} parent=11 // pred_region
          _
        $region16: #{mpii_1_forward.27} parent=11 // pred_fallthru
          _
        // Predicated region
        $region17: #{mpii_1_forward.27} parent=11 // pred_check
          %p199 = pneg %p87
        $region18: #{mpii_1_forward.27} parent=11 // pred_check_branch
          %201 = sbr.rel (%p199) target = $region20
        $region19: #{mpii_1_forward.27} parent=11 // pred_region
          _
        $region20: #{mpii_1_forward.27} parent=11 // pred_fallthru
          _
        // Predicated region
        $region21: #{mpii_1_forward.27} parent=11 // pred_check
          %p202 = pneg %p108
        $region22: #{mpii_1_forward.27} parent=11 // pred_check_branch
          %204 = sbr.rel (%p202) target = $region24
        $region23: #{mpii_1_forward.27} parent=11 // pred_region
          _
        $region24: #{mpii_1_forward.27} parent=11 // pred_fallthru
          _
        // Predicated region
        $region25: #{mpii_1_forward.27} parent=11 // pred_check
          %p205 = pneg %p129
        $region26: #{mpii_1_forward.27} parent=11 // pred_check_branch
          %207 = sbr.rel (%p205) target = $region28
        $region27: #{mpii_1_forward.27} parent=11 // pred_region
          _
        $region28: #{mpii_1_forward.27} parent=11 // pred_fallthru
          _
      $region12: #{mpii_1_forward.27} parent=5 // pred_fallthru
        _
      %p208 = scmp.lt.s32.totalorder %s19, 2
      // Predicated region
      $region29: #{mpii_1_forward.27} parent=5 // pred_check
        %p209 = pneg %p208
      $region30: #{mpii_1_forward.27} parent=5 // pred_check_branch
        %211 = sbr.rel (%p209) target = $region32
      $region31: #{mpii_1_forward.27} parent=5 // pred_region
        // Predicated region
        $region33: #{mpii_1_forward.27} parent=31 // pred_check
          %p212 = pneg %p39
        $region34: #{mpii_1_forward.27} parent=31 // pred_check_branch
          %214 = sbr.rel (%p212) target = $region36
        $region35: #{mpii_1_forward.27} parent=31 // pred_region
          %p215 = scmp.lt.s32.totalorder %s19, 1
          %s216 = scalar_select %p215, %s19, 1
          %s217 = smul.addr %s216, 10
          %s218 = smul.addr %s217, 8
          %s219 = scalar_lea.vmem %s0, %s218
        $region36: #{mpii_1_forward.27} parent=31 // pred_fallthru
          _
      $region32: #{mpii_1_forward.27} parent=5 // pred_fallthru
        _
      %p220 = scmp.le.s32.totalorder 1, %s19
      %p221 = scmp.lt.s32.totalorder %s19, 3
      %p222 = pnand %p220, %p221
      %p223 = pneg %p222
      // Predicated region
      $region37: #{mpii_1_forward.27} parent=5 // pred_check
        _
      $region38: #{mpii_1_forward.27} parent=5 // pred_check_branch
        %225 = sbr.rel (%p222) target = $region40
      $region39: #{mpii_1_forward.27} parent=5 // pred_region
        %s226 = ssub.s32 %s19, 1
        %p227 = scmp.lt.s32.totalorder %s24, 1
        %s228 = scalar_select %p227, %s24, 1
        %s229 = smul.addr %s228, 10
        %s230 = smul.addr %s229, 8
        %s231 = scalar_lea.vmem %s0, %s230
        %p232 = pneg %p45
        %p233 = pneg %p42
        %p234 = pneg %p66
        %p235 = pneg %p63
        %p236 = pneg %p87
        %p237 = pneg %p84
        %p238 = pneg %p108
        %p239 = pneg %p105
        %p240 = pneg %p129
        %p241 = pneg %p126
        %p242 = pneg %p155
        %p243 = pneg %p152
        %s244 = sand.u32 %s142, 1
        %s245 = scalar_lea.sflag [#allocation3], %s244
        %s246 = sand.u32 %s142, 1
        %s247 = smul.addr %s246, 16
        %s248 = scalar_lea.vmem [#allocation2], %s247
        %p249 = pneg %p181
        %p250 = pneg %p178
        %s251 = sand.u32 %s168, 1
        %s252 = scalar_lea.sflag [#allocation5], %s251
        %s253 = sand.u32 %s168, 1
        %s254 = smul.addr %s253, 2
        %s255 = scalar_lea.vmem [#allocation4], %s254
        %p256 = scmp.lt.s32.totalorder %s24, 1
        %s257 = scalar_select %p256, %s24, 1
        %s258 = smul.addr %s257, 10
        %s259 = smul.addr %s258, 8
        %s260 = scalar_lea.vmem %s0, %s259
        %v262 = vld [vmem:[%s260] sm:$0xff]
        %v263 = vld [vmem:[%s260 + $0x8] sm:$0xff]
        %v264 = vld [vmem:[%s260 + $0x10] sm:$0xff]
        %v265 = vld [vmem:[%s260 + $0x18] sm:$0xff]
        %v266 = vld [vmem:[%s260 + $0x20] sm:$0xff]
        %v267 = vld [vmem:[%s260 + $0x28] sm:$0xff]
        %v268 = vld [vmem:[%s260 + $0x30] sm:$0xff]
        %v269 = vld [vmem:[%s260 + $0x38] sm:$0xff]
        %v270 = vld [vmem:[%s260 + $0x40] sm:$0xff]
        %v271 = vld [vmem:[%s260 + $0x48] sm:$0xff]
        %v272 = vpack.c.bf16 %v267, %v262
        %v273 = vpack.c.bf16 %v268, %v263
        %v274 = vpack.c.bf16 %v269, %v264
        %v275 = vpack.c.bf16 %v270, %v265
        %v276 = vpack.c.bf16 %v271, %v266
        %v277 = vld [vmem:[%s1] sm:$0xf]
        %v278 = vld [vmem:[%s1 + $0x4] sm:$0xf]
        %v279 = vld [vmem:[%s1 + $0x8] sm:$0xf]
        %v280 = vld [vmem:[%s1 + $0xc] sm:$0xf]
        %v281 = vld [vmem:[%s1 + $0x10] sm:$0xf]
        %v282 = vld [vmem:[%s1 + $0x14] sm:$0xf]
        %v283 = vld [vmem:[%s1 + $0x18] sm:$0xf]
        %v284 = vld [vmem:[%s1 + $0x1c] sm:$0xf]
        %v285 = vld [vmem:[%s1 + $0x20] sm:$0xf]
        %v286 = vld [vmem:[%s1 + $0x24] sm:$0xf]
        %v287 = vld [vmem:[%s1 + $0x28] sm:$0xf]
        %v288 = vld [vmem:[%s1 + $0x2c] sm:$0xf]
        %v289 = vld [vmem:[%s1 + $0x30] sm:$0xf]
        %v290 = vld [vmem:[%s1 + $0x34] sm:$0xf]
        %v291 = vld [vmem:[%s1 + $0x38] sm:$0xf]
        %v292 = vld [vmem:[%s1 + $0x3c] sm:$0xf]
        %v293 = vld [vmem:[%s1 + $0x40] sm:$0xf]
        %v294 = vld [vmem:[%s1 + $0x44] sm:$0xf]
        %v295 = vld [vmem:[%s1 + $0x48] sm:$0xf]
        %v296 = vld [vmem:[%s1 + $0x4c] sm:$0xf]
        %v297 = vld [vmem:[%s1 + $0x50] sm:$0xf]
        %v298 = vld [vmem:[%s1 + $0x54] sm:$0xf]
        %v299 = vld [vmem:[%s1 + $0x58] sm:$0xf]
        %v300 = vld [vmem:[%s1 + $0x5c] sm:$0xf]
        %v301 = vld [vmem:[%s1 + $0x60] sm:$0xf]
        %v302 = vld [vmem:[%s1 + $0x64] sm:$0xf]
        %v303 = vld [vmem:[%s1 + $0x68] sm:$0xf]
        %v304 = vld [vmem:[%s1 + $0x6c] sm:$0xf]
        %v305 = vld [vmem:[%s1 + $0x70] sm:$0xf]
        %v306 = vld [vmem:[%s1 + $0x74] sm:$0xf]
        %v307 = vld [vmem:[%s1 + $0x78] sm:$0xf]
        %v308 = vld [vmem:[%s1 + $0x7c] sm:$0xf]
        %v309 = vld [vmem:[%s1 + $0x80] sm:$0xf]
        %v310 = vld [vmem:[%s1 + $0x84] sm:$0xf]
        %v311 = vld [vmem:[%s1 + $0x88] sm:$0xf]
        %v312 = vld [vmem:[%s1 + $0x8c] sm:$0xf]
        %v313 = vld [vmem:[%s1 + $0x90] sm:$0xf]
        %v314 = vld [vmem:[%s1 + $0x94] sm:$0xf]
        %v315 = vld [vmem:[%s1 + $0x98] sm:$0xf]
        %v316 = vld [vmem:[%s1 + $0x9c] sm:$0xf]
        %v317 = vld [vmem:[%s1 + $0xa0] sm:$0xf]
        %v318 = vld [vmem:[%s1 + $0xa4] sm:$0xf]
        %v319 = vld [vmem:[%s1 + $0xa8] sm:$0xf]
        %v320 = vld [vmem:[%s1 + $0xac] sm:$0xf]
        %v321 = vld [vmem:[%s1 + $0xb0] sm:$0xf]
        %v322 = vld [vmem:[%s1 + $0xb4] sm:$0xf]
        %v323 = vld [vmem:[%s1 + $0xb8] sm:$0xf]
        %v324 = vld [vmem:[%s1 + $0xbc] sm:$0xf]
        %v325 = vld [vmem:[%s1 + $0xc0] sm:$0xf]
        %v326 = vld [vmem:[%s1 + $0xc4] sm:$0xf]
        %v327 = vld [vmem:[%s1 + $0xc8] sm:$0xf]
        %v328 = vld [vmem:[%s1 + $0xcc] sm:$0xf]
        %v329 = vld [vmem:[%s1 + $0xd0] sm:$0xf]
        %v330 = vld [vmem:[%s1 + $0xd4] sm:$0xf]
        %v331 = vld [vmem:[%s1 + $0xd8] sm:$0xf]
        %v332 = vld [vmem:[%s1 + $0xdc] sm:$0xf]
        %v333 = vld [vmem:[%s1 + $0xe0] sm:$0xf]
        %v334 = vld [vmem:[%s1 + $0xe4] sm:$0xf]
        %v335 = vld [vmem:[%s1 + $0xe8] sm:$0xf]
        %v336 = vld [vmem:[%s1 + $0xec] sm:$0xf]
        %v337 = vld [vmem:[%s1 + $0xf0] sm:$0xf]
        %v338 = vld [vmem:[%s1 + $0xf4] sm:$0xf]
        %v339 = vld [vmem:[%s1 + $0xf8] sm:$0xf]
        %v340 = vld [vmem:[%s1 + $0xfc] sm:$0xf]
        %v341 = vld [vmem:[%s1 + $0x100] sm:$0xf]
        %v342 = vld [vmem:[%s1 + $0x104] sm:$0xf]
        %v343 = vld [vmem:[%s1 + $0x108] sm:$0xf]
        %v344 = vld [vmem:[%s1 + $0x10c] sm:$0xf]
        %v345 = vld [vmem:[%s1 + $0x110] sm:$0xf]
        %v346 = vld [vmem:[%s1 + $0x114] sm:$0xf]
        %v347 = vld [vmem:[%s1 + $0x118] sm:$0xf]
        %v348 = vld [vmem:[%s1 + $0x11c] sm:$0xf]
        %v349 = vld [vmem:[%s2] sm:$0x1]
        %v351 = vperm.slane %v349, 0
        %v425 = vunpack.c.l.b16 %v277
        %v426 = vunpack.c.l.b16 %v278
        %v427 = vunpack.c.l.b16 %v279
        %v428 = vunpack.c.l.b16 %v280
        %v429 = vunpack.c.l.b16 %v281
        %v430 = vunpack.c.l.b16 %v282
        %v431 = vunpack.c.l.b16 %v283
        %v432 = vunpack.c.l.b16 %v284
        %v433 = vunpack.c.l.b16 %v285
        %v434 = vunpack.c.l.b16 %v286
        %v435 = vunpack.c.l.b16 %v287
        %v436 = vunpack.c.l.b16 %v288
        %v437 = vunpack.c.l.b16 %v289
        %v438 = vunpack.c.l.b16 %v290
        %v439 = vunpack.c.l.b16 %v291
        %v440 = vunpack.c.l.b16 %v292
        %v441 = vunpack.c.l.b16 %v293
        %v442 = vunpack.c.l.b16 %v294
        %v443 = vunpack.c.l.b16 %v295
        %v444 = vunpack.c.l.b16 %v296
        %v445 = vunpack.c.l.b16 %v297
        %v446 = vunpack.c.l.b16 %v298
        %v447 = vunpack.c.l.b16 %v299
        %v448 = vunpack.c.l.b16 %v300
        %v449 = vunpack.c.l.b16 %v301
        %v450 = vunpack.c.l.b16 %v302
        %v451 = vunpack.c.l.b16 %v303
        %v452 = vunpack.c.l.b16 %v304
        %v453 = vunpack.c.l.b16 %v305
        %v454 = vunpack.c.l.b16 %v306
        %v455 = vunpack.c.l.b16 %v307
        %v456 = vunpack.c.l.b16 %v308
        %v457 = vunpack.c.l.b16 %v309
        %v458 = vunpack.c.l.b16 %v310
        %v459 = vunpack.c.l.b16 %v311
        %v460 = vunpack.c.l.b16 %v312
        %v461 = vunpack.c.l.b16 %v313
        %v462 = vunpack.c.l.b16 %v314
        %v463 = vunpack.c.l.b16 %v315
        %v464 = vunpack.c.l.b16 %v316
        %v465 = vunpack.c.l.b16 %v317
        %v466 = vunpack.c.l.b16 %v318
        %v467 = vunpack.c.l.b16 %v319
        %v468 = vunpack.c.l.b16 %v320
        %v469 = vunpack.c.l.b16 %v321
        %v470 = vunpack.c.l.b16 %v322
        %v471 = vunpack.c.l.b16 %v323
        %v472 = vunpack.c.l.b16 %v324
        %v473 = vunpack.c.l.b16 %v325
        %v474 = vunpack.c.l.b16 %v326
        %v475 = vunpack.c.l.b16 %v327
        %v476 = vunpack.c.l.b16 %v328
        %v477 = vunpack.c.l.b16 %v329
        %v478 = vunpack.c.l.b16 %v330
        %v479 = vunpack.c.l.b16 %v331
        %v480 = vunpack.c.l.b16 %v332
        %v481 = vunpack.c.l.b16 %v333
        %v482 = vunpack.c.l.b16 %v334
        %v483 = vunpack.c.l.b16 %v335
        %v484 = vunpack.c.l.b16 %v336
        %v485 = vunpack.c.l.b16 %v337
        %v486 = vunpack.c.l.b16 %v338
        %v487 = vunpack.c.l.b16 %v339
        %v488 = vunpack.c.l.b16 %v340
        %v489 = vunpack.c.l.b16 %v341
        %v490 = vunpack.c.l.b16 %v342
        %v491 = vunpack.c.l.b16 %v343
        %v492 = vunpack.c.l.b16 %v344
        %v493 = vunpack.c.l.b16 %v345
        %v494 = vunpack.c.l.b16 %v346
        %v495 = vunpack.c.l.b16 %v347
        %v496 = vunpack.c.l.b16 %v348
        %v497 = vpack.c.b16 %v426, %v425
        %v498 = vpack.c.b16 %v428, %v427
        %v499 = vpack.c.b16 %v430, %v429
        %v500 = vpack.c.b16 %v432, %v431
        %v501 = vpack.c.b16 %v434, %v433
        %v502 = vpack.c.b16 %v436, %v435
        %v503 = vpack.c.b16 %v438, %v437
        %v504 = vpack.c.b16 %v440, %v439
        %v505 = vpack.c.b16 %v442, %v441
        %v506 = vpack.c.b16 %v444, %v443
        %v507 = vpack.c.b16 %v446, %v445
        %v508 = vpack.c.b16 %v448, %v447
        %v509 = vpack.c.b16 %v450, %v449
        %v510 = vpack.c.b16 %v452, %v451
        %v511 = vpack.c.b16 %v454, %v453
        %v512 = vpack.c.b16 %v456, %v455
        %v513 = vpack.c.b16 %v458, %v457
        %v514 = vpack.c.b16 %v460, %v459
        %v515 = vpack.c.b16 %v462, %v461
        %v516 = vpack.c.b16 %v464, %v463
        %v517 = vpack.c.b16 %v466, %v465
        %v518 = vpack.c.b16 %v468, %v467
        %v519 = vpack.c.b16 %v470, %v469
        %v520 = vpack.c.b16 %v472, %v471
        %v521 = vpack.c.b16 %v474, %v473
        %v522 = vpack.c.b16 %v476, %v475
        %v523 = vpack.c.b16 %v478, %v477
        %v524 = vpack.c.b16 %v480, %v479
        %v525 = vpack.c.b16 %v482, %v481
        %v526 = vpack.c.b16 %v484, %v483
        %v527 = vpack.c.b16 %v486, %v485
        %v528 = vpack.c.b16 %v488, %v487
        %v529 = vpack.c.b16 %v490, %v489
        %v530 = vpack.c.b16 %v492, %v491
        %v531 = vpack.c.b16 %v494, %v493
        %v532 = vpack.c.b16 %v496, %v495
        %vm569 = vcmask 523264
        %v571 = vsel %vm569, %v276, 0
        %573 = vmatpush.bf16.msra.mxu0 %v504
        %574 = vmatpush.bf16.msra.mxu0 %v503
        %575 = vmatpush.bf16.msra.mxu0 %v502
        %576 = vmatpush.bf16.msra.mxu0 %v501
        %577 = vmatpush.bf16.msra.mxu0 %v500
        %578 = vmatpush.bf16.msra.mxu0 %v499
        %579 = vmatpush.bf16.msra.mxu0 %v498
        %580 = vmatpush.bf16.msra.mxu0 %v497
        %581 = vmatmul.bf16.gmra.mxu0 %v272
        %v582 = vpop.f32.mrf.mxu0
        %v583 = vadd.f32 %v351, %v582
        %v584 = vpop.f32.mrf.mxu0
        %v585 = vadd.f32 %v351, %v584
        %586 = vdwg.mxu0
        %587 = vmatpush.bf16.msra.mxu0 %v512
        %588 = vmatpush.bf16.msra.mxu0 %v511
        %589 = vmatpush.bf16.msra.mxu0 %v510
        %590 = vmatpush.bf16.msra.mxu0 %v509
        %591 = vmatpush.bf16.msra.mxu0 %v508
        %592 = vmatpush.bf16.msra.mxu0 %v507
        %593 = vmatpush.bf16.msra.mxu0 %v506
        %594 = vmatpush.bf16.msra.mxu0 %v505
        %595 = vmatmul.bf16.gmra.mxu0 %v273
        %v596 = vpop.f32.mrf.mxu0
        %v597 = vadd.f32 %v583, %v596
        %v598 = vpop.f32.mrf.mxu0
        %v599 = vadd.f32 %v585, %v598
        %600 = vdwg.mxu0
        %601 = vmatpush.bf16.msra.mxu0 %v520
        %602 = vmatpush.bf16.msra.mxu0 %v519
        %603 = vmatpush.bf16.msra.mxu0 %v518
        %604 = vmatpush.bf16.msra.mxu0 %v517
        %605 = vmatpush.bf16.msra.mxu0 %v516
        %606 = vmatpush.bf16.msra.mxu0 %v515
        %607 = vmatpush.bf16.msra.mxu0 %v514
        %608 = vmatpush.bf16.msra.mxu0 %v513
        %609 = vmatmul.bf16.gmra.mxu0 %v274
        %v610 = vpop.f32.mrf.mxu0
        %v611 = vadd.f32 %v597, %v610
        %v612 = vpop.f32.mrf.mxu0
        %v613 = vadd.f32 %v599, %v612
        %614 = vdwg.mxu0
        %615 = vmatpush.bf16.msra.mxu0 %v528
        %616 = vmatpush.bf16.msra.mxu0 %v527
        %617 = vmatpush.bf16.msra.mxu0 %v526
        %618 = vmatpush.bf16.msra.mxu0 %v525
        %619 = vmatpush.bf16.msra.mxu0 %v524
        %620 = vmatpush.bf16.msra.mxu0 %v523
        %621 = vmatpush.bf16.msra.mxu0 %v522
        %622 = vmatpush.bf16.msra.mxu0 %v521
        %623 = vmatmul.bf16.gmra.mxu0 %v275
        %v624 = vpop.f32.mrf.mxu0
        %v625 = vadd.f32 %v611, %v624
        %v626 = vpop.f32.mrf.mxu0
        %v627 = vadd.f32 %v613, %v626
        %628 = vdwg.mxu0
        %629 = vmatpush.bf16.msra.mxu0 0
        %630 = vmatpush.bf16.msra.mxu0 0
        %631 = vmatpush.bf16.msra.mxu0 0
        %632 = vmatpush.bf16.msra.mxu0 0
        %633 = vmatpush.bf16.msra.mxu0 %v532
        %634 = vmatpush.bf16.msra.mxu0 %v531
        %635 = vmatpush.bf16.msra.mxu0 %v530
        %636 = vmatpush.bf16.msra.mxu0 %v529
        %637 = vmatmul.bf16.gmra.mxu0 %v571
        %v638 = vpop.f32.mrf.mxu0
        %v639 = vadd.f32 %v625, %v638
        %v640 = vpop.f32.mrf.mxu0
        %v641 = vadd.f32 %v627, %v640
        %642 = vdwg.mxu0
        %vm643 = vcmask 130048
        %644 = vst.msk [vmem:[%s248] sm:$0xff] %vm643, %v639
        %645 = vst.msk [vmem:[%s248 + $0x8] sm:$0xff] %vm643, %v641
        %v646 = vsel %vm643, %v639, -inf
        %v647 = vsel %vm643, %v641, -inf
        %v648 = vmax.f32 %v646, %v647
        %v649 = vrot.slane %v648, 4
        %v650 = vmax.f32 %v648, %v649
        %v651 = vrot.slane %v650, 2
        %v652 = vmax.f32 %v650, %v651
        %v653 = vrot.slane %v652, 1
        %v654 = vmax.f32 %v652, %v653
        %v655 = vsub.f32 %v639, %v654
        %v656 = vsub.f32 %v641, %v654
        %v657 = vmul.f32 %v655, 1.442695
        %v658 = vpow.pop %v657
        %v659 = vmul.f32 %v656, 1.442695
        %v660 = vpow.pop %v659
        %v661 = vsel %vm643, %v658, 0.0
        %v662 = vsel %vm643, %v660, 0.0
        %v663 = vadd.f32 %v661, %v662
        %v664 = vrot.slane %v663, 4
        %v665 = vadd.f32 %v663, %v664
        %v666 = vrot.slane %v665, 2
        %v667 = vadd.f32 %v665, %v666
        %v668 = vrot.slane %v667, 1
        %v669 = vadd.f32 %v667, %v668
        %v670 = vrcp.pop %v669
        %v671 = vld [vmem:[%s3] sm:$0xff]
        %v672 = vld [vmem:[%s3 + $0x8] sm:$0xff]
        %674 = vset.pattern.permute.xlu0 0
        %675 = vperm.xlu0 %674, %v671
        %v676 = vpop.permute.xlu0 %675
        %679 = vset.pattern.permute.xlu0 0
        %680 = vperm.xlu0 %679, %v672
        %v681 = vpop.permute.xlu0 %680
        %v683 = vmul.f32 %v658, %v676
        %v684 = vmul.f32 %v660, %v681
        %v685 = vsel %vm643, %v683, 0.0
        %v686 = vsel %vm643, %v684, 0.0
        %v687 = vadd.f32 %v685, %v686
        %v688 = vrot.slane %v687, 4
        %v689 = vadd.f32 %v687, %v688
        %v690 = vrot.slane %v689, 2
        %v691 = vadd.f32 %v689, %v690
        %v692 = vrot.slane %v691, 1
        %v693 = vadd.f32 %v691, %v692
        %v694 = vmul.f32 %v693, %v670
        %v695 = vld [vmem:[%s4] sm:$0xff]
        %v696 = vld [vmem:[%s4 + $0x8] sm:$0xff]
        %698 = vset.pattern.permute.xlu0 0
        %699 = vperm.xlu0 %698, %v695
        %v700 = vpop.permute.xlu0 %699
        %703 = vset.pattern.permute.xlu0 0
        %704 = vperm.xlu0 %703, %v696
        %v705 = vpop.permute.xlu0 %704
        %v707 = vmul.f32 %v658, %v700
        %v708 = vmul.f32 %v660, %v705
        %v709 = vsel %vm643, %v707, 0.0
        %v710 = vsel %vm643, %v708, 0.0
        %v711 = vadd.f32 %v709, %v710
        %v712 = vrot.slane %v711, 4
        %v713 = vadd.f32 %v711, %v712
        %v714 = vrot.slane %v713, 2
        %v715 = vadd.f32 %v713, %v714
        %v716 = vrot.slane %v715, 1
        %v717 = vadd.f32 %v715, %v716
        %v718 = vmul.f32 %v717, %v670
        %vm719 = vcmask 1040384
        %v720 = vsel %vm719, %v694, %v718
        %vm721 = vcmask 123904
        %722 = vst.msk [vmem:[%s255] sm:$0x3] %vm721, %v720
        %s723 = sand.u32 %s142, 1
        %s724 = scalar_lea.sflag [#allocation3], %s723
        %s725 = sand.u32 %s142, 1
        %s726 = smul.addr %s725, 16
        %s727 = scalar_lea.vmem [#allocation2], %s726
        %s728 = sand.u32 %s168, 1
        %s729 = scalar_lea.sflag [#allocation5], %s728
        %s730 = sand.u32 %s168, 1
        %s731 = smul.addr %s730, 2
        %s732 = scalar_lea.vmem [#allocation4], %s731
        // Predicated region
        $region41: #{mpii_1_forward.27} parent=39 // pred_check
          %p733 = pneg %p152
        $region42: #{mpii_1_forward.27} parent=39 // pred_check_branch
          %735 = sbr.rel (%p733) target = $region44
        $region43: #{mpii_1_forward.27} parent=39 // pred_region
          %737 = vsyncadd %s724, 0
          %s738 = smul.addr %s24, 2
          %s739 = smul.addr %s738, 8
          %s740 = scalar_lea.hbm %s5, %s739
          %s741 = sshll.u32 %s727, 4
          %s742 = int_to_ptr.vmem [resolvable:$true] %s741
          %s743 = sshll.u32 %s740, 4
          %s744 = int_to_ptr.hbm [resolvable:$true] %s743
          %749 = dma.vmem_to_hbm [thread:$0]  %s742, 256, %s744, %s724, 128, 128, 8
        $region44: #{mpii_1_forward.27} parent=39 // pred_fallthru
          _
        // Predicated region
        $region45: #{mpii_1_forward.27} parent=39 // pred_check
          %p750 = pneg %p178
        $region46: #{mpii_1_forward.27} parent=39 // pred_check_branch
          %752 = sbr.rel (%p750) target = $region48
        $region47: #{mpii_1_forward.27} parent=39 // pred_region
          %754 = vsyncadd %s729, 0
          %s755 = smul.addr %s24, 2
          %s756 = scalar_lea.hbm %s6, %s755
          %s758 = sshll.u32 %s732, 4
          %s759 = int_to_ptr.vmem [resolvable:$true] %s758
          %s760 = sshll.u32 %s756, 4
          %s761 = int_to_ptr.hbm [resolvable:$true] %s760
          %763 = dma.vmem_to_hbm [thread:$0]  %s759, 32, %s761, %s729
        $region48: #{mpii_1_forward.27} parent=39 // pred_fallthru
          _
      $region40: #{mpii_1_forward.27} parent=5 // pred_fallthru
        _
      %p764 = scmp.le.s32.totalorder 2, %s19
      // Predicated region
      $region49: #{mpii_1_forward.27} parent=5 // pred_check
        %p765 = pneg %p764
      $region50: #{mpii_1_forward.27} parent=5 // pred_check_branch
        %767 = sbr.rel (%p765) target = $region52
      $region51: #{mpii_1_forward.27} parent=5 // pred_region
        %s768 = ssub.s32 %s19, 2
        // Predicated region
        $region53: #{mpii_1_forward.27} parent=51 // pred_check
          %p769 = pneg %p158
        $region54: #{mpii_1_forward.27} parent=51 // pred_check_branch
          %771 = sbr.rel (%p769) target = $region56
        $region55: #{mpii_1_forward.27} parent=51 // pred_region
          %s772 = sand.u32 %s143, 1
          %s773 = scalar_lea.sflag [#allocation3], %s772
          %s774 = sand.u32 %s143, 1
          %s775 = smul.addr %s774, 16
          %s776 = scalar_lea.vmem [#allocation2], %s775
          %778 = dma.done %s773, 256
        $region56: #{mpii_1_forward.27} parent=51 // pred_fallthru
          _
        // Predicated region
        $region57: #{mpii_1_forward.27} parent=51 // pred_check
          %p779 = pneg %p184
        $region58: #{mpii_1_forward.27} parent=51 // pred_check_branch
          %781 = sbr.rel (%p779) target = $region60
        $region59: #{mpii_1_forward.27} parent=51 // pred_region
          %s782 = sand.u32 %s169, 1
          %s783 = scalar_lea.sflag [#allocation5], %s782
          %s784 = sand.u32 %s169, 1
          %s785 = smul.addr %s784, 2
          %s786 = scalar_lea.vmem [#allocation4], %s785
          %788 = dma.done %s783, 32
        $region60: #{mpii_1_forward.27} parent=51 // pred_fallthru
          _
      $region52: #{mpii_1_forward.27} parent=5 // pred_fallthru
        _
    $region6: #{mpii_1_forward.27} parent=1 // loop_footer
      %s23 = sadd.s32 1, %s19
    $region7: #{mpii_1_forward.27} parent=1 // loop_footer_branch
      %18 = sbr.rel target = $region3
    $region8: #{mpii_1_forward.27} parent=1 // loop_exit
      _
    %789 = vsyncpa [#allocation3], 1
    %s790 = scalar_lea.sflag [#allocation3], 1
    %791 = vsyncpa %s790, 1
    %792 = vsyncpa [#allocation5], 1
    %s793 = scalar_lea.sflag [#allocation5], 1
    %794 = vsyncpa %s793, 1

// kernel: mpii_1_forward.26
$region0: #{mpii_1_forward.26}
  #allocation0 [shape = 'u32[]', space=smem, size = 0x4, offset = 0x4, fixed_abs, tag = 'smem constant byte address 0x4 - core index']
  #allocation1 [shape = 'u32[72,128]{1,0:T(1,128)}', space=vmem, size = 0x9000, scoped, tag = 'internal scratch']
  %s0 = inlined_call_operand.vmem [shape: f32[9,32,576], index: 0, kind: input, shape index: {}]
  %s1 = inlined_call_operand.vmem [shape: f32[9,576], index: 1, kind: input, shape index: {}]
  %s2 = inlined_call_operand.vmem [shape: bf16[576,576], index: 2, kind: input, shape index: {}]
  %s3 = inlined_call_operand.vmem [shape: f32[1,576], index: 3, kind: input, shape index: {}]
  %s4 = inlined_call_operand.vmem [shape: f32[32,576], index: 4, kind: output, shape index: {}]
  %s5 = sld [smem:[#allocation0]]
  $region26: #{mpii_1_forward.26} parent=0
    _
  %s7 = ssub.s32 1, %s5
  %s8 = scalar_select 0, %s7, %s5
  // Predicated region
  $region2: #{mpii_1_forward.26} parent=0 // pred_check
    _
  $region3: #{mpii_1_forward.26} parent=0 // pred_check_branch
    %10 = sbr.rel (0) target = $region5
  $region4: #{mpii_1_forward.26} parent=0 // pred_region
    _
  $region5: #{mpii_1_forward.26} parent=0 // pred_fallthru
    _
  // Predicated region
  $region6: #{mpii_1_forward.26} parent=0 // pred_check
    _
  $region7: #{mpii_1_forward.26} parent=0 // pred_check_branch
    %12 = sbr.rel (0) target = $region9
  $region8: #{mpii_1_forward.26} parent=0 // pred_region
    _
  $region9: #{mpii_1_forward.26} parent=0 // pred_fallthru
    _
  // Predicated region
  $region10: #{mpii_1_forward.26} parent=0 // pred_check
    _
  $region11: #{mpii_1_forward.26} parent=0 // pred_check_branch
    %14 = sbr.rel (0) target = $region13
  $region12: #{mpii_1_forward.26} parent=0 // pred_region
    _
  $region13: #{mpii_1_forward.26} parent=0 // pred_fallthru
    _
  // Predicated region
  $region14: #{mpii_1_forward.26} parent=0 // pred_check
    _
  $region15: #{mpii_1_forward.26} parent=0 // pred_check_branch
    %16 = sbr.rel (0) target = $region17
  $region16: #{mpii_1_forward.26} parent=0 // pred_region
    _
  $region17: #{mpii_1_forward.26} parent=0 // pred_fallthru
    _
  %v18 = vld [vmem:[%s1] sm:$0xff]
  %v19 = vld [vmem:[%s1 + $0x8] sm:$0xff]
  %v20 = vld [vmem:[%s1 + $0x10] sm:$0xff]
  %v21 = vld [vmem:[%s1 + $0x18] sm:$0xff]
  %v22 = vld [vmem:[%s1 + $0x20] sm:$0xff]
  %v23 = vld [vmem:[%s1 + $0x28] sm:$0x1]
  %v24 = vld [vmem:[%s1 + $0x30] sm:$0x1]
  %v25 = vld [vmem:[%s1 + $0x38] sm:$0x1]
  %v26 = vld [vmem:[%s1 + $0x40] sm:$0x1]
  %v27 = vld [vmem:[%s1 + $0x48] sm:$0x1]
  %v28 = vld [vmem:[%s0] sm:$0xff]
  %v29 = vld [vmem:[%s0 + $0x8] sm:$0xff]
  %v30 = vld [vmem:[%s0 + $0x10] sm:$0xff]
  %v31 = vld [vmem:[%s0 + $0x18] sm:$0xff]
  %v32 = vld [vmem:[%s0 + $0x20] sm:$0xff]
  %v33 = vld [vmem:[%s0 + $0x28] sm:$0xff]
  %v34 = vld [vmem:[%s0 + $0x30] sm:$0xff]
  %v35 = vld [vmem:[%s0 + $0x38] sm:$0xff]
  %v36 = vld [vmem:[%s0 + $0x40] sm:$0xff]
  %v37 = vld [vmem:[%s0 + $0x48] sm:$0xff]
  %v38 = vld [vmem:[%s0 + $0x50] sm:$0xff]
  %v39 = vld [vmem:[%s0 + $0x58] sm:$0xff]
  %v40 = vld [vmem:[%s0 + $0x60] sm:$0xff]
  %v41 = vld [vmem:[%s0 + $0x68] sm:$0xff]
  %v42 = vld [vmem:[%s0 + $0x70] sm:$0xff]
  %v43 = vld [vmem:[%s0 + $0x78] sm:$0xff]
  %v44 = vld [vmem:[%s0 + $0x80] sm:$0xff]
  %v45 = vld [vmem:[%s0 + $0x88] sm:$0xff]
  %v46 = vld [vmem:[%s0 + $0x90] sm:$0xff]
  %v47 = vld [vmem:[%s0 + $0x98] sm:$0xff]
  %v48 = vperm.slane %v18, 0
  %v49 = vperm.slane %v19, 0
  %v50 = vperm.slane %v20, 0
  %v51 = vperm.slane %v21, 0
  %v52 = vperm.slane %v22, 0
  %v53 = vmul.f32 %v28, %v48
  %v54 = vmul.f32 %v29, %v49
  %v55 = vmul.f32 %v30, %v50
  %v56 = vmul.f32 %v31, %v51
  %v57 = vmul.f32 %v32, %v52
  %v58 = vmul.f32 %v33, %v48
  %v59 = vmul.f32 %v34, %v49
  %v60 = vmul.f32 %v35, %v50
  %v61 = vmul.f32 %v36, %v51
  %v62 = vmul.f32 %v37, %v52
  %v63 = vmul.f32 %v38, %v48
  %v64 = vmul.f32 %v39, %v49
  %v65 = vmul.f32 %v40, %v50
  %v66 = vmul.f32 %v41, %v51
  %v67 = vmul.f32 %v42, %v52
  %v68 = vmul.f32 %v43, %v48
  %v69 = vmul.f32 %v44, %v49
  %v70 = vmul.f32 %v45, %v50
  %v71 = vmul.f32 %v46, %v51
  %v72 = vmul.f32 %v47, %v52
  %s73 = scalar_lea.vmem %s0, 160
  %v74 = vld [vmem:[%s73] sm:$0xff]
  %v75 = vld [vmem:[%s73 + $0x8] sm:$0xff]
  %v76 = vld [vmem:[%s73 + $0x10] sm:$0xff]
  %v77 = vld [vmem:[%s73 + $0x18] sm:$0xff]
  %v78 = vld [vmem:[%s73 + $0x20] sm:$0xff]
  %v79 = vld [vmem:[%s73 + $0x28] sm:$0xff]
  %v80 = vld [vmem:[%s73 + $0x30] sm:$0xff]
  %v81 = vld [vmem:[%s73 + $0x38] sm:$0xff]
  %v82 = vld [vmem:[%s73 + $0x40] sm:$0xff]
  %v83 = vld [vmem:[%s73 + $0x48] sm:$0xff]
  %v84 = vld [vmem:[%s73 + $0x50] sm:$0xff]
  %v85 = vld [vmem:[%s73 + $0x58] sm:$0xff]
  %v86 = vld [vmem:[%s73 + $0x60] sm:$0xff]
  %v87 = vld [vmem:[%s73 + $0x68] sm:$0xff]
  %v88 = vld [vmem:[%s73 + $0x70] sm:$0xff]
  %v89 = vld [vmem:[%s73 + $0x78] sm:$0xff]
  %v90 = vld [vmem:[%s73 + $0x80] sm:$0xff]
  %v91 = vld [vmem:[%s73 + $0x88] sm:$0xff]
  %v92 = vld [vmem:[%s73 + $0x90] sm:$0xff]
  %v93 = vld [vmem:[%s73 + $0x98] sm:$0xff]
  %v94 = vperm.slane %v18, 1
  %v95 = vperm.slane %v19, 1
  %v96 = vperm.slane %v20, 1
  %v97 = vperm.slane %v21, 1
  %v98 = vperm.slane %v22, 1
  %v99 = vmul.f32 %v74, %v94
  %v100 = vmul.f32 %v75, %v95
  %v101 = vmul.f32 %v76, %v96
  %v102 = vmul.f32 %v77, %v97
  %v103 = vmul.f32 %v78, %v98
  %v104 = vmul.f32 %v79, %v94
  %v105 = vmul.f32 %v80, %v95
  %v106 = vmul.f32 %v81, %v96
  %v107 = vmul.f32 %v82, %v97
  %v108 = vmul.f32 %v83, %v98
  %v109 = vmul.f32 %v84, %v94
  %v110 = vmul.f32 %v85, %v95
  %v111 = vmul.f32 %v86, %v96
  %v112 = vmul.f32 %v87, %v97
  %v113 = vmul.f32 %v88, %v98
  %v114 = vmul.f32 %v89, %v94
  %v115 = vmul.f32 %v90, %v95
  %v116 = vmul.f32 %v91, %v96
  %v117 = vmul.f32 %v92, %v97
  %v118 = vmul.f32 %v93, %v98
  %v119 = vadd.f32 %v53, %v99
  %v120 = vadd.f32 %v54, %v100
  %v121 = vadd.f32 %v55, %v101
  %v122 = vadd.f32 %v56, %v102
  %v123 = vadd.f32 %v57, %v103
  %v124 = vadd.f32 %v58, %v104
  %v125 = vadd.f32 %v59, %v105
  %v126 = vadd.f32 %v60, %v106
  %v127 = vadd.f32 %v61, %v107
  %v128 = vadd.f32 %v62, %v108
  %v129 = vadd.f32 %v63, %v109
  %v130 = vadd.f32 %v64, %v110
  %v131 = vadd.f32 %v65, %v111
  %v132 = vadd.f32 %v66, %v112
  %v133 = vadd.f32 %v67, %v113
  %v134 = vadd.f32 %v68, %v114
  %v135 = vadd.f32 %v69, %v115
  %v136 = vadd.f32 %v70, %v116
  %v137 = vadd.f32 %v71, %v117
  %v138 = vadd.f32 %v72, %v118
  %s139 = scalar_lea.vmem %s0, 320
  %v140 = vld [vmem:[%s139] sm:$0xff]
  %v141 = vld [vmem:[%s139 + $0x8] sm:$0xff]
  %v142 = vld [vmem:[%s139 + $0x10] sm:$0xff]
  %v143 = vld [vmem:[%s139 + $0x18] sm:$0xff]
  %v144 = vld [vmem:[%s139 + $0x20] sm:$0xff]
  %v145 = vld [vmem:[%s139 + $0x28] sm:$0xff]
  %v146 = vld [vmem:[%s139 + $0x30] sm:$0xff]
  %v147 = vld [vmem:[%s139 + $0x38] sm:$0xff]
  %v148 = vld [vmem:[%s139 + $0x40] sm:$0xff]
  %v149 = vld [vmem:[%s139 + $0x48] sm:$0xff]
  %v150 = vld [vmem:[%s139 + $0x50] sm:$0xff]
  %v151 = vld [vmem:[%s139 + $0x58] sm:$0xff]
  %v152 = vld [vmem:[%s139 + $0x60] sm:$0xff]
  %v153 = vld [vmem:[%s139 + $0x68] sm:$0xff]
  %v154 = vld [vmem:[%s139 + $0x70] sm:$0xff]
  %v155 = vld [vmem:[%s139 + $0x78] sm:$0xff]
  %v156 = vld [vmem:[%s139 + $0x80] sm:$0xff]
  %v157 = vld [vmem:[%s139 + $0x88] sm:$0xff]
  %v158 = vld [vmem:[%s139 + $0x90] sm:$0xff]
  %v159 = vld [vmem:[%s139 + $0x98] sm:$0xff]
  %v160 = vperm.slane %v18, 2
  %v161 = vperm.slane %v19, 2
  %v162 = vperm.slane %v20, 2
  %v163 = vperm.slane %v21, 2
  %v164 = vperm.slane %v22, 2
  %v165 = vmul.f32 %v140, %v160
  %v166 = vmul.f32 %v141, %v161
  %v167 = vmul.f32 %v142, %v162
  %v168 = vmul.f32 %v143, %v163
  %v169 = vmul.f32 %v144, %v164
  %v170 = vmul.f32 %v145, %v160
  %v171 = vmul.f32 %v146, %v161
  %v172 = vmul.f32 %v147, %v162
  %v173 = vmul.f32 %v148, %v163
  %v174 = vmul.f32 %v149, %v164
  %v175 = vmul.f32 %v150, %v160
  %v176 = vmul.f32 %v151, %v161
  %v177 = vmul.f32 %v152, %v162
  %v178 = vmul.f32 %v153, %v163
  %v179 = vmul.f32 %v154, %v164
  %v180 = vmul.f32 %v155, %v160
  %v181 = vmul.f32 %v156, %v161
  %v182 = vmul.f32 %v157, %v162
  %v183 = vmul.f32 %v158, %v163
  %v184 = vmul.f32 %v159, %v164
  %v185 = vadd.f32 %v119, %v165
  %v186 = vadd.f32 %v120, %v166
  %v187 = vadd.f32 %v121, %v167
  %v188 = vadd.f32 %v122, %v168
  %v189 = vadd.f32 %v123, %v169
  %v190 = vadd.f32 %v124, %v170
  %v191 = vadd.f32 %v125, %v171
  %v192 = vadd.f32 %v126, %v172
  %v193 = vadd.f32 %v127, %v173
  %v194 = vadd.f32 %v128, %v174
  %v195 = vadd.f32 %v129, %v175
  %v196 = vadd.f32 %v130, %v176
  %v197 = vadd.f32 %v131, %v177
  %v198 = vadd.f32 %v132, %v178
  %v199 = vadd.f32 %v133, %v179
  %v200 = vadd.f32 %v134, %v180
  %v201 = vadd.f32 %v135, %v181
  %v202 = vadd.f32 %v136, %v182
  %v203 = vadd.f32 %v137, %v183
  %v204 = vadd.f32 %v138, %v184
  %s205 = scalar_lea.vmem %s0, 480
  %v206 = vld [vmem:[%s205] sm:$0xff]
  %v207 = vld [vmem:[%s205 + $0x8] sm:$0xff]
  %v208 = vld [vmem:[%s205 + $0x10] sm:$0xff]
  %v209 = vld [vmem:[%s205 + $0x18] sm:$0xff]
  %v210 = vld [vmem:[%s205 + $0x20] sm:$0xff]
  %v211 = vld [vmem:[%s205 + $0x28] sm:$0xff]
  %v212 = vld [vmem:[%s205 + $0x30] sm:$0xff]
  %v213 = vld [vmem:[%s205 + $0x38] sm:$0xff]
  %v214 = vld [vmem:[%s205 + $0x40] sm:$0xff]
  %v215 = vld [vmem:[%s205 + $0x48] sm:$0xff]
  %v216 = vld [vmem:[%s205 + $0x50] sm:$0xff]
  %v217 = vld [vmem:[%s205 + $0x58] sm:$0xff]
  %v218 = vld [vmem:[%s205 + $0x60] sm:$0xff]
  %v219 = vld [vmem:[%s205 + $0x68] sm:$0xff]
  %v220 = vld [vmem:[%s205 + $0x70] sm:$0xff]
  %v221 = vld [vmem:[%s205 + $0x78] sm:$0xff]
  %v222 = vld [vmem:[%s205 + $0x80] sm:$0xff]
  %v223 = vld [vmem:[%s205 + $0x88] sm:$0xff]
  %v224 = vld [vmem:[%s205 + $0x90] sm:$0xff]
  %v225 = vld [vmem:[%s205 + $0x98] sm:$0xff]
  %v226 = vperm.slane %v18, 3
  %v227 = vperm.slane %v19, 3
  %v228 = vperm.slane %v20, 3
  %v229 = vperm.slane %v21, 3
  %v230 = vperm.slane %v22, 3
  %v231 = vmul.f32 %v206, %v226
  %v232 = vmul.f32 %v207, %v227
  %v233 = vmul.f32 %v208, %v228
  %v234 = vmul.f32 %v209, %v229
  %v235 = vmul.f32 %v210, %v230
  %v236 = vmul.f32 %v211, %v226
  %v237 = vmul.f32 %v212, %v227
  %v238 = vmul.f32 %v213, %v228
  %v239 = vmul.f32 %v214, %v229
  %v240 = vmul.f32 %v215, %v230
  %v241 = vmul.f32 %v216, %v226
  %v242 = vmul.f32 %v217, %v227
  %v243 = vmul.f32 %v218, %v228
  %v244 = vmul.f32 %v219, %v229
  %v245 = vmul.f32 %v220, %v230
  %v246 = vmul.f32 %v221, %v226
  %v247 = vmul.f32 %v222, %v227
  %v248 = vmul.f32 %v223, %v228
  %v249 = vmul.f32 %v224, %v229
  %v250 = vmul.f32 %v225, %v230
  %v251 = vadd.f32 %v185, %v231
  %v252 = vadd.f32 %v186, %v232
  %v253 = vadd.f32 %v187, %v233
  %v254 = vadd.f32 %v188, %v234
  %v255 = vadd.f32 %v189, %v235
  %v256 = vadd.f32 %v190, %v236
  %v257 = vadd.f32 %v191, %v237
  %v258 = vadd.f32 %v192, %v238
  %v259 = vadd.f32 %v193, %v239
  %v260 = vadd.f32 %v194, %v240
  %v261 = vadd.f32 %v195, %v241
  %v262 = vadd.f32 %v196, %v242
  %v263 = vadd.f32 %v197, %v243
  %v264 = vadd.f32 %v198, %v244
  %v265 = vadd.f32 %v199, %v245
  %v266 = vadd.f32 %v200, %v246
  %v267 = vadd.f32 %v201, %v247
  %v268 = vadd.f32 %v202, %v248
  %v269 = vadd.f32 %v203, %v249
  %v270 = vadd.f32 %v204, %v250
  %s271 = scalar_lea.vmem %s0, 640
  %v272 = vld [vmem:[%s271] sm:$0xff]
  %v273 = vld [vmem:[%s271 + $0x8] sm:$0xff]
  %v274 = vld [vmem:[%s271 + $0x10] sm:$0xff]
  %v275 = vld [vmem:[%s271 + $0x18] sm:$0xff]
  %v276 = vld [vmem:[%s271 + $0x20] sm:$0xff]
  %v277 = vld [vmem:[%s271 + $0x28] sm:$0xff]
  %v278 = vld [vmem:[%s271 + $0x30] sm:$0xff]
  %v279 = vld [vmem:[%s271 + $0x38] sm:$0xff]
  %v280 = vld [vmem:[%s271 + $0x40] sm:$0xff]
  %v281 = vld [vmem:[%s271 + $0x48] sm:$0xff]
  %v282 = vld [vmem:[%s271 + $0x50] sm:$0xff]
  %v283 = vld [vmem:[%s271 + $0x58] sm:$0xff]
  %v284 = vld [vmem:[%s271 + $0x60] sm:$0xff]
  %v285 = vld [vmem:[%s271 + $0x68] sm:$0xff]
  %v286 = vld [vmem:[%s271 + $0x70] sm:$0xff]
  %v287 = vld [vmem:[%s271 + $0x78] sm:$0xff]
  %v288 = vld [vmem:[%s271 + $0x80] sm:$0xff]
  %v289 = vld [vmem:[%s271 + $0x88] sm:$0xff]
  %v290 = vld [vmem:[%s271 + $0x90] sm:$0xff]
  %v291 = vld [vmem:[%s271 + $0x98] sm:$0xff]
  %v292 = vperm.slane %v18, 4
  %v293 = vperm.slane %v19, 4
  %v294 = vperm.slane %v20, 4
  %v295 = vperm.slane %v21, 4
  %v296 = vperm.slane %v22, 4
  %v297 = vmul.f32 %v272, %v292
  %v298 = vmul.f32 %v273, %v293
  %v299 = vmul.f32 %v274, %v294
  %v300 = vmul.f32 %v275, %v295
  %v301 = vmul.f32 %v276, %v296
  %v302 = vmul.f32 %v277, %v292
  %v303 = vmul.f32 %v278, %v293
  %v304 = vmul.f32 %v279, %v294
  %v305 = vmul.f32 %v280, %v295
  %v306 = vmul.f32 %v281, %v296
  %v307 = vmul.f32 %v282, %v292
  %v308 = vmul.f32 %v283, %v293
  %v309 = vmul.f32 %v284, %v294
  %v310 = vmul.f32 %v285, %v295
  %v311 = vmul.f32 %v286, %v296
  %v312 = vmul.f32 %v287, %v292
  %v313 = vmul.f32 %v288, %v293
  %v314 = vmul.f32 %v289, %v294
  %v315 = vmul.f32 %v290, %v295
  %v316 = vmul.f32 %v291, %v296
  %v317 = vadd.f32 %v251, %v297
  %v318 = vadd.f32 %v252, %v298
  %v319 = vadd.f32 %v253, %v299
  %v320 = vadd.f32 %v254, %v300
  %v321 = vadd.f32 %v255, %v301
  %v322 = vadd.f32 %v256, %v302
  %v323 = vadd.f32 %v257, %v303
  %v324 = vadd.f32 %v258, %v304
  %v325 = vadd.f32 %v259, %v305
  %v326 = vadd.f32 %v260, %v306
  %v327 = vadd.f32 %v261, %v307
  %v328 = vadd.f32 %v262, %v308
  %v329 = vadd.f32 %v263, %v309
  %v330 = vadd.f32 %v264, %v310
  %v331 = vadd.f32 %v265, %v311
  %v332 = vadd.f32 %v266, %v312
  %v333 = vadd.f32 %v267, %v313
  %v334 = vadd.f32 %v268, %v314
  %v335 = vadd.f32 %v269, %v315
  %v336 = vadd.f32 %v270, %v316
  %s337 = scalar_lea.vmem %s0, 800
  %v338 = vld [vmem:[%s337] sm:$0xff]
  %v339 = vld [vmem:[%s337 + $0x8] sm:$0xff]
  %v340 = vld [vmem:[%s337 + $0x10] sm:$0xff]
  %v341 = vld [vmem:[%s337 + $0x18] sm:$0xff]
  %v342 = vld [vmem:[%s337 + $0x20] sm:$0xff]
  %v343 = vld [vmem:[%s337 + $0x28] sm:$0xff]
  %v344 = vld [vmem:[%s337 + $0x30] sm:$0xff]
  %v345 = vld [vmem:[%s337 + $0x38] sm:$0xff]
  %v346 = vld [vmem:[%s337 + $0x40] sm:$0xff]
  %v347 = vld [vmem:[%s337 + $0x48] sm:$0xff]
  %v348 = vld [vmem:[%s337 + $0x50] sm:$0xff]
  %v349 = vld [vmem:[%s337 + $0x58] sm:$0xff]
  %v350 = vld [vmem:[%s337 + $0x60] sm:$0xff]
  %v351 = vld [vmem:[%s337 + $0x68] sm:$0xff]
  %v352 = vld [vmem:[%s337 + $0x70] sm:$0xff]
  %v353 = vld [vmem:[%s337 + $0x78] sm:$0xff]
  %v354 = vld [vmem:[%s337 + $0x80] sm:$0xff]
  %v355 = vld [vmem:[%s337 + $0x88] sm:$0xff]
  %v356 = vld [vmem:[%s337 + $0x90] sm:$0xff]
  %v357 = vld [vmem:[%s337 + $0x98] sm:$0xff]
  %v358 = vperm.slane %v18, 5
  %v359 = vperm.slane %v19, 5
  %v360 = vperm.slane %v20, 5
  %v361 = vperm.slane %v21, 5
  %v362 = vperm.slane %v22, 5
  %v363 = vmul.f32 %v338, %v358
  %v364 = vmul.f32 %v339, %v359
  %v365 = vmul.f32 %v340, %v360
  %v366 = vmul.f32 %v341, %v361
  %v367 = vmul.f32 %v342, %v362
  %v368 = vmul.f32 %v343, %v358
  %v369 = vmul.f32 %v344, %v359
  %v370 = vmul.f32 %v345, %v360
  %v371 = vmul.f32 %v346, %v361
  %v372 = vmul.f32 %v347, %v362
  %v373 = vmul.f32 %v348, %v358
  %v374 = vmul.f32 %v349, %v359
  %v375 = vmul.f32 %v350, %v360
  %v376 = vmul.f32 %v351, %v361
  %v377 = vmul.f32 %v352, %v362
  %v378 = vmul.f32 %v353, %v358
  %v379 = vmul.f32 %v354, %v359
  %v380 = vmul.f32 %v355, %v360
  %v381 = vmul.f32 %v356, %v361
  %v382 = vmul.f32 %v357, %v362
  %v383 = vadd.f32 %v317, %v363
  %v384 = vadd.f32 %v318, %v364
  %v385 = vadd.f32 %v319, %v365
  %v386 = vadd.f32 %v320, %v366
  %v387 = vadd.f32 %v321, %v367
  %v388 = vadd.f32 %v322, %v368
  %v389 = vadd.f32 %v323, %v369
  %v390 = vadd.f32 %v324, %v370
  %v391 = vadd.f32 %v325, %v371
  %v392 = vadd.f32 %v326, %v372
  %v393 = vadd.f32 %v327, %v373
  %v394 = vadd.f32 %v328, %v374
  %v395 = vadd.f32 %v329, %v375
  %v396 = vadd.f32 %v330, %v376
  %v397 = vadd.f32 %v331, %v377
  %v398 = vadd.f32 %v332, %v378
  %v399 = vadd.f32 %v333, %v379
  %v400 = vadd.f32 %v334, %v380
  %v401 = vadd.f32 %v335, %v381
  %v402 = vadd.f32 %v336, %v382
  %s403 = scalar_lea.vmem %s0, 960
  %v404 = vld [vmem:[%s403] sm:$0xff]
  %v405 = vld [vmem:[%s403 + $0x8] sm:$0xff]
  %v406 = vld [vmem:[%s403 + $0x10] sm:$0xff]
  %v407 = vld [vmem:[%s403 + $0x18] sm:$0xff]
  %v408 = vld [vmem:[%s403 + $0x20] sm:$0xff]
  %v409 = vld [vmem:[%s403 + $0x28] sm:$0xff]
  %v410 = vld [vmem:[%s403 + $0x30] sm:$0xff]
  %v411 = vld [vmem:[%s403 + $0x38] sm:$0xff]
  %v412 = vld [vmem:[%s403 + $0x40] sm:$0xff]
  %v413 = vld [vmem:[%s403 + $0x48] sm:$0xff]
  %v414 = vld [vmem:[%s403 + $0x50] sm:$0xff]
  %v415 = vld [vmem:[%s403 + $0x58] sm:$0xff]
  %v416 = vld [vmem:[%s403 + $0x60] sm:$0xff]
  %v417 = vld [vmem:[%s403 + $0x68] sm:$0xff]
  %v418 = vld [vmem:[%s403 + $0x70] sm:$0xff]
  %v419 = vld [vmem:[%s403 + $0x78] sm:$0xff]
  %v420 = vld [vmem:[%s403 + $0x80] sm:$0xff]
  %v421 = vld [vmem:[%s403 + $0x88] sm:$0xff]
  %v422 = vld [vmem:[%s403 + $0x90] sm:$0xff]
  %v423 = vld [vmem:[%s403 + $0x98] sm:$0xff]
  %v424 = vperm.slane %v18, 6
  %v425 = vperm.slane %v19, 6
  %v426 = vperm.slane %v20, 6
  %v427 = vperm.slane %v21, 6
  %v428 = vperm.slane %v22, 6
  %v429 = vmul.f32 %v404, %v424
  %v430 = vmul.f32 %v405, %v425
  %v431 = vmul.f32 %v406, %v426
  %v432 = vmul.f32 %v407, %v427
  %v433 = vmul.f32 %v408, %v428
  %v434 = vmul.f32 %v409, %v424
  %v435 = vmul.f32 %v410, %v425
  %v436 = vmul.f32 %v411, %v426
  %v437 = vmul.f32 %v412, %v427
  %v438 = vmul.f32 %v413, %v428
  %v439 = vmul.f32 %v414, %v424
  %v440 = vmul.f32 %v415, %v425
  %v441 = vmul.f32 %v416, %v426
  %v442 = vmul.f32 %v417, %v427
  %v443 = vmul.f32 %v418, %v428
  %v444 = vmul.f32 %v419, %v424
  %v445 = vmul.f32 %v420, %v425
  %v446 = vmul.f32 %v421, %v426
  %v447 = vmul.f32 %v422, %v427
  %v448 = vmul.f32 %v423, %v428
  %v449 = vadd.f32 %v383, %v429
  %v450 = vadd.f32 %v384, %v430
  %v451 = vadd.f32 %v385, %v431
  %v452 = vadd.f32 %v386, %v432
  %v453 = vadd.f32 %v387, %v433
  %v454 = vadd.f32 %v388, %v434
  %v455 = vadd.f32 %v389, %v435
  %v456 = vadd.f32 %v390, %v436
  %v457 = vadd.f32 %v391, %v437
  %v458 = vadd.f32 %v392, %v438
  %v459 = vadd.f32 %v393, %v439
  %v460 = vadd.f32 %v394, %v440
  %v461 = vadd.f32 %v395, %v441
  %v462 = vadd.f32 %v396, %v442
  %v463 = vadd.f32 %v397, %v443
  %v464 = vadd.f32 %v398, %v444
  %v465 = vadd.f32 %v399, %v445
  %v466 = vadd.f32 %v400, %v446
  %v467 = vadd.f32 %v401, %v447
  %v468 = vadd.f32 %v402, %v448
  %s469 = scalar_lea.vmem %s0, 1120
  %v470 = vld [vmem:[%s469] sm:$0xff]
  %v471 = vld [vmem:[%s469 + $0x8] sm:$0xff]
  %v472 = vld [vmem:[%s469 + $0x10] sm:$0xff]
  %v473 = vld [vmem:[%s469 + $0x18] sm:$0xff]
  %v474 = vld [vmem:[%s469 + $0x20] sm:$0xff]
  %v475 = vld [vmem:[%s469 + $0x28] sm:$0xff]
  %v476 = vld [vmem:[%s469 + $0x30] sm:$0xff]
  %v477 = vld [vmem:[%s469 + $0x38] sm:$0xff]
  %v478 = vld [vmem:[%s469 + $0x40] sm:$0xff]
  %v479 = vld [vmem:[%s469 + $0x48] sm:$0xff]
  %v480 = vld [vmem:[%s469 + $0x50] sm:$0xff]
  %v481 = vld [vmem:[%s469 + $0x58] sm:$0xff]
  %v482 = vld [vmem:[%s469 + $0x60] sm:$0xff]
  %v483 = vld [vmem:[%s469 + $0x68] sm:$0xff]
  %v484 = vld [vmem:[%s469 + $0x70] sm:$0xff]
  %v485 = vld [vmem:[%s469 + $0x78] sm:$0xff]
  %v486 = vld [vmem:[%s469 + $0x80] sm:$0xff]
  %v487 = vld [vmem:[%s469 + $0x88] sm:$0xff]
  %v488 = vld [vmem:[%s469 + $0x90] sm:$0xff]
  %v489 = vld [vmem:[%s469 + $0x98] sm:$0xff]
  %v490 = vperm.slane %v18, 7
  %v491 = vperm.slane %v19, 7
  %v492 = vperm.slane %v20, 7
  %v493 = vperm.slane %v21, 7
  %v494 = vperm.slane %v22, 7
  %v495 = vmul.f32 %v470, %v490
  %v496 = vmul.f32 %v471, %v491
  %v497 = vmul.f32 %v472, %v492
  %v498 = vmul.f32 %v473, %v493
  %v499 = vmul.f32 %v474, %v494
  %v500 = vmul.f32 %v475, %v490
  %v501 = vmul.f32 %v476, %v491
  %v502 = vmul.f32 %v477, %v492
  %v503 = vmul.f32 %v478, %v493
  %v504 = vmul.f32 %v479, %v494
  %v505 = vmul.f32 %v480, %v490
  %v506 = vmul.f32 %v481, %v491
  %v507 = vmul.f32 %v482, %v492
  %v508 = vmul.f32 %v483, %v493
  %v509 = vmul.f32 %v484, %v494
  %v510 = vmul.f32 %v485, %v490
  %v511 = vmul.f32 %v486, %v491
  %v512 = vmul.f32 %v487, %v492
  %v513 = vmul.f32 %v488, %v493
  %v514 = vmul.f32 %v489, %v494
  %v515 = vadd.f32 %v449, %v495
  %v516 = vadd.f32 %v450, %v496
  %v517 = vadd.f32 %v451, %v497
  %v518 = vadd.f32 %v452, %v498
  %v519 = vadd.f32 %v453, %v499
  %v520 = vadd.f32 %v454, %v500
  %v521 = vadd.f32 %v455, %v501
  %v522 = vadd.f32 %v456, %v502
  %v523 = vadd.f32 %v457, %v503
  %v524 = vadd.f32 %v458, %v504
  %v525 = vadd.f32 %v459, %v505
  %v526 = vadd.f32 %v460, %v506
  %v527 = vadd.f32 %v461, %v507
  %v528 = vadd.f32 %v462, %v508
  %v529 = vadd.f32 %v463, %v509
  %v530 = vadd.f32 %v464, %v510
  %v531 = vadd.f32 %v465, %v511
  %v532 = vadd.f32 %v466, %v512
  %v533 = vadd.f32 %v467, %v513
  %v534 = vadd.f32 %v468, %v514
  %s535 = scalar_lea.vmem %s0, 1280
  %v536 = vld [vmem:[%s535] sm:$0xff]
  %v537 = vld [vmem:[%s535 + $0x8] sm:$0xff]
  %v538 = vld [vmem:[%s535 + $0x10] sm:$0xff]
  %v539 = vld [vmem:[%s535 + $0x18] sm:$0xff]
  %v540 = vld [vmem:[%s535 + $0x20] sm:$0xff]
  %v541 = vld [vmem:[%s535 + $0x28] sm:$0xff]
  %v542 = vld [vmem:[%s535 + $0x30] sm:$0xff]
  %v543 = vld [vmem:[%s535 + $0x38] sm:$0xff]
  %v544 = vld [vmem:[%s535 + $0x40] sm:$0xff]
  %v545 = vld [vmem:[%s535 + $0x48] sm:$0xff]
  %v546 = vld [vmem:[%s535 + $0x50] sm:$0xff]
  %v547 = vld [vmem:[%s535 + $0x58] sm:$0xff]
  %v548 = vld [vmem:[%s535 + $0x60] sm:$0xff]
  %v549 = vld [vmem:[%s535 + $0x68] sm:$0xff]
  %v550 = vld [vmem:[%s535 + $0x70] sm:$0xff]
  %v551 = vld [vmem:[%s535 + $0x78] sm:$0xff]
  %v552 = vld [vmem:[%s535 + $0x80] sm:$0xff]
  %v553 = vld [vmem:[%s535 + $0x88] sm:$0xff]
  %v554 = vld [vmem:[%s535 + $0x90] sm:$0xff]
  %v555 = vld [vmem:[%s535 + $0x98] sm:$0xff]
  %v556 = vperm.slane %v23, 0
  %v557 = vperm.slane %v24, 0
  %v558 = vperm.slane %v25, 0
  %v559 = vperm.slane %v26, 0
  %v560 = vperm.slane %v27, 0
  %v561 = vmul.f32 %v536, %v556
  %v562 = vmul.f32 %v537, %v557
  %v563 = vmul.f32 %v538, %v558
  %v564 = vmul.f32 %v539, %v559
  %v565 = vmul.f32 %v540, %v560
  %v566 = vmul.f32 %v541, %v556
  %v567 = vmul.f32 %v542, %v557
  %v568 = vmul.f32 %v543, %v558
  %v569 = vmul.f32 %v544, %v559
  %v570 = vmul.f32 %v545, %v560
  %v571 = vmul.f32 %v546, %v556
  %v572 = vmul.f32 %v547, %v557
  %v573 = vmul.f32 %v548, %v558
  %v574 = vmul.f32 %v549, %v559
  %v575 = vmul.f32 %v550, %v560
  %v576 = vmul.f32 %v551, %v556
  %v577 = vmul.f32 %v552, %v557
  %v578 = vmul.f32 %v553, %v558
  %v579 = vmul.f32 %v554, %v559
  %v580 = vmul.f32 %v555, %v560
  %v581 = vadd.f32 %v515, %v561
  %v582 = vadd.f32 %v516, %v562
  %v583 = vadd.f32 %v517, %v563
  %v584 = vadd.f32 %v518, %v564
  %v585 = vadd.f32 %v519, %v565
  %v586 = vadd.f32 %v520, %v566
  %v587 = vadd.f32 %v521, %v567
  %v588 = vadd.f32 %v522, %v568
  %v589 = vadd.f32 %v523, %v569
  %v590 = vadd.f32 %v524, %v570
  %v591 = vadd.f32 %v525, %v571
  %v592 = vadd.f32 %v526, %v572
  %v593 = vadd.f32 %v527, %v573
  %v594 = vadd.f32 %v528, %v574
  %v595 = vadd.f32 %v529, %v575
  %v596 = vadd.f32 %v530, %v576
  %v597 = vadd.f32 %v531, %v577
  %v598 = vadd.f32 %v532, %v578
  %v599 = vadd.f32 %v533, %v579
  %v600 = vadd.f32 %v534, %v580
  %v601 = vpack.c.bf16 %v586, %v581
  %v602 = vpack.c.bf16 %v587, %v582
  %v603 = vpack.c.bf16 %v588, %v583
  %v604 = vpack.c.bf16 %v589, %v584
  %v605 = vpack.c.bf16 %v590, %v585
  %v606 = vpack.c.bf16 %v596, %v591
  %v607 = vpack.c.bf16 %v597, %v592
  %v608 = vpack.c.bf16 %v598, %v593
  %v609 = vpack.c.bf16 %v599, %v594
  %v610 = vpack.c.bf16 %v600, %v595
  %v611 = vld [vmem:[%s2] sm:$0xff]
  %v612 = vld [vmem:[%s2 + $0x8] sm:$0xff]
  %v613 = vld [vmem:[%s2 + $0x10] sm:$0xf]
  %v614 = vld [vmem:[%s2 + $0x14] sm:$0xff]
  %v615 = vld [vmem:[%s2 + $0x1c] sm:$0xff]
  %v616 = vld [vmem:[%s2 + $0x24] sm:$0xf]
  %v617 = vld [vmem:[%s2 + $0x28] sm:$0xff]
  %v618 = vld [vmem:[%s2 + $0x30] sm:$0xff]
  %v619 = vld [vmem:[%s2 + $0x38] sm:$0xf]
  %v620 = vld [vmem:[%s2 + $0x3c] sm:$0xff]
  %v621 = vld [vmem:[%s2 + $0x44] sm:$0xff]
  %v622 = vld [vmem:[%s2 + $0x4c] sm:$0xf]
  %v623 = vld [vmem:[%s2 + $0x50] sm:$0xff]
  %v624 = vld [vmem:[%s2 + $0x58] sm:$0xff]
  %v625 = vld [vmem:[%s2 + $0x60] sm:$0xf]
  %v626 = vld [vmem:[%s2 + $0x64] sm:$0xff]
  %v627 = vld [vmem:[%s2 + $0x6c] sm:$0xff]
  %v628 = vld [vmem:[%s2 + $0x74] sm:$0xf]
  %v629 = vld [vmem:[%s2 + $0x78] sm:$0xff]
  %v630 = vld [vmem:[%s2 + $0x80] sm:$0xff]
  %v631 = vld [vmem:[%s2 + $0x88] sm:$0xf]
  %v632 = vld [vmem:[%s2 + $0x8c] sm:$0xff]
  %v633 = vld [vmem:[%s2 + $0x94] sm:$0xff]
  %v634 = vld [vmem:[%s2 + $0x9c] sm:$0xf]
  %v635 = vld [vmem:[%s2 + $0xa0] sm:$0xff]
  %v636 = vld [vmem:[%s2 + $0xa8] sm:$0xff]
  %v637 = vld [vmem:[%s2 + $0xb0] sm:$0xf]
  %v638 = vld [vmem:[%s2 + $0xb4] sm:$0xff]
  %v639 = vld [vmem:[%s2 + $0xbc] sm:$0xff]
  %v640 = vld [vmem:[%s2 + $0xc4] sm:$0xf]
  %v641 = vld [vmem:[%s2 + $0xc8] sm:$0xff]
  %v642 = vld [vmem:[%s2 + $0xd0] sm:$0xff]
  %v643 = vld [vmem:[%s2 + $0xd8] sm:$0xf]
  %v644 = vld [vmem:[%s2 + $0xdc] sm:$0xff]
  %v645 = vld [vmem:[%s2 + $0xe4] sm:$0xff]
  %v646 = vld [vmem:[%s2 + $0xec] sm:$0xf]
  %v647 = vld [vmem:[%s2 + $0xf0] sm:$0xff]
  %v648 = vld [vmem:[%s2 + $0xf8] sm:$0xff]
  %v649 = vld [vmem:[%s2 + $0x100] sm:$0xf]
  %v650 = vld [vmem:[%s2 + $0x104] sm:$0xff]
  %v651 = vld [vmem:[%s2 + $0x10c] sm:$0xff]
  %v652 = vld [vmem:[%s2 + $0x114] sm:$0xf]
  %v653 = vld [vmem:[%s2 + $0x118] sm:$0xff]
  %v654 = vld [vmem:[%s2 + $0x120] sm:$0xff]
  %v655 = vld [vmem:[%s2 + $0x128] sm:$0xf]
  %v656 = vld [vmem:[%s2 + $0x12c] sm:$0xff]
  %v657 = vld [vmem:[%s2 + $0x134] sm:$0xff]
  %v658 = vld [vmem:[%s2 + $0x13c] sm:$0xf]
  %v659 = vld [vmem:[%s2 + $0x140] sm:$0xff]
  %v660 = vld [vmem:[%s2 + $0x148] sm:$0xff]
  %v661 = vld [vmem:[%s2 + $0x150] sm:$0xf]
  %v662 = vld [vmem:[%s2 + $0x154] sm:$0xff]
  %v663 = vld [vmem:[%s2 + $0x15c] sm:$0xff]
  %v664 = vld [vmem:[%s2 + $0x164] sm:$0xf]
  %v665 = vld [vmem:[%s2 + $0x168] sm:$0xff]
  %v666 = vld [vmem:[%s2 + $0x170] sm:$0xff]
  %v667 = vld [vmem:[%s2 + $0x178] sm:$0xf]
  %v668 = vld [vmem:[%s2 + $0x17c] sm:$0xff]
  %v669 = vld [vmem:[%s2 + $0x184] sm:$0xff]
  %v670 = vld [vmem:[%s2 + $0x18c] sm:$0xf]
  %v671 = vld [vmem:[%s2 + $0x190] sm:$0xff]
  %v672 = vld [vmem:[%s2 + $0x198] sm:$0xff]
  %v673 = vld [vmem:[%s2 + $0x1a0] sm:$0xf]
  %v674 = vld [vmem:[%s2 + $0x1a4] sm:$0xff]
  %v675 = vld [vmem:[%s2 + $0x1ac] sm:$0xff]
  %v676 = vld [vmem:[%s2 + $0x1b4] sm:$0xf]
  %v677 = vld [vmem:[%s2 + $0x1b8] sm:$0xff]
  %v678 = vld [vmem:[%s2 + $0x1c0] sm:$0xff]
  %v679 = vld [vmem:[%s2 + $0x1c8] sm:$0xf]
  %v680 = vld [vmem:[%s2 + $0x1cc] sm:$0xff]
  %v681 = vld [vmem:[%s2 + $0x1d4] sm:$0xff]
  %v682 = vld [vmem:[%s2 + $0x1dc] sm:$0xf]
  %v683 = vld [vmem:[%s2 + $0x1e0] sm:$0xff]
  %v684 = vld [vmem:[%s2 + $0x1e8] sm:$0xff]
  %v685 = vld [vmem:[%s2 + $0x1f0] sm:$0xf]
  %v686 = vld [vmem:[%s2 + $0x1f4] sm:$0xff]
  %v687 = vld [vmem:[%s2 + $0x1fc] sm:$0xff]
  %v688 = vld [vmem:[%s2 + $0x204] sm:$0xf]
  %v689 = vld [vmem:[%s2 + $0x208] sm:$0xff]
  %v690 = vld [vmem:[%s2 + $0x210] sm:$0xff]
  %v691 = vld [vmem:[%s2 + $0x218] sm:$0xf]
  %v692 = vld [vmem:[%s2 + $0x21c] sm:$0xff]
  %v693 = vld [vmem:[%s2 + $0x224] sm:$0xff]
  %v694 = vld [vmem:[%s2 + $0x22c] sm:$0xf]
  %v695 = vld [vmem:[%s2 + $0x230] sm:$0xff]
  %v696 = vld [vmem:[%s2 + $0x238] sm:$0xff]
  %v697 = vld [vmem:[%s2 + $0x240] sm:$0xf]
  %v698 = vld [vmem:[%s2 + $0x244] sm:$0xff]
  %v699 = vld [vmem:[%s2 + $0x24c] sm:$0xff]
  %v700 = vld [vmem:[%s2 + $0x254] sm:$0xf]
  %v701 = vld [vmem:[%s2 + $0x258] sm:$0xff]
  %v702 = vld [vmem:[%s2 + $0x260] sm:$0xff]
  %v703 = vld [vmem:[%s2 + $0x268] sm:$0xf]
  %v704 = vld [vmem:[%s2 + $0x26c] sm:$0xff]
  %v705 = vld [vmem:[%s2 + $0x274] sm:$0xff]
  %v706 = vld [vmem:[%s2 + $0x27c] sm:$0xf]
  %v707 = vld [vmem:[%s2 + $0x280] sm:$0xff]
  %v708 = vld [vmem:[%s2 + $0x288] sm:$0xff]
  %v709 = vld [vmem:[%s2 + $0x290] sm:$0xf]
  %v710 = vld [vmem:[%s2 + $0x294] sm:$0xff]
  %v711 = vld [vmem:[%s2 + $0x29c] sm:$0xff]
  %v712 = vld [vmem:[%s2 + $0x2a4] sm:$0xf]
  %v713 = vld [vmem:[%s2 + $0x2a8] sm:$0xff]
  %v714 = vld [vmem:[%s2 + $0x2b0] sm:$0xff]
  %v715 = vld [vmem:[%s2 + $0x2b8] sm:$0xf]
  %v716 = vld [vmem:[%s2 + $0x2bc] sm:$0xff]
  %v717 = vld [vmem:[%s2 + $0x2c4] sm:$0xff]
  %v718 = vld [vmem:[%s2 + $0x2cc] sm:$0xf]
  %v719 = vld [vmem:[%s2 + $0x2d0] sm:$0xff]
  %v720 = vld [vmem:[%s2 + $0x2d8] sm:$0xff]
  %v721 = vld [vmem:[%s2 + $0x2e0] sm:$0xf]
  %v722 = vld [vmem:[%s2 + $0x2e4] sm:$0xff]
  %v723 = vld [vmem:[%s2 + $0x2ec] sm:$0xff]
  %v724 = vld [vmem:[%s2 + $0x2f4] sm:$0xf]
  %v725 = vld [vmem:[%s2 + $0x2f8] sm:$0xff]
  %v726 = vld [vmem:[%s2 + $0x300] sm:$0xff]
  %v727 = vld [vmem:[%s2 + $0x308] sm:$0xf]
  %v728 = vld [vmem:[%s2 + $0x30c] sm:$0xff]
  %v729 = vld [vmem:[%s2 + $0x314] sm:$0xff]
  %v730 = vld [vmem:[%s2 + $0x31c] sm:$0xf]
  %v731 = vld [vmem:[%s2 + $0x320] sm:$0xff]
  %v732 = vld [vmem:[%s2 + $0x328] sm:$0xff]
  %v733 = vld [vmem:[%s2 + $0x330] sm:$0xf]
  %v734 = vld [vmem:[%s2 + $0x334] sm:$0xff]
  %v735 = vld [vmem:[%s2 + $0x33c] sm:$0xff]
  %v736 = vld [vmem:[%s2 + $0x344] sm:$0xf]
  %v737 = vld [vmem:[%s2 + $0x348] sm:$0xff]
  %v738 = vld [vmem:[%s2 + $0x350] sm:$0xff]
  %v739 = vld [vmem:[%s2 + $0x358] sm:$0xf]
  %v740 = vld [vmem:[%s2 + $0x35c] sm:$0xff]
  %v741 = vld [vmem:[%s2 + $0x364] sm:$0xff]
  %v742 = vld [vmem:[%s2 + $0x36c] sm:$0xf]
  %v743 = vld [vmem:[%s2 + $0x370] sm:$0xff]
  %v744 = vld [vmem:[%s2 + $0x378] sm:$0xff]
  %v745 = vld [vmem:[%s2 + $0x380] sm:$0xf]
  %v746 = vld [vmem:[%s2 + $0x384] sm:$0xff]
  %v747 = vld [vmem:[%s2 + $0x38c] sm:$0xff]
  %v748 = vld [vmem:[%s2 + $0x394] sm:$0xf]
  %v749 = vld [vmem:[%s2 + $0x398] sm:$0xff]
  %v750 = vld [vmem:[%s2 + $0x3a0] sm:$0xff]
  %v751 = vld [vmem:[%s2 + $0x3a8] sm:$0xf]
  %v752 = vld [vmem:[%s2 + $0x3ac] sm:$0xff]
  %v753 = vld [vmem:[%s2 + $0x3b4] sm:$0xff]
  %v754 = vld [vmem:[%s2 + $0x3bc] sm:$0xf]
  %v755 = vld [vmem:[%s2 + $0x3c0] sm:$0xff]
  %v756 = vld [vmem:[%s2 + $0x3c8] sm:$0xff]
  %v757 = vld [vmem:[%s2 + $0x3d0] sm:$0xf]
  %v758 = vld [vmem:[%s2 + $0x3d4] sm:$0xff]
  %v759 = vld [vmem:[%s2 + $0x3dc] sm:$0xff]
  %v760 = vld [vmem:[%s2 + $0x3e4] sm:$0xf]
  %v761 = vld [vmem:[%s2 + $0x3e8] sm:$0xff]
  %v762 = vld [vmem:[%s2 + $0x3f0] sm:$0xff]
  %v763 = vld [vmem:[%s2 + $0x3f8] sm:$0xf]
  %v764 = vld [vmem:[%s2 + $0x3fc] sm:$0xff]
  %v765 = vld [vmem:[%s2 + $0x404] sm:$0xff]
  %v766 = vld [vmem:[%s2 + $0x40c] sm:$0xf]
  %v767 = vld [vmem:[%s2 + $0x410] sm:$0xff]
  %v768 = vld [vmem:[%s2 + $0x418] sm:$0xff]
  %v769 = vld [vmem:[%s2 + $0x420] sm:$0xf]
  %v770 = vld [vmem:[%s2 + $0x424] sm:$0xff]
  %v771 = vld [vmem:[%s2 + $0x42c] sm:$0xff]
  %v772 = vld [vmem:[%s2 + $0x434] sm:$0xf]
  %v773 = vld [vmem:[%s2 + $0x438] sm:$0xff]
  %v774 = vld [vmem:[%s2 + $0x440] sm:$0xff]
  %v775 = vld [vmem:[%s2 + $0x448] sm:$0xf]
  %v776 = vld [vmem:[%s2 + $0x44c] sm:$0xff]
  %v777 = vld [vmem:[%s2 + $0x454] sm:$0xff]
  %v778 = vld [vmem:[%s2 + $0x45c] sm:$0xf]
  %v779 = vld [vmem:[%s2 + $0x460] sm:$0xff]
  %v780 = vld [vmem:[%s2 + $0x468] sm:$0xff]
  %v781 = vld [vmem:[%s2 + $0x470] sm:$0xf]
  %v782 = vld [vmem:[%s2 + $0x474] sm:$0xff]
  %v783 = vld [vmem:[%s2 + $0x47c] sm:$0xff]
  %v784 = vld [vmem:[%s2 + $0x484] sm:$0xf]
  %v785 = vld [vmem:[%s2 + $0x488] sm:$0xff]
  %v786 = vld [vmem:[%s2 + $0x490] sm:$0xff]
  %v787 = vld [vmem:[%s2 + $0x498] sm:$0xf]
  %v788 = vld [vmem:[%s2 + $0x49c] sm:$0xff]
  %v789 = vld [vmem:[%s2 + $0x4a4] sm:$0xff]
  %v790 = vld [vmem:[%s2 + $0x4ac] sm:$0xf]
  %v791 = vld [vmem:[%s2 + $0x4b0] sm:$0xff]
  %v792 = vld [vmem:[%s2 + $0x4b8] sm:$0xff]
  %v793 = vld [vmem:[%s2 + $0x4c0] sm:$0xf]
  %v794 = vld [vmem:[%s2 + $0x4c4] sm:$0xff]
  %v795 = vld [vmem:[%s2 + $0x4cc] sm:$0xff]
  %v796 = vld [vmem:[%s2 + $0x4d4] sm:$0xf]
  %v797 = vld [vmem:[%s2 + $0x4d8] sm:$0xff]
  %v798 = vld [vmem:[%s2 + $0x4e0] sm:$0xff]
  %v799 = vld [vmem:[%s2 + $0x4e8] sm:$0xf]
  %v800 = vld [vmem:[%s2 + $0x4ec] sm:$0xff]
  %v801 = vld [vmem:[%s2 + $0x4f4] sm:$0xff]
  %v802 = vld [vmem:[%s2 + $0x4fc] sm:$0xf]
  %v803 = vld [vmem:[%s2 + $0x500] sm:$0xff]
  %v804 = vld [vmem:[%s2 + $0x508] sm:$0xff]
  %v805 = vld [vmem:[%s2 + $0x510] sm:$0xf]
  %v806 = vld [vmem:[%s2 + $0x514] sm:$0xff]
  %v807 = vld [vmem:[%s2 + $0x51c] sm:$0xff]
  %v808 = vld [vmem:[%s2 + $0x524] sm:$0xf]
  %v809 = vld [vmem:[%s2 + $0x528] sm:$0xff]
  %v810 = vld [vmem:[%s2 + $0x530] sm:$0xff]
  %v811 = vld [vmem:[%s2 + $0x538] sm:$0xf]
  %v812 = vld [vmem:[%s2 + $0x53c] sm:$0xff]
  %v813 = vld [vmem:[%s2 + $0x544] sm:$0xff]
  %v814 = vld [vmem:[%s2 + $0x54c] sm:$0xf]
  %v815 = vld [vmem:[%s2 + $0x550] sm:$0xff]
  %v816 = vld [vmem:[%s2 + $0x558] sm:$0xff]
  %v817 = vld [vmem:[%s2 + $0x560] sm:$0xf]
  %v818 = vld [vmem:[%s2 + $0x564] sm:$0xff]
  %v819 = vld [vmem:[%s2 + $0x56c] sm:$0xff]
  %v820 = vld [vmem:[%s2 + $0x574] sm:$0xf]
  %v821 = vld [vmem:[%s2 + $0x578] sm:$0xff]
  %v822 = vld [vmem:[%s2 + $0x580] sm:$0xff]
  %v823 = vld [vmem:[%s2 + $0x588] sm:$0xf]
  %v824 = vld [vmem:[%s2 + $0x58c] sm:$0xff]
  %v825 = vld [vmem:[%s2 + $0x594] sm:$0xff]
  %v826 = vld [vmem:[%s2 + $0x59c] sm:$0xf]
  %v827 = vld [vmem:[%s3] sm:$0x1f]
  %v829 = vperm.slane %v827, 0
  %v830 = vperm.slane %v827, 1
  %v831 = vperm.slane %v827, 2
  %v832 = vperm.slane %v827, 3
  %v833 = vperm.slane %v827, 4
  %v1055 = vunpack.c.l.b16 %v611
  %v1056 = vunpack.c.h.b16 %v611
  %v1057 = vunpack.c.l.b16 %v612
  %v1058 = vunpack.c.h.b16 %v612
  %v1059 = vunpack.c.l.b16 %v613
  %v1060 = vunpack.c.l.b16 %v614
  %v1061 = vunpack.c.h.b16 %v614
  %v1062 = vunpack.c.l.b16 %v615
  %v1063 = vunpack.c.h.b16 %v615
  %v1064 = vunpack.c.l.b16 %v616
  %v1065 = vunpack.c.l.b16 %v617
  %v1066 = vunpack.c.h.b16 %v617
  %v1067 = vunpack.c.l.b16 %v618
  %v1068 = vunpack.c.h.b16 %v618
  %v1069 = vunpack.c.l.b16 %v619
  %v1070 = vunpack.c.l.b16 %v620
  %v1071 = vunpack.c.h.b16 %v620
  %v1072 = vunpack.c.l.b16 %v621
  %v1073 = vunpack.c.h.b16 %v621
  %v1074 = vunpack.c.l.b16 %v622
  %v1075 = vunpack.c.l.b16 %v623
  %v1076 = vunpack.c.h.b16 %v623
  %v1077 = vunpack.c.l.b16 %v624
  %v1078 = vunpack.c.h.b16 %v624
  %v1079 = vunpack.c.l.b16 %v625
  %v1080 = vunpack.c.l.b16 %v626
  %v1081 = vunpack.c.h.b16 %v626
  %v1082 = vunpack.c.l.b16 %v627
  %v1083 = vunpack.c.h.b16 %v627
  %v1084 = vunpack.c.l.b16 %v628
  %v1085 = vunpack.c.l.b16 %v629
  %v1086 = vunpack.c.h.b16 %v629
  %v1087 = vunpack.c.l.b16 %v630
  %v1088 = vunpack.c.h.b16 %v630
  %v1089 = vunpack.c.l.b16 %v631
  %v1090 = vunpack.c.l.b16 %v632
  %v1091 = vunpack.c.h.b16 %v632
  %v1092 = vunpack.c.l.b16 %v633
  %v1093 = vunpack.c.h.b16 %v633
  %v1094 = vunpack.c.l.b16 %v634
  %v1095 = vunpack.c.l.b16 %v635
  %v1096 = vunpack.c.h.b16 %v635
  %v1097 = vunpack.c.l.b16 %v636
  %v1098 = vunpack.c.h.b16 %v636
  %v1099 = vunpack.c.l.b16 %v637
  %v1100 = vunpack.c.l.b16 %v638
  %v1101 = vunpack.c.h.b16 %v638
  %v1102 = vunpack.c.l.b16 %v639
  %v1103 = vunpack.c.h.b16 %v639
  %v1104 = vunpack.c.l.b16 %v640
  %v1105 = vunpack.c.l.b16 %v641
  %v1106 = vunpack.c.h.b16 %v641
  %v1107 = vunpack.c.l.b16 %v642
  %v1108 = vunpack.c.h.b16 %v642
  %v1109 = vunpack.c.l.b16 %v643
  %v1110 = vunpack.c.l.b16 %v644
  %v1111 = vunpack.c.h.b16 %v644
  %v1112 = vunpack.c.l.b16 %v645
  %v1113 = vunpack.c.h.b16 %v645
  %v1114 = vunpack.c.l.b16 %v646
  %v1115 = vunpack.c.l.b16 %v647
  %v1116 = vunpack.c.h.b16 %v647
  %v1117 = vunpack.c.l.b16 %v648
  %v1118 = vunpack.c.h.b16 %v648
  %v1119 = vunpack.c.l.b16 %v649
  %v1120 = vunpack.c.l.b16 %v650
  %v1121 = vunpack.c.h.b16 %v650
  %v1122 = vunpack.c.l.b16 %v651
  %v1123 = vunpack.c.h.b16 %v651
  %v1124 = vunpack.c.l.b16 %v652
  %v1125 = vunpack.c.l.b16 %v653
  %v1126 = vunpack.c.h.b16 %v653
  %v1127 = vunpack.c.l.b16 %v654
  %v1128 = vunpack.c.h.b16 %v654
  %v1129 = vunpack.c.l.b16 %v655
  %v1130 = vunpack.c.l.b16 %v656
  %v1131 = vunpack.c.h.b16 %v656
  %v1132 = vunpack.c.l.b16 %v657
  %v1133 = vunpack.c.h.b16 %v657
  %v1134 = vunpack.c.l.b16 %v658
  %v1135 = vunpack.c.l.b16 %v659
  %v1136 = vunpack.c.h.b16 %v659
  %v1137 = vunpack.c.l.b16 %v660
  %v1138 = vunpack.c.h.b16 %v660
  %v1139 = vunpack.c.l.b16 %v661
  %v1140 = vunpack.c.l.b16 %v662
  %v1141 = vunpack.c.h.b16 %v662
  %v1142 = vunpack.c.l.b16 %v663
  %v1143 = vunpack.c.h.b16 %v663
  %v1144 = vunpack.c.l.b16 %v664
  %v1145 = vunpack.c.l.b16 %v665
  %v1146 = vunpack.c.h.b16 %v665
  %v1147 = vunpack.c.l.b16 %v666
  %v1148 = vunpack.c.h.b16 %v666
  %v1149 = vunpack.c.l.b16 %v667
  %v1150 = vunpack.c.l.b16 %v668
  %v1151 = vunpack.c.h.b16 %v668
  %v1152 = vunpack.c.l.b16 %v669
  %v1153 = vunpack.c.h.b16 %v669
  %v1154 = vunpack.c.l.b16 %v670
  %v1155 = vunpack.c.l.b16 %v671
  %v1156 = vunpack.c.h.b16 %v671
  %v1157 = vunpack.c.l.b16 %v672
  %v1158 = vunpack.c.h.b16 %v672
  %v1159 = vunpack.c.l.b16 %v673
  %v1160 = vunpack.c.l.b16 %v674
  %v1161 = vunpack.c.h.b16 %v674
  %v1162 = vunpack.c.l.b16 %v675
  %v1163 = vunpack.c.h.b16 %v675
  %v1164 = vunpack.c.l.b16 %v676
  %v1165 = vunpack.c.l.b16 %v677
  %v1166 = vunpack.c.h.b16 %v677
  %v1167 = vunpack.c.l.b16 %v678
  %v1168 = vunpack.c.h.b16 %v678
  %v1169 = vunpack.c.l.b16 %v679
  %v1170 = vunpack.c.l.b16 %v680
  %v1171 = vunpack.c.h.b16 %v680
  %v1172 = vunpack.c.l.b16 %v681
  %v1173 = vunpack.c.h.b16 %v681
  %v1174 = vunpack.c.l.b16 %v682
  %v1175 = vunpack.c.l.b16 %v683
  %v1176 = vunpack.c.h.b16 %v683
  %v1177 = vunpack.c.l.b16 %v684
  %v1178 = vunpack.c.h.b16 %v684
  %v1179 = vunpack.c.l.b16 %v685
  %v1180 = vunpack.c.l.b16 %v686
  %v1181 = vunpack.c.h.b16 %v686
  %v1182 = vunpack.c.l.b16 %v687
  %v1183 = vunpack.c.h.b16 %v687
  %v1184 = vunpack.c.l.b16 %v688
  %v1185 = vunpack.c.l.b16 %v689
  %v1186 = vunpack.c.h.b16 %v689
  %v1187 = vunpack.c.l.b16 %v690
  %v1188 = vunpack.c.h.b16 %v690
  %v1189 = vunpack.c.l.b16 %v691
  %v1190 = vunpack.c.l.b16 %v692
  %v1191 = vunpack.c.h.b16 %v692
  %v1192 = vunpack.c.l.b16 %v693
  %v1193 = vunpack.c.h.b16 %v693
  %v1194 = vunpack.c.l.b16 %v694
  %v1195 = vunpack.c.l.b16 %v695
  %v1196 = vunpack.c.h.b16 %v695
  %v1197 = vunpack.c.l.b16 %v696
  %v1198 = vunpack.c.h.b16 %v696
  %v1199 = vunpack.c.l.b16 %v697
  %v1200 = vunpack.c.l.b16 %v698
  %v1201 = vunpack.c.h.b16 %v698
  %v1202 = vunpack.c.l.b16 %v699
  %v1203 = vunpack.c.h.b16 %v699
  %v1204 = vunpack.c.l.b16 %v700
  %v1205 = vunpack.c.l.b16 %v701
  %v1206 = vunpack.c.h.b16 %v701
  %v1207 = vunpack.c.l.b16 %v702
  %v1208 = vunpack.c.h.b16 %v702
  %v1209 = vunpack.c.l.b16 %v703
  %v1210 = vunpack.c.l.b16 %v704
  %v1211 = vunpack.c.h.b16 %v704
  %v1212 = vunpack.c.l.b16 %v705
  %v1213 = vunpack.c.h.b16 %v705
  %v1214 = vunpack.c.l.b16 %v706
  %v1215 = vunpack.c.l.b16 %v707
  %v1216 = vunpack.c.h.b16 %v707
  %v1217 = vunpack.c.l.b16 %v708
  %v1218 = vunpack.c.h.b16 %v708
  %v1219 = vunpack.c.l.b16 %v709
  %v1220 = vunpack.c.l.b16 %v710
  %v1221 = vunpack.c.h.b16 %v710
  %v1222 = vunpack.c.l.b16 %v711
  %v1223 = vunpack.c.h.b16 %v711
  %v1224 = vunpack.c.l.b16 %v712
  %v1225 = vunpack.c.l.b16 %v713
  %v1226 = vunpack.c.h.b16 %v713
  %v1227 = vunpack.c.l.b16 %v714
  %v1228 = vunpack.c.h.b16 %v714
  %v1229 = vunpack.c.l.b16 %v715
  %v1230 = vunpack.c.l.b16 %v716
  %v1231 = vunpack.c.h.b16 %v716
  %v1232 = vunpack.c.l.b16 %v717
  %v1233 = vunpack.c.h.b16 %v717
  %v1234 = vunpack.c.l.b16 %v718
  %v1235 = vunpack.c.l.b16 %v719
  %v1236 = vunpack.c.h.b16 %v719
  %v1237 = vunpack.c.l.b16 %v720
  %v1238 = vunpack.c.h.b16 %v720
  %v1239 = vunpack.c.l.b16 %v721
  %v1240 = vunpack.c.l.b16 %v722
  %v1241 = vunpack.c.h.b16 %v722
  %v1242 = vunpack.c.l.b16 %v723
  %v1243 = vunpack.c.h.b16 %v723
  %v1244 = vunpack.c.l.b16 %v724
  %v1245 = vunpack.c.l.b16 %v725
  %v1246 = vunpack.c.h.b16 %v725
  %v1247 = vunpack.c.l.b16 %v726
  %v1248 = vunpack.c.h.b16 %v726
  %v1249 = vunpack.c.l.b16 %v727
  %v1250 = vunpack.c.l.b16 %v728
  %v1251 = vunpack.c.h.b16 %v728
  %v1252 = vunpack.c.l.b16 %v729
  %v1253 = vunpack.c.h.b16 %v729
  %v1254 = vunpack.c.l.b16 %v730
  %v1255 = vunpack.c.l.b16 %v731
  %v1256 = vunpack.c.h.b16 %v731
  %v1257 = vunpack.c.l.b16 %v732
  %v1258 = vunpack.c.h.b16 %v732
  %v1259 = vunpack.c.l.b16 %v733
  %v1260 = vunpack.c.l.b16 %v734
  %v1261 = vunpack.c.h.b16 %v734
  %v1262 = vunpack.c.l.b16 %v735
  %v1263 = vunpack.c.h.b16 %v735
  %v1264 = vunpack.c.l.b16 %v736
  %v1265 = vunpack.c.l.b16 %v737
  %v1266 = vunpack.c.h.b16 %v737
  %v1267 = vunpack.c.l.b16 %v738
  %v1268 = vunpack.c.h.b16 %v738
  %v1269 = vunpack.c.l.b16 %v739
  %v1270 = vunpack.c.l.b16 %v740
  %v1271 = vunpack.c.h.b16 %v740
  %v1272 = vunpack.c.l.b16 %v741
  %v1273 = vunpack.c.h.b16 %v741
  %v1274 = vunpack.c.l.b16 %v742
  %v1275 = vunpack.c.l.b16 %v743
  %v1276 = vunpack.c.h.b16 %v743
  %v1277 = vunpack.c.l.b16 %v744
  %v1278 = vunpack.c.h.b16 %v744
  %v1279 = vunpack.c.l.b16 %v745
  %v1280 = vunpack.c.l.b16 %v746
  %v1281 = vunpack.c.h.b16 %v746
  %v1282 = vunpack.c.l.b16 %v747
  %v1283 = vunpack.c.h.b16 %v747
  %v1284 = vunpack.c.l.b16 %v748
  %v1285 = vunpack.c.l.b16 %v749
  %v1286 = vunpack.c.h.b16 %v749
  %v1287 = vunpack.c.l.b16 %v750
  %v1288 = vunpack.c.h.b16 %v750
  %v1289 = vunpack.c.l.b16 %v751
  %v1290 = vunpack.c.l.b16 %v752
  %v1291 = vunpack.c.h.b16 %v752
  %v1292 = vunpack.c.l.b16 %v753
  %v1293 = vunpack.c.h.b16 %v753
  %v1294 = vunpack.c.l.b16 %v754
  %v1295 = vunpack.c.l.b16 %v755
  %v1296 = vunpack.c.h.b16 %v755
  %v1297 = vunpack.c.l.b16 %v756
  %v1298 = vunpack.c.h.b16 %v756
  %v1299 = vunpack.c.l.b16 %v757
  %v1300 = vunpack.c.l.b16 %v758
  %v1301 = vunpack.c.h.b16 %v758
  %v1302 = vunpack.c.l.b16 %v759
  %v1303 = vunpack.c.h.b16 %v759
  %v1304 = vunpack.c.l.b16 %v760
  %v1305 = vunpack.c.l.b16 %v761
  %v1306 = vunpack.c.h.b16 %v761
  %v1307 = vunpack.c.l.b16 %v762
  %v1308 = vunpack.c.h.b16 %v762
  %v1309 = vunpack.c.l.b16 %v763
  %v1310 = vunpack.c.l.b16 %v764
  %v1311 = vunpack.c.h.b16 %v764
  %v1312 = vunpack.c.l.b16 %v765
  %v1313 = vunpack.c.h.b16 %v765
  %v1314 = vunpack.c.l.b16 %v766
  %v1315 = vunpack.c.l.b16 %v767
  %v1316 = vunpack.c.h.b16 %v767
  %v1317 = vunpack.c.l.b16 %v768
  %v1318 = vunpack.c.h.b16 %v768
  %v1319 = vunpack.c.l.b16 %v769
  %v1320 = vunpack.c.l.b16 %v770
  %v1321 = vunpack.c.h.b16 %v770
  %v1322 = vunpack.c.l.b16 %v771
  %v1323 = vunpack.c.h.b16 %v771
  %v1324 = vunpack.c.l.b16 %v772
  %v1325 = vunpack.c.l.b16 %v773
  %v1326 = vunpack.c.h.b16 %v773
  %v1327 = vunpack.c.l.b16 %v774
  %v1328 = vunpack.c.h.b16 %v774
  %v1329 = vunpack.c.l.b16 %v775
  %v1330 = vunpack.c.l.b16 %v776
  %v1331 = vunpack.c.h.b16 %v776
  %v1332 = vunpack.c.l.b16 %v777
  %v1333 = vunpack.c.h.b16 %v777
  %v1334 = vunpack.c.l.b16 %v778
  %v1335 = vunpack.c.l.b16 %v779
  %v1336 = vunpack.c.h.b16 %v779
  %v1337 = vunpack.c.l.b16 %v780
  %v1338 = vunpack.c.h.b16 %v780
  %v1339 = vunpack.c.l.b16 %v781
  %v1340 = vunpack.c.l.b16 %v782
  %v1341 = vunpack.c.h.b16 %v782
  %v1342 = vunpack.c.l.b16 %v783
  %v1343 = vunpack.c.h.b16 %v783
  %v1344 = vunpack.c.l.b16 %v784
  %v1345 = vunpack.c.l.b16 %v785
  %v1346 = vunpack.c.h.b16 %v785
  %v1347 = vunpack.c.l.b16 %v786
  %v1348 = vunpack.c.h.b16 %v786
  %v1349 = vunpack.c.l.b16 %v787
  %v1350 = vunpack.c.l.b16 %v788
  %v1351 = vunpack.c.h.b16 %v788
  %v1352 = vunpack.c.l.b16 %v789
  %v1353 = vunpack.c.h.b16 %v789
  %v1354 = vunpack.c.l.b16 %v790
  %v1355 = vunpack.c.l.b16 %v791
  %v1356 = vunpack.c.h.b16 %v791
  %v1357 = vunpack.c.l.b16 %v792
  %v1358 = vunpack.c.h.b16 %v792
  %v1359 = vunpack.c.l.b16 %v793
  %v1360 = vunpack.c.l.b16 %v794
  %v1361 = vunpack.c.h.b16 %v794
  %v1362 = vunpack.c.l.b16 %v795
  %v1363 = vunpack.c.h.b16 %v795
  %v1364 = vunpack.c.l.b16 %v796
  %v1365 = vunpack.c.l.b16 %v797
  %v1366 = vunpack.c.h.b16 %v797
  %v1367 = vunpack.c.l.b16 %v798
  %v1368 = vunpack.c.h.b16 %v798
  %v1369 = vunpack.c.l.b16 %v799
  %v1370 = vunpack.c.l.b16 %v800
  %v1371 = vunpack.c.h.b16 %v800
  %v1372 = vunpack.c.l.b16 %v801
  %v1373 = vunpack.c.h.b16 %v801
  %v1374 = vunpack.c.l.b16 %v802
  %v1375 = vunpack.c.l.b16 %v803
  %v1376 = vunpack.c.h.b16 %v803
  %v1377 = vunpack.c.l.b16 %v804
  %v1378 = vunpack.c.h.b16 %v804
  %v1379 = vunpack.c.l.b16 %v805
  %v1380 = vunpack.c.l.b16 %v806
  %v1381 = vunpack.c.h.b16 %v806
  %v1382 = vunpack.c.l.b16 %v807
  %v1383 = vunpack.c.h.b16 %v807
  %v1384 = vunpack.c.l.b16 %v808
  %v1385 = vunpack.c.l.b16 %v809
  %v1386 = vunpack.c.h.b16 %v809
  %v1387 = vunpack.c.l.b16 %v810
  %v1388 = vunpack.c.h.b16 %v810
  %v1389 = vunpack.c.l.b16 %v811
  %v1390 = vunpack.c.l.b16 %v812
  %v1391 = vunpack.c.h.b16 %v812
  %v1392 = vunpack.c.l.b16 %v813
  %v1393 = vunpack.c.h.b16 %v813
  %v1394 = vunpack.c.l.b16 %v814
  %v1395 = vunpack.c.l.b16 %v815
  %v1396 = vunpack.c.h.b16 %v815
  %v1397 = vunpack.c.l.b16 %v816
  %v1398 = vunpack.c.h.b16 %v816
  %v1399 = vunpack.c.l.b16 %v817
  %v1400 = vunpack.c.l.b16 %v818
  %v1401 = vunpack.c.h.b16 %v818
  %v1402 = vunpack.c.l.b16 %v819
  %v1403 = vunpack.c.h.b16 %v819
  %v1404 = vunpack.c.l.b16 %v820
  %v1405 = vunpack.c.l.b16 %v821
  %v1406 = vunpack.c.h.b16 %v821
  %v1407 = vunpack.c.l.b16 %v822
  %v1408 = vunpack.c.h.b16 %v822
  %v1409 = vunpack.c.l.b16 %v823
  %v1410 = vunpack.c.l.b16 %v824
  %v1411 = vunpack.c.h.b16 %v824
  %v1412 = vunpack.c.l.b16 %v825
  %v1413 = vunpack.c.h.b16 %v825
  %v1414 = vunpack.c.l.b16 %v826
  %v1415 = vpack.c.b16 %v1060, %v1055
  %v1416 = vpack.c.b16 %v1061, %v1056
  %v1417 = vpack.c.b16 %v1062, %v1057
  %v1418 = vpack.c.b16 %v1063, %v1058
  %v1419 = vpack.c.b16 %v1064, %v1059
  %v1420 = vpack.c.b16 %v1070, %v1065
  %v1421 = vpack.c.b16 %v1071, %v1066
  %v1422 = vpack.c.b16 %v1072, %v1067
  %v1423 = vpack.c.b16 %v1073, %v1068
  %v1424 = vpack.c.b16 %v1074, %v1069
  %v1425 = vpack.c.b16 %v1080, %v1075
  %v1426 = vpack.c.b16 %v1081, %v1076
  %v1427 = vpack.c.b16 %v1082, %v1077
  %v1428 = vpack.c.b16 %v1083, %v1078
  %v1429 = vpack.c.b16 %v1084, %v1079
  %v1430 = vpack.c.b16 %v1090, %v1085
  %v1431 = vpack.c.b16 %v1091, %v1086
  %v1432 = vpack.c.b16 %v1092, %v1087
  %v1433 = vpack.c.b16 %v1093, %v1088
  %v1434 = vpack.c.b16 %v1094, %v1089
  %v1435 = vpack.c.b16 %v1100, %v1095
  %v1436 = vpack.c.b16 %v1101, %v1096
  %v1437 = vpack.c.b16 %v1102, %v1097
  %v1438 = vpack.c.b16 %v1103, %v1098
  %v1439 = vpack.c.b16 %v1104, %v1099
  %v1440 = vpack.c.b16 %v1110, %v1105
  %v1441 = vpack.c.b16 %v1111, %v1106
  %v1442 = vpack.c.b16 %v1112, %v1107
  %v1443 = vpack.c.b16 %v1113, %v1108
  %v1444 = vpack.c.b16 %v1114, %v1109
  %v1445 = vpack.c.b16 %v1120, %v1115
  %v1446 = vpack.c.b16 %v1121, %v1116
  %v1447 = vpack.c.b16 %v1122, %v1117
  %v1448 = vpack.c.b16 %v1123, %v1118
  %v1449 = vpack.c.b16 %v1124, %v1119
  %v1450 = vpack.c.b16 %v1130, %v1125
  %v1451 = vpack.c.b16 %v1131, %v1126
  %v1452 = vpack.c.b16 %v1132, %v1127
  %v1453 = vpack.c.b16 %v1133, %v1128
  %v1454 = vpack.c.b16 %v1134, %v1129
  %v1455 = vpack.c.b16 %v1140, %v1135
  %v1456 = vpack.c.b16 %v1141, %v1136
  %v1457 = vpack.c.b16 %v1142, %v1137
  %v1458 = vpack.c.b16 %v1143, %v1138
  %v1459 = vpack.c.b16 %v1144, %v1139
  %v1460 = vpack.c.b16 %v1150, %v1145
  %v1461 = vpack.c.b16 %v1151, %v1146
  %v1462 = vpack.c.b16 %v1152, %v1147
  %v1463 = vpack.c.b16 %v1153, %v1148
  %v1464 = vpack.c.b16 %v1154, %v1149
  %v1465 = vpack.c.b16 %v1160, %v1155
  %v1466 = vpack.c.b16 %v1161, %v1156
  %v1467 = vpack.c.b16 %v1162, %v1157
  %v1468 = vpack.c.b16 %v1163, %v1158
  %v1469 = vpack.c.b16 %v1164, %v1159
  %v1470 = vpack.c.b16 %v1170, %v1165
  %v1471 = vpack.c.b16 %v1171, %v1166
  %v1472 = vpack.c.b16 %v1172, %v1167
  %v1473 = vpack.c.b16 %v1173, %v1168
  %v1474 = vpack.c.b16 %v1174, %v1169
  %v1475 = vpack.c.b16 %v1180, %v1175
  %v1476 = vpack.c.b16 %v1181, %v1176
  %v1477 = vpack.c.b16 %v1182, %v1177
  %v1478 = vpack.c.b16 %v1183, %v1178
  %v1479 = vpack.c.b16 %v1184, %v1179
  %v1480 = vpack.c.b16 %v1190, %v1185
  %v1481 = vpack.c.b16 %v1191, %v1186
  %v1482 = vpack.c.b16 %v1192, %v1187
  %v1483 = vpack.c.b16 %v1193, %v1188
  %v1484 = vpack.c.b16 %v1194, %v1189
  %v1485 = vpack.c.b16 %v1200, %v1195
  %v1486 = vpack.c.b16 %v1201, %v1196
  %v1487 = vpack.c.b16 %v1202, %v1197
  %v1488 = vpack.c.b16 %v1203, %v1198
  %v1489 = vpack.c.b16 %v1204, %v1199
  %v1490 = vpack.c.b16 %v1210, %v1205
  %v1491 = vpack.c.b16 %v1211, %v1206
  %v1492 = vpack.c.b16 %v1212, %v1207
  %v1493 = vpack.c.b16 %v1213, %v1208
  %v1494 = vpack.c.b16 %v1214, %v1209
  %v1495 = vpack.c.b16 %v1220, %v1215
  %v1496 = vpack.c.b16 %v1221, %v1216
  %v1497 = vpack.c.b16 %v1222, %v1217
  %v1498 = vpack.c.b16 %v1223, %v1218
  %v1499 = vpack.c.b16 %v1224, %v1219
  %v1500 = vpack.c.b16 %v1230, %v1225
  %v1501 = vpack.c.b16 %v1231, %v1226
  %v1502 = vpack.c.b16 %v1232, %v1227
  %v1503 = vpack.c.b16 %v1233, %v1228
  %v1504 = vpack.c.b16 %v1234, %v1229
  %v1505 = vpack.c.b16 %v1240, %v1235
  %v1506 = vpack.c.b16 %v1241, %v1236
  %v1507 = vpack.c.b16 %v1242, %v1237
  %v1508 = vpack.c.b16 %v1243, %v1238
  %v1509 = vpack.c.b16 %v1244, %v1239
  %v1510 = vpack.c.b16 %v1250, %v1245
  %v1511 = vpack.c.b16 %v1251, %v1246
  %v1512 = vpack.c.b16 %v1252, %v1247
  %v1513 = vpack.c.b16 %v1253, %v1248
  %v1514 = vpack.c.b16 %v1254, %v1249
  %v1515 = vpack.c.b16 %v1260, %v1255
  %v1516 = vpack.c.b16 %v1261, %v1256
  %v1517 = vpack.c.b16 %v1262, %v1257
  %v1518 = vpack.c.b16 %v1263, %v1258
  %v1519 = vpack.c.b16 %v1264, %v1259
  %v1520 = vpack.c.b16 %v1270, %v1265
  %v1521 = vpack.c.b16 %v1271, %v1266
  %v1522 = vpack.c.b16 %v1272, %v1267
  %v1523 = vpack.c.b16 %v1273, %v1268
  %v1524 = vpack.c.b16 %v1274, %v1269
  %v1525 = vpack.c.b16 %v1280, %v1275
  %v1526 = vpack.c.b16 %v1281, %v1276
  %v1527 = vpack.c.b16 %v1282, %v1277
  %v1528 = vpack.c.b16 %v1283, %v1278
  %v1529 = vpack.c.b16 %v1284, %v1279
  %v1530 = vpack.c.b16 %v1290, %v1285
  %v1531 = vpack.c.b16 %v1291, %v1286
  %v1532 = vpack.c.b16 %v1292, %v1287
  %v1533 = vpack.c.b16 %v1293, %v1288
  %v1534 = vpack.c.b16 %v1294, %v1289
  %v1535 = vpack.c.b16 %v1300, %v1295
  %v1536 = vpack.c.b16 %v1301, %v1296
  %v1537 = vpack.c.b16 %v1302, %v1297
  %v1538 = vpack.c.b16 %v1303, %v1298
  %v1539 = vpack.c.b16 %v1304, %v1299
  %v1540 = vpack.c.b16 %v1310, %v1305
  %v1541 = vpack.c.b16 %v1311, %v1306
  %v1542 = vpack.c.b16 %v1312, %v1307
  %v1543 = vpack.c.b16 %v1313, %v1308
  %v1544 = vpack.c.b16 %v1314, %v1309
  %v1545 = vpack.c.b16 %v1320, %v1315
  %v1546 = vpack.c.b16 %v1321, %v1316
  %v1547 = vpack.c.b16 %v1322, %v1317
  %v1548 = vpack.c.b16 %v1323, %v1318
  %v1549 = vpack.c.b16 %v1324, %v1319
  %v1550 = vpack.c.b16 %v1330, %v1325
  %v1551 = vpack.c.b16 %v1331, %v1326
  %v1552 = vpack.c.b16 %v1332, %v1327
  %v1553 = vpack.c.b16 %v1333, %v1328
  %v1554 = vpack.c.b16 %v1334, %v1329
  %v1555 = vpack.c.b16 %v1340, %v1335
  %v1556 = vpack.c.b16 %v1341, %v1336
  %v1557 = vpack.c.b16 %v1342, %v1337
  %v1558 = vpack.c.b16 %v1343, %v1338
  %v1559 = vpack.c.b16 %v1344, %v1339
  %v1560 = vpack.c.b16 %v1350, %v1345
  %v1561 = vpack.c.b16 %v1351, %v1346
  %v1562 = vpack.c.b16 %v1352, %v1347
  %v1563 = vpack.c.b16 %v1353, %v1348
  %v1564 = vpack.c.b16 %v1354, %v1349
  %v1565 = vpack.c.b16 %v1360, %v1355
  %v1566 = vpack.c.b16 %v1361, %v1356
  %v1567 = vpack.c.b16 %v1362, %v1357
  %v1568 = vpack.c.b16 %v1363, %v1358
  %v1569 = vpack.c.b16 %v1364, %v1359
  %v1570 = vpack.c.b16 %v1370, %v1365
  %v1571 = vpack.c.b16 %v1371, %v1366
  %v1572 = vpack.c.b16 %v1372, %v1367
  %v1573 = vpack.c.b16 %v1373, %v1368
  %v1574 = vpack.c.b16 %v1374, %v1369
  %v1575 = vpack.c.b16 %v1380, %v1375
  %v1576 = vpack.c.b16 %v1381, %v1376
  %v1577 = vpack.c.b16 %v1382, %v1377
  %v1578 = vpack.c.b16 %v1383, %v1378
  %v1579 = vpack.c.b16 %v1384, %v1379
  %v1580 = vpack.c.b16 %v1390, %v1385
  %v1581 = vpack.c.b16 %v1391, %v1386
  %v1582 = vpack.c.b16 %v1392, %v1387
  %v1583 = vpack.c.b16 %v1393, %v1388
  %v1584 = vpack.c.b16 %v1394, %v1389
  %v1585 = vpack.c.b16 %v1400, %v1395
  %v1586 = vpack.c.b16 %v1401, %v1396
  %v1587 = vpack.c.b16 %v1402, %v1397
  %v1588 = vpack.c.b16 %v1403, %v1398
  %v1589 = vpack.c.b16 %v1404, %v1399
  %v1590 = vpack.c.b16 %v1410, %v1405
  %v1591 = vpack.c.b16 %v1411, %v1406
  %v1592 = vpack.c.b16 %v1412, %v1407
  %v1593 = vpack.c.b16 %v1413, %v1408
  %v1594 = vpack.c.b16 %v1414, %v1409
  %vm1775 = vcmask 523264
  %v1777 = vsel %vm1775, %v605, 0
  %v1780 = vsel %vm1775, %v610, 0
  %1782 = vmatpush.bf16.msra.mxu0 %v1450
  %1783 = vmatpush.bf16.msra.mxu0 %v1445
  %1784 = vmatpush.bf16.msra.mxu0 %v1440
  %1785 = vmatpush.bf16.msra.mxu0 %v1435
  %1786 = vmatpush.bf16.msra.mxu0 %v1430
  %1787 = vmatpush.bf16.msra.mxu0 %v1425
  %1788 = vmatpush.bf16.msra.mxu0 %v1420
  %1789 = vmatpush.bf16.msra.mxu0 %v1415
  %1790 = vmatmul.bf16.gmra.mxu0 %v601
  %v1791 = vpop.f32.mrf.mxu0
  %v1792 = vadd.f32 %v829, %v1791
  %v1793 = vpop.f32.mrf.mxu0
  %v1794 = vadd.f32 %v829, %v1793
  %1795 = vmatmul.bf16.gmra.mxu0 %v606
  %v1796 = vpop.f32.mrf.mxu0
  %v1797 = vadd.f32 %v829, %v1796
  %v1798 = vpop.f32.mrf.mxu0
  %v1799 = vadd.f32 %v829, %v1798
  %1800 = vdwg.mxu0
  %1801 = vmatpush.bf16.msra.mxu0 %v1490
  %1802 = vmatpush.bf16.msra.mxu0 %v1485
  %1803 = vmatpush.bf16.msra.mxu0 %v1480
  %1804 = vmatpush.bf16.msra.mxu0 %v1475
  %1805 = vmatpush.bf16.msra.mxu0 %v1470
  %1806 = vmatpush.bf16.msra.mxu0 %v1465
  %1807 = vmatpush.bf16.msra.mxu0 %v1460
  %1808 = vmatpush.bf16.msra.mxu0 %v1455
  %1809 = vmatmul.bf16.gmra.mxu0 %v602
  %v1810 = vpop.f32.mrf.mxu0
  %v1811 = vadd.f32 %v1792, %v1810
  %v1812 = vpop.f32.mrf.mxu0
  %v1813 = vadd.f32 %v1794, %v1812
  %1814 = vmatmul.bf16.gmra.mxu0 %v607
  %v1815 = vpop.f32.mrf.mxu0
  %v1816 = vadd.f32 %v1797, %v1815
  %v1817 = vpop.f32.mrf.mxu0
  %v1818 = vadd.f32 %v1799, %v1817
  %1819 = vdwg.mxu0
  %1820 = vmatpush.bf16.msra.mxu0 %v1530
  %1821 = vmatpush.bf16.msra.mxu0 %v1525
  %1822 = vmatpush.bf16.msra.mxu0 %v1520
  %1823 = vmatpush.bf16.msra.mxu0 %v1515
  %1824 = vmatpush.bf16.msra.mxu0 %v1510
  %1825 = vmatpush.bf16.msra.mxu0 %v1505
  %1826 = vmatpush.bf16.msra.mxu0 %v1500
  %1827 = vmatpush.bf16.msra.mxu0 %v1495
  %1828 = vmatmul.bf16.gmra.mxu0 %v603
  %v1829 = vpop.f32.mrf.mxu0
  %v1830 = vadd.f32 %v1811, %v1829
  %v1831 = vpop.f32.mrf.mxu0
  %v1832 = vadd.f32 %v1813, %v1831
  %1833 = vmatmul.bf16.gmra.mxu0 %v608
  %v1834 = vpop.f32.mrf.mxu0
  %v1835 = vadd.f32 %v1816, %v1834
  %v1836 = vpop.f32.mrf.mxu0
  %v1837 = vadd.f32 %v1818, %v1836
  %1838 = vdwg.mxu0
  %1839 = vmatpush.bf16.msra.mxu0 %v1570
  %1840 = vmatpush.bf16.msra.mxu0 %v1565
  %1841 = vmatpush.bf16.msra.mxu0 %v1560
  %1842 = vmatpush.bf16.msra.mxu0 %v1555
  %1843 = vmatpush.bf16.msra.mxu0 %v1550
  %1844 = vmatpush.bf16.msra.mxu0 %v1545
  %1845 = vmatpush.bf16.msra.mxu0 %v1540
  %1846 = vmatpush.bf16.msra.mxu0 %v1535
  %1847 = vmatmul.bf16.gmra.mxu0 %v604
  %v1848 = vpop.f32.mrf.mxu0
  %v1849 = vadd.f32 %v1830, %v1848
  %v1850 = vpop.f32.mrf.mxu0
  %v1851 = vadd.f32 %v1832, %v1850
  %1852 = vmatmul.bf16.gmra.mxu0 %v609
  %v1853 = vpop.f32.mrf.mxu0
  %v1854 = vadd.f32 %v1835, %v1853
  %v1855 = vpop.f32.mrf.mxu0
  %v1856 = vadd.f32 %v1837, %v1855
  %1857 = vdwg.mxu0
  %1858 = vmatpush.bf16.msra.mxu0 0
  %1859 = vmatpush.bf16.msra.mxu0 0
  %1860 = vmatpush.bf16.msra.mxu0 0
  %1861 = vmatpush.bf16.msra.mxu0 0
  %1862 = vmatpush.bf16.msra.mxu0 %v1590
  %1863 = vmatpush.bf16.msra.mxu0 %v1585
  %1864 = vmatpush.bf16.msra.mxu0 %v1580
  %1865 = vmatpush.bf16.msra.mxu0 %v1575
  %1866 = vmatmul.bf16.gmra.mxu0 %v1777
  %v1867 = vpop.f32.mrf.mxu0
  %v1868 = vadd.f32 %v1849, %v1867
  %v1869 = vpop.f32.mrf.mxu0
  %v1870 = vadd.f32 %v1851, %v1869
  %1871 = vmatmul.bf16.gmra.mxu0 %v1780
  %v1872 = vpop.f32.mrf.mxu0
  %v1873 = vadd.f32 %v1854, %v1872
  %v1874 = vpop.f32.mrf.mxu0
  %v1875 = vadd.f32 %v1856, %v1874
  %1876 = vdwg.mxu0
  %1877 = vmatpush.bf16.msra.mxu0 %v1451
  %1878 = vmatpush.bf16.msra.mxu0 %v1446
  %1879 = vmatpush.bf16.msra.mxu0 %v1441
  %1880 = vmatpush.bf16.msra.mxu0 %v1436
  %1881 = vmatpush.bf16.msra.mxu0 %v1431
  %1882 = vmatpush.bf16.msra.mxu0 %v1426
  %1883 = vmatpush.bf16.msra.mxu0 %v1421
  %1884 = vmatpush.bf16.msra.mxu0 %v1416
  %1885 = vmatmul.bf16.gmra.mxu0 %v601
  %v1886 = vpop.f32.mrf.mxu0
  %v1887 = vadd.f32 %v830, %v1886
  %v1888 = vpop.f32.mrf.mxu0
  %v1889 = vadd.f32 %v830, %v1888
  %1890 = vmatmul.bf16.gmra.mxu0 %v606
  %v1891 = vpop.f32.mrf.mxu0
  %v1892 = vadd.f32 %v830, %v1891
  %v1893 = vpop.f32.mrf.mxu0
  %v1894 = vadd.f32 %v830, %v1893
  %1895 = vdwg.mxu0
  %1896 = vmatpush.bf16.msra.mxu0 %v1491
  %1897 = vmatpush.bf16.msra.mxu0 %v1486
  %1898 = vmatpush.bf16.msra.mxu0 %v1481
  %1899 = vmatpush.bf16.msra.mxu0 %v1476
  %1900 = vmatpush.bf16.msra.mxu0 %v1471
  %1901 = vmatpush.bf16.msra.mxu0 %v1466
  %1902 = vmatpush.bf16.msra.mxu0 %v1461
  %1903 = vmatpush.bf16.msra.mxu0 %v1456
  %1904 = vmatmul.bf16.gmra.mxu0 %v602
  %v1905 = vpop.f32.mrf.mxu0
  %v1906 = vadd.f32 %v1887, %v1905
  %v1907 = vpop.f32.mrf.mxu0
  %v1908 = vadd.f32 %v1889, %v1907
  %1909 = vmatmul.bf16.gmra.mxu0 %v607
  %v1910 = vpop.f32.mrf.mxu0
  %v1911 = vadd.f32 %v1892, %v1910
  %v1912 = vpop.f32.mrf.mxu0
  %v1913 = vadd.f32 %v1894, %v1912
  %1914 = vdwg.mxu0
  %1915 = vmatpush.bf16.msra.mxu0 %v1531
  %1916 = vmatpush.bf16.msra.mxu0 %v1526
  %1917 = vmatpush.bf16.msra.mxu0 %v1521
  %1918 = vmatpush.bf16.msra.mxu0 %v1516
  %1919 = vmatpush.bf16.msra.mxu0 %v1511
  %1920 = vmatpush.bf16.msra.mxu0 %v1506
  %1921 = vmatpush.bf16.msra.mxu0 %v1501
  %1922 = vmatpush.bf16.msra.mxu0 %v1496
  %1923 = vmatmul.bf16.gmra.mxu0 %v603
  %v1924 = vpop.f32.mrf.mxu0
  %v1925 = vadd.f32 %v1906, %v1924
  %v1926 = vpop.f32.mrf.mxu0
  %v1927 = vadd.f32 %v1908, %v1926
  %1928 = vmatmul.bf16.gmra.mxu0 %v608
  %v1929 = vpop.f32.mrf.mxu0
  %v1930 = vadd.f32 %v1911, %v1929
  %v1931 = vpop.f32.mrf.mxu0
  %v1932 = vadd.f32 %v1913, %v1931
  %1933 = vdwg.mxu0
  %1934 = vmatpush.bf16.msra.mxu0 %v1571
  %1935 = vmatpush.bf16.msra.mxu0 %v1566
  %1936 = vmatpush.bf16.msra.mxu0 %v1561
  %1937 = vmatpush.bf16.msra.mxu0 %v1556
  %1938 = vmatpush.bf16.msra.mxu0 %v1551
  %1939 = vmatpush.bf16.msra.mxu0 %v1546
  %1940 = vmatpush.bf16.msra.mxu0 %v1541
  %1941 = vmatpush.bf16.msra.mxu0 %v1536
  %1942 = vmatmul.bf16.gmra.mxu0 %v604
  %v1943 = vpop.f32.mrf.mxu0
  %v1944 = vadd.f32 %v1925, %v1943
  %v1945 = vpop.f32.mrf.mxu0
  %v1946 = vadd.f32 %v1927, %v1945
  %1947 = vmatmul.bf16.gmra.mxu0 %v609
  %v1948 = vpop.f32.mrf.mxu0
  %v1949 = vadd.f32 %v1930, %v1948
  %v1950 = vpop.f32.mrf.mxu0
  %v1951 = vadd.f32 %v1932, %v1950
  %1952 = vdwg.mxu0
  %1953 = vmatpush.bf16.msra.mxu0 0
  %1954 = vmatpush.bf16.msra.mxu0 0
  %1955 = vmatpush.bf16.msra.mxu0 0
  %1956 = vmatpush.bf16.msra.mxu0 0
  %1957 = vmatpush.bf16.msra.mxu0 %v1591
  %1958 = vmatpush.bf16.msra.mxu0 %v1586
  %1959 = vmatpush.bf16.msra.mxu0 %v1581
  %1960 = vmatpush.bf16.msra.mxu0 %v1576
  %1961 = vmatmul.bf16.gmra.mxu0 %v1777
  %v1962 = vpop.f32.mrf.mxu0
  %v1963 = vadd.f32 %v1944, %v1962
  %v1964 = vpop.f32.mrf.mxu0
  %v1965 = vadd.f32 %v1946, %v1964
  %1966 = vmatmul.bf16.gmra.mxu0 %v1780
  %v1967 = vpop.f32.mrf.mxu0
  %v1968 = vadd.f32 %v1949, %v1967
  %v1969 = vpop.f32.mrf.mxu0
  %v1970 = vadd.f32 %v1951, %v1969
  %1971 = vdwg.mxu0
  %1972 = vmatpush.bf16.msra.mxu0 %v1452
  %1973 = vmatpush.bf16.msra.mxu0 %v1447
  %1974 = vmatpush.bf16.msra.mxu0 %v1442
  %1975 = vmatpush.bf16.msra.mxu0 %v1437
  %1976 = vmatpush.bf16.msra.mxu0 %v1432
  %1977 = vmatpush.bf16.msra.mxu0 %v1427
  %1978 = vmatpush.bf16.msra.mxu0 %v1422
  %1979 = vmatpush.bf16.msra.mxu0 %v1417
  %1980 = vmatmul.bf16.gmra.mxu0 %v601
  %v1981 = vpop.f32.mrf.mxu0
  %v1982 = vadd.f32 %v831, %v1981
  %v1983 = vpop.f32.mrf.mxu0
  %v1984 = vadd.f32 %v831, %v1983
  %1985 = vmatmul.bf16.gmra.mxu0 %v606
  %v1986 = vpop.f32.mrf.mxu0
  %v1987 = vadd.f32 %v831, %v1986
  %v1988 = vpop.f32.mrf.mxu0
  %v1989 = vadd.f32 %v831, %v1988
  %1990 = vdwg.mxu0
  %1991 = vmatpush.bf16.msra.mxu0 %v1492
  %1992 = vmatpush.bf16.msra.mxu0 %v1487
  %1993 = vmatpush.bf16.msra.mxu0 %v1482
  %1994 = vmatpush.bf16.msra.mxu0 %v1477
  %1995 = vmatpush.bf16.msra.mxu0 %v1472
  %1996 = vmatpush.bf16.msra.mxu0 %v1467
  %1997 = vmatpush.bf16.msra.mxu0 %v1462
  %1998 = vmatpush.bf16.msra.mxu0 %v1457
  %1999 = vmatmul.bf16.gmra.mxu0 %v602
  %v2000 = vpop.f32.mrf.mxu0
  %v2001 = vadd.f32 %v1982, %v2000
  %v2002 = vpop.f32.mrf.mxu0
  %v2003 = vadd.f32 %v1984, %v2002
  %2004 = vmatmul.bf16.gmra.mxu0 %v607
  %v2005 = vpop.f32.mrf.mxu0
  %v2006 = vadd.f32 %v1987, %v2005
  %v2007 = vpop.f32.mrf.mxu0
  %v2008 = vadd.f32 %v1989, %v2007
  %2009 = vdwg.mxu0
  %2010 = vmatpush.bf16.msra.mxu0 %v1532
  %2011 = vmatpush.bf16.msra.mxu0 %v1527
  %2012 = vmatpush.bf16.msra.mxu0 %v1522
  %2013 = vmatpush.bf16.msra.mxu0 %v1517
  %2014 = vmatpush.bf16.msra.mxu0 %v1512
  %2015 = vmatpush.bf16.msra.mxu0 %v1507
  %2016 = vmatpush.bf16.msra.mxu0 %v1502
  %2017 = vmatpush.bf16.msra.mxu0 %v1497
  %2018 = vmatmul.bf16.gmra.mxu0 %v603
  %v2019 = vpop.f32.mrf.mxu0
  %v2020 = vadd.f32 %v2001, %v2019
  %v2021 = vpop.f32.mrf.mxu0
  %v2022 = vadd.f32 %v2003, %v2021
  %2023 = vmatmul.bf16.gmra.mxu0 %v608
  %v2024 = vpop.f32.mrf.mxu0
  %v2025 = vadd.f32 %v2006, %v2024
  %v2026 = vpop.f32.mrf.mxu0
  %v2027 = vadd.f32 %v2008, %v2026
  %2028 = vdwg.mxu0
  %2029 = vmatpush.bf16.msra.mxu0 %v1572
  %2030 = vmatpush.bf16.msra.mxu0 %v1567
  %2031 = vmatpush.bf16.msra.mxu0 %v1562
  %2032 = vmatpush.bf16.msra.mxu0 %v1557
  %2033 = vmatpush.bf16.msra.mxu0 %v1552
  %2034 = vmatpush.bf16.msra.mxu0 %v1547
  %2035 = vmatpush.bf16.msra.mxu0 %v1542
  %2036 = vmatpush.bf16.msra.mxu0 %v1537
  %2037 = vmatmul.bf16.gmra.mxu0 %v604
  %v2038 = vpop.f32.mrf.mxu0
  %v2039 = vadd.f32 %v2020, %v2038
  %v2040 = vpop.f32.mrf.mxu0
  %v2041 = vadd.f32 %v2022, %v2040
  %2042 = vmatmul.bf16.gmra.mxu0 %v609
  %v2043 = vpop.f32.mrf.mxu0
  %v2044 = vadd.f32 %v2025, %v2043
  %v2045 = vpop.f32.mrf.mxu0
  %v2046 = vadd.f32 %v2027, %v2045
  %2047 = vdwg.mxu0
  %2048 = vmatpush.bf16.msra.mxu0 0
  %2049 = vmatpush.bf16.msra.mxu0 0
  %2050 = vmatpush.bf16.msra.mxu0 0
  %2051 = vmatpush.bf16.msra.mxu0 0
  %2052 = vmatpush.bf16.msra.mxu0 %v1592
  %2053 = vmatpush.bf16.msra.mxu0 %v1587
  %2054 = vmatpush.bf16.msra.mxu0 %v1582
  %2055 = vmatpush.bf16.msra.mxu0 %v1577
  %2056 = vmatmul.bf16.gmra.mxu0 %v1777
  %v2057 = vpop.f32.mrf.mxu0
  %v2058 = vadd.f32 %v2039, %v2057
  %v2059 = vpop.f32.mrf.mxu0
  %v2060 = vadd.f32 %v2041, %v2059
  %2061 = vmatmul.bf16.gmra.mxu0 %v1780
  %v2062 = vpop.f32.mrf.mxu0
  %v2063 = vadd.f32 %v2044, %v2062
  %v2064 = vpop.f32.mrf.mxu0
  %v2065 = vadd.f32 %v2046, %v2064
  %2066 = vdwg.mxu0
  %2067 = vmatpush.bf16.msra.mxu0 %v1453
  %2068 = vmatpush.bf16.msra.mxu0 %v1448
  %2069 = vmatpush.bf16.msra.mxu0 %v1443
  %2070 = vmatpush.bf16.msra.mxu0 %v1438
  %2071 = vmatpush.bf16.msra.mxu0 %v1433
  %2072 = vmatpush.bf16.msra.mxu0 %v1428
  %2073 = vmatpush.bf16.msra.mxu0 %v1423
  %2074 = vmatpush.bf16.msra.mxu0 %v1418
  %2075 = vmatmul.bf16.gmra.mxu0 %v601
  %v2076 = vpop.f32.mrf.mxu0
  %v2077 = vadd.f32 %v832, %v2076
  %v2078 = vpop.f32.mrf.mxu0
  %v2079 = vadd.f32 %v832, %v2078
  %2080 = vmatmul.bf16.gmra.mxu0 %v606
  %v2081 = vpop.f32.mrf.mxu0
  %v2082 = vadd.f32 %v832, %v2081
  %v2083 = vpop.f32.mrf.mxu0
  %v2084 = vadd.f32 %v832, %v2083
  %2085 = vdwg.mxu0
  %2086 = vmatpush.bf16.msra.mxu0 %v1493
  %2087 = vmatpush.bf16.msra.mxu0 %v1488
  %2088 = vmatpush.bf16.msra.mxu0 %v1483
  %2089 = vmatpush.bf16.msra.mxu0 %v1478
  %2090 = vmatpush.bf16.msra.mxu0 %v1473
  %2091 = vmatpush.bf16.msra.mxu0 %v1468
  %2092 = vmatpush.bf16.msra.mxu0 %v1463
  %2093 = vmatpush.bf16.msra.mxu0 %v1458
  %2094 = vmatmul.bf16.gmra.mxu0 %v602
  %v2095 = vpop.f32.mrf.mxu0
  %v2096 = vadd.f32 %v2077, %v2095
  %v2097 = vpop.f32.mrf.mxu0
  %v2098 = vadd.f32 %v2079, %v2097
  %2099 = vmatmul.bf16.gmra.mxu0 %v607
  %v2100 = vpop.f32.mrf.mxu0
  %v2101 = vadd.f32 %v2082, %v2100
  %v2102 = vpop.f32.mrf.mxu0
  %v2103 = vadd.f32 %v2084, %v2102
  %2104 = vdwg.mxu0
  %2105 = vmatpush.bf16.msra.mxu0 %v1533
  %2106 = vmatpush.bf16.msra.mxu0 %v1528
  %2107 = vmatpush.bf16.msra.mxu0 %v1523
  %2108 = vmatpush.bf16.msra.mxu0 %v1518
  %2109 = vmatpush.bf16.msra.mxu0 %v1513
  %2110 = vmatpush.bf16.msra.mxu0 %v1508
  %2111 = vmatpush.bf16.msra.mxu0 %v1503
  %2112 = vmatpush.bf16.msra.mxu0 %v1498
  %2113 = vmatmul.bf16.gmra.mxu0 %v603
  %v2114 = vpop.f32.mrf.mxu0
  %v2115 = vadd.f32 %v2096, %v2114
  %v2116 = vpop.f32.mrf.mxu0
  %v2117 = vadd.f32 %v2098, %v2116
  %2118 = vmatmul.bf16.gmra.mxu0 %v608
  %v2119 = vpop.f32.mrf.mxu0
  %v2120 = vadd.f32 %v2101, %v2119
  %v2121 = vpop.f32.mrf.mxu0
  %v2122 = vadd.f32 %v2103, %v2121
  %2123 = vdwg.mxu0
  %2124 = vmatpush.bf16.msra.mxu0 %v1573
  %2125 = vmatpush.bf16.msra.mxu0 %v1568
  %2126 = vmatpush.bf16.msra.mxu0 %v1563
  %2127 = vmatpush.bf16.msra.mxu0 %v1558
  %2128 = vmatpush.bf16.msra.mxu0 %v1553
  %2129 = vmatpush.bf16.msra.mxu0 %v1548
  %2130 = vmatpush.bf16.msra.mxu0 %v1543
  %2131 = vmatpush.bf16.msra.mxu0 %v1538
  %2132 = vmatmul.bf16.gmra.mxu0 %v604
  %v2133 = vpop.f32.mrf.mxu0
  %v2134 = vadd.f32 %v2115, %v2133
  %v2135 = vpop.f32.mrf.mxu0
  %v2136 = vadd.f32 %v2117, %v2135
  %2137 = vmatmul.bf16.gmra.mxu0 %v609
  %v2138 = vpop.f32.mrf.mxu0
  %v2139 = vadd.f32 %v2120, %v2138
  %v2140 = vpop.f32.mrf.mxu0
  %v2141 = vadd.f32 %v2122, %v2140
  %2142 = vdwg.mxu0
  %2143 = vmatpush.bf16.msra.mxu0 0
  %2144 = vmatpush.bf16.msra.mxu0 0
  %2145 = vmatpush.bf16.msra.mxu0 0
  %2146 = vmatpush.bf16.msra.mxu0 0
  %2147 = vmatpush.bf16.msra.mxu0 %v1593
  %2148 = vmatpush.bf16.msra.mxu0 %v1588
  %2149 = vmatpush.bf16.msra.mxu0 %v1583
  %2150 = vmatpush.bf16.msra.mxu0 %v1578
  %2151 = vmatmul.bf16.gmra.mxu0 %v1777
  %v2152 = vpop.f32.mrf.mxu0
  %v2153 = vadd.f32 %v2134, %v2152
  %v2154 = vpop.f32.mrf.mxu0
  %v2155 = vadd.f32 %v2136, %v2154
  %2156 = vmatmul.bf16.gmra.mxu0 %v1780
  %v2157 = vpop.f32.mrf.mxu0
  %v2158 = vadd.f32 %v2139, %v2157
  %v2159 = vpop.f32.mrf.mxu0
  %v2160 = vadd.f32 %v2141, %v2159
  %2161 = vdwg.mxu0
  %2162 = vmatpush.bf16.msra.mxu0 %v1454
  %2163 = vmatpush.bf16.msra.mxu0 %v1449
  %2164 = vmatpush.bf16.msra.mxu0 %v1444
  %2165 = vmatpush.bf16.msra.mxu0 %v1439
  %2166 = vmatpush.bf16.msra.mxu0 %v1434
  %2167 = vmatpush.bf16.msra.mxu0 %v1429
  %2168 = vmatpush.bf16.msra.mxu0 %v1424
  %2169 = vmatpush.bf16.msra.mxu0 %v1419
  %2170 = vmatmul.bf16.gmra.mxu0 %v601
  %v2171 = vpop.f32.mrf.mxu0
  %v2172 = vadd.f32 %v833, %v2171
  %v2173 = vpop.f32.mrf.mxu0
  %v2174 = vadd.f32 %v833, %v2173
  %2175 = vmatmul.bf16.gmra.mxu0 %v606
  %v2176 = vpop.f32.mrf.mxu0
  %v2177 = vadd.f32 %v833, %v2176
  %v2178 = vpop.f32.mrf.mxu0
  %v2179 = vadd.f32 %v833, %v2178
  %2180 = vdwg.mxu0
  %2181 = vmatpush.bf16.msra.mxu0 %v1494
  %2182 = vmatpush.bf16.msra.mxu0 %v1489
  %2183 = vmatpush.bf16.msra.mxu0 %v1484
  %2184 = vmatpush.bf16.msra.mxu0 %v1479
  %2185 = vmatpush.bf16.msra.mxu0 %v1474
  %2186 = vmatpush.bf16.msra.mxu0 %v1469
  %2187 = vmatpush.bf16.msra.mxu0 %v1464
  %2188 = vmatpush.bf16.msra.mxu0 %v1459
  %2189 = vmatmul.bf16.gmra.mxu0 %v602
  %v2190 = vpop.f32.mrf.mxu0
  %v2191 = vadd.f32 %v2172, %v2190
  %v2192 = vpop.f32.mrf.mxu0
  %v2193 = vadd.f32 %v2174, %v2192
  %2194 = vmatmul.bf16.gmra.mxu0 %v607
  %v2195 = vpop.f32.mrf.mxu0
  %v2196 = vadd.f32 %v2177, %v2195
  %v2197 = vpop.f32.mrf.mxu0
  %v2198 = vadd.f32 %v2179, %v2197
  %2199 = vdwg.mxu0
  %2200 = vmatpush.bf16.msra.mxu0 %v1534
  %2201 = vmatpush.bf16.msra.mxu0 %v1529
  %2202 = vmatpush.bf16.msra.mxu0 %v1524
  %2203 = vmatpush.bf16.msra.mxu0 %v1519
  %2204 = vmatpush.bf16.msra.mxu0 %v1514
  %2205 = vmatpush.bf16.msra.mxu0 %v1509
  %2206 = vmatpush.bf16.msra.mxu0 %v1504
  %2207 = vmatpush.bf16.msra.mxu0 %v1499
  %2208 = vmatmul.bf16.gmra.mxu0 %v603
  %v2209 = vpop.f32.mrf.mxu0
  %v2210 = vadd.f32 %v2191, %v2209
  %v2211 = vpop.f32.mrf.mxu0
  %v2212 = vadd.f32 %v2193, %v2211
  %2213 = vmatmul.bf16.gmra.mxu0 %v608
  %v2214 = vpop.f32.mrf.mxu0
  %v2215 = vadd.f32 %v2196, %v2214
  %v2216 = vpop.f32.mrf.mxu0
  %v2217 = vadd.f32 %v2198, %v2216
  %2218 = vdwg.mxu0
  %2219 = vmatpush.bf16.msra.mxu0 %v1574
  %2220 = vmatpush.bf16.msra.mxu0 %v1569
  %2221 = vmatpush.bf16.msra.mxu0 %v1564
  %2222 = vmatpush.bf16.msra.mxu0 %v1559
  %2223 = vmatpush.bf16.msra.mxu0 %v1554
  %2224 = vmatpush.bf16.msra.mxu0 %v1549
  %2225 = vmatpush.bf16.msra.mxu0 %v1544
  %2226 = vmatpush.bf16.msra.mxu0 %v1539
  %2227 = vmatmul.bf16.gmra.mxu0 %v604
  %v2228 = vpop.f32.mrf.mxu0
  %v2229 = vadd.f32 %v2210, %v2228
  %v2230 = vpop.f32.mrf.mxu0
  %v2231 = vadd.f32 %v2212, %v2230
  %2232 = vmatmul.bf16.gmra.mxu0 %v609
  %v2233 = vpop.f32.mrf.mxu0
  %v2234 = vadd.f32 %v2215, %v2233
  %v2235 = vpop.f32.mrf.mxu0
  %v2236 = vadd.f32 %v2217, %v2235
  %2237 = vdwg.mxu0
  %2238 = vmatpush.bf16.msra.mxu0 0
  %2239 = vmatpush.bf16.msra.mxu0 0
  %2240 = vmatpush.bf16.msra.mxu0 0
  %2241 = vmatpush.bf16.msra.mxu0 0
  %2242 = vmatpush.bf16.msra.mxu0 %v1594
  %2243 = vmatpush.bf16.msra.mxu0 %v1589
  %2244 = vmatpush.bf16.msra.mxu0 %v1584
  %2245 = vmatpush.bf16.msra.mxu0 %v1579
  %2246 = vmatmul.bf16.gmra.mxu0 %v1777
  %v2247 = vpop.f32.mrf.mxu0
  %v2248 = vadd.f32 %v2229, %v2247
  %v2249 = vpop.f32.mrf.mxu0
  %v2250 = vadd.f32 %v2231, %v2249
  %2251 = vmatmul.bf16.gmra.mxu0 %v1780
  %v2252 = vpop.f32.mrf.mxu0
  %v2253 = vadd.f32 %v2234, %v2252
  %v2254 = vpop.f32.mrf.mxu0
  %v2255 = vadd.f32 %v2236, %v2254
  %2256 = vdwg.mxu0
  %v2257 = vmax.f32 %v1868, 0.0
  %v2258 = vmax.f32 %v1963, 0.0
  %v2259 = vmax.f32 %v2058, 0.0
  %v2260 = vmax.f32 %v2153, 0.0
  %v2261 = vmax.f32 %v2248, 0.0
  %v2262 = vmax.f32 %v1870, 0.0
  %v2263 = vmax.f32 %v1965, 0.0
  %v2264 = vmax.f32 %v2060, 0.0
  %v2265 = vmax.f32 %v2155, 0.0
  %v2266 = vmax.f32 %v2250, 0.0
  %v2267 = vmax.f32 %v1873, 0.0
  %v2268 = vmax.f32 %v1968, 0.0
  %v2269 = vmax.f32 %v2063, 0.0
  %v2270 = vmax.f32 %v2158, 0.0
  %v2271 = vmax.f32 %v2253, 0.0
  %v2272 = vmax.f32 %v1875, 0.0
  %v2273 = vmax.f32 %v1970, 0.0
  %v2274 = vmax.f32 %v2065, 0.0
  %v2275 = vmax.f32 %v2160, 0.0
  %v2276 = vmax.f32 %v2255, 0.0
  %2277 = vst [vmem:[%s4] sm:$0xff] %v2257
  %2278 = vst [vmem:[%s4 + $0x8] sm:$0xff] %v2258
  %2279 = vst [vmem:[%s4 + $0x10] sm:$0xff] %v2259
  %2280 = vst [vmem:[%s4 + $0x18] sm:$0xff] %v2260
  %2281 = vst.msk [vmem:[%s4 + $0x20] sm:$0xff] %vm1775, %v2261
  %2282 = vst [vmem:[%s4 + $0x28] sm:$0xff] %v2262
  %2283 = vst [vmem:[%s4 + $0x30] sm:$0xff] %v2263
  %2284 = vst [vmem:[%s4 + $0x38] sm:$0xff] %v2264
  %2285 = vst [vmem:[%s4 + $0x40] sm:$0xff] %v2265
  %2286 = vst.msk [vmem:[%s4 + $0x48] sm:$0xff] %vm1775, %v2266
  %2287 = vst [vmem:[%s4 + $0x50] sm:$0xff] %v2267
  %2288 = vst [vmem:[%s4 + $0x58] sm:$0xff] %v2268
  %2289 = vst [vmem:[%s4 + $0x60] sm:$0xff] %v2269
  %2290 = vst [vmem:[%s4 + $0x68] sm:$0xff] %v2270
  %2291 = vst.msk [vmem:[%s4 + $0x70] sm:$0xff] %vm1775, %v2271
  %2292 = vst [vmem:[%s4 + $0x78] sm:$0xff] %v2272
  %2293 = vst [vmem:[%s4 + $0x80] sm:$0xff] %v2273
  %2294 = vst [vmem:[%s4 + $0x88] sm:$0xff] %v2274
  %2295 = vst [vmem:[%s4 + $0x90] sm:$0xff] %v2275
  %2296 = vst.msk [vmem:[%s4 + $0x98] sm:$0xff] %vm1775, %v2276
  // Predicated region
  $region18: #{mpii_1_forward.26} parent=0 // pred_check
    _
  $region19: #{mpii_1_forward.26} parent=0 // pred_check_branch
    %2298 = sbr.rel (0) target = $region21
  $region20: #{mpii_1_forward.26} parent=0 // pred_region
    _
  $region21: #{mpii_1_forward.26} parent=0 // pred_fallthru
    _
  // Predicated region
  $region22: #{mpii_1_forward.26} parent=0 // pred_check
    _
  $region23: #{mpii_1_forward.26} parent=0 // pred_check_branch
    %2300 = sbr.rel (0) target = $region25
  $region24: #{mpii_1_forward.26} parent=0 // pred_region
    _
  $region25: #{mpii_1_forward.26} parent=0 // pred_fallthru
    _

</llo_original>
